<compile_context>
chip_gen: v7x
topology: tpu7x:2x2x1
jax: 0.10.0
libtpu: 0.0.40
codegen_flags: <defaults>
</compile_context>

<pallas_src>
import jax
import jax.numpy as jnp
from jax import lax
from jax.experimental import pallas as pl
from jax.experimental.pallas import tpu as pltpu

C_PAD = 128          # lane-dense channel padding used for every layer's output lanes


# ---------------------------------------------------------------------------
# The single fused Pallas kernel (one sample per grid step)
# ---------------------------------------------------------------------------
def _fused_net_kernel(p1_ref, w1_ref, b1_ref, g2_ref, w2_ref, b2_ref,
                      wf1_ref, bf1_ref, wf2_ref, bf2_ref, out_ref):
    f32, bf16 = jnp.float32, jnp.bfloat16

    # ---- conv1 (5x5, 1->10) as one im2col matmul; patch rows are pre-ordered as
    #      [pool-tap 0 | tap 1 | tap 2 | tap 3], 144 rows (12x12 positions) each.
    y1 = jnp.dot(p1_ref[0], w1_ref[...], preferred_element_type=f32) + b1_ref[...]  # (576,128)

    # ---- 2x2/2 max-pool + ReLU: taps are contiguous row blocks -> slices + maximum.
    a1 = jnp.maximum(jnp.maximum(y1[0:144], y1[144:288]),
                     jnp.maximum(y1[288:432], y1[432:576]))
    a1 = jnp.maximum(a1, 0.0).astype(bf16)                                   # (144,128)

    # ---- conv2 (5x5, 10->20): gather all 25 taps with ONE constant 0/1 selection matmul
    #      (row order = tap-major, with pool2 taps folded in), then 25 accumulating matmuls.
    # TODO(synk): Dropout2d is identity (eval mode); training-mode channel dropout not implemented.
    p2 = jnp.dot(g2_ref[...], a1, preferred_element_type=f32).astype(bf16)   # (1600,128)
    acc2 = jnp.zeros((64, C_PAD), f32)
    for k in range(25):
        acc2 = acc2 + jnp.dot(p2[k * 64:(k + 1) * 64], w2_ref[k],
                              preferred_element_type=f32)
    y2 = acc2 + b2_ref[...]                                                  # (64,128)

    # ---- 2x2/2 max-pool + ReLU (pool2 taps are contiguous 16-row blocks).
    a2 = jnp.maximum(jnp.maximum(y2[0:16], y2[16:32]),
                     jnp.maximum(y2[32:48], y2[48:64]))
    a2 = jnp.maximum(a2, 0.0).astype(bf16)                                   # (16,128)

    # ---- fc1 = Conv2d(20, 10, kernel 4): full 4x4 x 20 contraction as 16 accumulating
    #      matmuls (one per spatial tap), then ReLU.
    acc3 = jnp.zeros((1, C_PAD), f32)
    for s in range(16):
        acc3 = acc3 + jnp.dot(a2[s:s + 1], wf1_ref[s], preferred_element_type=f32)
    a3 = jnp.maximum(acc3 + bf1_ref[...], 0.0).astype(bf16)                  # (1,128)

    # ---- fc2 = Conv2d(10, 10, 1) + log_softmax over the 10 real class lanes.
    z = jnp.dot(a3, wf2_ref[...], preferred_element_type=f32) + bf2_ref[...]  # (1,128)
    lane = lax.broadcasted_iota(jnp.int32, (1, C_PAD), 1)
    mask = lane < 10
    zmax = jnp.max(jnp.where(mask, z, -jnp.inf), axis=-1, keepdims=True)
    ez = jnp.where(mask, jnp.exp(z - zmax), 0.0)
    lse = jnp.log(jnp.sum(ez, axis=-1, keepdims=True))
    out_ref[0] = jnp.where(mask, z - zmax - lse, 0.0)


# ---------------------------------------------------------------------------
# Host-side constant preparation (tiny, one-time layout work)
# ---------------------------------------------------------------------------
def _prepare_operands(params):
    bf16, f32 = jnp.bfloat16, jnp.float32

    # conv1: (25, 128); rows = ky*5+kx, cols = out-channel (zero-padded to 128 lanes).
    w1 = params["conv1_w"].reshape(10, 25).T
    w1 = jnp.zeros((25, C_PAD), bf16).at[:, :10].set(w1.astype(bf16))
    b1 = jnp.zeros((1, C_PAD), f32).at[0, :10].set(params["conv1_b"])

    # conv2: (25, 128, 128); [ky*5+kx, ci(pad), co(pad)].
    w2 = params["conv2_w"].transpose(2, 3, 1, 0).reshape(25, 10, 20)
    w2 = jnp.zeros((25, C_PAD, C_PAD), bf16).at[:, :10, :20].set(w2.astype(bf16))
    b2 = jnp.zeros((1, C_PAD), f32).at[0, :20].set(params["conv2_b"])

    # fc1 (Conv2d(20,10,4)): (16, 128, 128); [s = a*4+b, ci(pad), co(pad)].
    wf1 = params["fc1_w"].transpose(2, 3, 1, 0).reshape(16, 20, 10)
    wf1 = jnp.zeros((16, C_PAD, C_PAD), bf16).at[:, :20, :10].set(wf1.astype(bf16))
    bf1 = jnp.zeros((1, C_PAD), f32).at[0, :10].set(params["fc1_b"])

    # fc2 (Conv2d(10,10,1)): (128, 128); [ci(pad), co(pad)].
    wf2 = params["fc2_w"].reshape(10, 10).T
    wf2 = jnp.zeros((C_PAD, C_PAD), bf16).at[:10, :10].set(wf2.astype(bf16))
    bf2 = jnp.zeros((1, C_PAD), f32).at[0, :10].set(params["fc2_b"])

    # conv2 patch-selection matrix G2: (1600, 144) 0/1.  Row (k*64 + t*16 + q) selects the
    # pooled 12x12 pixel feeding conv2 tap k=(ky,kx) at conv2 output position
    # (2*(q//4)+dy_t, 2*(q%4)+dx_t), i.e. pool2's taps are folded into the row order.
    k = jnp.arange(25); t = jnp.arange(4); q = jnp.arange(16)
    ky, kx = (k // 5)[:, None, None], (k % 5)[:, None, None]
    dy, dx = (t // 2)[None, :, None], (t % 2)[None, :, None]
    i2, j2 = (q // 4)[None, None, :], (q % 4)[None, None, :]
    src = ((2 * i2 + dy + ky) * 12 + (2 * j2 + dx + kx)).reshape(1600)
    g2 = (src[:, None] == jnp.arange(144)[None, :]).astype(bf16)

    return w1, b1, g2, w2, b2, wf1, bf1, wf2, bf2


def _build_patches(x):
    """conv1 im2col: (N,1,28,28) -> (N, 576, 25) bf16.

    Row order = (pool-tap t, pooled position r in 12x12 row-major); feature order = ky*5+kx.
    """
    n = x.shape[0]
    img = x.reshape(n, 28, 28)
    t = jnp.arange(4); r = jnp.arange(144); k = jnp.arange(25)
    dy, dx = (t // 2)[:, None, None], (t % 2)[:, None, None]
    i, j = (r // 12)[None, :, None], (r % 12)[None, :, None]
    ky, kx = (k // 5)[None, None, :], (k % 5)[None, None, :]
    rows = 2 * i + dy + ky                      # (4, 144, 25)
    cols = 2 * j + dx + kx
    p1 = img[:, rows, cols]                     # (N, 4, 144, 25)
    return p1.reshape(n, 576, 25).astype(jnp.bfloat16)


# ---------------------------------------------------------------------------
# Fused forward pass
# ---------------------------------------------------------------------------
def net_forward(x, params):
    """Pallas implementation of Net.forward. x: (N, 1, 28, 28) f32 -> (N, 10, 1, 1)."""
    assert x.shape[1:] == (1, 28, 28), x.shape
    n = x.shape[0]
    p1 = _build_patches(x)
    ops = _prepare_operands(params)

    in_specs = [pl.BlockSpec((1, 576, 25), lambda i: (i, 0, 0))]
    for a in ops:                               # constants: resident, DMA'd once
        nd = a.ndim
        in_specs.append(pl.BlockSpec(a.shape, (lambda i, _nd=nd: (0,) * _nd)))

    out = pl.pallas_call(
        _fused_net_kernel,
        out_shape=jax.ShapeDtypeStruct((n, 1, C_PAD), jnp.float32),
        grid=(n,),
        in_specs=in_specs,
        out_specs=pl.BlockSpec((1, 1, C_PAD), lambda i: (i, 0, 0)),
        compiler_params=pltpu.CompilerParams(
            dimension_semantics=("parallel",),
            vmem_limit_bytes=32 * 1024 * 1024),
    )(p1, *ops)

    return out[:, 0, :10].reshape(n, 10, 1, 1)


# ---------------------------------------------------------------------------
# Pure-JAX reference (f32, highest precision) for a sanity check
# ---------------------------------------------------------------------------
def net_forward_ref(x, params):
    dn = ("NCHW", "OIHW", "NCHW")
    conv = lambda a, w, b: lax.conv_general_dilated(
        a, w, (1, 1), "VALID", dimension_numbers=dn,
        precision=lax.Precision.HIGHEST) + b.reshape(1, -1, 1, 1)
    pool = lambda a: lax.reduce_window(a, -jnp.inf, lax.max,
                                       (1, 1, 2, 2), (1, 1, 2, 2), "VALID")
    y = jnp.maximum(pool(conv(x, params["conv1_w"], params["conv1_b"])), 0.0)
    y = jnp.maximum(pool(conv(y, params["conv2_w"], params["conv2_b"])), 0.0)
    y = jnp.maximum(conv(y, params["fc1_w"], params["fc1_b"]), 0.0)
    y = conv(y, params["fc2_w"], params["fc2_b"])
    return jax.nn.log_softmax(y, axis=1)


# ---------------------------------------------------------------------------
if __name__ == "__main__":
    key = jax.random.PRNGKey(0)
    ks = jax.random.split(key, 9)
    params = {
        "conv1_w": 0.1 * jax.random.normal(ks[0], (10, 1, 5, 5), jnp.float32),
        "conv1_b": 0.1 * jax.random.normal(ks[1], (10,), jnp.float32),
        "conv2_w": 0.1 * jax.random.normal(ks[2], (20, 10, 5, 5), jnp.float32),
        "conv2_b": 0.1 * jax.random.normal(ks[3], (20,), jnp.float32),
        "fc1_w":   0.1 * jax.random.normal(ks[4], (10, 20, 4, 4), jnp.float32),
        "fc1_b":   0.1 * jax.random.normal(ks[5], (10,), jnp.float32),
        "fc2_w":   0.1 * jax.random.normal(ks[6], (10, 10, 1, 1), jnp.float32),
        "fc2_b":   0.1 * jax.random.normal(ks[7], (10,), jnp.float32),
    }
    # MNIST-style input implied by the module (28x28 -> 24 -> 12 -> 8 -> 4 -> 1).
    x = jax.random.normal(ks[8], (2, 1, 28, 28), jnp.float32)

    out = jax.block_until_ready(jax.jit(net_forward)(x, params))
    ref = jax.block_until_ready(net_forward_ref(x, params))

    assert out.shape == (2, 10, 1, 1), out.shape
    # bf16 MXU operands (f32 accumulation) -> slightly looser tolerance than pure f32.
    assert jnp.allclose(out, ref, rtol=5e-2, atol=1e-1), (
        f"max abs diff {jnp.max(jnp.abs(out - ref))}")
    print("KERNEL_OK")
</pallas_src>

<mosaic_0001>
module attributes {stable_mosaic.version = 11 : i64} {
  func.func @_fused_net_kernel(%arg0: i32, %arg1: memref<1x576x25xbf16, #tpu.memory_space<vmem>>, %arg2: memref<25x128xbf16, #tpu.memory_space<vmem>>, %arg3: memref<1x128xf32, #tpu.memory_space<vmem>>, %arg4: memref<1600x144xbf16, #tpu.memory_space<vmem>>, %arg5: memref<25x128x128xbf16, #tpu.memory_space<vmem>>, %arg6: memref<1x128xf32, #tpu.memory_space<vmem>>, %arg7: memref<16x128x128xbf16, #tpu.memory_space<vmem>>, %arg8: memref<1x128xf32, #tpu.memory_space<vmem>>, %arg9: memref<128x128xbf16, #tpu.memory_space<vmem>>, %arg10: memref<1x128xf32, #tpu.memory_space<vmem>>, %arg11: memref<1x1x128xf32, #tpu.memory_space<vmem>>) attributes {dimension_semantics = [#tpu.dimension_semantics<parallel>], iteration_bounds = array<i64: 2>, scalar_prefetch = 0 : i64, scratch_operands = 0 : i64, tpu.core_type = #tpu.core_type<tc>, window_params = [{transform_indices = @transform_0, window_bounds = array<i64: 1, 576, 25>}, {pipeline_mode = #tpu.pipeline_mode<synchronous>, transform_indices = @transform_1, window_bounds = array<i64: 25, 128>}, {pipeline_mode = #tpu.pipeline_mode<synchronous>, transform_indices = @transform_2, window_bounds = array<i64: 1, 128>}, {pipeline_mode = #tpu.pipeline_mode<synchronous>, transform_indices = @transform_3, window_bounds = array<i64: 1600, 144>}, {pipeline_mode = #tpu.pipeline_mode<synchronous>, transform_indices = @transform_4, window_bounds = array<i64: 25, 128, 128>}, {pipeline_mode = #tpu.pipeline_mode<synchronous>, transform_indices = @transform_5, window_bounds = array<i64: 1, 128>}, {pipeline_mode = #tpu.pipeline_mode<synchronous>, transform_indices = @transform_6, window_bounds = array<i64: 16, 128, 128>}, {pipeline_mode = #tpu.pipeline_mode<synchronous>, transform_indices = @transform_7, window_bounds = array<i64: 1, 128>}, {pipeline_mode = #tpu.pipeline_mode<synchronous>, transform_indices = @transform_8, window_bounds = array<i64: 128, 128>}, {pipeline_mode = #tpu.pipeline_mode<synchronous>, transform_indices = @transform_9, window_bounds = array<i64: 1, 128>}, {transform_indices = @transform_10, window_bounds = array<i64: 1, 1, 128>}]} {
    %c0 = arith.constant 0 : index
    %c0_0 = arith.constant 0 : index
    %c0_1 = arith.constant 0 : index
    %0 = vector.load %arg1[%c0, %c0_0, %c0_1] : memref<1x576x25xbf16, #tpu.memory_space<vmem>>, vector<1x576x25xbf16>
    %1 = vector.shape_cast %0 : vector<1x576x25xbf16> to vector<576x25xbf16>
    %c0_2 = arith.constant 0 : index
    %c0_3 = arith.constant 0 : index
    %2 = vector.load %arg2[%c0_2, %c0_3] : memref<25x128xbf16, #tpu.memory_space<vmem>>, vector<25x128xbf16>
    %cst = arith.constant dense<0.000000e+00> : vector<576x128xf32>
    %3 = tpu.matmul %1, %2, %cst {dimension_numbers = #tpu.dot_dimension_numbers<[1], [0], [0], [1], [0, 0, 1, 1], [], []>} : vector<576x25xbf16>, vector<25x128xbf16>, vector<576x128xf32> -> vector<576x128xf32>
    %c0_4 = arith.constant 0 : index
    %c0_5 = arith.constant 0 : index
    %4 = vector.load %arg3[%c0_4, %c0_5] : memref<1x128xf32, #tpu.memory_space<vmem>>, vector<1x128xf32>
    %5 = vector.broadcast %4 : vector<1x128xf32> to vector<576x128xf32>
    %6 = arith.addf %3, %5 : vector<576x128xf32>
    %7 = vector.extract_strided_slice %6 {offsets = [0, 0], sizes = [144, 128], strides = [1, 1]} : vector<576x128xf32> to vector<144x128xf32>
    %8 = vector.extract_strided_slice %6 {offsets = [144, 0], sizes = [144, 128], strides = [1, 1]} : vector<576x128xf32> to vector<144x128xf32>
    %9 = arith.maximumf %7, %8 : vector<144x128xf32>
    %10 = vector.extract_strided_slice %6 {offsets = [288, 0], sizes = [144, 128], strides = [1, 1]} : vector<576x128xf32> to vector<144x128xf32>
    %11 = vector.extract_strided_slice %6 {offsets = [432, 0], sizes = [144, 128], strides = [1, 1]} : vector<576x128xf32> to vector<144x128xf32>
    %12 = arith.maximumf %10, %11 : vector<144x128xf32>
    %13 = arith.maximumf %9, %12 : vector<144x128xf32>
    %cst_6 = arith.constant 0.000000e+00 : f32
    %14 = vector.broadcast %cst_6 : f32 to vector<144x128xf32>
    %15 = arith.maximumf %13, %14 : vector<144x128xf32>
    %16 = arith.truncf %15 : vector<144x128xf32> to vector<144x128xbf16>
    %c0_7 = arith.constant 0 : index
    %c0_8 = arith.constant 0 : index
    %17 = vector.load %arg4[%c0_7, %c0_8] : memref<1600x144xbf16, #tpu.memory_space<vmem>>, vector<1600x144xbf16>
    %cst_9 = arith.constant dense<0.000000e+00> : vector<1600x128xf32>
    %18 = tpu.matmul %17, %16, %cst_9 {dimension_numbers = #tpu.dot_dimension_numbers<[1], [0], [0], [1], [0, 0, 1, 1], [], []>} : vector<1600x144xbf16>, vector<144x128xbf16>, vector<1600x128xf32> -> vector<1600x128xf32>
    %19 = arith.truncf %18 : vector<1600x128xf32> to vector<1600x128xbf16>
    %cst_10 = arith.constant 0.000000e+00 : f32
    %20 = vector.broadcast %cst_10 : f32 to vector<64x128xf32>
    %21 = vector.extract_strided_slice %19 {offsets = [0, 0], sizes = [64, 128], strides = [1, 1]} : vector<1600x128xbf16> to vector<64x128xbf16>
    %c0_11 = arith.constant 0 : index
    %c0_12 = arith.constant 0 : index
    %c0_13 = arith.constant 0 : index
    %22 = vector.load %arg5[%c0_11, %c0_12, %c0_13] : memref<25x128x128xbf16, #tpu.memory_space<vmem>>, vector<1x128x128xbf16>
    %23 = vector.shape_cast %22 : vector<1x128x128xbf16> to vector<128x128xbf16>
    %cst_14 = arith.constant dense<0.000000e+00> : vector<64x128xf32>
    %24 = tpu.matmul %21, %23, %cst_14 {dimension_numbers = #tpu.dot_dimension_numbers<[1], [0], [0], [1], [0, 0, 1, 1], [], []>} : vector<64x128xbf16>, vector<128x128xbf16>, vector<64x128xf32> -> vector<64x128xf32>
    %25 = arith.addf %20, %24 : vector<64x128xf32>
    %26 = vector.extract_strided_slice %19 {offsets = [64, 0], sizes = [64, 128], strides = [1, 1]} : vector<1600x128xbf16> to vector<64x128xbf16>
    %c1 = arith.constant 1 : index
    %c0_15 = arith.constant 0 : index
    %c0_16 = arith.constant 0 : index
    %27 = vector.load %arg5[%c1, %c0_15, %c0_16] : memref<25x128x128xbf16, #tpu.memory_space<vmem>>, vector<1x128x128xbf16>
    %28 = vector.shape_cast %27 : vector<1x128x128xbf16> to vector<128x128xbf16>
    %cst_17 = arith.constant dense<0.000000e+00> : vector<64x128xf32>
    %29 = tpu.matmul %26, %28, %cst_17 {dimension_numbers = #tpu.dot_dimension_numbers<[1], [0], [0], [1], [0, 0, 1, 1], [], []>} : vector<64x128xbf16>, vector<128x128xbf16>, vector<64x128xf32> -> vector<64x128xf32>
    %30 = arith.addf %25, %29 : vector<64x128xf32>
    %31 = vector.extract_strided_slice %19 {offsets = [128, 0], sizes = [64, 128], strides = [1, 1]} : vector<1600x128xbf16> to vector<64x128xbf16>
    %c2 = arith.constant 2 : index
    %c0_18 = arith.constant 0 : index
    %c0_19 = arith.constant 0 : index
    %32 = vector.load %arg5[%c2, %c0_18, %c0_19] : memref<25x128x128xbf16, #tpu.memory_space<vmem>>, vector<1x128x128xbf16>
    %33 = vector.shape_cast %32 : vector<1x128x128xbf16> to vector<128x128xbf16>
    %cst_20 = arith.constant dense<0.000000e+00> : vector<64x128xf32>
    %34 = tpu.matmul %31, %33, %cst_20 {dimension_numbers = #tpu.dot_dimension_numbers<[1], [0], [0], [1], [0, 0, 1, 1], [], []>} : vector<64x128xbf16>, vector<128x128xbf16>, vector<64x128xf32> -> vector<64x128xf32>
    %35 = arith.addf %30, %34 : vector<64x128xf32>
    %36 = vector.extract_strided_slice %19 {offsets = [192, 0], sizes = [64, 128], strides = [1, 1]} : vector<1600x128xbf16> to vector<64x128xbf16>
    %c3 = arith.constant 3 : index
    %c0_21 = arith.constant 0 : index
    %c0_22 = arith.constant 0 : index
    %37 = vector.load %arg5[%c3, %c0_21, %c0_22] : memref<25x128x128xbf16, #tpu.memory_space<vmem>>, vector<1x128x128xbf16>
    %38 = vector.shape_cast %37 : vector<1x128x128xbf16> to vector<128x128xbf16>
    %cst_23 = arith.constant dense<0.000000e+00> : vector<64x128xf32>
    %39 = tpu.matmul %36, %38, %cst_23 {dimension_numbers = #tpu.dot_dimension_numbers<[1], [0], [0], [1], [0, 0, 1, 1], [], []>} : vector<64x128xbf16>, vector<128x128xbf16>, vector<64x128xf32> -> vector<64x128xf32>
    %40 = arith.addf %35, %39 : vector<64x128xf32>
    %41 = vector.extract_strided_slice %19 {offsets = [256, 0], sizes = [64, 128], strides = [1, 1]} : vector<1600x128xbf16> to vector<64x128xbf16>
    %c4 = arith.constant 4 : index
    %c0_24 = arith.constant 0 : index
    %c0_25 = arith.constant 0 : index
    %42 = vector.load %arg5[%c4, %c0_24, %c0_25] : memref<25x128x128xbf16, #tpu.memory_space<vmem>>, vector<1x128x128xbf16>
    %43 = vector.shape_cast %42 : vector<1x128x128xbf16> to vector<128x128xbf16>
    %cst_26 = arith.constant dense<0.000000e+00> : vector<64x128xf32>
    %44 = tpu.matmul %41, %43, %cst_26 {dimension_numbers = #tpu.dot_dimension_numbers<[1], [0], [0], [1], [0, 0, 1, 1], [], []>} : vector<64x128xbf16>, vector<128x128xbf16>, vector<64x128xf32> -> vector<64x128xf32>
    %45 = arith.addf %40, %44 : vector<64x128xf32>
    %46 = vector.extract_strided_slice %19 {offsets = [320, 0], sizes = [64, 128], strides = [1, 1]} : vector<1600x128xbf16> to vector<64x128xbf16>
    %c5 = arith.constant 5 : index
    %c0_27 = arith.constant 0 : index
    %c0_28 = arith.constant 0 : index
    %47 = vector.load %arg5[%c5, %c0_27, %c0_28] : memref<25x128x128xbf16, #tpu.memory_space<vmem>>, vector<1x128x128xbf16>
    %48 = vector.shape_cast %47 : vector<1x128x128xbf16> to vector<128x128xbf16>
    %cst_29 = arith.constant dense<0.000000e+00> : vector<64x128xf32>
    %49 = tpu.matmul %46, %48, %cst_29 {dimension_numbers = #tpu.dot_dimension_numbers<[1], [0], [0], [1], [0, 0, 1, 1], [], []>} : vector<64x128xbf16>, vector<128x128xbf16>, vector<64x128xf32> -> vector<64x128xf32>
    %50 = arith.addf %45, %49 : vector<64x128xf32>
    %51 = vector.extract_strided_slice %19 {offsets = [384, 0], sizes = [64, 128], strides = [1, 1]} : vector<1600x128xbf16> to vector<64x128xbf16>
    %c6 = arith.constant 6 : index
    %c0_30 = arith.constant 0 : index
    %c0_31 = arith.constant 0 : index
    %52 = vector.load %arg5[%c6, %c0_30, %c0_31] : memref<25x128x128xbf16, #tpu.memory_space<vmem>>, vector<1x128x128xbf16>
    %53 = vector.shape_cast %52 : vector<1x128x128xbf16> to vector<128x128xbf16>
    %cst_32 = arith.constant dense<0.000000e+00> : vector<64x128xf32>
    %54 = tpu.matmul %51, %53, %cst_32 {dimension_numbers = #tpu.dot_dimension_numbers<[1], [0], [0], [1], [0, 0, 1, 1], [], []>} : vector<64x128xbf16>, vector<128x128xbf16>, vector<64x128xf32> -> vector<64x128xf32>
    %55 = arith.addf %50, %54 : vector<64x128xf32>
    %56 = vector.extract_strided_slice %19 {offsets = [448, 0], sizes = [64, 128], strides = [1, 1]} : vector<1600x128xbf16> to vector<64x128xbf16>
    %c7 = arith.constant 7 : index
    %c0_33 = arith.constant 0 : index
    %c0_34 = arith.constant 0 : index
    %57 = vector.load %arg5[%c7, %c0_33, %c0_34] : memref<25x128x128xbf16, #tpu.memory_space<vmem>>, vector<1x128x128xbf16>
    %58 = vector.shape_cast %57 : vector<1x128x128xbf16> to vector<128x128xbf16>
    %cst_35 = arith.constant dense<0.000000e+00> : vector<64x128xf32>
    %59 = tpu.matmul %56, %58, %cst_35 {dimension_numbers = #tpu.dot_dimension_numbers<[1], [0], [0], [1], [0, 0, 1, 1], [], []>} : vector<64x128xbf16>, vector<128x128xbf16>, vector<64x128xf32> -> vector<64x128xf32>
    %60 = arith.addf %55, %59 : vector<64x128xf32>
    %61 = vector.extract_strided_slice %19 {offsets = [512, 0], sizes = [64, 128], strides = [1, 1]} : vector<1600x128xbf16> to vector<64x128xbf16>
    %c8 = arith.constant 8 : index
    %c0_36 = arith.constant 0 : index
    %c0_37 = arith.constant 0 : index
    %62 = vector.load %arg5[%c8, %c0_36, %c0_37] : memref<25x128x128xbf16, #tpu.memory_space<vmem>>, vector<1x128x128xbf16>
    %63 = vector.shape_cast %62 : vector<1x128x128xbf16> to vector<128x128xbf16>
    %cst_38 = arith.constant dense<0.000000e+00> : vector<64x128xf32>
    %64 = tpu.matmul %61, %63, %cst_38 {dimension_numbers = #tpu.dot_dimension_numbers<[1], [0], [0], [1], [0, 0, 1, 1], [], []>} : vector<64x128xbf16>, vector<128x128xbf16>, vector<64x128xf32> -> vector<64x128xf32>
    %65 = arith.addf %60, %64 : vector<64x128xf32>
    %66 = vector.extract_strided_slice %19 {offsets = [576, 0], sizes = [64, 128], strides = [1, 1]} : vector<1600x128xbf16> to vector<64x128xbf16>
    %c9 = arith.constant 9 : index
    %c0_39 = arith.constant 0 : index
    %c0_40 = arith.constant 0 : index
    %67 = vector.load %arg5[%c9, %c0_39, %c0_40] : memref<25x128x128xbf16, #tpu.memory_space<vmem>>, vector<1x128x128xbf16>
    %68 = vector.shape_cast %67 : vector<1x128x128xbf16> to vector<128x128xbf16>
    %cst_41 = arith.constant dense<0.000000e+00> : vector<64x128xf32>
    %69 = tpu.matmul %66, %68, %cst_41 {dimension_numbers = #tpu.dot_dimension_numbers<[1], [0], [0], [1], [0, 0, 1, 1], [], []>} : vector<64x128xbf16>, vector<128x128xbf16>, vector<64x128xf32> -> vector<64x128xf32>
    %70 = arith.addf %65, %69 : vector<64x128xf32>
    %71 = vector.extract_strided_slice %19 {offsets = [640, 0], sizes = [64, 128], strides = [1, 1]} : vector<1600x128xbf16> to vector<64x128xbf16>
    %c10 = arith.constant 10 : index
    %c0_42 = arith.constant 0 : index
    %c0_43 = arith.constant 0 : index
    %72 = vector.load %arg5[%c10, %c0_42, %c0_43] : memref<25x128x128xbf16, #tpu.memory_space<vmem>>, vector<1x128x128xbf16>
    %73 = vector.shape_cast %72 : vector<1x128x128xbf16> to vector<128x128xbf16>
    %cst_44 = arith.constant dense<0.000000e+00> : vector<64x128xf32>
    %74 = tpu.matmul %71, %73, %cst_44 {dimension_numbers = #tpu.dot_dimension_numbers<[1], [0], [0], [1], [0, 0, 1, 1], [], []>} : vector<64x128xbf16>, vector<128x128xbf16>, vector<64x128xf32> -> vector<64x128xf32>
    %75 = arith.addf %70, %74 : vector<64x128xf32>
    %76 = vector.extract_strided_slice %19 {offsets = [704, 0], sizes = [64, 128], strides = [1, 1]} : vector<1600x128xbf16> to vector<64x128xbf16>
    %c11 = arith.constant 11 : index
    %c0_45 = arith.constant 0 : index
    %c0_46 = arith.constant 0 : index
    %77 = vector.load %arg5[%c11, %c0_45, %c0_46] : memref<25x128x128xbf16, #tpu.memory_space<vmem>>, vector<1x128x128xbf16>
    %78 = vector.shape_cast %77 : vector<1x128x128xbf16> to vector<128x128xbf16>
    %cst_47 = arith.constant dense<0.000000e+00> : vector<64x128xf32>
    %79 = tpu.matmul %76, %78, %cst_47 {dimension_numbers = #tpu.dot_dimension_numbers<[1], [0], [0], [1], [0, 0, 1, 1], [], []>} : vector<64x128xbf16>, vector<128x128xbf16>, vector<64x128xf32> -> vector<64x128xf32>
    %80 = arith.addf %75, %79 : vector<64x128xf32>
    %81 = vector.extract_strided_slice %19 {offsets = [768, 0], sizes = [64, 128], strides = [1, 1]} : vector<1600x128xbf16> to vector<64x128xbf16>
    %c12 = arith.constant 12 : index
    %c0_48 = arith.constant 0 : index
    %c0_49 = arith.constant 0 : index
    %82 = vector.load %arg5[%c12, %c0_48, %c0_49] : memref<25x128x128xbf16, #tpu.memory_space<vmem>>, vector<1x128x128xbf16>
    %83 = vector.shape_cast %82 : vector<1x128x128xbf16> to vector<128x128xbf16>
    %cst_50 = arith.constant dense<0.000000e+00> : vector<64x128xf32>
    %84 = tpu.matmul %81, %83, %cst_50 {dimension_numbers = #tpu.dot_dimension_numbers<[1], [0], [0], [1], [0, 0, 1, 1], [], []>} : vector<64x128xbf16>, vector<128x128xbf16>, vector<64x128xf32> -> vector<64x128xf32>
    %85 = arith.addf %80, %84 : vector<64x128xf32>
    %86 = vector.extract_strided_slice %19 {offsets = [832, 0], sizes = [64, 128], strides = [1, 1]} : vector<1600x128xbf16> to vector<64x128xbf16>
    %c13 = arith.constant 13 : index
    %c0_51 = arith.constant 0 : index
    %c0_52 = arith.constant 0 : index
    %87 = vector.load %arg5[%c13, %c0_51, %c0_52] : memref<25x128x128xbf16, #tpu.memory_space<vmem>>, vector<1x128x128xbf16>
    %88 = vector.shape_cast %87 : vector<1x128x128xbf16> to vector<128x128xbf16>
    %cst_53 = arith.constant dense<0.000000e+00> : vector<64x128xf32>
    %89 = tpu.matmul %86, %88, %cst_53 {dimension_numbers = #tpu.dot_dimension_numbers<[1], [0], [0], [1], [0, 0, 1, 1], [], []>} : vector<64x128xbf16>, vector<128x128xbf16>, vector<64x128xf32> -> vector<64x128xf32>
    %90 = arith.addf %85, %89 : vector<64x128xf32>
    %91 = vector.extract_strided_slice %19 {offsets = [896, 0], sizes = [64, 128], strides = [1, 1]} : vector<1600x128xbf16> to vector<64x128xbf16>
    %c14 = arith.constant 14 : index
    %c0_54 = arith.constant 0 : index
    %c0_55 = arith.constant 0 : index
    %92 = vector.load %arg5[%c14, %c0_54, %c0_55] : memref<25x128x128xbf16, #tpu.memory_space<vmem>>, vector<1x128x128xbf16>
    %93 = vector.shape_cast %92 : vector<1x128x128xbf16> to vector<128x128xbf16>
    %cst_56 = arith.constant dense<0.000000e+00> : vector<64x128xf32>
    %94 = tpu.matmul %91, %93, %cst_56 {dimension_numbers = #tpu.dot_dimension_numbers<[1], [0], [0], [1], [0, 0, 1, 1], [], []>} : vector<64x128xbf16>, vector<128x128xbf16>, vector<64x128xf32> -> vector<64x128xf32>
    %95 = arith.addf %90, %94 : vector<64x128xf32>
    %96 = vector.extract_strided_slice %19 {offsets = [960, 0], sizes = [64, 128], strides = [1, 1]} : vector<1600x128xbf16> to vector<64x128xbf16>
    %c15 = arith.constant 15 : index
    %c0_57 = arith.constant 0 : index
    %c0_58 = arith.constant 0 : index
    %97 = vector.load %arg5[%c15, %c0_57, %c0_58] : memref<25x128x128xbf16, #tpu.memory_space<vmem>>, vector<1x128x128xbf16>
    %98 = vector.shape_cast %97 : vector<1x128x128xbf16> to vector<128x128xbf16>
    %cst_59 = arith.constant dense<0.000000e+00> : vector<64x128xf32>
    %99 = tpu.matmul %96, %98, %cst_59 {dimension_numbers = #tpu.dot_dimension_numbers<[1], [0], [0], [1], [0, 0, 1, 1], [], []>} : vector<64x128xbf16>, vector<128x128xbf16>, vector<64x128xf32> -> vector<64x128xf32>
    %100 = arith.addf %95, %99 : vector<64x128xf32>
    %101 = vector.extract_strided_slice %19 {offsets = [1024, 0], sizes = [64, 128], strides = [1, 1]} : vector<1600x128xbf16> to vector<64x128xbf16>
    %c16 = arith.constant 16 : index
    %c0_60 = arith.constant 0 : index
    %c0_61 = arith.constant 0 : index
    %102 = vector.load %arg5[%c16, %c0_60, %c0_61] : memref<25x128x128xbf16, #tpu.memory_space<vmem>>, vector<1x128x128xbf16>
    %103 = vector.shape_cast %102 : vector<1x128x128xbf16> to vector<128x128xbf16>
    %cst_62 = arith.constant dense<0.000000e+00> : vector<64x128xf32>
    %104 = tpu.matmul %101, %103, %cst_62 {dimension_numbers = #tpu.dot_dimension_numbers<[1], [0], [0], [1], [0, 0, 1, 1], [], []>} : vector<64x128xbf16>, vector<128x128xbf16>, vector<64x128xf32> -> vector<64x128xf32>
    %105 = arith.addf %100, %104 : vector<64x128xf32>
    %106 = vector.extract_strided_slice %19 {offsets = [1088, 0], sizes = [64, 128], strides = [1, 1]} : vector<1600x128xbf16> to vector<64x128xbf16>
    %c17 = arith.constant 17 : index
    %c0_63 = arith.constant 0 : index
    %c0_64 = arith.constant 0 : index
    %107 = vector.load %arg5[%c17, %c0_63, %c0_64] : memref<25x128x128xbf16, #tpu.memory_space<vmem>>, vector<1x128x128xbf16>
    %108 = vector.shape_cast %107 : vector<1x128x128xbf16> to vector<128x128xbf16>
    %cst_65 = arith.constant dense<0.000000e+00> : vector<64x128xf32>
    %109 = tpu.matmul %106, %108, %cst_65 {dimension_numbers = #tpu.dot_dimension_numbers<[1], [0], [0], [1], [0, 0, 1, 1], [], []>} : vector<64x128xbf16>, vector<128x128xbf16>, vector<64x128xf32> -> vector<64x128xf32>
    %110 = arith.addf %105, %109 : vector<64x128xf32>
    %111 = vector.extract_strided_slice %19 {offsets = [1152, 0], sizes = [64, 128], strides = [1, 1]} : vector<1600x128xbf16> to vector<64x128xbf16>
    %c18 = arith.constant 18 : index
    %c0_66 = arith.constant 0 : index
    %c0_67 = arith.constant 0 : index
    %112 = vector.load %arg5[%c18, %c0_66, %c0_67] : memref<25x128x128xbf16, #tpu.memory_space<vmem>>, vector<1x128x128xbf16>
    %113 = vector.shape_cast %112 : vector<1x128x128xbf16> to vector<128x128xbf16>
    %cst_68 = arith.constant dense<0.000000e+00> : vector<64x128xf32>
    %114 = tpu.matmul %111, %113, %cst_68 {dimension_numbers = #tpu.dot_dimension_numbers<[1], [0], [0], [1], [0, 0, 1, 1], [], []>} : vector<64x128xbf16>, vector<128x128xbf16>, vector<64x128xf32> -> vector<64x128xf32>
    %115 = arith.addf %110, %114 : vector<64x128xf32>
    %116 = vector.extract_strided_slice %19 {offsets = [1216, 0], sizes = [64, 128], strides = [1, 1]} : vector<1600x128xbf16> to vector<64x128xbf16>
    %c19 = arith.constant 19 : index
    %c0_69 = arith.constant 0 : index
    %c0_70 = arith.constant 0 : index
    %117 = vector.load %arg5[%c19, %c0_69, %c0_70] : memref<25x128x128xbf16, #tpu.memory_space<vmem>>, vector<1x128x128xbf16>
    %118 = vector.shape_cast %117 : vector<1x128x128xbf16> to vector<128x128xbf16>
    %cst_71 = arith.constant dense<0.000000e+00> : vector<64x128xf32>
    %119 = tpu.matmul %116, %118, %cst_71 {dimension_numbers = #tpu.dot_dimension_numbers<[1], [0], [0], [1], [0, 0, 1, 1], [], []>} : vector<64x128xbf16>, vector<128x128xbf16>, vector<64x128xf32> -> vector<64x128xf32>
    %120 = arith.addf %115, %119 : vector<64x128xf32>
    %121 = vector.extract_strided_slice %19 {offsets = [1280, 0], sizes = [64, 128], strides = [1, 1]} : vector<1600x128xbf16> to vector<64x128xbf16>
    %c20 = arith.constant 20 : index
    %c0_72 = arith.constant 0 : index
    %c0_73 = arith.constant 0 : index
    %122 = vector.load %arg5[%c20, %c0_72, %c0_73] : memref<25x128x128xbf16, #tpu.memory_space<vmem>>, vector<1x128x128xbf16>
    %123 = vector.shape_cast %122 : vector<1x128x128xbf16> to vector<128x128xbf16>
    %cst_74 = arith.constant dense<0.000000e+00> : vector<64x128xf32>
    %124 = tpu.matmul %121, %123, %cst_74 {dimension_numbers = #tpu.dot_dimension_numbers<[1], [0], [0], [1], [0, 0, 1, 1], [], []>} : vector<64x128xbf16>, vector<128x128xbf16>, vector<64x128xf32> -> vector<64x128xf32>
    %125 = arith.addf %120, %124 : vector<64x128xf32>
    %126 = vector.extract_strided_slice %19 {offsets = [1344, 0], sizes = [64, 128], strides = [1, 1]} : vector<1600x128xbf16> to vector<64x128xbf16>
    %c21 = arith.constant 21 : index
    %c0_75 = arith.constant 0 : index
    %c0_76 = arith.constant 0 : index
    %127 = vector.load %arg5[%c21, %c0_75, %c0_76] : memref<25x128x128xbf16, #tpu.memory_space<vmem>>, vector<1x128x128xbf16>
    %128 = vector.shape_cast %127 : vector<1x128x128xbf16> to vector<128x128xbf16>
    %cst_77 = arith.constant dense<0.000000e+00> : vector<64x128xf32>
    %129 = tpu.matmul %126, %128, %cst_77 {dimension_numbers = #tpu.dot_dimension_numbers<[1], [0], [0], [1], [0, 0, 1, 1], [], []>} : vector<64x128xbf16>, vector<128x128xbf16>, vector<64x128xf32> -> vector<64x128xf32>
    %130 = arith.addf %125, %129 : vector<64x128xf32>
    %131 = vector.extract_strided_slice %19 {offsets = [1408, 0], sizes = [64, 128], strides = [1, 1]} : vector<1600x128xbf16> to vector<64x128xbf16>
    %c22 = arith.constant 22 : index
    %c0_78 = arith.constant 0 : index
    %c0_79 = arith.constant 0 : index
    %132 = vector.load %arg5[%c22, %c0_78, %c0_79] : memref<25x128x128xbf16, #tpu.memory_space<vmem>>, vector<1x128x128xbf16>
    %133 = vector.shape_cast %132 : vector<1x128x128xbf16> to vector<128x128xbf16>
    %cst_80 = arith.constant dense<0.000000e+00> : vector<64x128xf32>
    %134 = tpu.matmul %131, %133, %cst_80 {dimension_numbers = #tpu.dot_dimension_numbers<[1], [0], [0], [1], [0, 0, 1, 1], [], []>} : vector<64x128xbf16>, vector<128x128xbf16>, vector<64x128xf32> -> vector<64x128xf32>
    %135 = arith.addf %130, %134 : vector<64x128xf32>
    %136 = vector.extract_strided_slice %19 {offsets = [1472, 0], sizes = [64, 128], strides = [1, 1]} : vector<1600x128xbf16> to vector<64x128xbf16>
    %c23 = arith.constant 23 : index
    %c0_81 = arith.constant 0 : index
    %c0_82 = arith.constant 0 : index
    %137 = vector.load %arg5[%c23, %c0_81, %c0_82] : memref<25x128x128xbf16, #tpu.memory_space<vmem>>, vector<1x128x128xbf16>
    %138 = vector.shape_cast %137 : vector<1x128x128xbf16> to vector<128x128xbf16>
    %cst_83 = arith.constant dense<0.000000e+00> : vector<64x128xf32>
    %139 = tpu.matmul %136, %138, %cst_83 {dimension_numbers = #tpu.dot_dimension_numbers<[1], [0], [0], [1], [0, 0, 1, 1], [], []>} : vector<64x128xbf16>, vector<128x128xbf16>, vector<64x128xf32> -> vector<64x128xf32>
    %140 = arith.addf %135, %139 : vector<64x128xf32>
    %141 = vector.extract_strided_slice %19 {offsets = [1536, 0], sizes = [64, 128], strides = [1, 1]} : vector<1600x128xbf16> to vector<64x128xbf16>
    %c24 = arith.constant 24 : index
    %c0_84 = arith.constant 0 : index
    %c0_85 = arith.constant 0 : index
    %142 = vector.load %arg5[%c24, %c0_84, %c0_85] : memref<25x128x128xbf16, #tpu.memory_space<vmem>>, vector<1x128x128xbf16>
    %143 = vector.shape_cast %142 : vector<1x128x128xbf16> to vector<128x128xbf16>
    %cst_86 = arith.constant dense<0.000000e+00> : vector<64x128xf32>
    %144 = tpu.matmul %141, %143, %cst_86 {dimension_numbers = #tpu.dot_dimension_numbers<[1], [0], [0], [1], [0, 0, 1, 1], [], []>} : vector<64x128xbf16>, vector<128x128xbf16>, vector<64x128xf32> -> vector<64x128xf32>
    %145 = arith.addf %140, %144 : vector<64x128xf32>
    %c0_87 = arith.constant 0 : index
    %c0_88 = arith.constant 0 : index
    %146 = vector.load %arg6[%c0_87, %c0_88] : memref<1x128xf32, #tpu.memory_space<vmem>>, vector<1x128xf32>
    %147 = vector.broadcast %146 : vector<1x128xf32> to vector<64x128xf32>
    %148 = arith.addf %145, %147 : vector<64x128xf32>
    %149 = vector.extract_strided_slice %148 {offsets = [0, 0], sizes = [16, 128], strides = [1, 1]} : vector<64x128xf32> to vector<16x128xf32>
    %150 = vector.extract_strided_slice %148 {offsets = [16, 0], sizes = [16, 128], strides = [1, 1]} : vector<64x128xf32> to vector<16x128xf32>
    %151 = arith.maximumf %149, %150 : vector<16x128xf32>
    %152 = vector.extract_strided_slice %148 {offsets = [32, 0], sizes = [16, 128], strides = [1, 1]} : vector<64x128xf32> to vector<16x128xf32>
    %153 = vector.extract_strided_slice %148 {offsets = [48, 0], sizes = [16, 128], strides = [1, 1]} : vector<64x128xf32> to vector<16x128xf32>
    %154 = arith.maximumf %152, %153 : vector<16x128xf32>
    %155 = arith.maximumf %151, %154 : vector<16x128xf32>
    %cst_89 = arith.constant 0.000000e+00 : f32
    %156 = vector.broadcast %cst_89 : f32 to vector<16x128xf32>
    %157 = arith.maximumf %155, %156 : vector<16x128xf32>
    %158 = arith.truncf %157 : vector<16x128xf32> to vector<16x128xbf16>
    %cst_90 = arith.constant 0.000000e+00 : f32
    %159 = vector.broadcast %cst_90 : f32 to vector<1x128xf32>
    %160 = vector.extract_strided_slice %158 {offsets = [0, 0], sizes = [1, 128], strides = [1, 1]} : vector<16x128xbf16> to vector<1x128xbf16>
    %c0_91 = arith.constant 0 : index
    %c0_92 = arith.constant 0 : index
    %c0_93 = arith.constant 0 : index
    %161 = vector.load %arg7[%c0_91, %c0_92, %c0_93] : memref<16x128x128xbf16, #tpu.memory_space<vmem>>, vector<1x128x128xbf16>
    %162 = vector.shape_cast %161 : vector<1x128x128xbf16> to vector<128x128xbf16>
    %cst_94 = arith.constant dense<0.000000e+00> : vector<1x128xf32>
    %163 = tpu.matmul %160, %162, %cst_94 {dimension_numbers = #tpu.dot_dimension_numbers<[1], [0], [0], [1], [0, 0, 1, 1], [], []>} : vector<1x128xbf16>, vector<128x128xbf16>, vector<1x128xf32> -> vector<1x128xf32>
    %164 = arith.addf %159, %163 : vector<1x128xf32>
    %165 = vector.extract_strided_slice %158 {offsets = [1, 0], sizes = [1, 128], strides = [1, 1]} : vector<16x128xbf16> to vector<1x128xbf16>
    %c1_95 = arith.constant 1 : index
    %c0_96 = arith.constant 0 : index
    %c0_97 = arith.constant 0 : index
    %166 = vector.load %arg7[%c1_95, %c0_96, %c0_97] : memref<16x128x128xbf16, #tpu.memory_space<vmem>>, vector<1x128x128xbf16>
    %167 = vector.shape_cast %166 : vector<1x128x128xbf16> to vector<128x128xbf16>
    %cst_98 = arith.constant dense<0.000000e+00> : vector<1x128xf32>
    %168 = tpu.matmul %165, %167, %cst_98 {dimension_numbers = #tpu.dot_dimension_numbers<[1], [0], [0], [1], [0, 0, 1, 1], [], []>} : vector<1x128xbf16>, vector<128x128xbf16>, vector<1x128xf32> -> vector<1x128xf32>
    %169 = arith.addf %164, %168 : vector<1x128xf32>
    %170 = vector.extract_strided_slice %158 {offsets = [2, 0], sizes = [1, 128], strides = [1, 1]} : vector<16x128xbf16> to vector<1x128xbf16>
    %c2_99 = arith.constant 2 : index
    %c0_100 = arith.constant 0 : index
    %c0_101 = arith.constant 0 : index
    %171 = vector.load %arg7[%c2_99, %c0_100, %c0_101] : memref<16x128x128xbf16, #tpu.memory_space<vmem>>, vector<1x128x128xbf16>
    %172 = vector.shape_cast %171 : vector<1x128x128xbf16> to vector<128x128xbf16>
    %cst_102 = arith.constant dense<0.000000e+00> : vector<1x128xf32>
    %173 = tpu.matmul %170, %172, %cst_102 {dimension_numbers = #tpu.dot_dimension_numbers<[1], [0], [0], [1], [0, 0, 1, 1], [], []>} : vector<1x128xbf16>, vector<128x128xbf16>, vector<1x128xf32> -> vector<1x128xf32>
    %174 = arith.addf %169, %173 : vector<1x128xf32>
    %175 = vector.extract_strided_slice %158 {offsets = [3, 0], sizes = [1, 128], strides = [1, 1]} : vector<16x128xbf16> to vector<1x128xbf16>
    %c3_103 = arith.constant 3 : index
    %c0_104 = arith.constant 0 : index
    %c0_105 = arith.constant 0 : index
    %176 = vector.load %arg7[%c3_103, %c0_104, %c0_105] : memref<16x128x128xbf16, #tpu.memory_space<vmem>>, vector<1x128x128xbf16>
    %177 = vector.shape_cast %176 : vector<1x128x128xbf16> to vector<128x128xbf16>
    %cst_106 = arith.constant dense<0.000000e+00> : vector<1x128xf32>
    %178 = tpu.matmul %175, %177, %cst_106 {dimension_numbers = #tpu.dot_dimension_numbers<[1], [0], [0], [1], [0, 0, 1, 1], [], []>} : vector<1x128xbf16>, vector<128x128xbf16>, vector<1x128xf32> -> vector<1x128xf32>
    %179 = arith.addf %174, %178 : vector<1x128xf32>
    %180 = vector.extract_strided_slice %158 {offsets = [4, 0], sizes = [1, 128], strides = [1, 1]} : vector<16x128xbf16> to vector<1x128xbf16>
    %c4_107 = arith.constant 4 : index
    %c0_108 = arith.constant 0 : index
    %c0_109 = arith.constant 0 : index
    %181 = vector.load %arg7[%c4_107, %c0_108, %c0_109] : memref<16x128x128xbf16, #tpu.memory_space<vmem>>, vector<1x128x128xbf16>
    %182 = vector.shape_cast %181 : vector<1x128x128xbf16> to vector<128x128xbf16>
    %cst_110 = arith.constant dense<0.000000e+00> : vector<1x128xf32>
    %183 = tpu.matmul %180, %182, %cst_110 {dimension_numbers = #tpu.dot_dimension_numbers<[1], [0], [0], [1], [0, 0, 1, 1], [], []>} : vector<1x128xbf16>, vector<128x128xbf16>, vector<1x128xf32> -> vector<1x128xf32>
    %184 = arith.addf %179, %183 : vector<1x128xf32>
    %185 = vector.extract_strided_slice %158 {offsets = [5, 0], sizes = [1, 128], strides = [1, 1]} : vector<16x128xbf16> to vector<1x128xbf16>
    %c5_111 = arith.constant 5 : index
    %c0_112 = arith.constant 0 : index
    %c0_113 = arith.constant 0 : index
    %186 = vector.load %arg7[%c5_111, %c0_112, %c0_113] : memref<16x128x128xbf16, #tpu.memory_space<vmem>>, vector<1x128x128xbf16>
    %187 = vector.shape_cast %186 : vector<1x128x128xbf16> to vector<128x128xbf16>
    %cst_114 = arith.constant dense<0.000000e+00> : vector<1x128xf32>
    %188 = tpu.matmul %185, %187, %cst_114 {dimension_numbers = #tpu.dot_dimension_numbers<[1], [0], [0], [1], [0, 0, 1, 1], [], []>} : vector<1x128xbf16>, vector<128x128xbf16>, vector<1x128xf32> -> vector<1x128xf32>
    %189 = arith.addf %184, %188 : vector<1x128xf32>
    %190 = vector.extract_strided_slice %158 {offsets = [6, 0], sizes = [1, 128], strides = [1, 1]} : vector<16x128xbf16> to vector<1x128xbf16>
    %c6_115 = arith.constant 6 : index
    %c0_116 = arith.constant 0 : index
    %c0_117 = arith.constant 0 : index
    %191 = vector.load %arg7[%c6_115, %c0_116, %c0_117] : memref<16x128x128xbf16, #tpu.memory_space<vmem>>, vector<1x128x128xbf16>
    %192 = vector.shape_cast %191 : vector<1x128x128xbf16> to vector<128x128xbf16>
    %cst_118 = arith.constant dense<0.000000e+00> : vector<1x128xf32>
    %193 = tpu.matmul %190, %192, %cst_118 {dimension_numbers = #tpu.dot_dimension_numbers<[1], [0], [0], [1], [0, 0, 1, 1], [], []>} : vector<1x128xbf16>, vector<128x128xbf16>, vector<1x128xf32> -> vector<1x128xf32>
    %194 = arith.addf %189, %193 : vector<1x128xf32>
    %195 = vector.extract_strided_slice %158 {offsets = [7, 0], sizes = [1, 128], strides = [1, 1]} : vector<16x128xbf16> to vector<1x128xbf16>
    %c7_119 = arith.constant 7 : index
    %c0_120 = arith.constant 0 : index
    %c0_121 = arith.constant 0 : index
    %196 = vector.load %arg7[%c7_119, %c0_120, %c0_121] : memref<16x128x128xbf16, #tpu.memory_space<vmem>>, vector<1x128x128xbf16>
    %197 = vector.shape_cast %196 : vector<1x128x128xbf16> to vector<128x128xbf16>
    %cst_122 = arith.constant dense<0.000000e+00> : vector<1x128xf32>
    %198 = tpu.matmul %195, %197, %cst_122 {dimension_numbers = #tpu.dot_dimension_numbers<[1], [0], [0], [1], [0, 0, 1, 1], [], []>} : vector<1x128xbf16>, vector<128x128xbf16>, vector<1x128xf32> -> vector<1x128xf32>
    %199 = arith.addf %194, %198 : vector<1x128xf32>
    %200 = vector.extract_strided_slice %158 {offsets = [8, 0], sizes = [1, 128], strides = [1, 1]} : vector<16x128xbf16> to vector<1x128xbf16>
    %c8_123 = arith.constant 8 : index
    %c0_124 = arith.constant 0 : index
    %c0_125 = arith.constant 0 : index
    %201 = vector.load %arg7[%c8_123, %c0_124, %c0_125] : memref<16x128x128xbf16, #tpu.memory_space<vmem>>, vector<1x128x128xbf16>
    %202 = vector.shape_cast %201 : vector<1x128x128xbf16> to vector<128x128xbf16>
    %cst_126 = arith.constant dense<0.000000e+00> : vector<1x128xf32>
    %203 = tpu.matmul %200, %202, %cst_126 {dimension_numbers = #tpu.dot_dimension_numbers<[1], [0], [0], [1], [0, 0, 1, 1], [], []>} : vector<1x128xbf16>, vector<128x128xbf16>, vector<1x128xf32> -> vector<1x128xf32>
    %204 = arith.addf %199, %203 : vector<1x128xf32>
    %205 = vector.extract_strided_slice %158 {offsets = [9, 0], sizes = [1, 128], strides = [1, 1]} : vector<16x128xbf16> to vector<1x128xbf16>
    %c9_127 = arith.constant 9 : index
    %c0_128 = arith.constant 0 : index
    %c0_129 = arith.constant 0 : index
    %206 = vector.load %arg7[%c9_127, %c0_128, %c0_129] : memref<16x128x128xbf16, #tpu.memory_space<vmem>>, vector<1x128x128xbf16>
    %207 = vector.shape_cast %206 : vector<1x128x128xbf16> to vector<128x128xbf16>
    %cst_130 = arith.constant dense<0.000000e+00> : vector<1x128xf32>
    %208 = tpu.matmul %205, %207, %cst_130 {dimension_numbers = #tpu.dot_dimension_numbers<[1], [0], [0], [1], [0, 0, 1, 1], [], []>} : vector<1x128xbf16>, vector<128x128xbf16>, vector<1x128xf32> -> vector<1x128xf32>
    %209 = arith.addf %204, %208 : vector<1x128xf32>
    %210 = vector.extract_strided_slice %158 {offsets = [10, 0], sizes = [1, 128], strides = [1, 1]} : vector<16x128xbf16> to vector<1x128xbf16>
    %c10_131 = arith.constant 10 : index
    %c0_132 = arith.constant 0 : index
    %c0_133 = arith.constant 0 : index
    %211 = vector.load %arg7[%c10_131, %c0_132, %c0_133] : memref<16x128x128xbf16, #tpu.memory_space<vmem>>, vector<1x128x128xbf16>
    %212 = vector.shape_cast %211 : vector<1x128x128xbf16> to vector<128x128xbf16>
    %cst_134 = arith.constant dense<0.000000e+00> : vector<1x128xf32>
    %213 = tpu.matmul %210, %212, %cst_134 {dimension_numbers = #tpu.dot_dimension_numbers<[1], [0], [0], [1], [0, 0, 1, 1], [], []>} : vector<1x128xbf16>, vector<128x128xbf16>, vector<1x128xf32> -> vector<1x128xf32>
    %214 = arith.addf %209, %213 : vector<1x128xf32>
    %215 = vector.extract_strided_slice %158 {offsets = [11, 0], sizes = [1, 128], strides = [1, 1]} : vector<16x128xbf16> to vector<1x128xbf16>
    %c11_135 = arith.constant 11 : index
    %c0_136 = arith.constant 0 : index
    %c0_137 = arith.constant 0 : index
    %216 = vector.load %arg7[%c11_135, %c0_136, %c0_137] : memref<16x128x128xbf16, #tpu.memory_space<vmem>>, vector<1x128x128xbf16>
    %217 = vector.shape_cast %216 : vector<1x128x128xbf16> to vector<128x128xbf16>
    %cst_138 = arith.constant dense<0.000000e+00> : vector<1x128xf32>
    %218 = tpu.matmul %215, %217, %cst_138 {dimension_numbers = #tpu.dot_dimension_numbers<[1], [0], [0], [1], [0, 0, 1, 1], [], []>} : vector<1x128xbf16>, vector<128x128xbf16>, vector<1x128xf32> -> vector<1x128xf32>
    %219 = arith.addf %214, %218 : vector<1x128xf32>
    %220 = vector.extract_strided_slice %158 {offsets = [12, 0], sizes = [1, 128], strides = [1, 1]} : vector<16x128xbf16> to vector<1x128xbf16>
    %c12_139 = arith.constant 12 : index
    %c0_140 = arith.constant 0 : index
    %c0_141 = arith.constant 0 : index
    %221 = vector.load %arg7[%c12_139, %c0_140, %c0_141] : memref<16x128x128xbf16, #tpu.memory_space<vmem>>, vector<1x128x128xbf16>
    %222 = vector.shape_cast %221 : vector<1x128x128xbf16> to vector<128x128xbf16>
    %cst_142 = arith.constant dense<0.000000e+00> : vector<1x128xf32>
    %223 = tpu.matmul %220, %222, %cst_142 {dimension_numbers = #tpu.dot_dimension_numbers<[1], [0], [0], [1], [0, 0, 1, 1], [], []>} : vector<1x128xbf16>, vector<128x128xbf16>, vector<1x128xf32> -> vector<1x128xf32>
    %224 = arith.addf %219, %223 : vector<1x128xf32>
    %225 = vector.extract_strided_slice %158 {offsets = [13, 0], sizes = [1, 128], strides = [1, 1]} : vector<16x128xbf16> to vector<1x128xbf16>
    %c13_143 = arith.constant 13 : index
    %c0_144 = arith.constant 0 : index
    %c0_145 = arith.constant 0 : index
    %226 = vector.load %arg7[%c13_143, %c0_144, %c0_145] : memref<16x128x128xbf16, #tpu.memory_space<vmem>>, vector<1x128x128xbf16>
    %227 = vector.shape_cast %226 : vector<1x128x128xbf16> to vector<128x128xbf16>
    %cst_146 = arith.constant dense<0.000000e+00> : vector<1x128xf32>
    %228 = tpu.matmul %225, %227, %cst_146 {dimension_numbers = #tpu.dot_dimension_numbers<[1], [0], [0], [1], [0, 0, 1, 1], [], []>} : vector<1x128xbf16>, vector<128x128xbf16>, vector<1x128xf32> -> vector<1x128xf32>
    %229 = arith.addf %224, %228 : vector<1x128xf32>
    %230 = vector.extract_strided_slice %158 {offsets = [14, 0], sizes = [1, 128], strides = [1, 1]} : vector<16x128xbf16> to vector<1x128xbf16>
    %c14_147 = arith.constant 14 : index
    %c0_148 = arith.constant 0 : index
    %c0_149 = arith.constant 0 : index
    %231 = vector.load %arg7[%c14_147, %c0_148, %c0_149] : memref<16x128x128xbf16, #tpu.memory_space<vmem>>, vector<1x128x128xbf16>
    %232 = vector.shape_cast %231 : vector<1x128x128xbf16> to vector<128x128xbf16>
    %cst_150 = arith.constant dense<0.000000e+00> : vector<1x128xf32>
    %233 = tpu.matmul %230, %232, %cst_150 {dimension_numbers = #tpu.dot_dimension_numbers<[1], [0], [0], [1], [0, 0, 1, 1], [], []>} : vector<1x128xbf16>, vector<128x128xbf16>, vector<1x128xf32> -> vector<1x128xf32>
    %234 = arith.addf %229, %233 : vector<1x128xf32>
    %235 = vector.extract_strided_slice %158 {offsets = [15, 0], sizes = [1, 128], strides = [1, 1]} : vector<16x128xbf16> to vector<1x128xbf16>
    %c15_151 = arith.constant 15 : index
    %c0_152 = arith.constant 0 : index
    %c0_153 = arith.constant 0 : index
    %236 = vector.load %arg7[%c15_151, %c0_152, %c0_153] : memref<16x128x128xbf16, #tpu.memory_space<vmem>>, vector<1x128x128xbf16>
    %237 = vector.shape_cast %236 : vector<1x128x128xbf16> to vector<128x128xbf16>
    %cst_154 = arith.constant dense<0.000000e+00> : vector<1x128xf32>
    %238 = tpu.matmul %235, %237, %cst_154 {dimension_numbers = #tpu.dot_dimension_numbers<[1], [0], [0], [1], [0, 0, 1, 1], [], []>} : vector<1x128xbf16>, vector<128x128xbf16>, vector<1x128xf32> -> vector<1x128xf32>
    %239 = arith.addf %234, %238 : vector<1x128xf32>
    %c0_155 = arith.constant 0 : index
    %c0_156 = arith.constant 0 : index
    %240 = vector.load %arg8[%c0_155, %c0_156] : memref<1x128xf32, #tpu.memory_space<vmem>>, vector<1x128xf32>
    %241 = arith.addf %239, %240 : vector<1x128xf32>
    %cst_157 = arith.constant 0.000000e+00 : f32
    %242 = vector.broadcast %cst_157 : f32 to vector<1x128xf32>
    %243 = arith.maximumf %241, %242 : vector<1x128xf32>
    %244 = arith.truncf %243 : vector<1x128xf32> to vector<1x128xbf16>
    %c0_158 = arith.constant 0 : index
    %c0_159 = arith.constant 0 : index
    %245 = vector.load %arg9[%c0_158, %c0_159] : memref<128x128xbf16, #tpu.memory_space<vmem>>, vector<128x128xbf16>
    %cst_160 = arith.constant dense<0.000000e+00> : vector<1x128xf32>
    %246 = tpu.matmul %244, %245, %cst_160 {dimension_numbers = #tpu.dot_dimension_numbers<[1], [0], [0], [1], [0, 0, 1, 1], [], []>} : vector<1x128xbf16>, vector<128x128xbf16>, vector<1x128xf32> -> vector<1x128xf32>
    %c0_161 = arith.constant 0 : index
    %c0_162 = arith.constant 0 : index
    %247 = vector.load %arg10[%c0_161, %c0_162] : memref<1x128xf32, #tpu.memory_space<vmem>>, vector<1x128xf32>
    %248 = arith.addf %246, %247 : vector<1x128xf32>
    %249 = tpu.iota {dimensions = array<i32: 1>} : vector<1x128xi32>
    %c10_i32 = arith.constant 10 : i32
    %250 = vector.broadcast %c10_i32 : i32 to vector<1x128xi32>
    %251 = arith.cmpi slt, %249, %250 : vector<1x128xi32>
    %cst_163 = arith.constant 0xFF800000 : f32
    %252 = vector.broadcast %cst_163 : f32 to vector<1x128xf32>
    %253 = arith.select %251, %248, %252 : vector<1x128xi1>, vector<1x128xf32>
    %cst_164 = arith.constant dense<0xFF800000> : vector<1xf32>
    %254 = vector.multi_reduction <maximumf>, %253, %cst_164 [1] : vector<1x128xf32> to vector<1xf32>
    %255 = vector.shape_cast %254 : vector<1xf32> to vector<1x1xf32>
    %256 = vector.broadcast %255 : vector<1x1xf32> to vector<1x128xf32>
    %257 = arith.subf %248, %256 : vector<1x128xf32>
    %258 = math.exp %257 : vector<1x128xf32>
    %cst_165 = arith.constant 0.000000e+00 : f32
    %259 = vector.broadcast %cst_165 : f32 to vector<1x128xf32>
    %260 = arith.select %251, %258, %259 : vector<1x128xi1>, vector<1x128xf32>
    %cst_166 = arith.constant dense<0.000000e+00> : vector<1xf32>
    %261 = vector.multi_reduction <add>, %260, %cst_166 [1] : vector<1x128xf32> to vector<1xf32>
    %262 = vector.shape_cast %261 : vector<1xf32> to vector<1x1xf32>
    %263 = math.log %262 : vector<1x1xf32>
    %264 = vector.broadcast %255 : vector<1x1xf32> to vector<1x128xf32>
    %265 = arith.subf %248, %264 : vector<1x128xf32>
    %266 = vector.broadcast %263 : vector<1x1xf32> to vector<1x128xf32>
    %267 = arith.subf %265, %266 : vector<1x128xf32>
    %cst_167 = arith.constant 0.000000e+00 : f32
    %268 = vector.broadcast %cst_167 : f32 to vector<1x128xf32>
    %269 = arith.select %251, %267, %268 : vector<1x128xi1>, vector<1x128xf32>
    %c0_168 = arith.constant 0 : index
    %c0_169 = arith.constant 0 : index
    %c0_170 = arith.constant 0 : index
    %270 = vector.load %arg11[%c0_168, %c0_169, %c0_170] : memref<1x1x128xf32, #tpu.memory_space<vmem>>, vector<1x1x128xf32>
    %271 = vector.shape_cast %270 : vector<1x1x128xf32> to vector<1x128xf32>
    %272 = vector.shape_cast %269 : vector<1x128xf32> to vector<1x1x128xf32>
    tpu.vector_store %arg11[%c0_168, %c0_169, %c0_170], %272 {strides = array<i32>} : memref<1x1x128xf32, #tpu.memory_space<vmem>>, vector<1x1x128xf32>,
    return
  }
  func.func @transform_0(%arg0: i32) -> (i32, i32, i32) {
    %c0_i32 = arith.constant 0 : i32
    %c0_i32_0 = arith.constant 0 : i32
    %c0_i32_1 = arith.constant 0 : i32
    return %arg0, %c0_i32, %c0_i32_0 : i32, i32, i32
  }
  func.func @transform_1(%arg0: i32) -> (i32, i32) {
    %c0_i32 = arith.constant 0 : i32
    %c0_i32_0 = arith.constant 0 : i32
    %c0_i32_1 = arith.constant 0 : i32
    return %c0_i32, %c0_i32_0 : i32, i32
  }
  func.func @transform_2(%arg0: i32) -> (i32, i32) {
    %c0_i32 = arith.constant 0 : i32
    %c0_i32_0 = arith.constant 0 : i32
    %c0_i32_1 = arith.constant 0 : i32
    return %c0_i32, %c0_i32_0 : i32, i32
  }
  func.func @transform_3(%arg0: i32) -> (i32, i32) {
    %c0_i32 = arith.constant 0 : i32
    %c0_i32_0 = arith.constant 0 : i32
    %c0_i32_1 = arith.constant 0 : i32
    return %c0_i32, %c0_i32_0 : i32, i32
  }
  func.func @transform_4(%arg0: i32) -> (i32, i32, i32) {
    %c0_i32 = arith.constant 0 : i32
    %c0_i32_0 = arith.constant 0 : i32
    %c0_i32_1 = arith.constant 0 : i32
    %c0_i32_2 = arith.constant 0 : i32
    return %c0_i32, %c0_i32_0, %c0_i32_1 : i32, i32, i32
  }
  func.func @transform_5(%arg0: i32) -> (i32, i32) {
    %c0_i32 = arith.constant 0 : i32
    %c0_i32_0 = arith.constant 0 : i32
    %c0_i32_1 = arith.constant 0 : i32
    return %c0_i32, %c0_i32_0 : i32, i32
  }
  func.func @transform_6(%arg0: i32) -> (i32, i32, i32) {
    %c0_i32 = arith.constant 0 : i32
    %c0_i32_0 = arith.constant 0 : i32
    %c0_i32_1 = arith.constant 0 : i32
    %c0_i32_2 = arith.constant 0 : i32
    return %c0_i32, %c0_i32_0, %c0_i32_1 : i32, i32, i32
  }
  func.func @transform_7(%arg0: i32) -> (i32, i32) {
    %c0_i32 = arith.constant 0 : i32
    %c0_i32_0 = arith.constant 0 : i32
    %c0_i32_1 = arith.constant 0 : i32
    return %c0_i32, %c0_i32_0 : i32, i32
  }
  func.func @transform_8(%arg0: i32) -> (i32, i32) {
    %c0_i32 = arith.constant 0 : i32
    %c0_i32_0 = arith.constant 0 : i32
    %c0_i32_1 = arith.constant 0 : i32
    return %c0_i32, %c0_i32_0 : i32, i32
  }
  func.func @transform_9(%arg0: i32) -> (i32, i32) {
    %c0_i32 = arith.constant 0 : i32
    %c0_i32_0 = arith.constant 0 : i32
    %c0_i32_1 = arith.constant 0 : i32
    return %c0_i32, %c0_i32_0 : i32, i32
  }
  func.func @transform_10(%arg0: i32) -> (i32, i32, i32) {
    %c0_i32 = arith.constant 0 : i32
    %c0_i32_0 = arith.constant 0 : i32
    %c0_i32_1 = arith.constant 0 : i32
    return %arg0, %c0_i32, %c0_i32_0 : i32, i32, i32
  }
}

</mosaic_0001>

<llo_original>
// kernel: net_forward.1
$region0: #{net_forward.1}
  #allocation0 [shape = 'u32[]', space=smem, size = 0x4, offset = 0x4, fixed_abs, tag = 'smem constant byte address 0x4 - core index']
  #allocation1 [shape = 'u32[144,128]{1,0:T(1,128)}', space=vmem, size = 0x12000, scoped, tag = 'internal scratch']
  %s0 = inlined_call_operand.vmem [shape: bf16[2,576,25], index: 0, kind: input, shape index: {}]
  %s1 = inlined_call_operand.vmem [shape: bf16[25,128], index: 1, kind: input, shape index: {}]
  %s2 = inlined_call_operand.vmem [shape: f32[1,128], index: 2, kind: input, shape index: {}]
  %s3 = inlined_call_operand.vmem [shape: bf16[1600,144], index: 3, kind: input, shape index: {}]
  %s4 = inlined_call_operand.vmem [shape: bf16[25,128,128], index: 4, kind: input, shape index: {}]
  %s5 = inlined_call_operand.vmem [shape: f32[1,128], index: 5, kind: input, shape index: {}]
  %s6 = inlined_call_operand.vmem [shape: bf16[16,128,128], index: 6, kind: input, shape index: {}]
  %s7 = inlined_call_operand.vmem [shape: f32[1,128], index: 7, kind: input, shape index: {}]
  %s8 = inlined_call_operand.vmem [shape: bf16[128,128], index: 8, kind: input, shape index: {}]
  %s9 = inlined_call_operand.vmem [shape: f32[1,128], index: 9, kind: input, shape index: {}]
  %s10 = inlined_call_operand.vmem [shape: f32[2,1,128], index: 10, kind: output, shape index: {}]
  %s11 = sld [smem:[#allocation0]]
  $region73: #{net_forward.1} parent=0
    _
  %s13 = ssub.s32 1, %s11
  %s14 = scalar_select 0, %s13, %s11
  loop: start=0, step=1, limit=4
  $region2: #{net_forward.1} parent=0 // loop_pre_header
    _
  $region3: #{net_forward.1} parent=0 // loop_header
    %s16 = sphi 0, %s20
    %p17 = scmp.ge.s32.totalorder %s16, 4
    %s26 = sphi 0, %s28
    %s29 = sphi 0, %s26
    %s30 = sphi 0, %s29
    %s46 = sphi 0, %s30
    %s50 = sphi 0, %s50
    %s52 = sphi 0, %s50
    %s53 = sphi 0, %s52
    %s67 = sphi 0, %s53
    %s71 = sphi 0, %s71
    %s73 = sphi 0, %s71
    %s74 = sphi 0, %s73
    %s88 = sphi 0, %s74
    %s92 = sphi 0, %s92
    %s94 = sphi 0, %s92
    %s95 = sphi 0, %s94
    %s109 = sphi 0, %s95
    %s113 = sphi 0, %s113
    %s115 = sphi 0, %s113
    %s116 = sphi 0, %s115
    %s130 = sphi 0, %s116
    %s134 = sphi 0, %s134
    %s136 = sphi 0, %s134
    %s137 = sphi 0, %s136
    %s151 = sphi 0, %s137
    %s155 = sphi 0, %s155
    %s157 = sphi 0, %s155
    %s158 = sphi 0, %s157
    %s172 = sphi 0, %s158
    %s176 = sphi 0, %s176
    %s178 = sphi 0, %s176
    %s179 = sphi 0, %s178
    %s193 = sphi 0, %s179
    %s197 = sphi 0, %s197
    %s199 = sphi 0, %s197
    %s200 = sphi 0, %s199
    %s214 = sphi 0, %s200
    %s218 = sphi 0, %s218
    %s220 = sphi 0, %s218
    %s221 = sphi 0, %s220
    %s235 = sphi 0, %s221
    %s241 = sphi 0, %s243
    %s244 = sphi 0, %s241
    %s245 = sphi 0, %s244
    %s261 = sphi 0, %s245
  $region4: #{net_forward.1} parent=0 // loop_header_branch
    %19 = sbr.rel (%p17) target = $region8
  $region5: #{net_forward.1} parent=0 // loop_body
    %s21 = ssub.s32 %s16, 1
    %s22 = ssub.s32 %s16, 2
    %s23 = sadd.s32 %s16, 1
    %s24 = ssub.s32 %s16, %s23
    %p25 = scmp.eq.s32.totalorder %s24, 0
    %s27 = sadd.s32 %s26, 1
    %s28 = scalar_select %p25, %s26, %s27
    %p31 = pneg %p25
    %p32 = scmp.eq.s32.totalorder %s16, 1
    %p33 = por %p31, %p32
    %p34 = scmp.ne.s32.totalorder %s26, %s29
    %p35 = scmp.eq.s32.totalorder %s16, 0
    %p36 = por %p34, %p35
    %p37 = scmp.ne.s32.totalorder %s26, %s29
    %p38 = scmp.eq.s32.totalorder %s21, 1
    %p39 = por %p37, %p38
    %p40 = scmp.ne.s32.totalorder %s29, %s30
    %p41 = scmp.eq.s32.totalorder %s21, 0
    %p42 = por %p40, %p41
    %p43 = scmp.ne.s32.totalorder %s29, %s30
    %p44 = scmp.eq.s32.totalorder %s22, 1
    %p45 = por %p43, %p44
    %p47 = scmp.ne.s32.totalorder %s30, %s46
    %p48 = scmp.eq.s32.totalorder %s22, 0
    %p49 = por %p47, %p48
    %s51 = sadd.s32 %s50, 1
    %p54 = scmp.eq.s32.totalorder %s16, 1
    %p55 = scmp.ne.s32.totalorder %s50, %s52
    %p56 = scmp.eq.s32.totalorder %s16, 0
    %p57 = por %p55, %p56
    %p58 = scmp.ne.s32.totalorder %s50, %s52
    %p59 = scmp.eq.s32.totalorder %s21, 1
    %p60 = por %p58, %p59
    %p61 = scmp.ne.s32.totalorder %s52, %s53
    %p62 = scmp.eq.s32.totalorder %s21, 0
    %p63 = por %p61, %p62
    %p64 = scmp.ne.s32.totalorder %s52, %s53
    %p65 = scmp.eq.s32.totalorder %s22, 1
    %p66 = por %p64, %p65
    %p68 = scmp.ne.s32.totalorder %s53, %s67
    %p69 = scmp.eq.s32.totalorder %s22, 0
    %p70 = por %p68, %p69
    %s72 = sadd.s32 %s71, 1
    %p75 = scmp.eq.s32.totalorder %s16, 1
    %p76 = scmp.ne.s32.totalorder %s71, %s73
    %p77 = scmp.eq.s32.totalorder %s16, 0
    %p78 = por %p76, %p77
    %p79 = scmp.ne.s32.totalorder %s71, %s73
    %p80 = scmp.eq.s32.totalorder %s21, 1
    %p81 = por %p79, %p80
    %p82 = scmp.ne.s32.totalorder %s73, %s74
    %p83 = scmp.eq.s32.totalorder %s21, 0
    %p84 = por %p82, %p83
    %p85 = scmp.ne.s32.totalorder %s73, %s74
    %p86 = scmp.eq.s32.totalorder %s22, 1
    %p87 = por %p85, %p86
    %p89 = scmp.ne.s32.totalorder %s74, %s88
    %p90 = scmp.eq.s32.totalorder %s22, 0
    %p91 = por %p89, %p90
    %s93 = sadd.s32 %s92, 1
    %p96 = scmp.eq.s32.totalorder %s16, 1
    %p97 = scmp.ne.s32.totalorder %s92, %s94
    %p98 = scmp.eq.s32.totalorder %s16, 0
    %p99 = por %p97, %p98
    %p100 = scmp.ne.s32.totalorder %s92, %s94
    %p101 = scmp.eq.s32.totalorder %s21, 1
    %p102 = por %p100, %p101
    %p103 = scmp.ne.s32.totalorder %s94, %s95
    %p104 = scmp.eq.s32.totalorder %s21, 0
    %p105 = por %p103, %p104
    %p106 = scmp.ne.s32.totalorder %s94, %s95
    %p107 = scmp.eq.s32.totalorder %s22, 1
    %p108 = por %p106, %p107
    %p110 = scmp.ne.s32.totalorder %s95, %s109
    %p111 = scmp.eq.s32.totalorder %s22, 0
    %p112 = por %p110, %p111
    %s114 = sadd.s32 %s113, 1
    %p117 = scmp.eq.s32.totalorder %s16, 1
    %p118 = scmp.ne.s32.totalorder %s113, %s115
    %p119 = scmp.eq.s32.totalorder %s16, 0
    %p120 = por %p118, %p119
    %p121 = scmp.ne.s32.totalorder %s113, %s115
    %p122 = scmp.eq.s32.totalorder %s21, 1
    %p123 = por %p121, %p122
    %p124 = scmp.ne.s32.totalorder %s115, %s116
    %p125 = scmp.eq.s32.totalorder %s21, 0
    %p126 = por %p124, %p125
    %p127 = scmp.ne.s32.totalorder %s115, %s116
    %p128 = scmp.eq.s32.totalorder %s22, 1
    %p129 = por %p127, %p128
    %p131 = scmp.ne.s32.totalorder %s116, %s130
    %p132 = scmp.eq.s32.totalorder %s22, 0
    %p133 = por %p131, %p132
    %s135 = sadd.s32 %s134, 1
    %p138 = scmp.eq.s32.totalorder %s16, 1
    %p139 = scmp.ne.s32.totalorder %s134, %s136
    %p140 = scmp.eq.s32.totalorder %s16, 0
    %p141 = por %p139, %p140
    %p142 = scmp.ne.s32.totalorder %s134, %s136
    %p143 = scmp.eq.s32.totalorder %s21, 1
    %p144 = por %p142, %p143
    %p145 = scmp.ne.s32.totalorder %s136, %s137
    %p146 = scmp.eq.s32.totalorder %s21, 0
    %p147 = por %p145, %p146
    %p148 = scmp.ne.s32.totalorder %s136, %s137
    %p149 = scmp.eq.s32.totalorder %s22, 1
    %p150 = por %p148, %p149
    %p152 = scmp.ne.s32.totalorder %s137, %s151
    %p153 = scmp.eq.s32.totalorder %s22, 0
    %p154 = por %p152, %p153
    %s156 = sadd.s32 %s155, 1
    %p159 = scmp.eq.s32.totalorder %s16, 1
    %p160 = scmp.ne.s32.totalorder %s155, %s157
    %p161 = scmp.eq.s32.totalorder %s16, 0
    %p162 = por %p160, %p161
    %p163 = scmp.ne.s32.totalorder %s155, %s157
    %p164 = scmp.eq.s32.totalorder %s21, 1
    %p165 = por %p163, %p164
    %p166 = scmp.ne.s32.totalorder %s157, %s158
    %p167 = scmp.eq.s32.totalorder %s21, 0
    %p168 = por %p166, %p167
    %p169 = scmp.ne.s32.totalorder %s157, %s158
    %p170 = scmp.eq.s32.totalorder %s22, 1
    %p171 = por %p169, %p170
    %p173 = scmp.ne.s32.totalorder %s158, %s172
    %p174 = scmp.eq.s32.totalorder %s22, 0
    %p175 = por %p173, %p174
    %s177 = sadd.s32 %s176, 1
    %p180 = scmp.eq.s32.totalorder %s16, 1
    %p181 = scmp.ne.s32.totalorder %s176, %s178
    %p182 = scmp.eq.s32.totalorder %s16, 0
    %p183 = por %p181, %p182
    %p184 = scmp.ne.s32.totalorder %s176, %s178
    %p185 = scmp.eq.s32.totalorder %s21, 1
    %p186 = por %p184, %p185
    %p187 = scmp.ne.s32.totalorder %s178, %s179
    %p188 = scmp.eq.s32.totalorder %s21, 0
    %p189 = por %p187, %p188
    %p190 = scmp.ne.s32.totalorder %s178, %s179
    %p191 = scmp.eq.s32.totalorder %s22, 1
    %p192 = por %p190, %p191
    %p194 = scmp.ne.s32.totalorder %s179, %s193
    %p195 = scmp.eq.s32.totalorder %s22, 0
    %p196 = por %p194, %p195
    %s198 = sadd.s32 %s197, 1
    %p201 = scmp.eq.s32.totalorder %s16, 1
    %p202 = scmp.ne.s32.totalorder %s197, %s199
    %p203 = scmp.eq.s32.totalorder %s16, 0
    %p204 = por %p202, %p203
    %p205 = scmp.ne.s32.totalorder %s197, %s199
    %p206 = scmp.eq.s32.totalorder %s21, 1
    %p207 = por %p205, %p206
    %p208 = scmp.ne.s32.totalorder %s199, %s200
    %p209 = scmp.eq.s32.totalorder %s21, 0
    %p210 = por %p208, %p209
    %p211 = scmp.ne.s32.totalorder %s199, %s200
    %p212 = scmp.eq.s32.totalorder %s22, 1
    %p213 = por %p211, %p212
    %p215 = scmp.ne.s32.totalorder %s200, %s214
    %p216 = scmp.eq.s32.totalorder %s22, 0
    %p217 = por %p215, %p216
    %s219 = sadd.s32 %s218, 1
    %p222 = scmp.eq.s32.totalorder %s16, 1
    %p223 = scmp.ne.s32.totalorder %s218, %s220
    %p224 = scmp.eq.s32.totalorder %s16, 0
    %p225 = por %p223, %p224
    %p226 = scmp.ne.s32.totalorder %s218, %s220
    %p227 = scmp.eq.s32.totalorder %s21, 1
    %p228 = por %p226, %p227
    %p229 = scmp.ne.s32.totalorder %s220, %s221
    %p230 = scmp.eq.s32.totalorder %s21, 0
    %p231 = por %p229, %p230
    %p232 = scmp.ne.s32.totalorder %s220, %s221
    %p233 = scmp.eq.s32.totalorder %s22, 1
    %p234 = por %p232, %p233
    %p236 = scmp.ne.s32.totalorder %s221, %s235
    %p237 = scmp.eq.s32.totalorder %s22, 0
    %p238 = por %p236, %p237
    %s239 = ssub.s32 %s16, %s23
    %p240 = scmp.eq.s32.totalorder %s239, 0
    %s242 = sadd.s32 %s241, 1
    %s243 = scalar_select %p240, %s241, %s242
    %p246 = pneg %p240
    %p247 = scmp.eq.s32.totalorder %s16, 1
    %p248 = por %p246, %p247
    %p249 = scmp.ne.s32.totalorder %s241, %s244
    %p250 = scmp.eq.s32.totalorder %s16, 0
    %p251 = por %p249, %p250
    %p252 = scmp.ne.s32.totalorder %s241, %s244
    %p253 = scmp.eq.s32.totalorder %s21, 1
    %p254 = por %p252, %p253
    %p255 = scmp.ne.s32.totalorder %s244, %s245
    %p256 = scmp.eq.s32.totalorder %s21, 0
    %p257 = por %p255, %p256
    %p258 = scmp.ne.s32.totalorder %s244, %s245
    %p259 = scmp.eq.s32.totalorder %s22, 1
    %p260 = por %p258, %p259
    %p262 = scmp.ne.s32.totalorder %s245, %s261
    %p263 = scmp.eq.s32.totalorder %s22, 0
    %p264 = por %p262, %p263
    %p265 = scmp.le.s32.totalorder 1, %s16
    %p266 = scmp.lt.s32.totalorder %s16, 3
    %p267 = pnand %p265, %p266
    %p268 = pneg %p267
    // Predicated region
    $region9: #{net_forward.1} parent=5 // pred_check
      _
    $region10: #{net_forward.1} parent=5 // pred_check_branch
      %270 = sbr.rel (%p267) target = $region12
    $region11: #{net_forward.1} parent=5 // pred_region
      %s271 = ssub.s32 %s16, 1
      // Predicated region
      $region13: #{net_forward.1} parent=11 // pred_check
        %p272 = pneg %p63
      $region14: #{net_forward.1} parent=11 // pred_check_branch
        %274 = sbr.rel (%p272) target = $region16
      $region15: #{net_forward.1} parent=11 // pred_region
        _
      $region16: #{net_forward.1} parent=11 // pred_fallthru
        _
      // Predicated region
      $region17: #{net_forward.1} parent=11 // pred_check
        %p275 = pneg %p84
      $region18: #{net_forward.1} parent=11 // pred_check_branch
        %277 = sbr.rel (%p275) target = $region20
      $region19: #{net_forward.1} parent=11 // pred_region
        _
      $region20: #{net_forward.1} parent=11 // pred_fallthru
        _
      // Predicated region
      $region21: #{net_forward.1} parent=11 // pred_check
        %p278 = pneg %p105
      $region22: #{net_forward.1} parent=11 // pred_check_branch
        %280 = sbr.rel (%p278) target = $region24
      $region23: #{net_forward.1} parent=11 // pred_region
        _
      $region24: #{net_forward.1} parent=11 // pred_fallthru
        _
      // Predicated region
      $region25: #{net_forward.1} parent=11 // pred_check
        %p281 = pneg %p126
      $region26: #{net_forward.1} parent=11 // pred_check_branch
        %283 = sbr.rel (%p281) target = $region28
      $region27: #{net_forward.1} parent=11 // pred_region
        _
      $region28: #{net_forward.1} parent=11 // pred_fallthru
        _
      // Predicated region
      $region29: #{net_forward.1} parent=11 // pred_check
        %p284 = pneg %p147
      $region30: #{net_forward.1} parent=11 // pred_check_branch
        %286 = sbr.rel (%p284) target = $region32
      $region31: #{net_forward.1} parent=11 // pred_region
        _
      $region32: #{net_forward.1} parent=11 // pred_fallthru
        _
      // Predicated region
      $region33: #{net_forward.1} parent=11 // pred_check
        %p287 = pneg %p168
      $region34: #{net_forward.1} parent=11 // pred_check_branch
        %289 = sbr.rel (%p287) target = $region36
      $region35: #{net_forward.1} parent=11 // pred_region
        _
      $region36: #{net_forward.1} parent=11 // pred_fallthru
        _
      // Predicated region
      $region37: #{net_forward.1} parent=11 // pred_check
        %p290 = pneg %p189
      $region38: #{net_forward.1} parent=11 // pred_check_branch
        %292 = sbr.rel (%p290) target = $region40
      $region39: #{net_forward.1} parent=11 // pred_region
        _
      $region40: #{net_forward.1} parent=11 // pred_fallthru
        _
      // Predicated region
      $region41: #{net_forward.1} parent=11 // pred_check
        %p293 = pneg %p210
      $region42: #{net_forward.1} parent=11 // pred_check_branch
        %295 = sbr.rel (%p293) target = $region44
      $region43: #{net_forward.1} parent=11 // pred_region
        _
      $region44: #{net_forward.1} parent=11 // pred_fallthru
        _
      // Predicated region
      $region45: #{net_forward.1} parent=11 // pred_check
        %p296 = pneg %p231
      $region46: #{net_forward.1} parent=11 // pred_check_branch
        %298 = sbr.rel (%p296) target = $region48
      $region47: #{net_forward.1} parent=11 // pred_region
        _
      $region48: #{net_forward.1} parent=11 // pred_fallthru
        _
    $region12: #{net_forward.1} parent=5 // pred_fallthru
      _
    %p299 = scmp.lt.s32.totalorder %s16, 2
    // Predicated region
    $region49: #{net_forward.1} parent=5 // pred_check
      %p300 = pneg %p299
    $region50: #{net_forward.1} parent=5 // pred_check_branch
      %302 = sbr.rel (%p300) target = $region52
    $region51: #{net_forward.1} parent=5 // pred_region
      // Predicated region
      $region53: #{net_forward.1} parent=51 // pred_check
        %p303 = pneg %p36
      $region54: #{net_forward.1} parent=51 // pred_check_branch
        %305 = sbr.rel (%p303) target = $region56
      $region55: #{net_forward.1} parent=51 // pred_region
        %p306 = scmp.lt.s32.totalorder %s16, 1
        %s307 = scalar_select %p306, %s16, 1
        %s308 = smul.addr %s307, 72
        %s309 = smul.addr %s308, 4
        %s310 = scalar_lea.vmem %s0, %s309
      $region56: #{net_forward.1} parent=51 // pred_fallthru
        _
    $region52: #{net_forward.1} parent=5 // pred_fallthru
      _
    %p311 = scmp.le.s32.totalorder 1, %s16
    %p312 = scmp.lt.s32.totalorder %s16, 3
    %p313 = pnand %p311, %p312
    %p314 = pneg %p313
    // Predicated region
    $region57: #{net_forward.1} parent=5 // pred_check
      _
    $region58: #{net_forward.1} parent=5 // pred_check_branch
      %316 = sbr.rel (%p313) target = $region60
    $region59: #{net_forward.1} parent=5 // pred_region
      %s317 = ssub.s32 %s16, 1
      %p318 = scmp.lt.s32.totalorder %s21, 1
      %s319 = scalar_select %p318, %s21, 1
      %s320 = smul.addr %s319, 72
      %s321 = smul.addr %s320, 4
      %s322 = scalar_lea.vmem %s0, %s321
      %p323 = pneg %p42
      %p324 = pneg %p39
      %p325 = pneg %p63
      %p326 = pneg %p60
      %p327 = pneg %p84
      %p328 = pneg %p81
      %p329 = pneg %p105
      %p330 = pneg %p102
      %p331 = pneg %p126
      %p332 = pneg %p123
      %p333 = pneg %p147
      %p334 = pneg %p144
      %p335 = pneg %p168
      %p336 = pneg %p165
      %p337 = pneg %p189
      %p338 = pneg %p186
      %p339 = pneg %p210
      %p340 = pneg %p207
      %p341 = pneg %p231
      %p342 = pneg %p228
      %p343 = pneg %p257
      %p344 = pneg %p254
      %p345 = scmp.lt.s32.totalorder %s21, 1
      %s346 = scalar_select %p345, %s21, 1
      %s347 = scalar_lea.vmem %s10, %s346
      %p348 = scmp.lt.s32.totalorder %s21, 1
      %s349 = scalar_select %p348, %s21, 1
      %s350 = smul.addr %s349, 72
      %s351 = smul.addr %s350, 4
      %s352 = scalar_lea.vmem %s0, %s351
      %p353 = scmp.lt.s32.totalorder %s21, 1
      %s354 = scalar_select %p353, %s21, 1
      %s355 = scalar_lea.vmem %s10, %s354
      %v357 = vld [vmem:[%s352] sm:$0xf]
      %v358 = vld [vmem:[%s352 + $0x4] sm:$0xf]
      %v359 = vld [vmem:[%s352 + $0x8] sm:$0xf]
      %v360 = vld [vmem:[%s352 + $0xc] sm:$0xf]
      %v361 = vld [vmem:[%s352 + $0x10] sm:$0xf]
      %v362 = vld [vmem:[%s352 + $0x14] sm:$0xf]
      %v363 = vld [vmem:[%s352 + $0x18] sm:$0xf]
      %v364 = vld [vmem:[%s352 + $0x1c] sm:$0xf]
      %v365 = vld [vmem:[%s352 + $0x20] sm:$0xf]
      %v366 = vld [vmem:[%s352 + $0x24] sm:$0xf]
      %v367 = vld [vmem:[%s352 + $0x28] sm:$0xf]
      %v368 = vld [vmem:[%s352 + $0x2c] sm:$0xf]
      %v369 = vld [vmem:[%s352 + $0x30] sm:$0xf]
      %v370 = vld [vmem:[%s352 + $0x34] sm:$0xf]
      %v371 = vld [vmem:[%s352 + $0x38] sm:$0xf]
      %v372 = vld [vmem:[%s352 + $0x3c] sm:$0xf]
      %v373 = vld [vmem:[%s352 + $0x40] sm:$0xf]
      %v374 = vld [vmem:[%s352 + $0x44] sm:$0xf]
      %v375 = vld [vmem:[%s352 + $0x48] sm:$0xf]
      %v376 = vld [vmem:[%s352 + $0x4c] sm:$0xf]
      %v377 = vld [vmem:[%s352 + $0x50] sm:$0xf]
      %v378 = vld [vmem:[%s352 + $0x54] sm:$0xf]
      %v379 = vld [vmem:[%s352 + $0x58] sm:$0xf]
      %v380 = vld [vmem:[%s352 + $0x5c] sm:$0xf]
      %v381 = vld [vmem:[%s352 + $0x60] sm:$0xf]
      %v382 = vld [vmem:[%s352 + $0x64] sm:$0xf]
      %v383 = vld [vmem:[%s352 + $0x68] sm:$0xf]
      %v384 = vld [vmem:[%s352 + $0x6c] sm:$0xf]
      %v385 = vld [vmem:[%s352 + $0x70] sm:$0xf]
      %v386 = vld [vmem:[%s352 + $0x74] sm:$0xf]
      %v387 = vld [vmem:[%s352 + $0x78] sm:$0xf]
      %v388 = vld [vmem:[%s352 + $0x7c] sm:$0xf]
      %v389 = vld [vmem:[%s352 + $0x80] sm:$0xf]
      %v390 = vld [vmem:[%s352 + $0x84] sm:$0xf]
      %v391 = vld [vmem:[%s352 + $0x88] sm:$0xf]
      %v392 = vld [vmem:[%s352 + $0x8c] sm:$0xf]
      %v393 = vld [vmem:[%s352 + $0x90] sm:$0xf]
      %v394 = vld [vmem:[%s352 + $0x94] sm:$0xf]
      %v395 = vld [vmem:[%s352 + $0x98] sm:$0xf]
      %v396 = vld [vmem:[%s352 + $0x9c] sm:$0xf]
      %v397 = vld [vmem:[%s352 + $0xa0] sm:$0xf]
      %v398 = vld [vmem:[%s352 + $0xa4] sm:$0xf]
      %v399 = vld [vmem:[%s352 + $0xa8] sm:$0xf]
      %v400 = vld [vmem:[%s352 + $0xac] sm:$0xf]
      %v401 = vld [vmem:[%s352 + $0xb0] sm:$0xf]
      %v402 = vld [vmem:[%s352 + $0xb4] sm:$0xf]
      %v403 = vld [vmem:[%s352 + $0xb8] sm:$0xf]
      %v404 = vld [vmem:[%s352 + $0xbc] sm:$0xf]
      %v405 = vld [vmem:[%s352 + $0xc0] sm:$0xf]
      %v406 = vld [vmem:[%s352 + $0xc4] sm:$0xf]
      %v407 = vld [vmem:[%s352 + $0xc8] sm:$0xf]
      %v408 = vld [vmem:[%s352 + $0xcc] sm:$0xf]
      %v409 = vld [vmem:[%s352 + $0xd0] sm:$0xf]
      %v410 = vld [vmem:[%s352 + $0xd4] sm:$0xf]
      %v411 = vld [vmem:[%s352 + $0xd8] sm:$0xf]
      %v412 = vld [vmem:[%s352 + $0xdc] sm:$0xf]
      %v413 = vld [vmem:[%s352 + $0xe0] sm:$0xf]
      %v414 = vld [vmem:[%s352 + $0xe4] sm:$0xf]
      %v415 = vld [vmem:[%s352 + $0xe8] sm:$0xf]
      %v416 = vld [vmem:[%s352 + $0xec] sm:$0xf]
      %v417 = vld [vmem:[%s352 + $0xf0] sm:$0xf]
      %v418 = vld [vmem:[%s352 + $0xf4] sm:$0xf]
      %v419 = vld [vmem:[%s352 + $0xf8] sm:$0xf]
      %v420 = vld [vmem:[%s352 + $0xfc] sm:$0xf]
      %v421 = vld [vmem:[%s352 + $0x100] sm:$0xf]
      %v422 = vld [vmem:[%s352 + $0x104] sm:$0xf]
      %v423 = vld [vmem:[%s352 + $0x108] sm:$0xf]
      %v424 = vld [vmem:[%s352 + $0x10c] sm:$0xf]
      %v425 = vld [vmem:[%s352 + $0x110] sm:$0xf]
      %v426 = vld [vmem:[%s352 + $0x114] sm:$0xf]
      %v427 = vld [vmem:[%s352 + $0x118] sm:$0xf]
      %v428 = vld [vmem:[%s352 + $0x11c] sm:$0xf]
      %v429 = vld [vmem:[%s1] sm:$0xf]
      %v430 = vld [vmem:[%s1 + $0x4] sm:$0xf]
      %v431 = vld [vmem:[%s1 + $0x8] sm:$0xf]
      %v432 = vld [vmem:[%s1 + $0xc] sm:$0x1]
      %v433 = vld [vmem:[%s2] sm:$0x1]
      %v435 = vlaneseq
      %v436 = vshrl.u32 %v435, 7
      %v437 = vsub.s32 0, %v436
      %v438 = vrot.slane %v433, %v437
      %v512 = vunpack.c.l.b16 %v357
      %v513 = vunpack.c.l.b16 %v358
      %v514 = vunpack.c.l.b16 %v359
      %v515 = vunpack.c.l.b16 %v360
      %v516 = vunpack.c.l.b16 %v361
      %v517 = vunpack.c.l.b16 %v362
      %v518 = vunpack.c.l.b16 %v363
      %v519 = vunpack.c.l.b16 %v364
      %v520 = vunpack.c.l.b16 %v365
      %v521 = vunpack.c.l.b16 %v366
      %v522 = vunpack.c.l.b16 %v367
      %v523 = vunpack.c.l.b16 %v368
      %v524 = vunpack.c.l.b16 %v369
      %v525 = vunpack.c.l.b16 %v370
      %v526 = vunpack.c.l.b16 %v371
      %v527 = vunpack.c.l.b16 %v372
      %v528 = vunpack.c.l.b16 %v373
      %v529 = vunpack.c.l.b16 %v374
      %v530 = vunpack.c.l.b16 %v375
      %v531 = vunpack.c.l.b16 %v376
      %v532 = vunpack.c.l.b16 %v377
      %v533 = vunpack.c.l.b16 %v378
      %v534 = vunpack.c.l.b16 %v379
      %v535 = vunpack.c.l.b16 %v380
      %v536 = vunpack.c.l.b16 %v381
      %v537 = vunpack.c.l.b16 %v382
      %v538 = vunpack.c.l.b16 %v383
      %v539 = vunpack.c.l.b16 %v384
      %v540 = vunpack.c.l.b16 %v385
      %v541 = vunpack.c.l.b16 %v386
      %v542 = vunpack.c.l.b16 %v387
      %v543 = vunpack.c.l.b16 %v388
      %v544 = vunpack.c.l.b16 %v389
      %v545 = vunpack.c.l.b16 %v390
      %v546 = vunpack.c.l.b16 %v391
      %v547 = vunpack.c.l.b16 %v392
      %v548 = vunpack.c.l.b16 %v393
      %v549 = vunpack.c.l.b16 %v394
      %v550 = vunpack.c.l.b16 %v395
      %v551 = vunpack.c.l.b16 %v396
      %v552 = vunpack.c.l.b16 %v397
      %v553 = vunpack.c.l.b16 %v398
      %v554 = vunpack.c.l.b16 %v399
      %v555 = vunpack.c.l.b16 %v400
      %v556 = vunpack.c.l.b16 %v401
      %v557 = vunpack.c.l.b16 %v402
      %v558 = vunpack.c.l.b16 %v403
      %v559 = vunpack.c.l.b16 %v404
      %v560 = vunpack.c.l.b16 %v405
      %v561 = vunpack.c.l.b16 %v406
      %v562 = vunpack.c.l.b16 %v407
      %v563 = vunpack.c.l.b16 %v408
      %v564 = vunpack.c.l.b16 %v409
      %v565 = vunpack.c.l.b16 %v410
      %v566 = vunpack.c.l.b16 %v411
      %v567 = vunpack.c.l.b16 %v412
      %v568 = vunpack.c.l.b16 %v413
      %v569 = vunpack.c.l.b16 %v414
      %v570 = vunpack.c.l.b16 %v415
      %v571 = vunpack.c.l.b16 %v416
      %v572 = vunpack.c.l.b16 %v417
      %v573 = vunpack.c.l.b16 %v418
      %v574 = vunpack.c.l.b16 %v419
      %v575 = vunpack.c.l.b16 %v420
      %v576 = vunpack.c.l.b16 %v421
      %v577 = vunpack.c.l.b16 %v422
      %v578 = vunpack.c.l.b16 %v423
      %v579 = vunpack.c.l.b16 %v424
      %v580 = vunpack.c.l.b16 %v425
      %v581 = vunpack.c.l.b16 %v426
      %v582 = vunpack.c.l.b16 %v427
      %v583 = vunpack.c.l.b16 %v428
      %v584 = vpack.c.b16 %v513, %v512
      %v585 = vpack.c.b16 %v515, %v514
      %v586 = vpack.c.b16 %v517, %v516
      %v587 = vpack.c.b16 %v519, %v518
      %v588 = vpack.c.b16 %v521, %v520
      %v589 = vpack.c.b16 %v523, %v522
      %v590 = vpack.c.b16 %v525, %v524
      %v591 = vpack.c.b16 %v527, %v526
      %v592 = vpack.c.b16 %v529, %v528
      %v593 = vpack.c.b16 %v531, %v530
      %v594 = vpack.c.b16 %v533, %v532
      %v595 = vpack.c.b16 %v535, %v534
      %v596 = vpack.c.b16 %v537, %v536
      %v597 = vpack.c.b16 %v539, %v538
      %v598 = vpack.c.b16 %v541, %v540
      %v599 = vpack.c.b16 %v543, %v542
      %v600 = vpack.c.b16 %v545, %v544
      %v601 = vpack.c.b16 %v547, %v546
      %v602 = vpack.c.b16 %v549, %v548
      %v603 = vpack.c.b16 %v551, %v550
      %v604 = vpack.c.b16 %v553, %v552
      %v605 = vpack.c.b16 %v555, %v554
      %v606 = vpack.c.b16 %v557, %v556
      %v607 = vpack.c.b16 %v559, %v558
      %v608 = vpack.c.b16 %v561, %v560
      %v609 = vpack.c.b16 %v563, %v562
      %v610 = vpack.c.b16 %v565, %v564
      %v611 = vpack.c.b16 %v567, %v566
      %v612 = vpack.c.b16 %v569, %v568
      %v613 = vpack.c.b16 %v571, %v570
      %v614 = vpack.c.b16 %v573, %v572
      %v615 = vpack.c.b16 %v575, %v574
      %v616 = vpack.c.b16 %v577, %v576
      %v617 = vpack.c.b16 %v579, %v578
      %v618 = vpack.c.b16 %v581, %v580
      %v619 = vpack.c.b16 %v583, %v582
      %v624 = vunpack.c.l.b16 %v429
      %v625 = vunpack.c.l.b16 %v430
      %v626 = vunpack.c.l.b16 %v431
      %v627 = vunpack.c.l.b16 %v432
      %v628 = vpack.c.b16 %v625, %v624
      %v629 = vpack.c.b16 %v627, %v626
      %vm631 = vcmask 203776
      %v633 = vsel %vm631, %v584, 0
      %v636 = vsel %vm631, %v585, 0
      %v639 = vsel %vm631, %v586, 0
      %v642 = vsel %vm631, %v587, 0
      %v645 = vsel %vm631, %v588, 0
      %v648 = vsel %vm631, %v589, 0
      %v651 = vsel %vm631, %v590, 0
      %v654 = vsel %vm631, %v591, 0
      %v657 = vsel %vm631, %v592, 0
      %v660 = vsel %vm631, %v593, 0
      %v663 = vsel %vm631, %v594, 0
      %v666 = vsel %vm631, %v595, 0
      %v669 = vsel %vm631, %v596, 0
      %v672 = vsel %vm631, %v597, 0
      %v675 = vsel %vm631, %v598, 0
      %v678 = vsel %vm631, %v599, 0
      %v681 = vsel %vm631, %v600, 0
      %v684 = vsel %vm631, %v601, 0
      %v687 = vsel %vm631, %v602, 0
      %v690 = vsel %vm631, %v603, 0
      %v693 = vsel %vm631, %v604, 0
      %v696 = vsel %vm631, %v605, 0
      %v699 = vsel %vm631, %v606, 0
      %v702 = vsel %vm631, %v607, 0
      %v705 = vsel %vm631, %v608, 0
      %v708 = vsel %vm631, %v609, 0
      %v711 = vsel %vm631, %v610, 0
      %v714 = vsel %vm631, %v611, 0
      %v717 = vsel %vm631, %v612, 0
      %v720 = vsel %vm631, %v613, 0
      %v723 = vsel %vm631, %v614, 0
      %v726 = vsel %vm631, %v615, 0
      %v729 = vsel %vm631, %v616, 0
      %v732 = vsel %vm631, %v617, 0
      %v735 = vsel %vm631, %v618, 0
      %v738 = vsel %vm631, %v619, 0
      %vm740 = vcmask 1043456
      %vm741 = vcmask 1044480
      %v742 = vsel %vm740, 4294967295, 65535
      %v743 = vsel %vm741, %v742, 0
      %v745 = vand.u32 %v629, %v743
      %747 = vmatprep.subr.bf16.mxu0 0
      %748 = vmatpush1.bf16.msra.mxu0 %v628
      %749 = vmatprep.subr.bf16.mxu0 0
      %750 = vmatpush1.bf16.msra.mxu0 %v745
      %751 = vmatprep.subr.bf16.mxu0 0
      %752 = vmatpush1.bf16.msra.mxu0 0
      %753 = vmatprep.subr.bf16.mxu0 0
      %754 = vmatpush1.bf16.msra.mxu0 0
      %755 = vmatprep.subr.bf16.mxu0 0
      %756 = vmatpush1.bf16.msra.mxu0 0
      %757 = vmatprep.subr.bf16.mxu0 0
      %758 = vmatpush1.bf16.msra.mxu0 0
      %759 = vmatprep.subr.bf16.mxu0 0
      %760 = vmatpush1.bf16.msra.mxu0 0
      %761 = vmatprep.subr.bf16.mxu0 0
      %762 = vmatpush1.bf16.msra.mxu0 0
      %763 = vmatprep.subr.bf16.mxu0 0
      %764 = vmatpush1.bf16.msra.mxu0 0
      %765 = vmatprep.subr.bf16.mxu0 0
      %766 = vmatpush1.bf16.msra.mxu0 0
      %767 = vmatprep.subr.bf16.mxu0 0
      %768 = vmatpush1.bf16.msra.mxu0 0
      %769 = vmatprep.subr.bf16.mxu0 0
      %770 = vmatpush1.bf16.msra.mxu0 0
      %771 = vmatprep.subr.bf16.mxu0 0
      %772 = vmatpush1.bf16.msra.mxu0 0
      %773 = vmatprep.subr.bf16.mxu0 0
      %774 = vmatpush1.bf16.msra.mxu0 0
      %775 = vmatprep.subr.bf16.mxu0 0
      %776 = vmatpush1.bf16.msra.mxu0 0
      %777 = vmatprep.subr.bf16.mxu0 0
      %778 = vmatpush1.bf16.msra.mxu0 0
      %779 = vmatprep.mubr.bf16.mxu0 0
      %780 = vmatmul.mubr.bf16.gmra.mrb[0].mxu0 %v633
      %v781 = vpop.f32.mrb[0].mxu0
      %v782 = vadd.f32 %v438, %v781
      %v783 = vpop.f32.mrb[0].mxu0
      %v784 = vpop.f32.mrb[0].mxu0
      %v785 = vadd.f32 %v438, %v784
      %v786 = vpop.f32.mrb[0].mxu0
      %787 = vmatprep.mubr.bf16.mxu0 0
      %788 = vmatmul.mubr.bf16.gmra.mrb[0].mxu0 %v636
      %v789 = vpop.f32.mrb[0].mxu0
      %v790 = vadd.f32 %v438, %v789
      %v791 = vpop.f32.mrb[0].mxu0
      %v792 = vpop.f32.mrb[0].mxu0
      %v793 = vadd.f32 %v438, %v792
      %v794 = vpop.f32.mrb[0].mxu0
      %795 = vmatprep.mubr.bf16.mxu0 0
      %796 = vmatmul.mubr.bf16.gmra.mrb[0].mxu0 %v639
      %v797 = vpop.f32.mrb[0].mxu0
      %v798 = vadd.f32 %v438, %v797
      %v799 = vpop.f32.mrb[0].mxu0
      %v800 = vpop.f32.mrb[0].mxu0
      %v801 = vadd.f32 %v438, %v800
      %v802 = vpop.f32.mrb[0].mxu0
      %803 = vmatprep.mubr.bf16.mxu0 0
      %804 = vmatmul.mubr.bf16.gmra.mrb[0].mxu0 %v642
      %v805 = vpop.f32.mrb[0].mxu0
      %v806 = vadd.f32 %v438, %v805
      %v807 = vpop.f32.mrb[0].mxu0
      %v808 = vpop.f32.mrb[0].mxu0
      %v809 = vadd.f32 %v438, %v808
      %v810 = vpop.f32.mrb[0].mxu0
      %811 = vmatprep.mubr.bf16.mxu0 0
      %812 = vmatmul.mubr.bf16.gmra.mrb[0].mxu0 %v645
      %v813 = vpop.f32.mrb[0].mxu0
      %v814 = vadd.f32 %v438, %v813
      %v815 = vpop.f32.mrb[0].mxu0
      %v816 = vpop.f32.mrb[0].mxu0
      %v817 = vadd.f32 %v438, %v816
      %v818 = vpop.f32.mrb[0].mxu0
      %819 = vmatprep.mubr.bf16.mxu0 0
      %820 = vmatmul.mubr.bf16.gmra.mrb[0].mxu0 %v648
      %v821 = vpop.f32.mrb[0].mxu0
      %v822 = vadd.f32 %v438, %v821
      %v823 = vpop.f32.mrb[0].mxu0
      %v824 = vpop.f32.mrb[0].mxu0
      %v825 = vadd.f32 %v438, %v824
      %v826 = vpop.f32.mrb[0].mxu0
      %827 = vmatprep.mubr.bf16.mxu0 0
      %828 = vmatmul.mubr.bf16.gmra.mrb[0].mxu0 %v651
      %v829 = vpop.f32.mrb[0].mxu0
      %v830 = vadd.f32 %v438, %v829
      %v831 = vpop.f32.mrb[0].mxu0
      %v832 = vpop.f32.mrb[0].mxu0
      %v833 = vadd.f32 %v438, %v832
      %v834 = vpop.f32.mrb[0].mxu0
      %835 = vmatprep.mubr.bf16.mxu0 0
      %836 = vmatmul.mubr.bf16.gmra.mrb[0].mxu0 %v654
      %v837 = vpop.f32.mrb[0].mxu0
      %v838 = vadd.f32 %v438, %v837
      %v839 = vpop.f32.mrb[0].mxu0
      %v840 = vpop.f32.mrb[0].mxu0
      %v841 = vadd.f32 %v438, %v840
      %v842 = vpop.f32.mrb[0].mxu0
      %843 = vmatprep.mubr.bf16.mxu0 0
      %844 = vmatmul.mubr.bf16.gmra.mrb[0].mxu0 %v657
      %v845 = vpop.f32.mrb[0].mxu0
      %v846 = vadd.f32 %v438, %v845
      %v847 = vpop.f32.mrb[0].mxu0
      %v848 = vpop.f32.mrb[0].mxu0
      %v849 = vadd.f32 %v438, %v848
      %v850 = vpop.f32.mrb[0].mxu0
      %851 = vmatprep.mubr.bf16.mxu0 0
      %852 = vmatmul.mubr.bf16.gmra.mrb[0].mxu0 %v660
      %v853 = vpop.f32.mrb[0].mxu0
      %v854 = vadd.f32 %v438, %v853
      %v855 = vpop.f32.mrb[0].mxu0
      %v856 = vpop.f32.mrb[0].mxu0
      %v857 = vadd.f32 %v438, %v856
      %v858 = vpop.f32.mrb[0].mxu0
      %859 = vmatprep.mubr.bf16.mxu0 0
      %860 = vmatmul.mubr.bf16.gmra.mrb[0].mxu0 %v663
      %v861 = vpop.f32.mrb[0].mxu0
      %v862 = vadd.f32 %v438, %v861
      %v863 = vpop.f32.mrb[0].mxu0
      %v864 = vpop.f32.mrb[0].mxu0
      %v865 = vadd.f32 %v438, %v864
      %v866 = vpop.f32.mrb[0].mxu0
      %867 = vmatprep.mubr.bf16.mxu0 0
      %868 = vmatmul.mubr.bf16.gmra.mrb[0].mxu0 %v666
      %v869 = vpop.f32.mrb[0].mxu0
      %v870 = vadd.f32 %v438, %v869
      %v871 = vpop.f32.mrb[0].mxu0
      %v872 = vpop.f32.mrb[0].mxu0
      %v873 = vadd.f32 %v438, %v872
      %v874 = vpop.f32.mrb[0].mxu0
      %875 = vmatprep.mubr.bf16.mxu0 0
      %876 = vmatmul.mubr.bf16.gmra.mrb[0].mxu0 %v669
      %v877 = vpop.f32.mrb[0].mxu0
      %v878 = vadd.f32 %v438, %v877
      %v879 = vpop.f32.mrb[0].mxu0
      %v880 = vpop.f32.mrb[0].mxu0
      %v881 = vadd.f32 %v438, %v880
      %v882 = vpop.f32.mrb[0].mxu0
      %883 = vmatprep.mubr.bf16.mxu0 0
      %884 = vmatmul.mubr.bf16.gmra.mrb[0].mxu0 %v672
      %v885 = vpop.f32.mrb[0].mxu0
      %v886 = vadd.f32 %v438, %v885
      %v887 = vpop.f32.mrb[0].mxu0
      %v888 = vpop.f32.mrb[0].mxu0
      %v889 = vadd.f32 %v438, %v888
      %v890 = vpop.f32.mrb[0].mxu0
      %891 = vmatprep.mubr.bf16.mxu0 0
      %892 = vmatmul.mubr.bf16.gmra.mrb[0].mxu0 %v675
      %v893 = vpop.f32.mrb[0].mxu0
      %v894 = vadd.f32 %v438, %v893
      %v895 = vpop.f32.mrb[0].mxu0
      %v896 = vpop.f32.mrb[0].mxu0
      %v897 = vadd.f32 %v438, %v896
      %v898 = vpop.f32.mrb[0].mxu0
      %899 = vmatprep.mubr.bf16.mxu0 0
      %900 = vmatmul.mubr.bf16.gmra.mrb[0].mxu0 %v678
      %v901 = vpop.f32.mrb[0].mxu0
      %v902 = vadd.f32 %v438, %v901
      %v903 = vpop.f32.mrb[0].mxu0
      %v904 = vpop.f32.mrb[0].mxu0
      %v905 = vadd.f32 %v438, %v904
      %v906 = vpop.f32.mrb[0].mxu0
      %907 = vmatprep.mubr.bf16.mxu0 0
      %908 = vmatmul.mubr.bf16.gmra.mrb[0].mxu0 %v681
      %v909 = vpop.f32.mrb[0].mxu0
      %v910 = vadd.f32 %v438, %v909
      %v911 = vpop.f32.mrb[0].mxu0
      %v912 = vpop.f32.mrb[0].mxu0
      %v913 = vadd.f32 %v438, %v912
      %v914 = vpop.f32.mrb[0].mxu0
      %915 = vmatprep.mubr.bf16.mxu0 0
      %916 = vmatmul.mubr.bf16.gmra.mrb[0].mxu0 %v684
      %v917 = vpop.f32.mrb[0].mxu0
      %v918 = vadd.f32 %v438, %v917
      %v919 = vpop.f32.mrb[0].mxu0
      %v920 = vpop.f32.mrb[0].mxu0
      %v921 = vadd.f32 %v438, %v920
      %v922 = vpop.f32.mrb[0].mxu0
      %923 = vmatprep.mubr.bf16.mxu0 0
      %924 = vmatmul.mubr.bf16.gmra.mrb[0].mxu0 %v687
      %v925 = vpop.f32.mrb[0].mxu0
      %v926 = vadd.f32 %v438, %v925
      %v927 = vpop.f32.mrb[0].mxu0
      %v928 = vpop.f32.mrb[0].mxu0
      %v929 = vadd.f32 %v438, %v928
      %v930 = vpop.f32.mrb[0].mxu0
      %931 = vmatprep.mubr.bf16.mxu0 0
      %932 = vmatmul.mubr.bf16.gmra.mrb[0].mxu0 %v690
      %v933 = vpop.f32.mrb[0].mxu0
      %v934 = vadd.f32 %v438, %v933
      %v935 = vpop.f32.mrb[0].mxu0
      %v936 = vpop.f32.mrb[0].mxu0
      %v937 = vadd.f32 %v438, %v936
      %v938 = vpop.f32.mrb[0].mxu0
      %939 = vmatprep.mubr.bf16.mxu0 0
      %940 = vmatmul.mubr.bf16.gmra.mrb[0].mxu0 %v693
      %v941 = vpop.f32.mrb[0].mxu0
      %v942 = vadd.f32 %v438, %v941
      %v943 = vpop.f32.mrb[0].mxu0
      %v944 = vpop.f32.mrb[0].mxu0
      %v945 = vadd.f32 %v438, %v944
      %v946 = vpop.f32.mrb[0].mxu0
      %947 = vmatprep.mubr.bf16.mxu0 0
      %948 = vmatmul.mubr.bf16.gmra.mrb[0].mxu0 %v696
      %v949 = vpop.f32.mrb[0].mxu0
      %v950 = vadd.f32 %v438, %v949
      %v951 = vpop.f32.mrb[0].mxu0
      %v952 = vpop.f32.mrb[0].mxu0
      %v953 = vadd.f32 %v438, %v952
      %v954 = vpop.f32.mrb[0].mxu0
      %955 = vmatprep.mubr.bf16.mxu0 0
      %956 = vmatmul.mubr.bf16.gmra.mrb[0].mxu0 %v699
      %v957 = vpop.f32.mrb[0].mxu0
      %v958 = vadd.f32 %v438, %v957
      %v959 = vpop.f32.mrb[0].mxu0
      %v960 = vpop.f32.mrb[0].mxu0
      %v961 = vadd.f32 %v438, %v960
      %v962 = vpop.f32.mrb[0].mxu0
      %963 = vmatprep.mubr.bf16.mxu0 0
      %964 = vmatmul.mubr.bf16.gmra.mrb[0].mxu0 %v702
      %v965 = vpop.f32.mrb[0].mxu0
      %v966 = vadd.f32 %v438, %v965
      %v967 = vpop.f32.mrb[0].mxu0
      %v968 = vpop.f32.mrb[0].mxu0
      %v969 = vadd.f32 %v438, %v968
      %v970 = vpop.f32.mrb[0].mxu0
      %971 = vmatprep.mubr.bf16.mxu0 0
      %972 = vmatmul.mubr.bf16.gmra.mrb[0].mxu0 %v705
      %v973 = vpop.f32.mrb[0].mxu0
      %v974 = vadd.f32 %v438, %v973
      %v975 = vpop.f32.mrb[0].mxu0
      %v976 = vpop.f32.mrb[0].mxu0
      %v977 = vadd.f32 %v438, %v976
      %v978 = vpop.f32.mrb[0].mxu0
      %979 = vmatprep.mubr.bf16.mxu0 0
      %980 = vmatmul.mubr.bf16.gmra.mrb[0].mxu0 %v708
      %v981 = vpop.f32.mrb[0].mxu0
      %v982 = vadd.f32 %v438, %v981
      %v983 = vpop.f32.mrb[0].mxu0
      %v984 = vpop.f32.mrb[0].mxu0
      %v985 = vadd.f32 %v438, %v984
      %v986 = vpop.f32.mrb[0].mxu0
      %987 = vmatprep.mubr.bf16.mxu0 0
      %988 = vmatmul.mubr.bf16.gmra.mrb[0].mxu0 %v711
      %v989 = vpop.f32.mrb[0].mxu0
      %v990 = vadd.f32 %v438, %v989
      %v991 = vpop.f32.mrb[0].mxu0
      %v992 = vpop.f32.mrb[0].mxu0
      %v993 = vadd.f32 %v438, %v992
      %v994 = vpop.f32.mrb[0].mxu0
      %995 = vmatprep.mubr.bf16.mxu0 0
      %996 = vmatmul.mubr.bf16.gmra.mrb[0].mxu0 %v714
      %v997 = vpop.f32.mrb[0].mxu0
      %v998 = vadd.f32 %v438, %v997
      %v999 = vpop.f32.mrb[0].mxu0
      %v1000 = vpop.f32.mrb[0].mxu0
      %v1001 = vadd.f32 %v438, %v1000
      %v1002 = vpop.f32.mrb[0].mxu0
      %1003 = vmatprep.mubr.bf16.mxu0 0
      %1004 = vmatmul.mubr.bf16.gmra.mrb[0].mxu0 %v717
      %v1005 = vpop.f32.mrb[0].mxu0
      %v1006 = vadd.f32 %v438, %v1005
      %v1007 = vpop.f32.mrb[0].mxu0
      %v1008 = vpop.f32.mrb[0].mxu0
      %v1009 = vadd.f32 %v438, %v1008
      %v1010 = vpop.f32.mrb[0].mxu0
      %1011 = vmatprep.mubr.bf16.mxu0 0
      %1012 = vmatmul.mubr.bf16.gmra.mrb[0].mxu0 %v720
      %v1013 = vpop.f32.mrb[0].mxu0
      %v1014 = vadd.f32 %v438, %v1013
      %v1015 = vpop.f32.mrb[0].mxu0
      %v1016 = vpop.f32.mrb[0].mxu0
      %v1017 = vadd.f32 %v438, %v1016
      %v1018 = vpop.f32.mrb[0].mxu0
      %1019 = vmatprep.mubr.bf16.mxu0 0
      %1020 = vmatmul.mubr.bf16.gmra.mrb[0].mxu0 %v723
      %v1021 = vpop.f32.mrb[0].mxu0
      %v1022 = vadd.f32 %v438, %v1021
      %v1023 = vpop.f32.mrb[0].mxu0
      %v1024 = vpop.f32.mrb[0].mxu0
      %v1025 = vadd.f32 %v438, %v1024
      %v1026 = vpop.f32.mrb[0].mxu0
      %1027 = vmatprep.mubr.bf16.mxu0 0
      %1028 = vmatmul.mubr.bf16.gmra.mrb[0].mxu0 %v726
      %v1029 = vpop.f32.mrb[0].mxu0
      %v1030 = vadd.f32 %v438, %v1029
      %v1031 = vpop.f32.mrb[0].mxu0
      %v1032 = vpop.f32.mrb[0].mxu0
      %v1033 = vadd.f32 %v438, %v1032
      %v1034 = vpop.f32.mrb[0].mxu0
      %1035 = vmatprep.mubr.bf16.mxu0 0
      %1036 = vmatmul.mubr.bf16.gmra.mrb[0].mxu0 %v729
      %v1037 = vpop.f32.mrb[0].mxu0
      %v1038 = vadd.f32 %v438, %v1037
      %v1039 = vpop.f32.mrb[0].mxu0
      %v1040 = vpop.f32.mrb[0].mxu0
      %v1041 = vadd.f32 %v438, %v1040
      %v1042 = vpop.f32.mrb[0].mxu0
      %1043 = vmatprep.mubr.bf16.mxu0 0
      %1044 = vmatmul.mubr.bf16.gmra.mrb[0].mxu0 %v732
      %v1045 = vpop.f32.mrb[0].mxu0
      %v1046 = vadd.f32 %v438, %v1045
      %v1047 = vpop.f32.mrb[0].mxu0
      %v1048 = vpop.f32.mrb[0].mxu0
      %v1049 = vadd.f32 %v438, %v1048
      %v1050 = vpop.f32.mrb[0].mxu0
      %1051 = vmatprep.mubr.bf16.mxu0 0
      %1052 = vmatmul.mubr.bf16.gmra.mrb[0].mxu0 %v735
      %v1053 = vpop.f32.mrb[0].mxu0
      %v1054 = vadd.f32 %v438, %v1053
      %v1055 = vpop.f32.mrb[0].mxu0
      %v1056 = vpop.f32.mrb[0].mxu0
      %v1057 = vadd.f32 %v438, %v1056
      %v1058 = vpop.f32.mrb[0].mxu0
      %1059 = vmatprep.mubr.bf16.mxu0 0
      %1060 = vmatmul.mubr.bf16.gmra.mrb[0].mxu0 %v738
      %v1061 = vpop.f32.mrb[0].mxu0
      %v1062 = vadd.f32 %v438, %v1061
      %v1063 = vpop.f32.mrb[0].mxu0
      %v1064 = vpop.f32.mrb[0].mxu0
      %v1065 = vadd.f32 %v438, %v1064
      %v1066 = vpop.f32.mrb[0].mxu0
      %1067 = vdwg.mxu0
      %v1068 = vmax.f32 %v782, %v854
      %v1069 = vmax.f32 %v785, %v857
      %v1070 = vmax.f32 %v790, %v862
      %v1071 = vmax.f32 %v793, %v865
      %v1072 = vmax.f32 %v798, %v870
      %v1073 = vmax.f32 %v801, %v873
      %v1074 = vmax.f32 %v806, %v878
      %v1075 = vmax.f32 %v809, %v881
      %v1076 = vmax.f32 %v814, %v886
      %v1077 = vmax.f32 %v817, %v889
      %v1078 = vmax.f32 %v822, %v894
      %v1079 = vmax.f32 %v825, %v897
      %v1080 = vmax.f32 %v830, %v902
      %v1081 = vmax.f32 %v833, %v905
      %v1082 = vmax.f32 %v838, %v910
      %v1083 = vmax.f32 %v841, %v913
      %v1084 = vmax.f32 %v846, %v918
      %v1085 = vmax.f32 %v849, %v921
      %v1086 = vmax.f32 %v926, %v998
      %v1087 = vmax.f32 %v929, %v1001
      %v1088 = vmax.f32 %v934, %v1006
      %v1089 = vmax.f32 %v937, %v1009
      %v1090 = vmax.f32 %v942, %v1014
      %v1091 = vmax.f32 %v945, %v1017
      %v1092 = vmax.f32 %v950, %v1022
      %v1093 = vmax.f32 %v953, %v1025
      %v1094 = vmax.f32 %v958, %v1030
      %v1095 = vmax.f32 %v961, %v1033
      %v1096 = vmax.f32 %v966, %v1038
      %v1097 = vmax.f32 %v969, %v1041
      %v1098 = vmax.f32 %v974, %v1046
      %v1099 = vmax.f32 %v977, %v1049
      %v1100 = vmax.f32 %v982, %v1054
      %v1101 = vmax.f32 %v985, %v1057
      %v1102 = vmax.f32 %v990, %v1062
      %v1103 = vmax.f32 %v993, %v1065
      %v1104 = vmax.f32 %v1068, %v1086
      %v1105 = vmax.f32 %v1069, %v1087
      %v1106 = vmax.f32 %v1070, %v1088
      %v1107 = vmax.f32 %v1071, %v1089
      %v1108 = vmax.f32 %v1072, %v1090
      %v1109 = vmax.f32 %v1073, %v1091
      %v1110 = vmax.f32 %v1074, %v1092
      %v1111 = vmax.f32 %v1075, %v1093
      %v1112 = vmax.f32 %v1076, %v1094
      %v1113 = vmax.f32 %v1077, %v1095
      %v1114 = vmax.f32 %v1078, %v1096
      %v1115 = vmax.f32 %v1079, %v1097
      %v1116 = vmax.f32 %v1080, %v1098
      %v1117 = vmax.f32 %v1081, %v1099
      %v1118 = vmax.f32 %v1082, %v1100
      %v1119 = vmax.f32 %v1083, %v1101
      %v1120 = vmax.f32 %v1084, %v1102
      %v1121 = vmax.f32 %v1085, %v1103
      %v1122 = vmax.f32 %v1104, 0.0
      %v1123 = vmax.f32 %v1105, 0.0
      %v1124 = vmax.f32 %v1106, 0.0
      %v1125 = vmax.f32 %v1107, 0.0
      %v1126 = vmax.f32 %v1108, 0.0
      %v1127 = vmax.f32 %v1109, 0.0
      %v1128 = vmax.f32 %v1110, 0.0
      %v1129 = vmax.f32 %v1111, 0.0
      %v1130 = vmax.f32 %v1112, 0.0
      %v1131 = vmax.f32 %v1113, 0.0
      %v1132 = vmax.f32 %v1114, 0.0
      %v1133 = vmax.f32 %v1115, 0.0
      %v1134 = vmax.f32 %v1116, 0.0
      %v1135 = vmax.f32 %v1117, 0.0
      %v1136 = vmax.f32 %v1118, 0.0
      %v1137 = vmax.f32 %v1119, 0.0
      %v1138 = vmax.f32 %v1120, 0.0
      %v1139 = vmax.f32 %v1121, 0.0
      %v1140 = vpack.c.bf16 %v1123, %v1122
      %v1141 = vpack.c.bf16 %v1125, %v1124
      %v1142 = vpack.c.bf16 %v1127, %v1126
      %v1143 = vpack.c.bf16 %v1129, %v1128
      %v1144 = vpack.c.bf16 %v1131, %v1130
      %v1145 = vpack.c.bf16 %v1133, %v1132
      %v1146 = vpack.c.bf16 %v1135, %v1134
      %v1147 = vpack.c.bf16 %v1137, %v1136
      %v1148 = vpack.c.bf16 %v1139, %v1138
      %v1149 = vld [vmem:[%s3] sm:$0xff]
      %v1150 = vld [vmem:[%s3 + $0x8] sm:$0xff]
      %v1151 = vld [vmem:[%s3 + $0x10] sm:$0xff]
      %v1152 = vld [vmem:[%s3 + $0x18] sm:$0xff]
      %v1153 = vld [vmem:[%s3 + $0x20] sm:$0xff]
      %v1154 = vld [vmem:[%s3 + $0x28] sm:$0xff]
      %v1155 = vld [vmem:[%s3 + $0x30] sm:$0xff]
      %v1156 = vld [vmem:[%s3 + $0x38] sm:$0xff]
      %v1157 = vld [vmem:[%s3 + $0x40] sm:$0xff]
      %v1158 = vld [vmem:[%s3 + $0x48] sm:$0xff]
      %v1159 = vld [vmem:[%s3 + $0x50] sm:$0xff]
      %v1160 = vld [vmem:[%s3 + $0x58] sm:$0xff]
      %v1161 = vld [vmem:[%s3 + $0x60] sm:$0xff]
      %v1162 = vld [vmem:[%s3 + $0x68] sm:$0xff]
      %v1163 = vld [vmem:[%s3 + $0x70] sm:$0xff]
      %v1164 = vld [vmem:[%s3 + $0x78] sm:$0xff]
      %v1165 = vld [vmem:[%s3 + $0x80] sm:$0xff]
      %v1166 = vld [vmem:[%s3 + $0x88] sm:$0xff]
      %v1167 = vld [vmem:[%s3 + $0x90] sm:$0xff]
      %v1168 = vld [vmem:[%s3 + $0x98] sm:$0xff]
      %v1169 = vld [vmem:[%s3 + $0xa0] sm:$0xff]
      %v1170 = vld [vmem:[%s3 + $0xa8] sm:$0xff]
      %v1171 = vld [vmem:[%s3 + $0xb0] sm:$0xff]
      %v1172 = vld [vmem:[%s3 + $0xb8] sm:$0xff]
      %v1173 = vld [vmem:[%s3 + $0xc0] sm:$0xff]
      %v1174 = vld [vmem:[%s3 + $0xc8] sm:$0xff]
      %v1175 = vld [vmem:[%s3 + $0xd0] sm:$0xff]
      %v1176 = vld [vmem:[%s3 + $0xd8] sm:$0xff]
      %v1177 = vld [vmem:[%s3 + $0xe0] sm:$0xff]
      %v1178 = vld [vmem:[%s3 + $0xe8] sm:$0xff]
      %v1179 = vld [vmem:[%s3 + $0xf0] sm:$0xff]
      %v1180 = vld [vmem:[%s3 + $0xf8] sm:$0xff]
      %v1181 = vld [vmem:[%s3 + $0x100] sm:$0xff]
      %v1182 = vld [vmem:[%s3 + $0x108] sm:$0xff]
      %v1183 = vld [vmem:[%s3 + $0x110] sm:$0xff]
      %v1184 = vld [vmem:[%s3 + $0x118] sm:$0xff]
      %v1185 = vld [vmem:[%s3 + $0x120] sm:$0xff]
      %v1186 = vld [vmem:[%s3 + $0x128] sm:$0xff]
      %v1187 = vld [vmem:[%s3 + $0x130] sm:$0xff]
      %v1188 = vld [vmem:[%s3 + $0x138] sm:$0xff]
      %v1189 = vld [vmem:[%s3 + $0x140] sm:$0xff]
      %v1190 = vld [vmem:[%s3 + $0x148] sm:$0xff]
      %v1191 = vld [vmem:[%s3 + $0x150] sm:$0xff]
      %v1192 = vld [vmem:[%s3 + $0x158] sm:$0xff]
      %v1193 = vld [vmem:[%s3 + $0x160] sm:$0xff]
      %v1194 = vld [vmem:[%s3 + $0x168] sm:$0xff]
      %v1195 = vld [vmem:[%s3 + $0x170] sm:$0xff]
      %v1196 = vld [vmem:[%s3 + $0x178] sm:$0xff]
      %v1197 = vld [vmem:[%s3 + $0x180] sm:$0xff]
      %v1198 = vld [vmem:[%s3 + $0x188] sm:$0xff]
      %v1199 = vld [vmem:[%s3 + $0x190] sm:$0xff]
      %v1200 = vld [vmem:[%s3 + $0x198] sm:$0xff]
      %v1201 = vld [vmem:[%s3 + $0x1a0] sm:$0xff]
      %v1202 = vld [vmem:[%s3 + $0x1a8] sm:$0xff]
      %v1203 = vld [vmem:[%s3 + $0x1b0] sm:$0xff]
      %v1204 = vld [vmem:[%s3 + $0x1b8] sm:$0xff]
      %v1205 = vld [vmem:[%s3 + $0x1c0] sm:$0xff]
      %v1206 = vld [vmem:[%s3 + $0x1c8] sm:$0xff]
      %v1207 = vld [vmem:[%s3 + $0x1d0] sm:$0xff]
      %v1208 = vld [vmem:[%s3 + $0x1d8] sm:$0xff]
      %v1209 = vld [vmem:[%s3 + $0x1e0] sm:$0xff]
      %v1210 = vld [vmem:[%s3 + $0x1e8] sm:$0xff]
      %v1211 = vld [vmem:[%s3 + $0x1f0] sm:$0xff]
      %v1212 = vld [vmem:[%s3 + $0x1f8] sm:$0xff]
      %v1213 = vld [vmem:[%s3 + $0x200] sm:$0xff]
      %v1214 = vld [vmem:[%s3 + $0x208] sm:$0xff]
      %v1215 = vld [vmem:[%s3 + $0x210] sm:$0xff]
      %v1216 = vld [vmem:[%s3 + $0x218] sm:$0xff]
      %v1217 = vld [vmem:[%s3 + $0x220] sm:$0xff]
      %v1218 = vld [vmem:[%s3 + $0x228] sm:$0xff]
      %v1219 = vld [vmem:[%s3 + $0x230] sm:$0xff]
      %v1220 = vld [vmem:[%s3 + $0x238] sm:$0xff]
      %v1221 = vld [vmem:[%s3 + $0x240] sm:$0xff]
      %v1222 = vld [vmem:[%s3 + $0x248] sm:$0xff]
      %v1223 = vld [vmem:[%s3 + $0x250] sm:$0xff]
      %v1224 = vld [vmem:[%s3 + $0x258] sm:$0xff]
      %v1225 = vld [vmem:[%s3 + $0x260] sm:$0xff]
      %v1226 = vld [vmem:[%s3 + $0x268] sm:$0xff]
      %v1227 = vld [vmem:[%s3 + $0x270] sm:$0xff]
      %v1228 = vld [vmem:[%s3 + $0x278] sm:$0xff]
      %v1229 = vld [vmem:[%s3 + $0x280] sm:$0xff]
      %v1230 = vld [vmem:[%s3 + $0x288] sm:$0xff]
      %v1231 = vld [vmem:[%s3 + $0x290] sm:$0xff]
      %v1232 = vld [vmem:[%s3 + $0x298] sm:$0xff]
      %v1233 = vld [vmem:[%s3 + $0x2a0] sm:$0xff]
      %v1234 = vld [vmem:[%s3 + $0x2a8] sm:$0xff]
      %v1235 = vld [vmem:[%s3 + $0x2b0] sm:$0xff]
      %v1236 = vld [vmem:[%s3 + $0x2b8] sm:$0xff]
      %v1237 = vld [vmem:[%s3 + $0x2c0] sm:$0xff]
      %v1238 = vld [vmem:[%s3 + $0x2c8] sm:$0xff]
      %v1239 = vld [vmem:[%s3 + $0x2d0] sm:$0xff]
      %v1240 = vld [vmem:[%s3 + $0x2d8] sm:$0xff]
      %v1241 = vld [vmem:[%s3 + $0x2e0] sm:$0xff]
      %v1242 = vld [vmem:[%s3 + $0x2e8] sm:$0xff]
      %v1243 = vld [vmem:[%s3 + $0x2f0] sm:$0xff]
      %v1244 = vld [vmem:[%s3 + $0x2f8] sm:$0xff]
      %v1245 = vld [vmem:[%s3 + $0x300] sm:$0xff]
      %v1246 = vld [vmem:[%s3 + $0x308] sm:$0xff]
      %v1247 = vld [vmem:[%s3 + $0x310] sm:$0xff]
      %v1248 = vld [vmem:[%s3 + $0x318] sm:$0xff]
      %v1249 = vld [vmem:[%s3 + $0x320] sm:$0xff]
      %v1250 = vld [vmem:[%s3 + $0x328] sm:$0xff]
      %v1251 = vld [vmem:[%s3 + $0x330] sm:$0xff]
      %v1252 = vld [vmem:[%s3 + $0x338] sm:$0xff]
      %v1253 = vld [vmem:[%s3 + $0x340] sm:$0xff]
      %v1254 = vld [vmem:[%s3 + $0x348] sm:$0xff]
      %v1255 = vld [vmem:[%s3 + $0x350] sm:$0xff]
      %v1256 = vld [vmem:[%s3 + $0x358] sm:$0xff]
      %v1257 = vld [vmem:[%s3 + $0x360] sm:$0xff]
      %v1258 = vld [vmem:[%s3 + $0x368] sm:$0xff]
      %v1259 = vld [vmem:[%s3 + $0x370] sm:$0xff]
      %v1260 = vld [vmem:[%s3 + $0x378] sm:$0xff]
      %v1261 = vld [vmem:[%s3 + $0x380] sm:$0xff]
      %v1262 = vld [vmem:[%s3 + $0x388] sm:$0xff]
      %v1263 = vld [vmem:[%s3 + $0x390] sm:$0xff]
      %v1264 = vld [vmem:[%s3 + $0x398] sm:$0xff]
      %v1265 = vld [vmem:[%s3 + $0x3a0] sm:$0xff]
      %v1266 = vld [vmem:[%s3 + $0x3a8] sm:$0xff]
      %v1267 = vld [vmem:[%s3 + $0x3b0] sm:$0xff]
      %v1268 = vld [vmem:[%s3 + $0x3b8] sm:$0xff]
      %v1269 = vld [vmem:[%s3 + $0x3c0] sm:$0xff]
      %v1270 = vld [vmem:[%s3 + $0x3c8] sm:$0xff]
      %v1271 = vld [vmem:[%s3 + $0x3d0] sm:$0xff]
      %v1272 = vld [vmem:[%s3 + $0x3d8] sm:$0xff]
      %v1273 = vld [vmem:[%s3 + $0x3e0] sm:$0xff]
      %v1274 = vld [vmem:[%s3 + $0x3e8] sm:$0xff]
      %v1275 = vld [vmem:[%s3 + $0x3f0] sm:$0xff]
      %v1276 = vld [vmem:[%s3 + $0x3f8] sm:$0xff]
      %v1277 = vld [vmem:[%s3 + $0x400] sm:$0xff]
      %v1278 = vld [vmem:[%s3 + $0x408] sm:$0xff]
      %v1279 = vld [vmem:[%s3 + $0x410] sm:$0xff]
      %v1280 = vld [vmem:[%s3 + $0x418] sm:$0xff]
      %v1281 = vld [vmem:[%s3 + $0x420] sm:$0xff]
      %v1282 = vld [vmem:[%s3 + $0x428] sm:$0xff]
      %v1283 = vld [vmem:[%s3 + $0x430] sm:$0xff]
      %v1284 = vld [vmem:[%s3 + $0x438] sm:$0xff]
      %v1285 = vld [vmem:[%s3 + $0x440] sm:$0xff]
      %v1286 = vld [vmem:[%s3 + $0x448] sm:$0xff]
      %v1287 = vld [vmem:[%s3 + $0x450] sm:$0xff]
      %v1288 = vld [vmem:[%s3 + $0x458] sm:$0xff]
      %v1289 = vld [vmem:[%s3 + $0x460] sm:$0xff]
      %v1290 = vld [vmem:[%s3 + $0x468] sm:$0xff]
      %v1291 = vld [vmem:[%s3 + $0x470] sm:$0xff]
      %v1292 = vld [vmem:[%s3 + $0x478] sm:$0xff]
      %v1293 = vld [vmem:[%s3 + $0x480] sm:$0xff]
      %v1294 = vld [vmem:[%s3 + $0x488] sm:$0xff]
      %v1295 = vld [vmem:[%s3 + $0x490] sm:$0xff]
      %v1296 = vld [vmem:[%s3 + $0x498] sm:$0xff]
      %v1297 = vld [vmem:[%s3 + $0x4a0] sm:$0xff]
      %v1298 = vld [vmem:[%s3 + $0x4a8] sm:$0xff]
      %v1299 = vld [vmem:[%s3 + $0x4b0] sm:$0xff]
      %v1300 = vld [vmem:[%s3 + $0x4b8] sm:$0xff]
      %v1301 = vld [vmem:[%s3 + $0x4c0] sm:$0xff]
      %v1302 = vld [vmem:[%s3 + $0x4c8] sm:$0xff]
      %v1303 = vld [vmem:[%s3 + $0x4d0] sm:$0xff]
      %v1304 = vld [vmem:[%s3 + $0x4d8] sm:$0xff]
      %v1305 = vld [vmem:[%s3 + $0x4e0] sm:$0xff]
      %v1306 = vld [vmem:[%s3 + $0x4e8] sm:$0xff]
      %v1307 = vld [vmem:[%s3 + $0x4f0] sm:$0xff]
      %v1308 = vld [vmem:[%s3 + $0x4f8] sm:$0xff]
      %v1309 = vld [vmem:[%s3 + $0x500] sm:$0xff]
      %v1310 = vld [vmem:[%s3 + $0x508] sm:$0xff]
      %v1311 = vld [vmem:[%s3 + $0x510] sm:$0xff]
      %v1312 = vld [vmem:[%s3 + $0x518] sm:$0xff]
      %v1313 = vld [vmem:[%s3 + $0x520] sm:$0xff]
      %v1314 = vld [vmem:[%s3 + $0x528] sm:$0xff]
      %v1315 = vld [vmem:[%s3 + $0x530] sm:$0xff]
      %v1316 = vld [vmem:[%s3 + $0x538] sm:$0xff]
      %v1317 = vld [vmem:[%s3 + $0x540] sm:$0xff]
      %v1318 = vld [vmem:[%s3 + $0x548] sm:$0xff]
      %v1319 = vld [vmem:[%s3 + $0x550] sm:$0xff]
      %v1320 = vld [vmem:[%s3 + $0x558] sm:$0xff]
      %v1321 = vld [vmem:[%s3 + $0x560] sm:$0xff]
      %v1322 = vld [vmem:[%s3 + $0x568] sm:$0xff]
      %v1323 = vld [vmem:[%s3 + $0x570] sm:$0xff]
      %v1324 = vld [vmem:[%s3 + $0x578] sm:$0xff]
      %v1325 = vld [vmem:[%s3 + $0x580] sm:$0xff]
      %v1326 = vld [vmem:[%s3 + $0x588] sm:$0xff]
      %v1327 = vld [vmem:[%s3 + $0x590] sm:$0xff]
      %v1328 = vld [vmem:[%s3 + $0x598] sm:$0xff]
      %v1329 = vld [vmem:[%s3 + $0x5a0] sm:$0xff]
      %v1330 = vld [vmem:[%s3 + $0x5a8] sm:$0xff]
      %v1331 = vld [vmem:[%s3 + $0x5b0] sm:$0xff]
      %v1332 = vld [vmem:[%s3 + $0x5b8] sm:$0xff]
      %v1333 = vld [vmem:[%s3 + $0x5c0] sm:$0xff]
      %v1334 = vld [vmem:[%s3 + $0x5c8] sm:$0xff]
      %v1335 = vld [vmem:[%s3 + $0x5d0] sm:$0xff]
      %v1336 = vld [vmem:[%s3 + $0x5d8] sm:$0xff]
      %v1337 = vld [vmem:[%s3 + $0x5e0] sm:$0xff]
      %v1338 = vld [vmem:[%s3 + $0x5e8] sm:$0xff]
      %v1339 = vld [vmem:[%s3 + $0x5f0] sm:$0xff]
      %v1340 = vld [vmem:[%s3 + $0x5f8] sm:$0xff]
      %v1341 = vld [vmem:[%s3 + $0x600] sm:$0xff]
      %v1342 = vld [vmem:[%s3 + $0x608] sm:$0xff]
      %v1343 = vld [vmem:[%s3 + $0x610] sm:$0xff]
      %v1344 = vld [vmem:[%s3 + $0x618] sm:$0xff]
      %v1345 = vld [vmem:[%s3 + $0x620] sm:$0xff]
      %v1346 = vld [vmem:[%s3 + $0x628] sm:$0xff]
      %v1347 = vld [vmem:[%s3 + $0x630] sm:$0xff]
      %v1348 = vld [vmem:[%s3 + $0x638] sm:$0xff]
      %v1549 = vunpack.c.l.b16 %v1149
      %v1550 = vunpack.c.h.b16 %v1149
      %v1551 = vunpack.c.l.b16 %v1150
      %v1552 = vunpack.c.h.b16 %v1150
      %v1553 = vunpack.c.l.b16 %v1151
      %v1554 = vunpack.c.h.b16 %v1151
      %v1555 = vunpack.c.l.b16 %v1152
      %v1556 = vunpack.c.h.b16 %v1152
      %v1557 = vunpack.c.l.b16 %v1153
      %v1558 = vunpack.c.h.b16 %v1153
      %v1559 = vunpack.c.l.b16 %v1154
      %v1560 = vunpack.c.h.b16 %v1154
      %v1561 = vunpack.c.l.b16 %v1155
      %v1562 = vunpack.c.h.b16 %v1155
      %v1563 = vunpack.c.l.b16 %v1156
      %v1564 = vunpack.c.h.b16 %v1156
      %v1565 = vunpack.c.l.b16 %v1157
      %v1566 = vunpack.c.h.b16 %v1157
      %v1567 = vunpack.c.l.b16 %v1158
      %v1568 = vunpack.c.h.b16 %v1158
      %v1569 = vunpack.c.l.b16 %v1159
      %v1570 = vunpack.c.h.b16 %v1159
      %v1571 = vunpack.c.l.b16 %v1160
      %v1572 = vunpack.c.h.b16 %v1160
      %v1573 = vunpack.c.l.b16 %v1161
      %v1574 = vunpack.c.h.b16 %v1161
      %v1575 = vunpack.c.l.b16 %v1162
      %v1576 = vunpack.c.h.b16 %v1162
      %v1577 = vunpack.c.l.b16 %v1163
      %v1578 = vunpack.c.h.b16 %v1163
      %v1579 = vunpack.c.l.b16 %v1164
      %v1580 = vunpack.c.h.b16 %v1164
      %v1581 = vunpack.c.l.b16 %v1165
      %v1582 = vunpack.c.h.b16 %v1165
      %v1583 = vunpack.c.l.b16 %v1166
      %v1584 = vunpack.c.h.b16 %v1166
      %v1585 = vunpack.c.l.b16 %v1167
      %v1586 = vunpack.c.h.b16 %v1167
      %v1587 = vunpack.c.l.b16 %v1168
      %v1588 = vunpack.c.h.b16 %v1168
      %v1589 = vunpack.c.l.b16 %v1169
      %v1590 = vunpack.c.h.b16 %v1169
      %v1591 = vunpack.c.l.b16 %v1170
      %v1592 = vunpack.c.h.b16 %v1170
      %v1593 = vunpack.c.l.b16 %v1171
      %v1594 = vunpack.c.h.b16 %v1171
      %v1595 = vunpack.c.l.b16 %v1172
      %v1596 = vunpack.c.h.b16 %v1172
      %v1597 = vunpack.c.l.b16 %v1173
      %v1598 = vunpack.c.h.b16 %v1173
      %v1599 = vunpack.c.l.b16 %v1174
      %v1600 = vunpack.c.h.b16 %v1174
      %v1601 = vunpack.c.l.b16 %v1175
      %v1602 = vunpack.c.h.b16 %v1175
      %v1603 = vunpack.c.l.b16 %v1176
      %v1604 = vunpack.c.h.b16 %v1176
      %v1605 = vunpack.c.l.b16 %v1177
      %v1606 = vunpack.c.h.b16 %v1177
      %v1607 = vunpack.c.l.b16 %v1178
      %v1608 = vunpack.c.h.b16 %v1178
      %v1609 = vunpack.c.l.b16 %v1179
      %v1610 = vunpack.c.h.b16 %v1179
      %v1611 = vunpack.c.l.b16 %v1180
      %v1612 = vunpack.c.h.b16 %v1180
      %v1613 = vunpack.c.l.b16 %v1181
      %v1614 = vunpack.c.h.b16 %v1181
      %v1615 = vunpack.c.l.b16 %v1182
      %v1616 = vunpack.c.h.b16 %v1182
      %v1617 = vunpack.c.l.b16 %v1183
      %v1618 = vunpack.c.h.b16 %v1183
      %v1619 = vunpack.c.l.b16 %v1184
      %v1620 = vunpack.c.h.b16 %v1184
      %v1621 = vunpack.c.l.b16 %v1185
      %v1622 = vunpack.c.h.b16 %v1185
      %v1623 = vunpack.c.l.b16 %v1186
      %v1624 = vunpack.c.h.b16 %v1186
      %v1625 = vunpack.c.l.b16 %v1187
      %v1626 = vunpack.c.h.b16 %v1187
      %v1627 = vunpack.c.l.b16 %v1188
      %v1628 = vunpack.c.h.b16 %v1188
      %v1629 = vunpack.c.l.b16 %v1189
      %v1630 = vunpack.c.h.b16 %v1189
      %v1631 = vunpack.c.l.b16 %v1190
      %v1632 = vunpack.c.h.b16 %v1190
      %v1633 = vunpack.c.l.b16 %v1191
      %v1634 = vunpack.c.h.b16 %v1191
      %v1635 = vunpack.c.l.b16 %v1192
      %v1636 = vunpack.c.h.b16 %v1192
      %v1637 = vunpack.c.l.b16 %v1193
      %v1638 = vunpack.c.h.b16 %v1193
      %v1639 = vunpack.c.l.b16 %v1194
      %v1640 = vunpack.c.h.b16 %v1194
      %v1641 = vunpack.c.l.b16 %v1195
      %v1642 = vunpack.c.h.b16 %v1195
      %v1643 = vunpack.c.l.b16 %v1196
      %v1644 = vunpack.c.h.b16 %v1196
      %v1645 = vunpack.c.l.b16 %v1197
      %v1646 = vunpack.c.h.b16 %v1197
      %v1647 = vunpack.c.l.b16 %v1198
      %v1648 = vunpack.c.h.b16 %v1198
      %v1649 = vunpack.c.l.b16 %v1199
      %v1650 = vunpack.c.h.b16 %v1199
      %v1651 = vunpack.c.l.b16 %v1200
      %v1652 = vunpack.c.h.b16 %v1200
      %v1653 = vunpack.c.l.b16 %v1201
      %v1654 = vunpack.c.h.b16 %v1201
      %v1655 = vunpack.c.l.b16 %v1202
      %v1656 = vunpack.c.h.b16 %v1202
      %v1657 = vunpack.c.l.b16 %v1203
      %v1658 = vunpack.c.h.b16 %v1203
      %v1659 = vunpack.c.l.b16 %v1204
      %v1660 = vunpack.c.h.b16 %v1204
      %v1661 = vunpack.c.l.b16 %v1205
      %v1662 = vunpack.c.h.b16 %v1205
      %v1663 = vunpack.c.l.b16 %v1206
      %v1664 = vunpack.c.h.b16 %v1206
      %v1665 = vunpack.c.l.b16 %v1207
      %v1666 = vunpack.c.h.b16 %v1207
      %v1667 = vunpack.c.l.b16 %v1208
      %v1668 = vunpack.c.h.b16 %v1208
      %v1669 = vunpack.c.l.b16 %v1209
      %v1670 = vunpack.c.h.b16 %v1209
      %v1671 = vunpack.c.l.b16 %v1210
      %v1672 = vunpack.c.h.b16 %v1210
      %v1673 = vunpack.c.l.b16 %v1211
      %v1674 = vunpack.c.h.b16 %v1211
      %v1675 = vunpack.c.l.b16 %v1212
      %v1676 = vunpack.c.h.b16 %v1212
      %v1677 = vunpack.c.l.b16 %v1213
      %v1678 = vunpack.c.h.b16 %v1213
      %v1679 = vunpack.c.l.b16 %v1214
      %v1680 = vunpack.c.h.b16 %v1214
      %v1681 = vunpack.c.l.b16 %v1215
      %v1682 = vunpack.c.h.b16 %v1215
      %v1683 = vunpack.c.l.b16 %v1216
      %v1684 = vunpack.c.h.b16 %v1216
      %v1685 = vunpack.c.l.b16 %v1217
      %v1686 = vunpack.c.h.b16 %v1217
      %v1687 = vunpack.c.l.b16 %v1218
      %v1688 = vunpack.c.h.b16 %v1218
      %v1689 = vunpack.c.l.b16 %v1219
      %v1690 = vunpack.c.h.b16 %v1219
      %v1691 = vunpack.c.l.b16 %v1220
      %v1692 = vunpack.c.h.b16 %v1220
      %v1693 = vunpack.c.l.b16 %v1221
      %v1694 = vunpack.c.h.b16 %v1221
      %v1695 = vunpack.c.l.b16 %v1222
      %v1696 = vunpack.c.h.b16 %v1222
      %v1697 = vunpack.c.l.b16 %v1223
      %v1698 = vunpack.c.h.b16 %v1223
      %v1699 = vunpack.c.l.b16 %v1224
      %v1700 = vunpack.c.h.b16 %v1224
      %v1701 = vunpack.c.l.b16 %v1225
      %v1702 = vunpack.c.h.b16 %v1225
      %v1703 = vunpack.c.l.b16 %v1226
      %v1704 = vunpack.c.h.b16 %v1226
      %v1705 = vunpack.c.l.b16 %v1227
      %v1706 = vunpack.c.h.b16 %v1227
      %v1707 = vunpack.c.l.b16 %v1228
      %v1708 = vunpack.c.h.b16 %v1228
      %v1709 = vunpack.c.l.b16 %v1229
      %v1710 = vunpack.c.h.b16 %v1229
      %v1711 = vunpack.c.l.b16 %v1230
      %v1712 = vunpack.c.h.b16 %v1230
      %v1713 = vunpack.c.l.b16 %v1231
      %v1714 = vunpack.c.h.b16 %v1231
      %v1715 = vunpack.c.l.b16 %v1232
      %v1716 = vunpack.c.h.b16 %v1232
      %v1717 = vunpack.c.l.b16 %v1233
      %v1718 = vunpack.c.h.b16 %v1233
      %v1719 = vunpack.c.l.b16 %v1234
      %v1720 = vunpack.c.h.b16 %v1234
      %v1721 = vunpack.c.l.b16 %v1235
      %v1722 = vunpack.c.h.b16 %v1235
      %v1723 = vunpack.c.l.b16 %v1236
      %v1724 = vunpack.c.h.b16 %v1236
      %v1725 = vunpack.c.l.b16 %v1237
      %v1726 = vunpack.c.h.b16 %v1237
      %v1727 = vunpack.c.l.b16 %v1238
      %v1728 = vunpack.c.h.b16 %v1238
      %v1729 = vunpack.c.l.b16 %v1239
      %v1730 = vunpack.c.h.b16 %v1239
      %v1731 = vunpack.c.l.b16 %v1240
      %v1732 = vunpack.c.h.b16 %v1240
      %v1733 = vunpack.c.l.b16 %v1241
      %v1734 = vunpack.c.h.b16 %v1241
      %v1735 = vunpack.c.l.b16 %v1242
      %v1736 = vunpack.c.h.b16 %v1242
      %v1737 = vunpack.c.l.b16 %v1243
      %v1738 = vunpack.c.h.b16 %v1243
      %v1739 = vunpack.c.l.b16 %v1244
      %v1740 = vunpack.c.h.b16 %v1244
      %v1741 = vunpack.c.l.b16 %v1245
      %v1742 = vunpack.c.h.b16 %v1245
      %v1743 = vunpack.c.l.b16 %v1246
      %v1744 = vunpack.c.h.b16 %v1246
      %v1745 = vunpack.c.l.b16 %v1247
      %v1746 = vunpack.c.h.b16 %v1247
      %v1747 = vunpack.c.l.b16 %v1248
      %v1748 = vunpack.c.h.b16 %v1248
      %v1749 = vunpack.c.l.b16 %v1249
      %v1750 = vunpack.c.h.b16 %v1249
      %v1751 = vunpack.c.l.b16 %v1250
      %v1752 = vunpack.c.h.b16 %v1250
      %v1753 = vunpack.c.l.b16 %v1251
      %v1754 = vunpack.c.h.b16 %v1251
      %v1755 = vunpack.c.l.b16 %v1252
      %v1756 = vunpack.c.h.b16 %v1252
      %v1757 = vunpack.c.l.b16 %v1253
      %v1758 = vunpack.c.h.b16 %v1253
      %v1759 = vunpack.c.l.b16 %v1254
      %v1760 = vunpack.c.h.b16 %v1254
      %v1761 = vunpack.c.l.b16 %v1255
      %v1762 = vunpack.c.h.b16 %v1255
      %v1763 = vunpack.c.l.b16 %v1256
      %v1764 = vunpack.c.h.b16 %v1256
      %v1765 = vunpack.c.l.b16 %v1257
      %v1766 = vunpack.c.h.b16 %v1257
      %v1767 = vunpack.c.l.b16 %v1258
      %v1768 = vunpack.c.h.b16 %v1258
      %v1769 = vunpack.c.l.b16 %v1259
      %v1770 = vunpack.c.h.b16 %v1259
      %v1771 = vunpack.c.l.b16 %v1260
      %v1772 = vunpack.c.h.b16 %v1260
      %v1773 = vunpack.c.l.b16 %v1261
      %v1774 = vunpack.c.h.b16 %v1261
      %v1775 = vunpack.c.l.b16 %v1262
      %v1776 = vunpack.c.h.b16 %v1262
      %v1777 = vunpack.c.l.b16 %v1263
      %v1778 = vunpack.c.h.b16 %v1263
      %v1779 = vunpack.c.l.b16 %v1264
      %v1780 = vunpack.c.h.b16 %v1264
      %v1781 = vunpack.c.l.b16 %v1265
      %v1782 = vunpack.c.h.b16 %v1265
      %v1783 = vunpack.c.l.b16 %v1266
      %v1784 = vunpack.c.h.b16 %v1266
      %v1785 = vunpack.c.l.b16 %v1267
      %v1786 = vunpack.c.h.b16 %v1267
      %v1787 = vunpack.c.l.b16 %v1268
      %v1788 = vunpack.c.h.b16 %v1268
      %v1789 = vunpack.c.l.b16 %v1269
      %v1790 = vunpack.c.h.b16 %v1269
      %v1791 = vunpack.c.l.b16 %v1270
      %v1792 = vunpack.c.h.b16 %v1270
      %v1793 = vunpack.c.l.b16 %v1271
      %v1794 = vunpack.c.h.b16 %v1271
      %v1795 = vunpack.c.l.b16 %v1272
      %v1796 = vunpack.c.h.b16 %v1272
      %v1797 = vunpack.c.l.b16 %v1273
      %v1798 = vunpack.c.h.b16 %v1273
      %v1799 = vunpack.c.l.b16 %v1274
      %v1800 = vunpack.c.h.b16 %v1274
      %v1801 = vunpack.c.l.b16 %v1275
      %v1802 = vunpack.c.h.b16 %v1275
      %v1803 = vunpack.c.l.b16 %v1276
      %v1804 = vunpack.c.h.b16 %v1276
      %v1805 = vunpack.c.l.b16 %v1277
      %v1806 = vunpack.c.h.b16 %v1277
      %v1807 = vunpack.c.l.b16 %v1278
      %v1808 = vunpack.c.h.b16 %v1278
      %v1809 = vunpack.c.l.b16 %v1279
      %v1810 = vunpack.c.h.b16 %v1279
      %v1811 = vunpack.c.l.b16 %v1280
      %v1812 = vunpack.c.h.b16 %v1280
      %v1813 = vunpack.c.l.b16 %v1281
      %v1814 = vunpack.c.h.b16 %v1281
      %v1815 = vunpack.c.l.b16 %v1282
      %v1816 = vunpack.c.h.b16 %v1282
      %v1817 = vunpack.c.l.b16 %v1283
      %v1818 = vunpack.c.h.b16 %v1283
      %v1819 = vunpack.c.l.b16 %v1284
      %v1820 = vunpack.c.h.b16 %v1284
      %v1821 = vunpack.c.l.b16 %v1285
      %v1822 = vunpack.c.h.b16 %v1285
      %v1823 = vunpack.c.l.b16 %v1286
      %v1824 = vunpack.c.h.b16 %v1286
      %v1825 = vunpack.c.l.b16 %v1287
      %v1826 = vunpack.c.h.b16 %v1287
      %v1827 = vunpack.c.l.b16 %v1288
      %v1828 = vunpack.c.h.b16 %v1288
      %v1829 = vunpack.c.l.b16 %v1289
      %v1830 = vunpack.c.h.b16 %v1289
      %v1831 = vunpack.c.l.b16 %v1290
      %v1832 = vunpack.c.h.b16 %v1290
      %v1833 = vunpack.c.l.b16 %v1291
      %v1834 = vunpack.c.h.b16 %v1291
      %v1835 = vunpack.c.l.b16 %v1292
      %v1836 = vunpack.c.h.b16 %v1292
      %v1837 = vunpack.c.l.b16 %v1293
      %v1838 = vunpack.c.h.b16 %v1293
      %v1839 = vunpack.c.l.b16 %v1294
      %v1840 = vunpack.c.h.b16 %v1294
      %v1841 = vunpack.c.l.b16 %v1295
      %v1842 = vunpack.c.h.b16 %v1295
      %v1843 = vunpack.c.l.b16 %v1296
      %v1844 = vunpack.c.h.b16 %v1296
      %v1845 = vunpack.c.l.b16 %v1297
      %v1846 = vunpack.c.h.b16 %v1297
      %v1847 = vunpack.c.l.b16 %v1298
      %v1848 = vunpack.c.h.b16 %v1298
      %v1849 = vunpack.c.l.b16 %v1299
      %v1850 = vunpack.c.h.b16 %v1299
      %v1851 = vunpack.c.l.b16 %v1300
      %v1852 = vunpack.c.h.b16 %v1300
      %v1853 = vunpack.c.l.b16 %v1301
      %v1854 = vunpack.c.h.b16 %v1301
      %v1855 = vunpack.c.l.b16 %v1302
      %v1856 = vunpack.c.h.b16 %v1302
      %v1857 = vunpack.c.l.b16 %v1303
      %v1858 = vunpack.c.h.b16 %v1303
      %v1859 = vunpack.c.l.b16 %v1304
      %v1860 = vunpack.c.h.b16 %v1304
      %v1861 = vunpack.c.l.b16 %v1305
      %v1862 = vunpack.c.h.b16 %v1305
      %v1863 = vunpack.c.l.b16 %v1306
      %v1864 = vunpack.c.h.b16 %v1306
      %v1865 = vunpack.c.l.b16 %v1307
      %v1866 = vunpack.c.h.b16 %v1307
      %v1867 = vunpack.c.l.b16 %v1308
      %v1868 = vunpack.c.h.b16 %v1308
      %v1869 = vunpack.c.l.b16 %v1309
      %v1870 = vunpack.c.h.b16 %v1309
      %v1871 = vunpack.c.l.b16 %v1310
      %v1872 = vunpack.c.h.b16 %v1310
      %v1873 = vunpack.c.l.b16 %v1311
      %v1874 = vunpack.c.h.b16 %v1311
      %v1875 = vunpack.c.l.b16 %v1312
      %v1876 = vunpack.c.h.b16 %v1312
      %v1877 = vunpack.c.l.b16 %v1313
      %v1878 = vunpack.c.h.b16 %v1313
      %v1879 = vunpack.c.l.b16 %v1314
      %v1880 = vunpack.c.h.b16 %v1314
      %v1881 = vunpack.c.l.b16 %v1315
      %v1882 = vunpack.c.h.b16 %v1315
      %v1883 = vunpack.c.l.b16 %v1316
      %v1884 = vunpack.c.h.b16 %v1316
      %v1885 = vunpack.c.l.b16 %v1317
      %v1886 = vunpack.c.h.b16 %v1317
      %v1887 = vunpack.c.l.b16 %v1318
      %v1888 = vunpack.c.h.b16 %v1318
      %v1889 = vunpack.c.l.b16 %v1319
      %v1890 = vunpack.c.h.b16 %v1319
      %v1891 = vunpack.c.l.b16 %v1320
      %v1892 = vunpack.c.h.b16 %v1320
      %v1893 = vunpack.c.l.b16 %v1321
      %v1894 = vunpack.c.h.b16 %v1321
      %v1895 = vunpack.c.l.b16 %v1322
      %v1896 = vunpack.c.h.b16 %v1322
      %v1897 = vunpack.c.l.b16 %v1323
      %v1898 = vunpack.c.h.b16 %v1323
      %v1899 = vunpack.c.l.b16 %v1324
      %v1900 = vunpack.c.h.b16 %v1324
      %v1901 = vunpack.c.l.b16 %v1325
      %v1902 = vunpack.c.h.b16 %v1325
      %v1903 = vunpack.c.l.b16 %v1326
      %v1904 = vunpack.c.h.b16 %v1326
      %v1905 = vunpack.c.l.b16 %v1327
      %v1906 = vunpack.c.h.b16 %v1327
      %v1907 = vunpack.c.l.b16 %v1328
      %v1908 = vunpack.c.h.b16 %v1328
      %v1909 = vunpack.c.l.b16 %v1329
      %v1910 = vunpack.c.h.b16 %v1329
      %v1911 = vunpack.c.l.b16 %v1330
      %v1912 = vunpack.c.h.b16 %v1330
      %v1913 = vunpack.c.l.b16 %v1331
      %v1914 = vunpack.c.h.b16 %v1331
      %v1915 = vunpack.c.l.b16 %v1332
      %v1916 = vunpack.c.h.b16 %v1332
      %v1917 = vunpack.c.l.b16 %v1333
      %v1918 = vunpack.c.h.b16 %v1333
      %v1919 = vunpack.c.l.b16 %v1334
      %v1920 = vunpack.c.h.b16 %v1334
      %v1921 = vunpack.c.l.b16 %v1335
      %v1922 = vunpack.c.h.b16 %v1335
      %v1923 = vunpack.c.l.b16 %v1336
      %v1924 = vunpack.c.h.b16 %v1336
      %v1925 = vunpack.c.l.b16 %v1337
      %v1926 = vunpack.c.h.b16 %v1337
      %v1927 = vunpack.c.l.b16 %v1338
      %v1928 = vunpack.c.h.b16 %v1338
      %v1929 = vunpack.c.l.b16 %v1339
      %v1930 = vunpack.c.h.b16 %v1339
      %v1931 = vunpack.c.l.b16 %v1340
      %v1932 = vunpack.c.h.b16 %v1340
      %v1933 = vunpack.c.l.b16 %v1341
      %v1934 = vunpack.c.h.b16 %v1341
      %v1935 = vunpack.c.l.b16 %v1342
      %v1936 = vunpack.c.h.b16 %v1342
      %v1937 = vunpack.c.l.b16 %v1343
      %v1938 = vunpack.c.h.b16 %v1343
      %v1939 = vunpack.c.l.b16 %v1344
      %v1940 = vunpack.c.h.b16 %v1344
      %v1941 = vunpack.c.l.b16 %v1345
      %v1942 = vunpack.c.h.b16 %v1345
      %v1943 = vunpack.c.l.b16 %v1346
      %v1944 = vunpack.c.h.b16 %v1346
      %v1945 = vunpack.c.l.b16 %v1347
      %v1946 = vunpack.c.h.b16 %v1347
      %v1947 = vunpack.c.l.b16 %v1348
      %v1948 = vunpack.c.h.b16 %v1348
      %v1949 = vpack.c.b16 %v1551, %v1549
      %v1950 = vpack.c.b16 %v1552, %v1550
      %v1951 = vpack.c.b16 %v1555, %v1553
      %v1952 = vpack.c.b16 %v1556, %v1554
      %v1953 = vpack.c.b16 %v1559, %v1557
      %v1954 = vpack.c.b16 %v1560, %v1558
      %v1955 = vpack.c.b16 %v1563, %v1561
      %v1956 = vpack.c.b16 %v1564, %v1562
      %v1957 = vpack.c.b16 %v1567, %v1565
      %v1958 = vpack.c.b16 %v1568, %v1566
      %v1959 = vpack.c.b16 %v1571, %v1569
      %v1960 = vpack.c.b16 %v1572, %v1570
      %v1961 = vpack.c.b16 %v1575, %v1573
      %v1962 = vpack.c.b16 %v1576, %v1574
      %v1963 = vpack.c.b16 %v1579, %v1577
      %v1964 = vpack.c.b16 %v1580, %v1578
      %v1965 = vpack.c.b16 %v1583, %v1581
      %v1966 = vpack.c.b16 %v1584, %v1582
      %v1967 = vpack.c.b16 %v1587, %v1585
      %v1968 = vpack.c.b16 %v1588, %v1586
      %v1969 = vpack.c.b16 %v1591, %v1589
      %v1970 = vpack.c.b16 %v1592, %v1590
      %v1971 = vpack.c.b16 %v1595, %v1593
      %v1972 = vpack.c.b16 %v1596, %v1594
      %v1973 = vpack.c.b16 %v1599, %v1597
      %v1974 = vpack.c.b16 %v1600, %v1598
      %v1975 = vpack.c.b16 %v1603, %v1601
      %v1976 = vpack.c.b16 %v1604, %v1602
      %v1977 = vpack.c.b16 %v1607, %v1605
      %v1978 = vpack.c.b16 %v1608, %v1606
      %v1979 = vpack.c.b16 %v1611, %v1609
      %v1980 = vpack.c.b16 %v1612, %v1610
      %v1981 = vpack.c.b16 %v1615, %v1613
      %v1982 = vpack.c.b16 %v1616, %v1614
      %v1983 = vpack.c.b16 %v1619, %v1617
      %v1984 = vpack.c.b16 %v1620, %v1618
      %v1985 = vpack.c.b16 %v1623, %v1621
      %v1986 = vpack.c.b16 %v1624, %v1622
      %v1987 = vpack.c.b16 %v1627, %v1625
      %v1988 = vpack.c.b16 %v1628, %v1626
      %v1989 = vpack.c.b16 %v1631, %v1629
      %v1990 = vpack.c.b16 %v1632, %v1630
      %v1991 = vpack.c.b16 %v1635, %v1633
      %v1992 = vpack.c.b16 %v1636, %v1634
      %v1993 = vpack.c.b16 %v1639, %v1637
      %v1994 = vpack.c.b16 %v1640, %v1638
      %v1995 = vpack.c.b16 %v1643, %v1641
      %v1996 = vpack.c.b16 %v1644, %v1642
      %v1997 = vpack.c.b16 %v1647, %v1645
      %v1998 = vpack.c.b16 %v1648, %v1646
      %v1999 = vpack.c.b16 %v1651, %v1649
      %v2000 = vpack.c.b16 %v1652, %v1650
      %v2001 = vpack.c.b16 %v1655, %v1653
      %v2002 = vpack.c.b16 %v1656, %v1654
      %v2003 = vpack.c.b16 %v1659, %v1657
      %v2004 = vpack.c.b16 %v1660, %v1658
      %v2005 = vpack.c.b16 %v1663, %v1661
      %v2006 = vpack.c.b16 %v1664, %v1662
      %v2007 = vpack.c.b16 %v1667, %v1665
      %v2008 = vpack.c.b16 %v1668, %v1666
      %v2009 = vpack.c.b16 %v1671, %v1669
      %v2010 = vpack.c.b16 %v1672, %v1670
      %v2011 = vpack.c.b16 %v1675, %v1673
      %v2012 = vpack.c.b16 %v1676, %v1674
      %v2013 = vpack.c.b16 %v1679, %v1677
      %v2014 = vpack.c.b16 %v1680, %v1678
      %v2015 = vpack.c.b16 %v1683, %v1681
      %v2016 = vpack.c.b16 %v1684, %v1682
      %v2017 = vpack.c.b16 %v1687, %v1685
      %v2018 = vpack.c.b16 %v1688, %v1686
      %v2019 = vpack.c.b16 %v1691, %v1689
      %v2020 = vpack.c.b16 %v1692, %v1690
      %v2021 = vpack.c.b16 %v1695, %v1693
      %v2022 = vpack.c.b16 %v1696, %v1694
      %v2023 = vpack.c.b16 %v1699, %v1697
      %v2024 = vpack.c.b16 %v1700, %v1698
      %v2025 = vpack.c.b16 %v1703, %v1701
      %v2026 = vpack.c.b16 %v1704, %v1702
      %v2027 = vpack.c.b16 %v1707, %v1705
      %v2028 = vpack.c.b16 %v1708, %v1706
      %v2029 = vpack.c.b16 %v1711, %v1709
      %v2030 = vpack.c.b16 %v1712, %v1710
      %v2031 = vpack.c.b16 %v1715, %v1713
      %v2032 = vpack.c.b16 %v1716, %v1714
      %v2033 = vpack.c.b16 %v1719, %v1717
      %v2034 = vpack.c.b16 %v1720, %v1718
      %v2035 = vpack.c.b16 %v1723, %v1721
      %v2036 = vpack.c.b16 %v1724, %v1722
      %v2037 = vpack.c.b16 %v1727, %v1725
      %v2038 = vpack.c.b16 %v1728, %v1726
      %v2039 = vpack.c.b16 %v1731, %v1729
      %v2040 = vpack.c.b16 %v1732, %v1730
      %v2041 = vpack.c.b16 %v1735, %v1733
      %v2042 = vpack.c.b16 %v1736, %v1734
      %v2043 = vpack.c.b16 %v1739, %v1737
      %v2044 = vpack.c.b16 %v1740, %v1738
      %v2045 = vpack.c.b16 %v1743, %v1741
      %v2046 = vpack.c.b16 %v1744, %v1742
      %v2047 = vpack.c.b16 %v1747, %v1745
      %v2048 = vpack.c.b16 %v1748, %v1746
      %v2049 = vpack.c.b16 %v1751, %v1749
      %v2050 = vpack.c.b16 %v1752, %v1750
      %v2051 = vpack.c.b16 %v1755, %v1753
      %v2052 = vpack.c.b16 %v1756, %v1754
      %v2053 = vpack.c.b16 %v1759, %v1757
      %v2054 = vpack.c.b16 %v1760, %v1758
      %v2055 = vpack.c.b16 %v1763, %v1761
      %v2056 = vpack.c.b16 %v1764, %v1762
      %v2057 = vpack.c.b16 %v1767, %v1765
      %v2058 = vpack.c.b16 %v1768, %v1766
      %v2059 = vpack.c.b16 %v1771, %v1769
      %v2060 = vpack.c.b16 %v1772, %v1770
      %v2061 = vpack.c.b16 %v1775, %v1773
      %v2062 = vpack.c.b16 %v1776, %v1774
      %v2063 = vpack.c.b16 %v1779, %v1777
      %v2064 = vpack.c.b16 %v1780, %v1778
      %v2065 = vpack.c.b16 %v1783, %v1781
      %v2066 = vpack.c.b16 %v1784, %v1782
      %v2067 = vpack.c.b16 %v1787, %v1785
      %v2068 = vpack.c.b16 %v1788, %v1786
      %v2069 = vpack.c.b16 %v1791, %v1789
      %v2070 = vpack.c.b16 %v1792, %v1790
      %v2071 = vpack.c.b16 %v1795, %v1793
      %v2072 = vpack.c.b16 %v1796, %v1794
      %v2073 = vpack.c.b16 %v1799, %v1797
      %v2074 = vpack.c.b16 %v1800, %v1798
      %v2075 = vpack.c.b16 %v1803, %v1801
      %v2076 = vpack.c.b16 %v1804, %v1802
      %v2077 = vpack.c.b16 %v1807, %v1805
      %v2078 = vpack.c.b16 %v1808, %v1806
      %v2079 = vpack.c.b16 %v1811, %v1809
      %v2080 = vpack.c.b16 %v1812, %v1810
      %v2081 = vpack.c.b16 %v1815, %v1813
      %v2082 = vpack.c.b16 %v1816, %v1814
      %v2083 = vpack.c.b16 %v1819, %v1817
      %v2084 = vpack.c.b16 %v1820, %v1818
      %v2085 = vpack.c.b16 %v1823, %v1821
      %v2086 = vpack.c.b16 %v1824, %v1822
      %v2087 = vpack.c.b16 %v1827, %v1825
      %v2088 = vpack.c.b16 %v1828, %v1826
      %v2089 = vpack.c.b16 %v1831, %v1829
      %v2090 = vpack.c.b16 %v1832, %v1830
      %v2091 = vpack.c.b16 %v1835, %v1833
      %v2092 = vpack.c.b16 %v1836, %v1834
      %v2093 = vpack.c.b16 %v1839, %v1837
      %v2094 = vpack.c.b16 %v1840, %v1838
      %v2095 = vpack.c.b16 %v1843, %v1841
      %v2096 = vpack.c.b16 %v1844, %v1842
      %v2097 = vpack.c.b16 %v1847, %v1845
      %v2098 = vpack.c.b16 %v1848, %v1846
      %v2099 = vpack.c.b16 %v1851, %v1849
      %v2100 = vpack.c.b16 %v1852, %v1850
      %v2101 = vpack.c.b16 %v1855, %v1853
      %v2102 = vpack.c.b16 %v1856, %v1854
      %v2103 = vpack.c.b16 %v1859, %v1857
      %v2104 = vpack.c.b16 %v1860, %v1858
      %v2105 = vpack.c.b16 %v1863, %v1861
      %v2106 = vpack.c.b16 %v1864, %v1862
      %v2107 = vpack.c.b16 %v1867, %v1865
      %v2108 = vpack.c.b16 %v1868, %v1866
      %v2109 = vpack.c.b16 %v1871, %v1869
      %v2110 = vpack.c.b16 %v1872, %v1870
      %v2111 = vpack.c.b16 %v1875, %v1873
      %v2112 = vpack.c.b16 %v1876, %v1874
      %v2113 = vpack.c.b16 %v1879, %v1877
      %v2114 = vpack.c.b16 %v1880, %v1878
      %v2115 = vpack.c.b16 %v1883, %v1881
      %v2116 = vpack.c.b16 %v1884, %v1882
      %v2117 = vpack.c.b16 %v1887, %v1885
      %v2118 = vpack.c.b16 %v1888, %v1886
      %v2119 = vpack.c.b16 %v1891, %v1889
      %v2120 = vpack.c.b16 %v1892, %v1890
      %v2121 = vpack.c.b16 %v1895, %v1893
      %v2122 = vpack.c.b16 %v1896, %v1894
      %v2123 = vpack.c.b16 %v1899, %v1897
      %v2124 = vpack.c.b16 %v1900, %v1898
      %v2125 = vpack.c.b16 %v1903, %v1901
      %v2126 = vpack.c.b16 %v1904, %v1902
      %v2127 = vpack.c.b16 %v1907, %v1905
      %v2128 = vpack.c.b16 %v1908, %v1906
      %v2129 = vpack.c.b16 %v1911, %v1909
      %v2130 = vpack.c.b16 %v1912, %v1910
      %v2131 = vpack.c.b16 %v1915, %v1913
      %v2132 = vpack.c.b16 %v1916, %v1914
      %v2133 = vpack.c.b16 %v1919, %v1917
      %v2134 = vpack.c.b16 %v1920, %v1918
      %v2135 = vpack.c.b16 %v1923, %v1921
      %v2136 = vpack.c.b16 %v1924, %v1922
      %v2137 = vpack.c.b16 %v1927, %v1925
      %v2138 = vpack.c.b16 %v1928, %v1926
      %v2139 = vpack.c.b16 %v1931, %v1929
      %v2140 = vpack.c.b16 %v1932, %v1930
      %v2141 = vpack.c.b16 %v1935, %v1933
      %v2142 = vpack.c.b16 %v1936, %v1934
      %v2143 = vpack.c.b16 %v1939, %v1937
      %v2144 = vpack.c.b16 %v1940, %v1938
      %v2145 = vpack.c.b16 %v1943, %v1941
      %v2146 = vpack.c.b16 %v1944, %v1942
      %v2147 = vpack.c.b16 %v1947, %v1945
      %v2148 = vpack.c.b16 %v1948, %v1946
      %vm2249 = vcmask 130048
      %v2251 = vsel %vm2249, %v1950, 0
      %v2254 = vsel %vm2249, %v1952, 0
      %v2257 = vsel %vm2249, %v1954, 0
      %v2260 = vsel %vm2249, %v1956, 0
      %v2263 = vsel %vm2249, %v1958, 0
      %v2266 = vsel %vm2249, %v1960, 0
      %v2269 = vsel %vm2249, %v1962, 0
      %v2272 = vsel %vm2249, %v1964, 0
      %v2275 = vsel %vm2249, %v1966, 0
      %v2278 = vsel %vm2249, %v1968, 0
      %v2281 = vsel %vm2249, %v1970, 0
      %v2284 = vsel %vm2249, %v1972, 0
      %v2287 = vsel %vm2249, %v1974, 0
      %v2290 = vsel %vm2249, %v1976, 0
      %v2293 = vsel %vm2249, %v1978, 0
      %v2296 = vsel %vm2249, %v1980, 0
      %v2299 = vsel %vm2249, %v1982, 0
      %v2302 = vsel %vm2249, %v1984, 0
      %v2305 = vsel %vm2249, %v1986, 0
      %v2308 = vsel %vm2249, %v1988, 0
      %v2311 = vsel %vm2249, %v1990, 0
      %v2314 = vsel %vm2249, %v1992, 0
      %v2317 = vsel %vm2249, %v1994, 0
      %v2320 = vsel %vm2249, %v1996, 0
      %v2323 = vsel %vm2249, %v1998, 0
      %v2326 = vsel %vm2249, %v2000, 0
      %v2329 = vsel %vm2249, %v2002, 0
      %v2332 = vsel %vm2249, %v2004, 0
      %v2335 = vsel %vm2249, %v2006, 0
      %v2338 = vsel %vm2249, %v2008, 0
      %v2341 = vsel %vm2249, %v2010, 0
      %v2344 = vsel %vm2249, %v2012, 0
      %v2347 = vsel %vm2249, %v2014, 0
      %v2350 = vsel %vm2249, %v2016, 0
      %v2353 = vsel %vm2249, %v2018, 0
      %v2356 = vsel %vm2249, %v2020, 0
      %v2359 = vsel %vm2249, %v2022, 0
      %v2362 = vsel %vm2249, %v2024, 0
      %v2365 = vsel %vm2249, %v2026, 0
      %v2368 = vsel %vm2249, %v2028, 0
      %v2371 = vsel %vm2249, %v2030, 0
      %v2374 = vsel %vm2249, %v2032, 0
      %v2377 = vsel %vm2249, %v2034, 0
      %v2380 = vsel %vm2249, %v2036, 0
      %v2383 = vsel %vm2249, %v2038, 0
      %v2386 = vsel %vm2249, %v2040, 0
      %v2389 = vsel %vm2249, %v2042, 0
      %v2392 = vsel %vm2249, %v2044, 0
      %v2395 = vsel %vm2249, %v2046, 0
      %v2398 = vsel %vm2249, %v2048, 0
      %v2401 = vsel %vm2249, %v2050, 0
      %v2404 = vsel %vm2249, %v2052, 0
      %v2407 = vsel %vm2249, %v2054, 0
      %v2410 = vsel %vm2249, %v2056, 0
      %v2413 = vsel %vm2249, %v2058, 0
      %v2416 = vsel %vm2249, %v2060, 0
      %v2419 = vsel %vm2249, %v2062, 0
      %v2422 = vsel %vm2249, %v2064, 0
      %v2425 = vsel %vm2249, %v2066, 0
      %v2428 = vsel %vm2249, %v2068, 0
      %v2431 = vsel %vm2249, %v2070, 0
      %v2434 = vsel %vm2249, %v2072, 0
      %v2437 = vsel %vm2249, %v2074, 0
      %v2440 = vsel %vm2249, %v2076, 0
      %v2443 = vsel %vm2249, %v2078, 0
      %v2446 = vsel %vm2249, %v2080, 0
      %v2449 = vsel %vm2249, %v2082, 0
      %v2452 = vsel %vm2249, %v2084, 0
      %v2455 = vsel %vm2249, %v2086, 0
      %v2458 = vsel %vm2249, %v2088, 0
      %v2461 = vsel %vm2249, %v2090, 0
      %v2464 = vsel %vm2249, %v2092, 0
      %v2467 = vsel %vm2249, %v2094, 0
      %v2470 = vsel %vm2249, %v2096, 0
      %v2473 = vsel %vm2249, %v2098, 0
      %v2476 = vsel %vm2249, %v2100, 0
      %v2479 = vsel %vm2249, %v2102, 0
      %v2482 = vsel %vm2249, %v2104, 0
      %v2485 = vsel %vm2249, %v2106, 0
      %v2488 = vsel %vm2249, %v2108, 0
      %v2491 = vsel %vm2249, %v2110, 0
      %v2494 = vsel %vm2249, %v2112, 0
      %v2497 = vsel %vm2249, %v2114, 0
      %v2500 = vsel %vm2249, %v2116, 0
      %v2503 = vsel %vm2249, %v2118, 0
      %v2506 = vsel %vm2249, %v2120, 0
      %v2509 = vsel %vm2249, %v2122, 0
      %v2512 = vsel %vm2249, %v2124, 0
      %v2515 = vsel %vm2249, %v2126, 0
      %v2518 = vsel %vm2249, %v2128, 0
      %v2521 = vsel %vm2249, %v2130, 0
      %v2524 = vsel %vm2249, %v2132, 0
      %v2527 = vsel %vm2249, %v2134, 0
      %v2530 = vsel %vm2249, %v2136, 0
      %v2533 = vsel %vm2249, %v2138, 0
      %v2536 = vsel %vm2249, %v2140, 0
      %v2539 = vsel %vm2249, %v2142, 0
      %v2542 = vsel %vm2249, %v2144, 0
      %v2545 = vsel %vm2249, %v2146, 0
      %v2548 = vsel %vm2249, %v2148, 0
      %2550 = vmatprep.subr.bf16.mxu0 0
      %2551 = vmatpush1.bf16.msra.mxu0 %v1140
      %2552 = vmatprep.subr.bf16.mxu0 0
      %2553 = vmatpush1.bf16.msra.mxu0 %v1141
      %2554 = vmatprep.subr.bf16.mxu0 0
      %2555 = vmatpush1.bf16.msra.mxu0 %v1142
      %2556 = vmatprep.subr.bf16.mxu0 0
      %2557 = vmatpush1.bf16.msra.mxu0 %v1143
      %2558 = vmatprep.subr.bf16.mxu0 0
      %2559 = vmatpush1.bf16.msra.mxu0 %v1144
      %2560 = vmatprep.subr.bf16.mxu0 0
      %2561 = vmatpush1.bf16.msra.mxu0 %v1145
      %2562 = vmatprep.subr.bf16.mxu0 0
      %2563 = vmatpush1.bf16.msra.mxu0 %v1146
      %2564 = vmatprep.subr.bf16.mxu0 0
      %2565 = vmatpush1.bf16.msra.mxu0 %v1147
      %2566 = vmatprep.subr.bf16.mxu0 0
      %2567 = vmatpush1.bf16.msra.mxu0 %v1148
      %2568 = vmatprep.subr.bf16.mxu0 0
      %2569 = vmatpush1.bf16.msra.mxu0 0
      %2570 = vmatprep.subr.bf16.mxu0 0
      %2571 = vmatpush1.bf16.msra.mxu0 0
      %2572 = vmatprep.subr.bf16.mxu0 0
      %2573 = vmatpush1.bf16.msra.mxu0 0
      %2574 = vmatprep.subr.bf16.mxu0 0
      %2575 = vmatpush1.bf16.msra.mxu0 0
      %2576 = vmatprep.subr.bf16.mxu0 0
      %2577 = vmatpush1.bf16.msra.mxu0 0
      %2578 = vmatprep.subr.bf16.mxu0 0
      %2579 = vmatpush1.bf16.msra.mxu0 0
      %2580 = vmatprep.subr.bf16.mxu0 0
      %2581 = vmatpush1.bf16.msra.mxu0 0
      %2582 = vmatprep.mubr.bf16.mxu0 %v2251
      %2583 = vmatmul.mubr.bf16.gmra.mrb[0].mxu0 %v1949
      %v2584 = vpop.f32.mrb[0].mxu0
      %v2585 = vadd.f32 0.0, %v2584
      %v2586 = vpop.f32.mrb[0].mxu0
      %v2587 = vpop.f32.mrb[0].mxu0
      %v2588 = vadd.f32 0.0, %v2587
      %v2589 = vpop.f32.mrb[0].mxu0
      %2590 = vmatprep.mubr.bf16.mxu0 %v2254
      %2591 = vmatmul.mubr.bf16.gmra.mrb[0].mxu0 %v1951
      %v2592 = vpop.f32.mrb[0].mxu0
      %v2593 = vadd.f32 0.0, %v2592
      %v2594 = vpop.f32.mrb[0].mxu0
      %v2595 = vpop.f32.mrb[0].mxu0
      %v2596 = vadd.f32 0.0, %v2595
      %v2597 = vpop.f32.mrb[0].mxu0
      %2598 = vmatprep.mubr.bf16.mxu0 %v2257
      %2599 = vmatmul.mubr.bf16.gmra.mrb[0].mxu0 %v1953
      %v2600 = vpop.f32.mrb[0].mxu0
      %v2601 = vadd.f32 0.0, %v2600
      %v2602 = vpop.f32.mrb[0].mxu0
      %v2603 = vpop.f32.mrb[0].mxu0
      %v2604 = vadd.f32 0.0, %v2603
      %v2605 = vpop.f32.mrb[0].mxu0
      %2606 = vmatprep.mubr.bf16.mxu0 %v2260
      %2607 = vmatmul.mubr.bf16.gmra.mrb[0].mxu0 %v1955
      %v2608 = vpop.f32.mrb[0].mxu0
      %v2609 = vadd.f32 0.0, %v2608
      %v2610 = vpop.f32.mrb[0].mxu0
      %v2611 = vpop.f32.mrb[0].mxu0
      %v2612 = vadd.f32 0.0, %v2611
      %v2613 = vpop.f32.mrb[0].mxu0
      %2614 = vmatprep.mubr.bf16.mxu0 %v2263
      %2615 = vmatmul.mubr.bf16.gmra.mrb[0].mxu0 %v1957
      %v2616 = vpop.f32.mrb[0].mxu0
      %v2617 = vadd.f32 0.0, %v2616
      %v2618 = vpop.f32.mrb[0].mxu0
      %v2619 = vpop.f32.mrb[0].mxu0
      %v2620 = vadd.f32 0.0, %v2619
      %v2621 = vpop.f32.mrb[0].mxu0
      %2622 = vmatprep.mubr.bf16.mxu0 %v2266
      %2623 = vmatmul.mubr.bf16.gmra.mrb[0].mxu0 %v1959
      %v2624 = vpop.f32.mrb[0].mxu0
      %v2625 = vadd.f32 0.0, %v2624
      %v2626 = vpop.f32.mrb[0].mxu0
      %v2627 = vpop.f32.mrb[0].mxu0
      %v2628 = vadd.f32 0.0, %v2627
      %v2629 = vpop.f32.mrb[0].mxu0
      %2630 = vmatprep.mubr.bf16.mxu0 %v2269
      %2631 = vmatmul.mubr.bf16.gmra.mrb[0].mxu0 %v1961
      %v2632 = vpop.f32.mrb[0].mxu0
      %v2633 = vadd.f32 0.0, %v2632
      %v2634 = vpop.f32.mrb[0].mxu0
      %v2635 = vpop.f32.mrb[0].mxu0
      %v2636 = vadd.f32 0.0, %v2635
      %v2637 = vpop.f32.mrb[0].mxu0
      %2638 = vmatprep.mubr.bf16.mxu0 %v2272
      %2639 = vmatmul.mubr.bf16.gmra.mrb[0].mxu0 %v1963
      %v2640 = vpop.f32.mrb[0].mxu0
      %v2641 = vadd.f32 0.0, %v2640
      %v2642 = vpop.f32.mrb[0].mxu0
      %v2643 = vpop.f32.mrb[0].mxu0
      %v2644 = vadd.f32 0.0, %v2643
      %v2645 = vpop.f32.mrb[0].mxu0
      %2646 = vmatprep.mubr.bf16.mxu0 %v2275
      %2647 = vmatmul.mubr.bf16.gmra.mrb[0].mxu0 %v1965
      %v2648 = vpop.f32.mrb[0].mxu0
      %v2649 = vadd.f32 0.0, %v2648
      %v2650 = vpop.f32.mrb[0].mxu0
      %v2651 = vpop.f32.mrb[0].mxu0
      %v2652 = vadd.f32 0.0, %v2651
      %v2653 = vpop.f32.mrb[0].mxu0
      %2654 = vmatprep.mubr.bf16.mxu0 %v2278
      %2655 = vmatmul.mubr.bf16.gmra.mrb[0].mxu0 %v1967
      %v2656 = vpop.f32.mrb[0].mxu0
      %v2657 = vadd.f32 0.0, %v2656
      %v2658 = vpop.f32.mrb[0].mxu0
      %v2659 = vpop.f32.mrb[0].mxu0
      %v2660 = vadd.f32 0.0, %v2659
      %v2661 = vpop.f32.mrb[0].mxu0
      %2662 = vmatprep.mubr.bf16.mxu0 %v2281
      %2663 = vmatmul.mubr.bf16.gmra.mrb[0].mxu0 %v1969
      %v2664 = vpop.f32.mrb[0].mxu0
      %v2665 = vadd.f32 0.0, %v2664
      %v2666 = vpop.f32.mrb[0].mxu0
      %v2667 = vpop.f32.mrb[0].mxu0
      %v2668 = vadd.f32 0.0, %v2667
      %v2669 = vpop.f32.mrb[0].mxu0
      %2670 = vmatprep.mubr.bf16.mxu0 %v2284
      %2671 = vmatmul.mubr.bf16.gmra.mrb[0].mxu0 %v1971
      %v2672 = vpop.f32.mrb[0].mxu0
      %v2673 = vadd.f32 0.0, %v2672
      %v2674 = vpop.f32.mrb[0].mxu0
      %v2675 = vpop.f32.mrb[0].mxu0
      %v2676 = vadd.f32 0.0, %v2675
      %v2677 = vpop.f32.mrb[0].mxu0
      %2678 = vmatprep.mubr.bf16.mxu0 %v2287
      %2679 = vmatmul.mubr.bf16.gmra.mrb[0].mxu0 %v1973
      %v2680 = vpop.f32.mrb[0].mxu0
      %v2681 = vadd.f32 0.0, %v2680
      %v2682 = vpop.f32.mrb[0].mxu0
      %v2683 = vpop.f32.mrb[0].mxu0
      %v2684 = vadd.f32 0.0, %v2683
      %v2685 = vpop.f32.mrb[0].mxu0
      %2686 = vmatprep.mubr.bf16.mxu0 %v2290
      %2687 = vmatmul.mubr.bf16.gmra.mrb[0].mxu0 %v1975
      %v2688 = vpop.f32.mrb[0].mxu0
      %v2689 = vadd.f32 0.0, %v2688
      %v2690 = vpop.f32.mrb[0].mxu0
      %v2691 = vpop.f32.mrb[0].mxu0
      %v2692 = vadd.f32 0.0, %v2691
      %v2693 = vpop.f32.mrb[0].mxu0
      %2694 = vmatprep.mubr.bf16.mxu0 %v2293
      %2695 = vmatmul.mubr.bf16.gmra.mrb[0].mxu0 %v1977
      %v2696 = vpop.f32.mrb[0].mxu0
      %v2697 = vadd.f32 0.0, %v2696
      %v2698 = vpop.f32.mrb[0].mxu0
      %v2699 = vpop.f32.mrb[0].mxu0
      %v2700 = vadd.f32 0.0, %v2699
      %v2701 = vpop.f32.mrb[0].mxu0
      %2702 = vmatprep.mubr.bf16.mxu0 %v2296
      %2703 = vmatmul.mubr.bf16.gmra.mrb[0].mxu0 %v1979
      %v2704 = vpop.f32.mrb[0].mxu0
      %v2705 = vadd.f32 0.0, %v2704
      %v2706 = vpop.f32.mrb[0].mxu0
      %v2707 = vpop.f32.mrb[0].mxu0
      %v2708 = vadd.f32 0.0, %v2707
      %v2709 = vpop.f32.mrb[0].mxu0
      %2710 = vmatprep.mubr.bf16.mxu0 %v2299
      %2711 = vmatmul.mubr.bf16.gmra.mrb[0].mxu0 %v1981
      %v2712 = vpop.f32.mrb[0].mxu0
      %v2713 = vadd.f32 0.0, %v2712
      %v2714 = vpop.f32.mrb[0].mxu0
      %v2715 = vpop.f32.mrb[0].mxu0
      %v2716 = vadd.f32 0.0, %v2715
      %v2717 = vpop.f32.mrb[0].mxu0
      %2718 = vmatprep.mubr.bf16.mxu0 %v2302
      %2719 = vmatmul.mubr.bf16.gmra.mrb[0].mxu0 %v1983
      %v2720 = vpop.f32.mrb[0].mxu0
      %v2721 = vadd.f32 0.0, %v2720
      %v2722 = vpop.f32.mrb[0].mxu0
      %v2723 = vpop.f32.mrb[0].mxu0
      %v2724 = vadd.f32 0.0, %v2723
      %v2725 = vpop.f32.mrb[0].mxu0
      %2726 = vmatprep.mubr.bf16.mxu0 %v2305
      %2727 = vmatmul.mubr.bf16.gmra.mrb[0].mxu0 %v1985
      %v2728 = vpop.f32.mrb[0].mxu0
      %v2729 = vadd.f32 0.0, %v2728
      %v2730 = vpop.f32.mrb[0].mxu0
      %v2731 = vpop.f32.mrb[0].mxu0
      %v2732 = vadd.f32 0.0, %v2731
      %v2733 = vpop.f32.mrb[0].mxu0
      %2734 = vmatprep.mubr.bf16.mxu0 %v2308
      %2735 = vmatmul.mubr.bf16.gmra.mrb[0].mxu0 %v1987
      %v2736 = vpop.f32.mrb[0].mxu0
      %v2737 = vadd.f32 0.0, %v2736
      %v2738 = vpop.f32.mrb[0].mxu0
      %v2739 = vpop.f32.mrb[0].mxu0
      %v2740 = vadd.f32 0.0, %v2739
      %v2741 = vpop.f32.mrb[0].mxu0
      %2742 = vmatprep.mubr.bf16.mxu0 %v2311
      %2743 = vmatmul.mubr.bf16.gmra.mrb[0].mxu0 %v1989
      %v2744 = vpop.f32.mrb[0].mxu0
      %v2745 = vadd.f32 0.0, %v2744
      %v2746 = vpop.f32.mrb[0].mxu0
      %v2747 = vpop.f32.mrb[0].mxu0
      %v2748 = vadd.f32 0.0, %v2747
      %v2749 = vpop.f32.mrb[0].mxu0
      %2750 = vmatprep.mubr.bf16.mxu0 %v2314
      %2751 = vmatmul.mubr.bf16.gmra.mrb[0].mxu0 %v1991
      %v2752 = vpop.f32.mrb[0].mxu0
      %v2753 = vadd.f32 0.0, %v2752
      %v2754 = vpop.f32.mrb[0].mxu0
      %v2755 = vpop.f32.mrb[0].mxu0
      %v2756 = vadd.f32 0.0, %v2755
      %v2757 = vpop.f32.mrb[0].mxu0
      %2758 = vmatprep.mubr.bf16.mxu0 %v2317
      %2759 = vmatmul.mubr.bf16.gmra.mrb[0].mxu0 %v1993
      %v2760 = vpop.f32.mrb[0].mxu0
      %v2761 = vadd.f32 0.0, %v2760
      %v2762 = vpop.f32.mrb[0].mxu0
      %v2763 = vpop.f32.mrb[0].mxu0
      %v2764 = vadd.f32 0.0, %v2763
      %v2765 = vpop.f32.mrb[0].mxu0
      %2766 = vmatprep.mubr.bf16.mxu0 %v2320
      %2767 = vmatmul.mubr.bf16.gmra.mrb[0].mxu0 %v1995
      %v2768 = vpop.f32.mrb[0].mxu0
      %v2769 = vadd.f32 0.0, %v2768
      %v2770 = vpop.f32.mrb[0].mxu0
      %v2771 = vpop.f32.mrb[0].mxu0
      %v2772 = vadd.f32 0.0, %v2771
      %v2773 = vpop.f32.mrb[0].mxu0
      %2774 = vmatprep.mubr.bf16.mxu0 %v2323
      %2775 = vmatmul.mubr.bf16.gmra.mrb[0].mxu0 %v1997
      %v2776 = vpop.f32.mrb[0].mxu0
      %v2777 = vadd.f32 0.0, %v2776
      %v2778 = vpop.f32.mrb[0].mxu0
      %v2779 = vpop.f32.mrb[0].mxu0
      %v2780 = vadd.f32 0.0, %v2779
      %v2781 = vpop.f32.mrb[0].mxu0
      %2782 = vmatprep.mubr.bf16.mxu0 %v2326
      %2783 = vmatmul.mubr.bf16.gmra.mrb[0].mxu0 %v1999
      %v2784 = vpop.f32.mrb[0].mxu0
      %v2785 = vadd.f32 0.0, %v2784
      %v2786 = vpop.f32.mrb[0].mxu0
      %v2787 = vpop.f32.mrb[0].mxu0
      %v2788 = vadd.f32 0.0, %v2787
      %v2789 = vpop.f32.mrb[0].mxu0
      %2790 = vmatprep.mubr.bf16.mxu0 %v2329
      %2791 = vmatmul.mubr.bf16.gmra.mrb[0].mxu0 %v2001
      %v2792 = vpop.f32.mrb[0].mxu0
      %v2793 = vadd.f32 0.0, %v2792
      %v2794 = vpop.f32.mrb[0].mxu0
      %v2795 = vpop.f32.mrb[0].mxu0
      %v2796 = vadd.f32 0.0, %v2795
      %v2797 = vpop.f32.mrb[0].mxu0
      %2798 = vmatprep.mubr.bf16.mxu0 %v2332
      %2799 = vmatmul.mubr.bf16.gmra.mrb[0].mxu0 %v2003
      %v2800 = vpop.f32.mrb[0].mxu0
      %v2801 = vadd.f32 0.0, %v2800
      %v2802 = vpop.f32.mrb[0].mxu0
      %v2803 = vpop.f32.mrb[0].mxu0
      %v2804 = vadd.f32 0.0, %v2803
      %v2805 = vpop.f32.mrb[0].mxu0
      %2806 = vmatprep.mubr.bf16.mxu0 %v2335
      %2807 = vmatmul.mubr.bf16.gmra.mrb[0].mxu0 %v2005
      %v2808 = vpop.f32.mrb[0].mxu0
      %v2809 = vadd.f32 0.0, %v2808
      %v2810 = vpop.f32.mrb[0].mxu0
      %v2811 = vpop.f32.mrb[0].mxu0
      %v2812 = vadd.f32 0.0, %v2811
      %v2813 = vpop.f32.mrb[0].mxu0
      %2814 = vmatprep.mubr.bf16.mxu0 %v2338
      %2815 = vmatmul.mubr.bf16.gmra.mrb[0].mxu0 %v2007
      %v2816 = vpop.f32.mrb[0].mxu0
      %v2817 = vadd.f32 0.0, %v2816
      %v2818 = vpop.f32.mrb[0].mxu0
      %v2819 = vpop.f32.mrb[0].mxu0
      %v2820 = vadd.f32 0.0, %v2819
      %v2821 = vpop.f32.mrb[0].mxu0
      %2822 = vmatprep.mubr.bf16.mxu0 %v2341
      %2823 = vmatmul.mubr.bf16.gmra.mrb[0].mxu0 %v2009
      %v2824 = vpop.f32.mrb[0].mxu0
      %v2825 = vadd.f32 0.0, %v2824
      %v2826 = vpop.f32.mrb[0].mxu0
      %v2827 = vpop.f32.mrb[0].mxu0
      %v2828 = vadd.f32 0.0, %v2827
      %v2829 = vpop.f32.mrb[0].mxu0
      %2830 = vmatprep.mubr.bf16.mxu0 %v2344
      %2831 = vmatmul.mubr.bf16.gmra.mrb[0].mxu0 %v2011
      %v2832 = vpop.f32.mrb[0].mxu0
      %v2833 = vadd.f32 0.0, %v2832
      %v2834 = vpop.f32.mrb[0].mxu0
      %v2835 = vpop.f32.mrb[0].mxu0
      %v2836 = vadd.f32 0.0, %v2835
      %v2837 = vpop.f32.mrb[0].mxu0
      %2838 = vmatprep.mubr.bf16.mxu0 %v2347
      %2839 = vmatmul.mubr.bf16.gmra.mrb[0].mxu0 %v2013
      %v2840 = vpop.f32.mrb[0].mxu0
      %v2841 = vadd.f32 0.0, %v2840
      %v2842 = vpop.f32.mrb[0].mxu0
      %v2843 = vpop.f32.mrb[0].mxu0
      %v2844 = vadd.f32 0.0, %v2843
      %v2845 = vpop.f32.mrb[0].mxu0
      %2846 = vmatprep.mubr.bf16.mxu0 %v2350
      %2847 = vmatmul.mubr.bf16.gmra.mrb[0].mxu0 %v2015
      %v2848 = vpop.f32.mrb[0].mxu0
      %v2849 = vadd.f32 0.0, %v2848
      %v2850 = vpop.f32.mrb[0].mxu0
      %v2851 = vpop.f32.mrb[0].mxu0
      %v2852 = vadd.f32 0.0, %v2851
      %v2853 = vpop.f32.mrb[0].mxu0
      %2854 = vmatprep.mubr.bf16.mxu0 %v2353
      %2855 = vmatmul.mubr.bf16.gmra.mrb[0].mxu0 %v2017
      %v2856 = vpop.f32.mrb[0].mxu0
      %v2857 = vadd.f32 0.0, %v2856
      %v2858 = vpop.f32.mrb[0].mxu0
      %v2859 = vpop.f32.mrb[0].mxu0
      %v2860 = vadd.f32 0.0, %v2859
      %v2861 = vpop.f32.mrb[0].mxu0
      %2862 = vmatprep.mubr.bf16.mxu0 %v2356
      %2863 = vmatmul.mubr.bf16.gmra.mrb[0].mxu0 %v2019
      %v2864 = vpop.f32.mrb[0].mxu0
      %v2865 = vadd.f32 0.0, %v2864
      %v2866 = vpop.f32.mrb[0].mxu0
      %v2867 = vpop.f32.mrb[0].mxu0
      %v2868 = vadd.f32 0.0, %v2867
      %v2869 = vpop.f32.mrb[0].mxu0
      %2870 = vmatprep.mubr.bf16.mxu0 %v2359
      %2871 = vmatmul.mubr.bf16.gmra.mrb[0].mxu0 %v2021
      %v2872 = vpop.f32.mrb[0].mxu0
      %v2873 = vadd.f32 0.0, %v2872
      %v2874 = vpop.f32.mrb[0].mxu0
      %v2875 = vpop.f32.mrb[0].mxu0
      %v2876 = vadd.f32 0.0, %v2875
      %v2877 = vpop.f32.mrb[0].mxu0
      %2878 = vmatprep.mubr.bf16.mxu0 %v2362
      %2879 = vmatmul.mubr.bf16.gmra.mrb[0].mxu0 %v2023
      %v2880 = vpop.f32.mrb[0].mxu0
      %v2881 = vadd.f32 0.0, %v2880
      %v2882 = vpop.f32.mrb[0].mxu0
      %v2883 = vpop.f32.mrb[0].mxu0
      %v2884 = vadd.f32 0.0, %v2883
      %v2885 = vpop.f32.mrb[0].mxu0
      %2886 = vmatprep.mubr.bf16.mxu0 %v2365
      %2887 = vmatmul.mubr.bf16.gmra.mrb[0].mxu0 %v2025
      %v2888 = vpop.f32.mrb[0].mxu0
      %v2889 = vadd.f32 0.0, %v2888
      %v2890 = vpop.f32.mrb[0].mxu0
      %v2891 = vpop.f32.mrb[0].mxu0
      %v2892 = vadd.f32 0.0, %v2891
      %v2893 = vpop.f32.mrb[0].mxu0
      %2894 = vmatprep.mubr.bf16.mxu0 %v2368
      %2895 = vmatmul.mubr.bf16.gmra.mrb[0].mxu0 %v2027
      %v2896 = vpop.f32.mrb[0].mxu0
      %v2897 = vadd.f32 0.0, %v2896
      %v2898 = vpop.f32.mrb[0].mxu0
      %v2899 = vpop.f32.mrb[0].mxu0
      %v2900 = vadd.f32 0.0, %v2899
      %v2901 = vpop.f32.mrb[0].mxu0
      %2902 = vmatprep.mubr.bf16.mxu0 %v2371
      %2903 = vmatmul.mubr.bf16.gmra.mrb[0].mxu0 %v2029
      %v2904 = vpop.f32.mrb[0].mxu0
      %v2905 = vadd.f32 0.0, %v2904
      %v2906 = vpop.f32.mrb[0].mxu0
      %v2907 = vpop.f32.mrb[0].mxu0
      %v2908 = vadd.f32 0.0, %v2907
      %v2909 = vpop.f32.mrb[0].mxu0
      %2910 = vmatprep.mubr.bf16.mxu0 %v2374
      %2911 = vmatmul.mubr.bf16.gmra.mrb[0].mxu0 %v2031
      %v2912 = vpop.f32.mrb[0].mxu0
      %v2913 = vadd.f32 0.0, %v2912
      %v2914 = vpop.f32.mrb[0].mxu0
      %v2915 = vpop.f32.mrb[0].mxu0
      %v2916 = vadd.f32 0.0, %v2915
      %v2917 = vpop.f32.mrb[0].mxu0
      %2918 = vmatprep.mubr.bf16.mxu0 %v2377
      %2919 = vmatmul.mubr.bf16.gmra.mrb[0].mxu0 %v2033
      %v2920 = vpop.f32.mrb[0].mxu0
      %v2921 = vadd.f32 0.0, %v2920
      %v2922 = vpop.f32.mrb[0].mxu0
      %v2923 = vpop.f32.mrb[0].mxu0
      %v2924 = vadd.f32 0.0, %v2923
      %v2925 = vpop.f32.mrb[0].mxu0
      %2926 = vmatprep.mubr.bf16.mxu0 %v2380
      %2927 = vmatmul.mubr.bf16.gmra.mrb[0].mxu0 %v2035
      %v2928 = vpop.f32.mrb[0].mxu0
      %v2929 = vadd.f32 0.0, %v2928
      %v2930 = vpop.f32.mrb[0].mxu0
      %v2931 = vpop.f32.mrb[0].mxu0
      %v2932 = vadd.f32 0.0, %v2931
      %v2933 = vpop.f32.mrb[0].mxu0
      %2934 = vmatprep.mubr.bf16.mxu0 %v2383
      %2935 = vmatmul.mubr.bf16.gmra.mrb[0].mxu0 %v2037
      %v2936 = vpop.f32.mrb[0].mxu0
      %v2937 = vadd.f32 0.0, %v2936
      %v2938 = vpop.f32.mrb[0].mxu0
      %v2939 = vpop.f32.mrb[0].mxu0
      %v2940 = vadd.f32 0.0, %v2939
      %v2941 = vpop.f32.mrb[0].mxu0
      %2942 = vmatprep.mubr.bf16.mxu0 %v2386
      %2943 = vmatmul.mubr.bf16.gmra.mrb[0].mxu0 %v2039
      %v2944 = vpop.f32.mrb[0].mxu0
      %v2945 = vadd.f32 0.0, %v2944
      %v2946 = vpop.f32.mrb[0].mxu0
      %v2947 = vpop.f32.mrb[0].mxu0
      %v2948 = vadd.f32 0.0, %v2947
      %v2949 = vpop.f32.mrb[0].mxu0
      %2950 = vmatprep.mubr.bf16.mxu0 %v2389
      %2951 = vmatmul.mubr.bf16.gmra.mrb[0].mxu0 %v2041
      %v2952 = vpop.f32.mrb[0].mxu0
      %v2953 = vadd.f32 0.0, %v2952
      %v2954 = vpop.f32.mrb[0].mxu0
      %v2955 = vpop.f32.mrb[0].mxu0
      %v2956 = vadd.f32 0.0, %v2955
      %v2957 = vpop.f32.mrb[0].mxu0
      %2958 = vmatprep.mubr.bf16.mxu0 %v2392
      %2959 = vmatmul.mubr.bf16.gmra.mrb[0].mxu0 %v2043
      %v2960 = vpop.f32.mrb[0].mxu0
      %v2961 = vadd.f32 0.0, %v2960
      %v2962 = vpop.f32.mrb[0].mxu0
      %v2963 = vpop.f32.mrb[0].mxu0
      %v2964 = vadd.f32 0.0, %v2963
      %v2965 = vpop.f32.mrb[0].mxu0
      %2966 = vmatprep.mubr.bf16.mxu0 %v2395
      %2967 = vmatmul.mubr.bf16.gmra.mrb[0].mxu0 %v2045
      %v2968 = vpop.f32.mrb[0].mxu0
      %v2969 = vadd.f32 0.0, %v2968
      %v2970 = vpop.f32.mrb[0].mxu0
      %v2971 = vpop.f32.mrb[0].mxu0
      %v2972 = vadd.f32 0.0, %v2971
      %v2973 = vpop.f32.mrb[0].mxu0
      %2974 = vmatprep.mubr.bf16.mxu0 %v2398
      %2975 = vmatmul.mubr.bf16.gmra.mrb[0].mxu0 %v2047
      %v2976 = vpop.f32.mrb[0].mxu0
      %v2977 = vadd.f32 0.0, %v2976
      %v2978 = vpop.f32.mrb[0].mxu0
      %v2979 = vpop.f32.mrb[0].mxu0
      %v2980 = vadd.f32 0.0, %v2979
      %v2981 = vpop.f32.mrb[0].mxu0
      %2982 = vmatprep.mubr.bf16.mxu0 %v2401
      %2983 = vmatmul.mubr.bf16.gmra.mrb[0].mxu0 %v2049
      %v2984 = vpop.f32.mrb[0].mxu0
      %v2985 = vadd.f32 0.0, %v2984
      %v2986 = vpop.f32.mrb[0].mxu0
      %v2987 = vpop.f32.mrb[0].mxu0
      %v2988 = vadd.f32 0.0, %v2987
      %v2989 = vpop.f32.mrb[0].mxu0
      %2990 = vmatprep.mubr.bf16.mxu0 %v2404
      %2991 = vmatmul.mubr.bf16.gmra.mrb[0].mxu0 %v2051
      %v2992 = vpop.f32.mrb[0].mxu0
      %v2993 = vadd.f32 0.0, %v2992
      %v2994 = vpop.f32.mrb[0].mxu0
      %v2995 = vpop.f32.mrb[0].mxu0
      %v2996 = vadd.f32 0.0, %v2995
      %v2997 = vpop.f32.mrb[0].mxu0
      %2998 = vmatprep.mubr.bf16.mxu0 %v2407
      %2999 = vmatmul.mubr.bf16.gmra.mrb[0].mxu0 %v2053
      %v3000 = vpop.f32.mrb[0].mxu0
      %v3001 = vadd.f32 0.0, %v3000
      %v3002 = vpop.f32.mrb[0].mxu0
      %v3003 = vpop.f32.mrb[0].mxu0
      %v3004 = vadd.f32 0.0, %v3003
      %v3005 = vpop.f32.mrb[0].mxu0
      %3006 = vmatprep.mubr.bf16.mxu0 %v2410
      %3007 = vmatmul.mubr.bf16.gmra.mrb[0].mxu0 %v2055
      %v3008 = vpop.f32.mrb[0].mxu0
      %v3009 = vadd.f32 0.0, %v3008
      %v3010 = vpop.f32.mrb[0].mxu0
      %v3011 = vpop.f32.mrb[0].mxu0
      %v3012 = vadd.f32 0.0, %v3011
      %v3013 = vpop.f32.mrb[0].mxu0
      %3014 = vmatprep.mubr.bf16.mxu0 %v2413
      %3015 = vmatmul.mubr.bf16.gmra.mrb[0].mxu0 %v2057
      %v3016 = vpop.f32.mrb[0].mxu0
      %v3017 = vadd.f32 0.0, %v3016
      %v3018 = vpop.f32.mrb[0].mxu0
      %v3019 = vpop.f32.mrb[0].mxu0
      %v3020 = vadd.f32 0.0, %v3019
      %v3021 = vpop.f32.mrb[0].mxu0
      %3022 = vmatprep.mubr.bf16.mxu0 %v2416
      %3023 = vmatmul.mubr.bf16.gmra.mrb[0].mxu0 %v2059
      %v3024 = vpop.f32.mrb[0].mxu0
      %v3025 = vadd.f32 0.0, %v3024
      %v3026 = vpop.f32.mrb[0].mxu0
      %v3027 = vpop.f32.mrb[0].mxu0
      %v3028 = vadd.f32 0.0, %v3027
      %v3029 = vpop.f32.mrb[0].mxu0
      %3030 = vmatprep.mubr.bf16.mxu0 %v2419
      %3031 = vmatmul.mubr.bf16.gmra.mrb[0].mxu0 %v2061
      %v3032 = vpop.f32.mrb[0].mxu0
      %v3033 = vadd.f32 0.0, %v3032
      %v3034 = vpop.f32.mrb[0].mxu0
      %v3035 = vpop.f32.mrb[0].mxu0
      %v3036 = vadd.f32 0.0, %v3035
      %v3037 = vpop.f32.mrb[0].mxu0
      %3038 = vmatprep.mubr.bf16.mxu0 %v2422
      %3039 = vmatmul.mubr.bf16.gmra.mrb[0].mxu0 %v2063
      %v3040 = vpop.f32.mrb[0].mxu0
      %v3041 = vadd.f32 0.0, %v3040
      %v3042 = vpop.f32.mrb[0].mxu0
      %v3043 = vpop.f32.mrb[0].mxu0
      %v3044 = vadd.f32 0.0, %v3043
      %v3045 = vpop.f32.mrb[0].mxu0
      %3046 = vmatprep.mubr.bf16.mxu0 %v2425
      %3047 = vmatmul.mubr.bf16.gmra.mrb[0].mxu0 %v2065
      %v3048 = vpop.f32.mrb[0].mxu0
      %v3049 = vadd.f32 0.0, %v3048
      %v3050 = vpop.f32.mrb[0].mxu0
      %v3051 = vpop.f32.mrb[0].mxu0
      %v3052 = vadd.f32 0.0, %v3051
      %v3053 = vpop.f32.mrb[0].mxu0
      %3054 = vmatprep.mubr.bf16.mxu0 %v2428
      %3055 = vmatmul.mubr.bf16.gmra.mrb[0].mxu0 %v2067
      %v3056 = vpop.f32.mrb[0].mxu0
      %v3057 = vadd.f32 0.0, %v3056
      %v3058 = vpop.f32.mrb[0].mxu0
      %v3059 = vpop.f32.mrb[0].mxu0
      %v3060 = vadd.f32 0.0, %v3059
      %v3061 = vpop.f32.mrb[0].mxu0
      %3062 = vmatprep.mubr.bf16.mxu0 %v2431
      %3063 = vmatmul.mubr.bf16.gmra.mrb[0].mxu0 %v2069
      %v3064 = vpop.f32.mrb[0].mxu0
      %v3065 = vadd.f32 0.0, %v3064
      %v3066 = vpop.f32.mrb[0].mxu0
      %v3067 = vpop.f32.mrb[0].mxu0
      %v3068 = vadd.f32 0.0, %v3067
      %v3069 = vpop.f32.mrb[0].mxu0
      %3070 = vmatprep.mubr.bf16.mxu0 %v2434
      %3071 = vmatmul.mubr.bf16.gmra.mrb[0].mxu0 %v2071
      %v3072 = vpop.f32.mrb[0].mxu0
      %v3073 = vadd.f32 0.0, %v3072
      %v3074 = vpop.f32.mrb[0].mxu0
      %v3075 = vpop.f32.mrb[0].mxu0
      %v3076 = vadd.f32 0.0, %v3075
      %v3077 = vpop.f32.mrb[0].mxu0
      %3078 = vmatprep.mubr.bf16.mxu0 %v2437
      %3079 = vmatmul.mubr.bf16.gmra.mrb[0].mxu0 %v2073
      %v3080 = vpop.f32.mrb[0].mxu0
      %v3081 = vadd.f32 0.0, %v3080
      %v3082 = vpop.f32.mrb[0].mxu0
      %v3083 = vpop.f32.mrb[0].mxu0
      %v3084 = vadd.f32 0.0, %v3083
      %v3085 = vpop.f32.mrb[0].mxu0
      %3086 = vmatprep.mubr.bf16.mxu0 %v2440
      %3087 = vmatmul.mubr.bf16.gmra.mrb[0].mxu0 %v2075
      %v3088 = vpop.f32.mrb[0].mxu0
      %v3089 = vadd.f32 0.0, %v3088
      %v3090 = vpop.f32.mrb[0].mxu0
      %v3091 = vpop.f32.mrb[0].mxu0
      %v3092 = vadd.f32 0.0, %v3091
      %v3093 = vpop.f32.mrb[0].mxu0
      %3094 = vmatprep.mubr.bf16.mxu0 %v2443
      %3095 = vmatmul.mubr.bf16.gmra.mrb[0].mxu0 %v2077
      %v3096 = vpop.f32.mrb[0].mxu0
      %v3097 = vadd.f32 0.0, %v3096
      %v3098 = vpop.f32.mrb[0].mxu0
      %v3099 = vpop.f32.mrb[0].mxu0
      %v3100 = vadd.f32 0.0, %v3099
      %v3101 = vpop.f32.mrb[0].mxu0
      %3102 = vmatprep.mubr.bf16.mxu0 %v2446
      %3103 = vmatmul.mubr.bf16.gmra.mrb[0].mxu0 %v2079
      %v3104 = vpop.f32.mrb[0].mxu0
      %v3105 = vadd.f32 0.0, %v3104
      %v3106 = vpop.f32.mrb[0].mxu0
      %v3107 = vpop.f32.mrb[0].mxu0
      %v3108 = vadd.f32 0.0, %v3107
      %v3109 = vpop.f32.mrb[0].mxu0
      %3110 = vmatprep.mubr.bf16.mxu0 %v2449
      %3111 = vmatmul.mubr.bf16.gmra.mrb[0].mxu0 %v2081
      %v3112 = vpop.f32.mrb[0].mxu0
      %v3113 = vadd.f32 0.0, %v3112
      %v3114 = vpop.f32.mrb[0].mxu0
      %v3115 = vpop.f32.mrb[0].mxu0
      %v3116 = vadd.f32 0.0, %v3115
      %v3117 = vpop.f32.mrb[0].mxu0
      %3118 = vmatprep.mubr.bf16.mxu0 %v2452
      %3119 = vmatmul.mubr.bf16.gmra.mrb[0].mxu0 %v2083
      %v3120 = vpop.f32.mrb[0].mxu0
      %v3121 = vadd.f32 0.0, %v3120
      %v3122 = vpop.f32.mrb[0].mxu0
      %v3123 = vpop.f32.mrb[0].mxu0
      %v3124 = vadd.f32 0.0, %v3123
      %v3125 = vpop.f32.mrb[0].mxu0
      %3126 = vmatprep.mubr.bf16.mxu0 %v2455
      %3127 = vmatmul.mubr.bf16.gmra.mrb[0].mxu0 %v2085
      %v3128 = vpop.f32.mrb[0].mxu0
      %v3129 = vadd.f32 0.0, %v3128
      %v3130 = vpop.f32.mrb[0].mxu0
      %v3131 = vpop.f32.mrb[0].mxu0
      %v3132 = vadd.f32 0.0, %v3131
      %v3133 = vpop.f32.mrb[0].mxu0
      %3134 = vmatprep.mubr.bf16.mxu0 %v2458
      %3135 = vmatmul.mubr.bf16.gmra.mrb[0].mxu0 %v2087
      %v3136 = vpop.f32.mrb[0].mxu0
      %v3137 = vadd.f32 0.0, %v3136
      %v3138 = vpop.f32.mrb[0].mxu0
      %v3139 = vpop.f32.mrb[0].mxu0
      %v3140 = vadd.f32 0.0, %v3139
      %v3141 = vpop.f32.mrb[0].mxu0
      %3142 = vmatprep.mubr.bf16.mxu0 %v2461
      %3143 = vmatmul.mubr.bf16.gmra.mrb[0].mxu0 %v2089
      %v3144 = vpop.f32.mrb[0].mxu0
      %v3145 = vadd.f32 0.0, %v3144
      %v3146 = vpop.f32.mrb[0].mxu0
      %v3147 = vpop.f32.mrb[0].mxu0
      %v3148 = vadd.f32 0.0, %v3147
      %v3149 = vpop.f32.mrb[0].mxu0
      %3150 = vmatprep.mubr.bf16.mxu0 %v2464
      %3151 = vmatmul.mubr.bf16.gmra.mrb[0].mxu0 %v2091
      %v3152 = vpop.f32.mrb[0].mxu0
      %v3153 = vadd.f32 0.0, %v3152
      %v3154 = vpop.f32.mrb[0].mxu0
      %v3155 = vpop.f32.mrb[0].mxu0
      %v3156 = vadd.f32 0.0, %v3155
      %v3157 = vpop.f32.mrb[0].mxu0
      %3158 = vmatprep.mubr.bf16.mxu0 %v2467
      %3159 = vmatmul.mubr.bf16.gmra.mrb[0].mxu0 %v2093
      %v3160 = vpop.f32.mrb[0].mxu0
      %v3161 = vadd.f32 0.0, %v3160
      %v3162 = vpop.f32.mrb[0].mxu0
      %v3163 = vpop.f32.mrb[0].mxu0
      %v3164 = vadd.f32 0.0, %v3163
      %v3165 = vpop.f32.mrb[0].mxu0
      %3166 = vmatprep.mubr.bf16.mxu0 %v2470
      %3167 = vmatmul.mubr.bf16.gmra.mrb[0].mxu0 %v2095
      %v3168 = vpop.f32.mrb[0].mxu0
      %v3169 = vadd.f32 0.0, %v3168
      %v3170 = vpop.f32.mrb[0].mxu0
      %v3171 = vpop.f32.mrb[0].mxu0
      %v3172 = vadd.f32 0.0, %v3171
      %v3173 = vpop.f32.mrb[0].mxu0
      %3174 = vmatprep.mubr.bf16.mxu0 %v2473
      %3175 = vmatmul.mubr.bf16.gmra.mrb[0].mxu0 %v2097
      %v3176 = vpop.f32.mrb[0].mxu0
      %v3177 = vadd.f32 0.0, %v3176
      %v3178 = vpop.f32.mrb[0].mxu0
      %v3179 = vpop.f32.mrb[0].mxu0
      %v3180 = vadd.f32 0.0, %v3179
      %v3181 = vpop.f32.mrb[0].mxu0
      %3182 = vmatprep.mubr.bf16.mxu0 %v2476
      %3183 = vmatmul.mubr.bf16.gmra.mrb[0].mxu0 %v2099
      %v3184 = vpop.f32.mrb[0].mxu0
      %v3185 = vadd.f32 0.0, %v3184
      %v3186 = vpop.f32.mrb[0].mxu0
      %v3187 = vpop.f32.mrb[0].mxu0
      %v3188 = vadd.f32 0.0, %v3187
      %v3189 = vpop.f32.mrb[0].mxu0
      %3190 = vmatprep.mubr.bf16.mxu0 %v2479
      %3191 = vmatmul.mubr.bf16.gmra.mrb[0].mxu0 %v2101
      %v3192 = vpop.f32.mrb[0].mxu0
      %v3193 = vadd.f32 0.0, %v3192
      %v3194 = vpop.f32.mrb[0].mxu0
      %v3195 = vpop.f32.mrb[0].mxu0
      %v3196 = vadd.f32 0.0, %v3195
      %v3197 = vpop.f32.mrb[0].mxu0
      %3198 = vmatprep.mubr.bf16.mxu0 %v2482
      %3199 = vmatmul.mubr.bf16.gmra.mrb[0].mxu0 %v2103
      %v3200 = vpop.f32.mrb[0].mxu0
      %v3201 = vadd.f32 0.0, %v3200
      %v3202 = vpop.f32.mrb[0].mxu0
      %v3203 = vpop.f32.mrb[0].mxu0
      %v3204 = vadd.f32 0.0, %v3203
      %v3205 = vpop.f32.mrb[0].mxu0
      %3206 = vmatprep.mubr.bf16.mxu0 %v2485
      %3207 = vmatmul.mubr.bf16.gmra.mrb[0].mxu0 %v2105
      %v3208 = vpop.f32.mrb[0].mxu0
      %v3209 = vadd.f32 0.0, %v3208
      %v3210 = vpop.f32.mrb[0].mxu0
      %v3211 = vpop.f32.mrb[0].mxu0
      %v3212 = vadd.f32 0.0, %v3211
      %v3213 = vpop.f32.mrb[0].mxu0
      %3214 = vmatprep.mubr.bf16.mxu0 %v2488
      %3215 = vmatmul.mubr.bf16.gmra.mrb[0].mxu0 %v2107
      %v3216 = vpop.f32.mrb[0].mxu0
      %v3217 = vadd.f32 0.0, %v3216
      %v3218 = vpop.f32.mrb[0].mxu0
      %v3219 = vpop.f32.mrb[0].mxu0
      %v3220 = vadd.f32 0.0, %v3219
      %v3221 = vpop.f32.mrb[0].mxu0
      %3222 = vmatprep.mubr.bf16.mxu0 %v2491
      %3223 = vmatmul.mubr.bf16.gmra.mrb[0].mxu0 %v2109
      %v3224 = vpop.f32.mrb[0].mxu0
      %v3225 = vadd.f32 0.0, %v3224
      %v3226 = vpop.f32.mrb[0].mxu0
      %v3227 = vpop.f32.mrb[0].mxu0
      %v3228 = vadd.f32 0.0, %v3227
      %v3229 = vpop.f32.mrb[0].mxu0
      %3230 = vmatprep.mubr.bf16.mxu0 %v2494
      %3231 = vmatmul.mubr.bf16.gmra.mrb[0].mxu0 %v2111
      %v3232 = vpop.f32.mrb[0].mxu0
      %v3233 = vadd.f32 0.0, %v3232
      %v3234 = vpop.f32.mrb[0].mxu0
      %v3235 = vpop.f32.mrb[0].mxu0
      %v3236 = vadd.f32 0.0, %v3235
      %v3237 = vpop.f32.mrb[0].mxu0
      %3238 = vmatprep.mubr.bf16.mxu0 %v2497
      %3239 = vmatmul.mubr.bf16.gmra.mrb[0].mxu0 %v2113
      %v3240 = vpop.f32.mrb[0].mxu0
      %v3241 = vadd.f32 0.0, %v3240
      %v3242 = vpop.f32.mrb[0].mxu0
      %v3243 = vpop.f32.mrb[0].mxu0
      %v3244 = vadd.f32 0.0, %v3243
      %v3245 = vpop.f32.mrb[0].mxu0
      %3246 = vmatprep.mubr.bf16.mxu0 %v2500
      %3247 = vmatmul.mubr.bf16.gmra.mrb[0].mxu0 %v2115
      %v3248 = vpop.f32.mrb[0].mxu0
      %v3249 = vadd.f32 0.0, %v3248
      %v3250 = vpop.f32.mrb[0].mxu0
      %v3251 = vpop.f32.mrb[0].mxu0
      %v3252 = vadd.f32 0.0, %v3251
      %v3253 = vpop.f32.mrb[0].mxu0
      %3254 = vmatprep.mubr.bf16.mxu0 %v2503
      %3255 = vmatmul.mubr.bf16.gmra.mrb[0].mxu0 %v2117
      %v3256 = vpop.f32.mrb[0].mxu0
      %v3257 = vadd.f32 0.0, %v3256
      %v3258 = vpop.f32.mrb[0].mxu0
      %v3259 = vpop.f32.mrb[0].mxu0
      %v3260 = vadd.f32 0.0, %v3259
      %v3261 = vpop.f32.mrb[0].mxu0
      %3262 = vmatprep.mubr.bf16.mxu0 %v2506
      %3263 = vmatmul.mubr.bf16.gmra.mrb[0].mxu0 %v2119
      %v3264 = vpop.f32.mrb[0].mxu0
      %v3265 = vadd.f32 0.0, %v3264
      %v3266 = vpop.f32.mrb[0].mxu0
      %v3267 = vpop.f32.mrb[0].mxu0
      %v3268 = vadd.f32 0.0, %v3267
      %v3269 = vpop.f32.mrb[0].mxu0
      %3270 = vmatprep.mubr.bf16.mxu0 %v2509
      %3271 = vmatmul.mubr.bf16.gmra.mrb[0].mxu0 %v2121
      %v3272 = vpop.f32.mrb[0].mxu0
      %v3273 = vadd.f32 0.0, %v3272
      %v3274 = vpop.f32.mrb[0].mxu0
      %v3275 = vpop.f32.mrb[0].mxu0
      %v3276 = vadd.f32 0.0, %v3275
      %v3277 = vpop.f32.mrb[0].mxu0
      %3278 = vmatprep.mubr.bf16.mxu0 %v2512
      %3279 = vmatmul.mubr.bf16.gmra.mrb[0].mxu0 %v2123
      %v3280 = vpop.f32.mrb[0].mxu0
      %v3281 = vadd.f32 0.0, %v3280
      %v3282 = vpop.f32.mrb[0].mxu0
      %v3283 = vpop.f32.mrb[0].mxu0
      %v3284 = vadd.f32 0.0, %v3283
      %v3285 = vpop.f32.mrb[0].mxu0
      %3286 = vmatprep.mubr.bf16.mxu0 %v2515
      %3287 = vmatmul.mubr.bf16.gmra.mrb[0].mxu0 %v2125
      %v3288 = vpop.f32.mrb[0].mxu0
      %v3289 = vadd.f32 0.0, %v3288
      %v3290 = vpop.f32.mrb[0].mxu0
      %v3291 = vpop.f32.mrb[0].mxu0
      %v3292 = vadd.f32 0.0, %v3291
      %v3293 = vpop.f32.mrb[0].mxu0
      %3294 = vmatprep.mubr.bf16.mxu0 %v2518
      %3295 = vmatmul.mubr.bf16.gmra.mrb[0].mxu0 %v2127
      %v3296 = vpop.f32.mrb[0].mxu0
      %v3297 = vadd.f32 0.0, %v3296
      %v3298 = vpop.f32.mrb[0].mxu0
      %v3299 = vpop.f32.mrb[0].mxu0
      %v3300 = vadd.f32 0.0, %v3299
      %v3301 = vpop.f32.mrb[0].mxu0
      %3302 = vmatprep.mubr.bf16.mxu0 %v2521
      %3303 = vmatmul.mubr.bf16.gmra.mrb[0].mxu0 %v2129
      %v3304 = vpop.f32.mrb[0].mxu0
      %v3305 = vadd.f32 0.0, %v3304
      %v3306 = vpop.f32.mrb[0].mxu0
      %v3307 = vpop.f32.mrb[0].mxu0
      %v3308 = vadd.f32 0.0, %v3307
      %v3309 = vpop.f32.mrb[0].mxu0
      %3310 = vmatprep.mubr.bf16.mxu0 %v2524
      %3311 = vmatmul.mubr.bf16.gmra.mrb[0].mxu0 %v2131
      %v3312 = vpop.f32.mrb[0].mxu0
      %v3313 = vadd.f32 0.0, %v3312
      %v3314 = vpop.f32.mrb[0].mxu0
      %v3315 = vpop.f32.mrb[0].mxu0
      %v3316 = vadd.f32 0.0, %v3315
      %v3317 = vpop.f32.mrb[0].mxu0
      %3318 = vmatprep.mubr.bf16.mxu0 %v2527
      %3319 = vmatmul.mubr.bf16.gmra.mrb[0].mxu0 %v2133
      %v3320 = vpop.f32.mrb[0].mxu0
      %v3321 = vadd.f32 0.0, %v3320
      %v3322 = vpop.f32.mrb[0].mxu0
      %v3323 = vpop.f32.mrb[0].mxu0
      %v3324 = vadd.f32 0.0, %v3323
      %v3325 = vpop.f32.mrb[0].mxu0
      %3326 = vmatprep.mubr.bf16.mxu0 %v2530
      %3327 = vmatmul.mubr.bf16.gmra.mrb[0].mxu0 %v2135
      %v3328 = vpop.f32.mrb[0].mxu0
      %v3329 = vadd.f32 0.0, %v3328
      %v3330 = vpop.f32.mrb[0].mxu0
      %v3331 = vpop.f32.mrb[0].mxu0
      %v3332 = vadd.f32 0.0, %v3331
      %v3333 = vpop.f32.mrb[0].mxu0
      %3334 = vmatprep.mubr.bf16.mxu0 %v2533
      %3335 = vmatmul.mubr.bf16.gmra.mrb[0].mxu0 %v2137
      %v3336 = vpop.f32.mrb[0].mxu0
      %v3337 = vadd.f32 0.0, %v3336
      %v3338 = vpop.f32.mrb[0].mxu0
      %v3339 = vpop.f32.mrb[0].mxu0
      %v3340 = vadd.f32 0.0, %v3339
      %v3341 = vpop.f32.mrb[0].mxu0
      %3342 = vmatprep.mubr.bf16.mxu0 %v2536
      %3343 = vmatmul.mubr.bf16.gmra.mrb[0].mxu0 %v2139
      %v3344 = vpop.f32.mrb[0].mxu0
      %v3345 = vadd.f32 0.0, %v3344
      %v3346 = vpop.f32.mrb[0].mxu0
      %v3347 = vpop.f32.mrb[0].mxu0
      %v3348 = vadd.f32 0.0, %v3347
      %v3349 = vpop.f32.mrb[0].mxu0
      %3350 = vmatprep.mubr.bf16.mxu0 %v2539
      %3351 = vmatmul.mubr.bf16.gmra.mrb[0].mxu0 %v2141
      %v3352 = vpop.f32.mrb[0].mxu0
      %v3353 = vadd.f32 0.0, %v3352
      %v3354 = vpop.f32.mrb[0].mxu0
      %v3355 = vpop.f32.mrb[0].mxu0
      %v3356 = vadd.f32 0.0, %v3355
      %v3357 = vpop.f32.mrb[0].mxu0
      %3358 = vmatprep.mubr.bf16.mxu0 %v2542
      %3359 = vmatmul.mubr.bf16.gmra.mrb[0].mxu0 %v2143
      %v3360 = vpop.f32.mrb[0].mxu0
      %v3361 = vadd.f32 0.0, %v3360
      %v3362 = vpop.f32.mrb[0].mxu0
      %v3363 = vpop.f32.mrb[0].mxu0
      %v3364 = vadd.f32 0.0, %v3363
      %v3365 = vpop.f32.mrb[0].mxu0
      %3366 = vmatprep.mubr.bf16.mxu0 %v2545
      %3367 = vmatmul.mubr.bf16.gmra.mrb[0].mxu0 %v2145
      %v3368 = vpop.f32.mrb[0].mxu0
      %v3369 = vadd.f32 0.0, %v3368
      %v3370 = vpop.f32.mrb[0].mxu0
      %v3371 = vpop.f32.mrb[0].mxu0
      %v3372 = vadd.f32 0.0, %v3371
      %v3373 = vpop.f32.mrb[0].mxu0
      %3374 = vmatprep.mubr.bf16.mxu0 %v2548
      %3375 = vmatmul.mubr.bf16.gmra.mrb[0].mxu0 %v2147
      %v3376 = vpop.f32.mrb[0].mxu0
      %v3377 = vadd.f32 0.0, %v3376
      %v3378 = vpop.f32.mrb[0].mxu0
      %v3379 = vpop.f32.mrb[0].mxu0
      %v3380 = vadd.f32 0.0, %v3379
      %v3381 = vpop.f32.mrb[0].mxu0
      %3382 = vdwg.mxu0
      %v3383 = vpack.c.bf16 %v2588, %v2585
      %v3384 = vpack.c.bf16 %v2596, %v2593
      %v3385 = vpack.c.bf16 %v2604, %v2601
      %v3386 = vpack.c.bf16 %v2612, %v2609
      %v3387 = vpack.c.bf16 %v2620, %v2617
      %v3388 = vpack.c.bf16 %v2628, %v2625
      %v3389 = vpack.c.bf16 %v2636, %v2633
      %v3390 = vpack.c.bf16 %v2644, %v2641
      %v3391 = vpack.c.bf16 %v2652, %v2649
      %v3392 = vpack.c.bf16 %v2660, %v2657
      %v3393 = vpack.c.bf16 %v2668, %v2665
      %v3394 = vpack.c.bf16 %v2676, %v2673
      %v3395 = vpack.c.bf16 %v2684, %v2681
      %v3396 = vpack.c.bf16 %v2692, %v2689
      %v3397 = vpack.c.bf16 %v2700, %v2697
      %v3398 = vpack.c.bf16 %v2708, %v2705
      %v3399 = vpack.c.bf16 %v2716, %v2713
      %v3400 = vpack.c.bf16 %v2724, %v2721
      %v3401 = vpack.c.bf16 %v2732, %v2729
      %v3402 = vpack.c.bf16 %v2740, %v2737
      %v3403 = vpack.c.bf16 %v2748, %v2745
      %v3404 = vpack.c.bf16 %v2756, %v2753
      %v3405 = vpack.c.bf16 %v2764, %v2761
      %v3406 = vpack.c.bf16 %v2772, %v2769
      %v3407 = vpack.c.bf16 %v2780, %v2777
      %v3408 = vpack.c.bf16 %v2788, %v2785
      %v3409 = vpack.c.bf16 %v2796, %v2793
      %v3410 = vpack.c.bf16 %v2804, %v2801
      %v3411 = vpack.c.bf16 %v2812, %v2809
      %v3412 = vpack.c.bf16 %v2820, %v2817
      %v3413 = vpack.c.bf16 %v2828, %v2825
      %v3414 = vpack.c.bf16 %v2836, %v2833
      %v3415 = vpack.c.bf16 %v2844, %v2841
      %v3416 = vpack.c.bf16 %v2852, %v2849
      %v3417 = vpack.c.bf16 %v2860, %v2857
      %v3418 = vpack.c.bf16 %v2868, %v2865
      %v3419 = vpack.c.bf16 %v2876, %v2873
      %v3420 = vpack.c.bf16 %v2884, %v2881
      %v3421 = vpack.c.bf16 %v2892, %v2889
      %v3422 = vpack.c.bf16 %v2900, %v2897
      %v3423 = vpack.c.bf16 %v2908, %v2905
      %v3424 = vpack.c.bf16 %v2916, %v2913
      %v3425 = vpack.c.bf16 %v2924, %v2921
      %v3426 = vpack.c.bf16 %v2932, %v2929
      %v3427 = vpack.c.bf16 %v2940, %v2937
      %v3428 = vpack.c.bf16 %v2948, %v2945
      %v3429 = vpack.c.bf16 %v2956, %v2953
      %v3430 = vpack.c.bf16 %v2964, %v2961
      %v3431 = vpack.c.bf16 %v2972, %v2969
      %v3432 = vpack.c.bf16 %v2980, %v2977
      %v3433 = vpack.c.bf16 %v2988, %v2985
      %v3434 = vpack.c.bf16 %v2996, %v2993
      %v3435 = vpack.c.bf16 %v3004, %v3001
      %v3436 = vpack.c.bf16 %v3012, %v3009
      %v3437 = vpack.c.bf16 %v3020, %v3017
      %v3438 = vpack.c.bf16 %v3028, %v3025
      %v3439 = vpack.c.bf16 %v3036, %v3033
      %v3440 = vpack.c.bf16 %v3044, %v3041
      %v3441 = vpack.c.bf16 %v3052, %v3049
      %v3442 = vpack.c.bf16 %v3060, %v3057
      %v3443 = vpack.c.bf16 %v3068, %v3065
      %v3444 = vpack.c.bf16 %v3076, %v3073
      %v3445 = vpack.c.bf16 %v3084, %v3081
      %v3446 = vpack.c.bf16 %v3092, %v3089
      %v3447 = vpack.c.bf16 %v3100, %v3097
      %v3448 = vpack.c.bf16 %v3108, %v3105
      %v3449 = vpack.c.bf16 %v3116, %v3113
      %v3450 = vpack.c.bf16 %v3124, %v3121
      %v3451 = vpack.c.bf16 %v3132, %v3129
      %v3452 = vpack.c.bf16 %v3140, %v3137
      %v3453 = vpack.c.bf16 %v3148, %v3145
      %v3454 = vpack.c.bf16 %v3156, %v3153
      %v3455 = vpack.c.bf16 %v3164, %v3161
      %v3456 = vpack.c.bf16 %v3172, %v3169
      %v3457 = vpack.c.bf16 %v3180, %v3177
      %v3458 = vpack.c.bf16 %v3188, %v3185
      %v3459 = vpack.c.bf16 %v3196, %v3193
      %v3460 = vpack.c.bf16 %v3204, %v3201
      %v3461 = vpack.c.bf16 %v3212, %v3209
      %v3462 = vpack.c.bf16 %v3220, %v3217
      %v3463 = vpack.c.bf16 %v3228, %v3225
      %v3464 = vpack.c.bf16 %v3236, %v3233
      %v3465 = vpack.c.bf16 %v3244, %v3241
      %v3466 = vpack.c.bf16 %v3252, %v3249
      %v3467 = vpack.c.bf16 %v3260, %v3257
      %v3468 = vpack.c.bf16 %v3268, %v3265
      %v3469 = vpack.c.bf16 %v3276, %v3273
      %v3470 = vpack.c.bf16 %v3284, %v3281
      %v3471 = vpack.c.bf16 %v3292, %v3289
      %v3472 = vpack.c.bf16 %v3300, %v3297
      %v3473 = vpack.c.bf16 %v3308, %v3305
      %v3474 = vpack.c.bf16 %v3316, %v3313
      %v3475 = vpack.c.bf16 %v3324, %v3321
      %v3476 = vpack.c.bf16 %v3332, %v3329
      %v3477 = vpack.c.bf16 %v3340, %v3337
      %v3478 = vpack.c.bf16 %v3348, %v3345
      %v3479 = vpack.c.bf16 %v3356, %v3353
      %v3480 = vpack.c.bf16 %v3364, %v3361
      %v3481 = vpack.c.bf16 %v3372, %v3369
      %v3482 = vpack.c.bf16 %v3380, %v3377
      %v3483 = vld [vmem:[%s4] sm:$0xf]
      %v3484 = vld [vmem:[%s4 + $0x4] sm:$0xf]
      %v3485 = vld [vmem:[%s4 + $0x8] sm:$0xf]
      %v3486 = vld [vmem:[%s4 + $0xc] sm:$0xf]
      %v3487 = vld [vmem:[%s4 + $0x10] sm:$0xf]
      %v3488 = vld [vmem:[%s4 + $0x14] sm:$0xf]
      %v3489 = vld [vmem:[%s4 + $0x18] sm:$0xf]
      %v3490 = vld [vmem:[%s4 + $0x1c] sm:$0xf]
      %v3491 = vld [vmem:[%s4 + $0x20] sm:$0xf]
      %v3492 = vld [vmem:[%s4 + $0x24] sm:$0xf]
      %v3493 = vld [vmem:[%s4 + $0x28] sm:$0xf]
      %v3494 = vld [vmem:[%s4 + $0x2c] sm:$0xf]
      %v3495 = vld [vmem:[%s4 + $0x30] sm:$0xf]
      %v3496 = vld [vmem:[%s4 + $0x34] sm:$0xf]
      %v3497 = vld [vmem:[%s4 + $0x38] sm:$0xf]
      %v3498 = vld [vmem:[%s4 + $0x3c] sm:$0xf]
      %s3499 = scalar_lea.vmem %s4, 64
      %v3500 = vld [vmem:[%s3499] sm:$0xf]
      %v3501 = vld [vmem:[%s3499 + $0x4] sm:$0xf]
      %v3502 = vld [vmem:[%s3499 + $0x8] sm:$0xf]
      %v3503 = vld [vmem:[%s3499 + $0xc] sm:$0xf]
      %v3504 = vld [vmem:[%s3499 + $0x10] sm:$0xf]
      %v3505 = vld [vmem:[%s3499 + $0x14] sm:$0xf]
      %v3506 = vld [vmem:[%s3499 + $0x18] sm:$0xf]
      %v3507 = vld [vmem:[%s3499 + $0x1c] sm:$0xf]
      %v3508 = vld [vmem:[%s3499 + $0x20] sm:$0xf]
      %v3509 = vld [vmem:[%s3499 + $0x24] sm:$0xf]
      %v3510 = vld [vmem:[%s3499 + $0x28] sm:$0xf]
      %v3511 = vld [vmem:[%s3499 + $0x2c] sm:$0xf]
      %v3512 = vld [vmem:[%s3499 + $0x30] sm:$0xf]
      %v3513 = vld [vmem:[%s3499 + $0x34] sm:$0xf]
      %v3514 = vld [vmem:[%s3499 + $0x38] sm:$0xf]
      %v3515 = vld [vmem:[%s3499 + $0x3c] sm:$0xf]
      %v3532 = vunpack.c.l.b16 %v3500
      %v3533 = vunpack.c.l.b16 %v3501
      %v3534 = vunpack.c.l.b16 %v3502
      %v3535 = vunpack.c.l.b16 %v3503
      %v3536 = vunpack.c.l.b16 %v3504
      %v3537 = vunpack.c.l.b16 %v3505
      %v3538 = vunpack.c.l.b16 %v3506
      %v3539 = vunpack.c.l.b16 %v3507
      %v3540 = vunpack.c.l.b16 %v3508
      %v3541 = vunpack.c.l.b16 %v3509
      %v3542 = vunpack.c.l.b16 %v3510
      %v3543 = vunpack.c.l.b16 %v3511
      %v3544 = vunpack.c.l.b16 %v3512
      %v3545 = vunpack.c.l.b16 %v3513
      %v3546 = vunpack.c.l.b16 %v3514
      %v3547 = vunpack.c.l.b16 %v3515
      %v3548 = vpack.c.b16 %v3533, %v3532
      %v3549 = vpack.c.b16 %v3535, %v3534
      %v3550 = vpack.c.b16 %v3537, %v3536
      %v3551 = vpack.c.b16 %v3539, %v3538
      %v3552 = vpack.c.b16 %v3541, %v3540
      %v3553 = vpack.c.b16 %v3543, %v3542
      %v3554 = vpack.c.b16 %v3545, %v3544
      %v3555 = vpack.c.b16 %v3547, %v3546
      %3564 = vmatprep.subr.bf16.mxu0 0
      %3565 = vmatpush1.bf16.msra.mxu0 %v3548
      %3566 = vmatprep.subr.bf16.mxu0 0
      %3567 = vmatpush1.bf16.msra.mxu0 %v3549
      %3568 = vmatprep.subr.bf16.mxu0 0
      %3569 = vmatpush1.bf16.msra.mxu0 %v3550
      %3570 = vmatprep.subr.bf16.mxu0 0
      %3571 = vmatpush1.bf16.msra.mxu0 %v3551
      %3572 = vmatprep.subr.bf16.mxu0 0
      %3573 = vmatpush1.bf16.msra.mxu0 %v3552
      %3574 = vmatprep.subr.bf16.mxu0 0
      %3575 = vmatpush1.bf16.msra.mxu0 %v3553
      %3576 = vmatprep.subr.bf16.mxu0 0
      %3577 = vmatpush1.bf16.msra.mxu0 %v3554
      %3578 = vmatprep.subr.bf16.mxu0 0
      %3579 = vmatpush1.bf16.msra.mxu0 %v3555
      %3580 = vmatprep.subr.bf16.mxu0 0
      %3581 = vmatpush1.bf16.msra.mxu0 0
      %3582 = vmatprep.subr.bf16.mxu0 0
      %3583 = vmatpush1.bf16.msra.mxu0 0
      %3584 = vmatprep.subr.bf16.mxu0 0
      %3585 = vmatpush1.bf16.msra.mxu0 0
      %3586 = vmatprep.subr.bf16.mxu0 0
      %3587 = vmatpush1.bf16.msra.mxu0 0
      %3588 = vmatprep.subr.bf16.mxu0 0
      %3589 = vmatpush1.bf16.msra.mxu0 0
      %3590 = vmatprep.subr.bf16.mxu0 0
      %3591 = vmatpush1.bf16.msra.mxu0 0
      %3592 = vmatprep.subr.bf16.mxu0 0
      %3593 = vmatpush1.bf16.msra.mxu0 0
      %3594 = vmatprep.subr.bf16.mxu0 0
      %3595 = vmatpush1.bf16.msra.mxu0 0
      %3596 = vmatprep.mubr.bf16.mxu0 0
      %3597 = vmatmul.mubr.bf16.gmra.mrb[0].mxu0 %v3387
      %v3598 = vpop.f32.mrb[0].mxu0
      %v3599 = vadd.f32 0.0, %v3598
      %v3600 = vpop.f32.mrb[0].mxu0
      %v3601 = vpop.f32.mrb[0].mxu0
      %v3602 = vadd.f32 0.0, %v3601
      %v3603 = vpop.f32.mrb[0].mxu0
      %3604 = vmatprep.mubr.bf16.mxu0 0
      %3605 = vmatmul.mubr.bf16.gmra.mrb[0].mxu0 %v3388
      %v3606 = vpop.f32.mrb[0].mxu0
      %v3607 = vadd.f32 0.0, %v3606
      %v3608 = vpop.f32.mrb[0].mxu0
      %v3609 = vpop.f32.mrb[0].mxu0
      %v3610 = vadd.f32 0.0, %v3609
      %v3611 = vpop.f32.mrb[0].mxu0
      %3612 = vmatprep.mubr.bf16.mxu0 0
      %3613 = vmatmul.mubr.bf16.gmra.mrb[0].mxu0 %v3389
      %v3614 = vpop.f32.mrb[0].mxu0
      %v3615 = vadd.f32 0.0, %v3614
      %v3616 = vpop.f32.mrb[0].mxu0
      %v3617 = vpop.f32.mrb[0].mxu0
      %v3618 = vadd.f32 0.0, %v3617
      %v3619 = vpop.f32.mrb[0].mxu0
      %3620 = vmatprep.mubr.bf16.mxu0 0
      %3621 = vmatmul.mubr.bf16.gmra.mrb[0].mxu0 %v3390
      %v3622 = vpop.f32.mrb[0].mxu0
      %v3623 = vadd.f32 0.0, %v3622
      %v3624 = vpop.f32.mrb[0].mxu0
      %v3625 = vpop.f32.mrb[0].mxu0
      %v3626 = vadd.f32 0.0, %v3625
      %v3627 = vpop.f32.mrb[0].mxu0
      %3628 = vdwg.mxu0
      %v3645 = vunpack.c.l.b16 %v3483
      %v3646 = vunpack.c.l.b16 %v3484
      %v3647 = vunpack.c.l.b16 %v3485
      %v3648 = vunpack.c.l.b16 %v3486
      %v3649 = vunpack.c.l.b16 %v3487
      %v3650 = vunpack.c.l.b16 %v3488
      %v3651 = vunpack.c.l.b16 %v3489
      %v3652 = vunpack.c.l.b16 %v3490
      %v3653 = vunpack.c.l.b16 %v3491
      %v3654 = vunpack.c.l.b16 %v3492
      %v3655 = vunpack.c.l.b16 %v3493
      %v3656 = vunpack.c.l.b16 %v3494
      %v3657 = vunpack.c.l.b16 %v3495
      %v3658 = vunpack.c.l.b16 %v3496
      %v3659 = vunpack.c.l.b16 %v3497
      %v3660 = vunpack.c.l.b16 %v3498
      %v3661 = vpack.c.b16 %v3646, %v3645
      %v3662 = vpack.c.b16 %v3648, %v3647
      %v3663 = vpack.c.b16 %v3650, %v3649
      %v3664 = vpack.c.b16 %v3652, %v3651
      %v3665 = vpack.c.b16 %v3654, %v3653
      %v3666 = vpack.c.b16 %v3656, %v3655
      %v3667 = vpack.c.b16 %v3658, %v3657
      %v3668 = vpack.c.b16 %v3660, %v3659
      %3677 = vmatprep.subr.bf16.mxu0 0
      %3678 = vmatpush1.bf16.msra.mxu0 %v3661
      %3679 = vmatprep.subr.bf16.mxu0 0
      %3680 = vmatpush1.bf16.msra.mxu0 %v3662
      %3681 = vmatprep.subr.bf16.mxu0 0
      %3682 = vmatpush1.bf16.msra.mxu0 %v3663
      %3683 = vmatprep.subr.bf16.mxu0 0
      %3684 = vmatpush1.bf16.msra.mxu0 %v3664
      %3685 = vmatprep.subr.bf16.mxu0 0
      %3686 = vmatpush1.bf16.msra.mxu0 %v3665
      %3687 = vmatprep.subr.bf16.mxu0 0
      %3688 = vmatpush1.bf16.msra.mxu0 %v3666
      %3689 = vmatprep.subr.bf16.mxu0 0
      %3690 = vmatpush1.bf16.msra.mxu0 %v3667
      %3691 = vmatprep.subr.bf16.mxu0 0
      %3692 = vmatpush1.bf16.msra.mxu0 %v3668
      %3693 = vmatprep.subr.bf16.mxu0 0
      %3694 = vmatpush1.bf16.msra.mxu0 0
      %3695 = vmatprep.subr.bf16.mxu0 0
      %3696 = vmatpush1.bf16.msra.mxu0 0
      %3697 = vmatprep.subr.bf16.mxu0 0
      %3698 = vmatpush1.bf16.msra.mxu0 0
      %3699 = vmatprep.subr.bf16.mxu0 0
      %3700 = vmatpush1.bf16.msra.mxu0 0
      %3701 = vmatprep.subr.bf16.mxu0 0
      %3702 = vmatpush1.bf16.msra.mxu0 0
      %3703 = vmatprep.subr.bf16.mxu0 0
      %3704 = vmatpush1.bf16.msra.mxu0 0
      %3705 = vmatprep.subr.bf16.mxu0 0
      %3706 = vmatpush1.bf16.msra.mxu0 0
      %3707 = vmatprep.subr.bf16.mxu0 0
      %3708 = vmatpush1.bf16.msra.mxu0 0
      %3709 = vmatprep.mubr.bf16.mxu0 0
      %3710 = vmatmul.mubr.bf16.gmra.mrb[0].mxu0 %v3383
      %v3711 = vpop.f32.mrb[0].mxu0
      %v3712 = vadd.f32 %v3599, %v3711
      %v3713 = vpop.f32.mrb[0].mxu0
      %v3714 = vpop.f32.mrb[0].mxu0
      %v3715 = vadd.f32 %v3602, %v3714
      %v3716 = vpop.f32.mrb[0].mxu0
      %3717 = vmatprep.mubr.bf16.mxu0 0
      %3718 = vmatmul.mubr.bf16.gmra.mrb[0].mxu0 %v3384
      %v3719 = vpop.f32.mrb[0].mxu0
      %v3720 = vadd.f32 %v3607, %v3719
      %v3721 = vpop.f32.mrb[0].mxu0
      %v3722 = vpop.f32.mrb[0].mxu0
      %v3723 = vadd.f32 %v3610, %v3722
      %v3724 = vpop.f32.mrb[0].mxu0
      %3725 = vmatprep.mubr.bf16.mxu0 0
      %3726 = vmatmul.mubr.bf16.gmra.mrb[0].mxu0 %v3385
      %v3727 = vpop.f32.mrb[0].mxu0
      %v3728 = vadd.f32 %v3615, %v3727
      %v3729 = vpop.f32.mrb[0].mxu0
      %v3730 = vpop.f32.mrb[0].mxu0
      %v3731 = vadd.f32 %v3618, %v3730
      %v3732 = vpop.f32.mrb[0].mxu0
      %3733 = vmatprep.mubr.bf16.mxu0 0
      %3734 = vmatmul.mubr.bf16.gmra.mrb[0].mxu0 %v3386
      %v3735 = vpop.f32.mrb[0].mxu0
      %v3736 = vadd.f32 %v3623, %v3735
      %v3737 = vpop.f32.mrb[0].mxu0
      %v3738 = vpop.f32.mrb[0].mxu0
      %v3739 = vadd.f32 %v3626, %v3738
      %v3740 = vpop.f32.mrb[0].mxu0
      %3741 = vdwg.mxu0
      %s3742 = scalar_lea.vmem %s4, 128
      %v3743 = vld [vmem:[%s3742] sm:$0xf]
      %v3744 = vld [vmem:[%s3742 + $0x4] sm:$0xf]
      %v3745 = vld [vmem:[%s3742 + $0x8] sm:$0xf]
      %v3746 = vld [vmem:[%s3742 + $0xc] sm:$0xf]
      %v3747 = vld [vmem:[%s3742 + $0x10] sm:$0xf]
      %v3748 = vld [vmem:[%s3742 + $0x14] sm:$0xf]
      %v3749 = vld [vmem:[%s3742 + $0x18] sm:$0xf]
      %v3750 = vld [vmem:[%s3742 + $0x1c] sm:$0xf]
      %v3751 = vld [vmem:[%s3742 + $0x20] sm:$0xf]
      %v3752 = vld [vmem:[%s3742 + $0x24] sm:$0xf]
      %v3753 = vld [vmem:[%s3742 + $0x28] sm:$0xf]
      %v3754 = vld [vmem:[%s3742 + $0x2c] sm:$0xf]
      %v3755 = vld [vmem:[%s3742 + $0x30] sm:$0xf]
      %v3756 = vld [vmem:[%s3742 + $0x34] sm:$0xf]
      %v3757 = vld [vmem:[%s3742 + $0x38] sm:$0xf]
      %v3758 = vld [vmem:[%s3742 + $0x3c] sm:$0xf]
      %v3775 = vunpack.c.l.b16 %v3743
      %v3776 = vunpack.c.l.b16 %v3744
      %v3777 = vunpack.c.l.b16 %v3745
      %v3778 = vunpack.c.l.b16 %v3746
      %v3779 = vunpack.c.l.b16 %v3747
      %v3780 = vunpack.c.l.b16 %v3748
      %v3781 = vunpack.c.l.b16 %v3749
      %v3782 = vunpack.c.l.b16 %v3750
      %v3783 = vunpack.c.l.b16 %v3751
      %v3784 = vunpack.c.l.b16 %v3752
      %v3785 = vunpack.c.l.b16 %v3753
      %v3786 = vunpack.c.l.b16 %v3754
      %v3787 = vunpack.c.l.b16 %v3755
      %v3788 = vunpack.c.l.b16 %v3756
      %v3789 = vunpack.c.l.b16 %v3757
      %v3790 = vunpack.c.l.b16 %v3758
      %v3791 = vpack.c.b16 %v3776, %v3775
      %v3792 = vpack.c.b16 %v3778, %v3777
      %v3793 = vpack.c.b16 %v3780, %v3779
      %v3794 = vpack.c.b16 %v3782, %v3781
      %v3795 = vpack.c.b16 %v3784, %v3783
      %v3796 = vpack.c.b16 %v3786, %v3785
      %v3797 = vpack.c.b16 %v3788, %v3787
      %v3798 = vpack.c.b16 %v3790, %v3789
      %3807 = vmatprep.subr.bf16.mxu0 0
      %3808 = vmatpush1.bf16.msra.mxu0 %v3791
      %3809 = vmatprep.subr.bf16.mxu0 0
      %3810 = vmatpush1.bf16.msra.mxu0 %v3792
      %3811 = vmatprep.subr.bf16.mxu0 0
      %3812 = vmatpush1.bf16.msra.mxu0 %v3793
      %3813 = vmatprep.subr.bf16.mxu0 0
      %3814 = vmatpush1.bf16.msra.mxu0 %v3794
      %3815 = vmatprep.subr.bf16.mxu0 0
      %3816 = vmatpush1.bf16.msra.mxu0 %v3795
      %3817 = vmatprep.subr.bf16.mxu0 0
      %3818 = vmatpush1.bf16.msra.mxu0 %v3796
      %3819 = vmatprep.subr.bf16.mxu0 0
      %3820 = vmatpush1.bf16.msra.mxu0 %v3797
      %3821 = vmatprep.subr.bf16.mxu0 0
      %3822 = vmatpush1.bf16.msra.mxu0 %v3798
      %3823 = vmatprep.subr.bf16.mxu0 0
      %3824 = vmatpush1.bf16.msra.mxu0 0
      %3825 = vmatprep.subr.bf16.mxu0 0
      %3826 = vmatpush1.bf16.msra.mxu0 0
      %3827 = vmatprep.subr.bf16.mxu0 0
      %3828 = vmatpush1.bf16.msra.mxu0 0
      %3829 = vmatprep.subr.bf16.mxu0 0
      %3830 = vmatpush1.bf16.msra.mxu0 0
      %3831 = vmatprep.subr.bf16.mxu0 0
      %3832 = vmatpush1.bf16.msra.mxu0 0
      %3833 = vmatprep.subr.bf16.mxu0 0
      %3834 = vmatpush1.bf16.msra.mxu0 0
      %3835 = vmatprep.subr.bf16.mxu0 0
      %3836 = vmatpush1.bf16.msra.mxu0 0
      %3837 = vmatprep.subr.bf16.mxu0 0
      %3838 = vmatpush1.bf16.msra.mxu0 0
      %3839 = vmatprep.mubr.bf16.mxu0 0
      %3840 = vmatmul.mubr.bf16.gmra.mrb[0].mxu0 %v3391
      %v3841 = vpop.f32.mrb[0].mxu0
      %v3842 = vadd.f32 0.0, %v3841
      %v3843 = vpop.f32.mrb[0].mxu0
      %v3844 = vpop.f32.mrb[0].mxu0
      %v3845 = vadd.f32 0.0, %v3844
      %v3846 = vpop.f32.mrb[0].mxu0
      %3847 = vmatprep.mubr.bf16.mxu0 0
      %3848 = vmatmul.mubr.bf16.gmra.mrb[0].mxu0 %v3392
      %v3849 = vpop.f32.mrb[0].mxu0
      %v3850 = vadd.f32 0.0, %v3849
      %v3851 = vpop.f32.mrb[0].mxu0
      %v3852 = vpop.f32.mrb[0].mxu0
      %v3853 = vadd.f32 0.0, %v3852
      %v3854 = vpop.f32.mrb[0].mxu0
      %3855 = vmatprep.mubr.bf16.mxu0 0
      %3856 = vmatmul.mubr.bf16.gmra.mrb[0].mxu0 %v3393
      %v3857 = vpop.f32.mrb[0].mxu0
      %v3858 = vadd.f32 0.0, %v3857
      %v3859 = vpop.f32.mrb[0].mxu0
      %v3860 = vpop.f32.mrb[0].mxu0
      %v3861 = vadd.f32 0.0, %v3860
      %v3862 = vpop.f32.mrb[0].mxu0
      %3863 = vmatprep.mubr.bf16.mxu0 0
      %3864 = vmatmul.mubr.bf16.gmra.mrb[0].mxu0 %v3394
      %v3865 = vpop.f32.mrb[0].mxu0
      %v3866 = vadd.f32 0.0, %v3865
      %v3867 = vpop.f32.mrb[0].mxu0
      %v3868 = vpop.f32.mrb[0].mxu0
      %v3869 = vadd.f32 0.0, %v3868
      %v3870 = vpop.f32.mrb[0].mxu0
      %3871 = vdwg.mxu0
      %v3872 = vadd.f32 %v3712, %v3842
      %v3873 = vadd.f32 %v3715, %v3845
      %v3874 = vadd.f32 %v3720, %v3850
      %v3875 = vadd.f32 %v3723, %v3853
      %v3876 = vadd.f32 %v3728, %v3858
      %v3877 = vadd.f32 %v3731, %v3861
      %v3878 = vadd.f32 %v3736, %v3866
      %v3879 = vadd.f32 %v3739, %v3869
      %s3880 = scalar_lea.vmem %s4, 192
      %v3881 = vld [vmem:[%s3880] sm:$0xf]
      %v3882 = vld [vmem:[%s3880 + $0x4] sm:$0xf]
      %v3883 = vld [vmem:[%s3880 + $0x8] sm:$0xf]
      %v3884 = vld [vmem:[%s3880 + $0xc] sm:$0xf]
      %v3885 = vld [vmem:[%s3880 + $0x10] sm:$0xf]
      %v3886 = vld [vmem:[%s3880 + $0x14] sm:$0xf]
      %v3887 = vld [vmem:[%s3880 + $0x18] sm:$0xf]
      %v3888 = vld [vmem:[%s3880 + $0x1c] sm:$0xf]
      %v3889 = vld [vmem:[%s3880 + $0x20] sm:$0xf]
      %v3890 = vld [vmem:[%s3880 + $0x24] sm:$0xf]
      %v3891 = vld [vmem:[%s3880 + $0x28] sm:$0xf]
      %v3892 = vld [vmem:[%s3880 + $0x2c] sm:$0xf]
      %v3893 = vld [vmem:[%s3880 + $0x30] sm:$0xf]
      %v3894 = vld [vmem:[%s3880 + $0x34] sm:$0xf]
      %v3895 = vld [vmem:[%s3880 + $0x38] sm:$0xf]
      %v3896 = vld [vmem:[%s3880 + $0x3c] sm:$0xf]
      %v3913 = vunpack.c.l.b16 %v3881
      %v3914 = vunpack.c.l.b16 %v3882
      %v3915 = vunpack.c.l.b16 %v3883
      %v3916 = vunpack.c.l.b16 %v3884
      %v3917 = vunpack.c.l.b16 %v3885
      %v3918 = vunpack.c.l.b16 %v3886
      %v3919 = vunpack.c.l.b16 %v3887
      %v3920 = vunpack.c.l.b16 %v3888
      %v3921 = vunpack.c.l.b16 %v3889
      %v3922 = vunpack.c.l.b16 %v3890
      %v3923 = vunpack.c.l.b16 %v3891
      %v3924 = vunpack.c.l.b16 %v3892
      %v3925 = vunpack.c.l.b16 %v3893
      %v3926 = vunpack.c.l.b16 %v3894
      %v3927 = vunpack.c.l.b16 %v3895
      %v3928 = vunpack.c.l.b16 %v3896
      %v3929 = vpack.c.b16 %v3914, %v3913
      %v3930 = vpack.c.b16 %v3916, %v3915
      %v3931 = vpack.c.b16 %v3918, %v3917
      %v3932 = vpack.c.b16 %v3920, %v3919
      %v3933 = vpack.c.b16 %v3922, %v3921
      %v3934 = vpack.c.b16 %v3924, %v3923
      %v3935 = vpack.c.b16 %v3926, %v3925
      %v3936 = vpack.c.b16 %v3928, %v3927
      %3945 = vmatprep.subr.bf16.mxu0 0
      %3946 = vmatpush1.bf16.msra.mxu0 %v3929
      %3947 = vmatprep.subr.bf16.mxu0 0
      %3948 = vmatpush1.bf16.msra.mxu0 %v3930
      %3949 = vmatprep.subr.bf16.mxu0 0
      %3950 = vmatpush1.bf16.msra.mxu0 %v3931
      %3951 = vmatprep.subr.bf16.mxu0 0
      %3952 = vmatpush1.bf16.msra.mxu0 %v3932
      %3953 = vmatprep.subr.bf16.mxu0 0
      %3954 = vmatpush1.bf16.msra.mxu0 %v3933
      %3955 = vmatprep.subr.bf16.mxu0 0
      %3956 = vmatpush1.bf16.msra.mxu0 %v3934
      %3957 = vmatprep.subr.bf16.mxu0 0
      %3958 = vmatpush1.bf16.msra.mxu0 %v3935
      %3959 = vmatprep.subr.bf16.mxu0 0
      %3960 = vmatpush1.bf16.msra.mxu0 %v3936
      %3961 = vmatprep.subr.bf16.mxu0 0
      %3962 = vmatpush1.bf16.msra.mxu0 0
      %3963 = vmatprep.subr.bf16.mxu0 0
      %3964 = vmatpush1.bf16.msra.mxu0 0
      %3965 = vmatprep.subr.bf16.mxu0 0
      %3966 = vmatpush1.bf16.msra.mxu0 0
      %3967 = vmatprep.subr.bf16.mxu0 0
      %3968 = vmatpush1.bf16.msra.mxu0 0
      %3969 = vmatprep.subr.bf16.mxu0 0
      %3970 = vmatpush1.bf16.msra.mxu0 0
      %3971 = vmatprep.subr.bf16.mxu0 0
      %3972 = vmatpush1.bf16.msra.mxu0 0
      %3973 = vmatprep.subr.bf16.mxu0 0
      %3974 = vmatpush1.bf16.msra.mxu0 0
      %3975 = vmatprep.subr.bf16.mxu0 0
      %3976 = vmatpush1.bf16.msra.mxu0 0
      %3977 = vmatprep.mubr.bf16.mxu0 0
      %3978 = vmatmul.mubr.bf16.gmra.mrb[0].mxu0 %v3395
      %v3979 = vpop.f32.mrb[0].mxu0
      %v3980 = vadd.f32 0.0, %v3979
      %v3981 = vpop.f32.mrb[0].mxu0
      %v3982 = vpop.f32.mrb[0].mxu0
      %v3983 = vadd.f32 0.0, %v3982
      %v3984 = vpop.f32.mrb[0].mxu0
      %3985 = vmatprep.mubr.bf16.mxu0 0
      %3986 = vmatmul.mubr.bf16.gmra.mrb[0].mxu0 %v3396
      %v3987 = vpop.f32.mrb[0].mxu0
      %v3988 = vadd.f32 0.0, %v3987
      %v3989 = vpop.f32.mrb[0].mxu0
      %v3990 = vpop.f32.mrb[0].mxu0
      %v3991 = vadd.f32 0.0, %v3990
      %v3992 = vpop.f32.mrb[0].mxu0
      %3993 = vmatprep.mubr.bf16.mxu0 0
      %3994 = vmatmul.mubr.bf16.gmra.mrb[0].mxu0 %v3397
      %v3995 = vpop.f32.mrb[0].mxu0
      %v3996 = vadd.f32 0.0, %v3995
      %v3997 = vpop.f32.mrb[0].mxu0
      %v3998 = vpop.f32.mrb[0].mxu0
      %v3999 = vadd.f32 0.0, %v3998
      %v4000 = vpop.f32.mrb[0].mxu0
      %4001 = vmatprep.mubr.bf16.mxu0 0
      %4002 = vmatmul.mubr.bf16.gmra.mrb[0].mxu0 %v3398
      %v4003 = vpop.f32.mrb[0].mxu0
      %v4004 = vadd.f32 0.0, %v4003
      %v4005 = vpop.f32.mrb[0].mxu0
      %v4006 = vpop.f32.mrb[0].mxu0
      %v4007 = vadd.f32 0.0, %v4006
      %v4008 = vpop.f32.mrb[0].mxu0
      %4009 = vdwg.mxu0
      %v4010 = vadd.f32 %v3872, %v3980
      %v4011 = vadd.f32 %v3873, %v3983
      %v4012 = vadd.f32 %v3874, %v3988
      %v4013 = vadd.f32 %v3875, %v3991
      %v4014 = vadd.f32 %v3876, %v3996
      %v4015 = vadd.f32 %v3877, %v3999
      %v4016 = vadd.f32 %v3878, %v4004
      %v4017 = vadd.f32 %v3879, %v4007
      %s4018 = scalar_lea.vmem %s4, 256
      %v4019 = vld [vmem:[%s4018] sm:$0xf]
      %v4020 = vld [vmem:[%s4018 + $0x4] sm:$0xf]
      %v4021 = vld [vmem:[%s4018 + $0x8] sm:$0xf]
      %v4022 = vld [vmem:[%s4018 + $0xc] sm:$0xf]
      %v4023 = vld [vmem:[%s4018 + $0x10] sm:$0xf]
      %v4024 = vld [vmem:[%s4018 + $0x14] sm:$0xf]
      %v4025 = vld [vmem:[%s4018 + $0x18] sm:$0xf]
      %v4026 = vld [vmem:[%s4018 + $0x1c] sm:$0xf]
      %v4027 = vld [vmem:[%s4018 + $0x20] sm:$0xf]
      %v4028 = vld [vmem:[%s4018 + $0x24] sm:$0xf]
      %v4029 = vld [vmem:[%s4018 + $0x28] sm:$0xf]
      %v4030 = vld [vmem:[%s4018 + $0x2c] sm:$0xf]
      %v4031 = vld [vmem:[%s4018 + $0x30] sm:$0xf]
      %v4032 = vld [vmem:[%s4018 + $0x34] sm:$0xf]
      %v4033 = vld [vmem:[%s4018 + $0x38] sm:$0xf]
      %v4034 = vld [vmem:[%s4018 + $0x3c] sm:$0xf]
      %v4051 = vunpack.c.l.b16 %v4019
      %v4052 = vunpack.c.l.b16 %v4020
      %v4053 = vunpack.c.l.b16 %v4021
      %v4054 = vunpack.c.l.b16 %v4022
      %v4055 = vunpack.c.l.b16 %v4023
      %v4056 = vunpack.c.l.b16 %v4024
      %v4057 = vunpack.c.l.b16 %v4025
      %v4058 = vunpack.c.l.b16 %v4026
      %v4059 = vunpack.c.l.b16 %v4027
      %v4060 = vunpack.c.l.b16 %v4028
      %v4061 = vunpack.c.l.b16 %v4029
      %v4062 = vunpack.c.l.b16 %v4030
      %v4063 = vunpack.c.l.b16 %v4031
      %v4064 = vunpack.c.l.b16 %v4032
      %v4065 = vunpack.c.l.b16 %v4033
      %v4066 = vunpack.c.l.b16 %v4034
      %v4067 = vpack.c.b16 %v4052, %v4051
      %v4068 = vpack.c.b16 %v4054, %v4053
      %v4069 = vpack.c.b16 %v4056, %v4055
      %v4070 = vpack.c.b16 %v4058, %v4057
      %v4071 = vpack.c.b16 %v4060, %v4059
      %v4072 = vpack.c.b16 %v4062, %v4061
      %v4073 = vpack.c.b16 %v4064, %v4063
      %v4074 = vpack.c.b16 %v4066, %v4065
      %4083 = vmatprep.subr.bf16.mxu0 0
      %4084 = vmatpush1.bf16.msra.mxu0 %v4067
      %4085 = vmatprep.subr.bf16.mxu0 0
      %4086 = vmatpush1.bf16.msra.mxu0 %v4068
      %4087 = vmatprep.subr.bf16.mxu0 0
      %4088 = vmatpush1.bf16.msra.mxu0 %v4069
      %4089 = vmatprep.subr.bf16.mxu0 0
      %4090 = vmatpush1.bf16.msra.mxu0 %v4070
      %4091 = vmatprep.subr.bf16.mxu0 0
      %4092 = vmatpush1.bf16.msra.mxu0 %v4071
      %4093 = vmatprep.subr.bf16.mxu0 0
      %4094 = vmatpush1.bf16.msra.mxu0 %v4072
      %4095 = vmatprep.subr.bf16.mxu0 0
      %4096 = vmatpush1.bf16.msra.mxu0 %v4073
      %4097 = vmatprep.subr.bf16.mxu0 0
      %4098 = vmatpush1.bf16.msra.mxu0 %v4074
      %4099 = vmatprep.subr.bf16.mxu0 0
      %4100 = vmatpush1.bf16.msra.mxu0 0
      %4101 = vmatprep.subr.bf16.mxu0 0
      %4102 = vmatpush1.bf16.msra.mxu0 0
      %4103 = vmatprep.subr.bf16.mxu0 0
      %4104 = vmatpush1.bf16.msra.mxu0 0
      %4105 = vmatprep.subr.bf16.mxu0 0
      %4106 = vmatpush1.bf16.msra.mxu0 0
      %4107 = vmatprep.subr.bf16.mxu0 0
      %4108 = vmatpush1.bf16.msra.mxu0 0
      %4109 = vmatprep.subr.bf16.mxu0 0
      %4110 = vmatpush1.bf16.msra.mxu0 0
      %4111 = vmatprep.subr.bf16.mxu0 0
      %4112 = vmatpush1.bf16.msra.mxu0 0
      %4113 = vmatprep.subr.bf16.mxu0 0
      %4114 = vmatpush1.bf16.msra.mxu0 0
      %4115 = vmatprep.mubr.bf16.mxu0 0
      %4116 = vmatmul.mubr.bf16.gmra.mrb[0].mxu0 %v3399
      %v4117 = vpop.f32.mrb[0].mxu0
      %v4118 = vadd.f32 0.0, %v4117
      %v4119 = vpop.f32.mrb[0].mxu0
      %v4120 = vpop.f32.mrb[0].mxu0
      %v4121 = vadd.f32 0.0, %v4120
      %v4122 = vpop.f32.mrb[0].mxu0
      %4123 = vmatprep.mubr.bf16.mxu0 0
      %4124 = vmatmul.mubr.bf16.gmra.mrb[0].mxu0 %v3400
      %v4125 = vpop.f32.mrb[0].mxu0
      %v4126 = vadd.f32 0.0, %v4125
      %v4127 = vpop.f32.mrb[0].mxu0
      %v4128 = vpop.f32.mrb[0].mxu0
      %v4129 = vadd.f32 0.0, %v4128
      %v4130 = vpop.f32.mrb[0].mxu0
      %4131 = vmatprep.mubr.bf16.mxu0 0
      %4132 = vmatmul.mubr.bf16.gmra.mrb[0].mxu0 %v3401
      %v4133 = vpop.f32.mrb[0].mxu0
      %v4134 = vadd.f32 0.0, %v4133
      %v4135 = vpop.f32.mrb[0].mxu0
      %v4136 = vpop.f32.mrb[0].mxu0
      %v4137 = vadd.f32 0.0, %v4136
      %v4138 = vpop.f32.mrb[0].mxu0
      %4139 = vmatprep.mubr.bf16.mxu0 0
      %4140 = vmatmul.mubr.bf16.gmra.mrb[0].mxu0 %v3402
      %v4141 = vpop.f32.mrb[0].mxu0
      %v4142 = vadd.f32 0.0, %v4141
      %v4143 = vpop.f32.mrb[0].mxu0
      %v4144 = vpop.f32.mrb[0].mxu0
      %v4145 = vadd.f32 0.0, %v4144
      %v4146 = vpop.f32.mrb[0].mxu0
      %4147 = vdwg.mxu0
      %v4148 = vadd.f32 %v4010, %v4118
      %v4149 = vadd.f32 %v4011, %v4121
      %v4150 = vadd.f32 %v4012, %v4126
      %v4151 = vadd.f32 %v4013, %v4129
      %v4152 = vadd.f32 %v4014, %v4134
      %v4153 = vadd.f32 %v4015, %v4137
      %v4154 = vadd.f32 %v4016, %v4142
      %v4155 = vadd.f32 %v4017, %v4145
      %s4156 = scalar_lea.vmem %s4, 320
      %v4157 = vld [vmem:[%s4156] sm:$0xf]
      %v4158 = vld [vmem:[%s4156 + $0x4] sm:$0xf]
      %v4159 = vld [vmem:[%s4156 + $0x8] sm:$0xf]
      %v4160 = vld [vmem:[%s4156 + $0xc] sm:$0xf]
      %v4161 = vld [vmem:[%s4156 + $0x10] sm:$0xf]
      %v4162 = vld [vmem:[%s4156 + $0x14] sm:$0xf]
      %v4163 = vld [vmem:[%s4156 + $0x18] sm:$0xf]
      %v4164 = vld [vmem:[%s4156 + $0x1c] sm:$0xf]
      %v4165 = vld [vmem:[%s4156 + $0x20] sm:$0xf]
      %v4166 = vld [vmem:[%s4156 + $0x24] sm:$0xf]
      %v4167 = vld [vmem:[%s4156 + $0x28] sm:$0xf]
      %v4168 = vld [vmem:[%s4156 + $0x2c] sm:$0xf]
      %v4169 = vld [vmem:[%s4156 + $0x30] sm:$0xf]
      %v4170 = vld [vmem:[%s4156 + $0x34] sm:$0xf]
      %v4171 = vld [vmem:[%s4156 + $0x38] sm:$0xf]
      %v4172 = vld [vmem:[%s4156 + $0x3c] sm:$0xf]
      %v4189 = vunpack.c.l.b16 %v4157
      %v4190 = vunpack.c.l.b16 %v4158
      %v4191 = vunpack.c.l.b16 %v4159
      %v4192 = vunpack.c.l.b16 %v4160
      %v4193 = vunpack.c.l.b16 %v4161
      %v4194 = vunpack.c.l.b16 %v4162
      %v4195 = vunpack.c.l.b16 %v4163
      %v4196 = vunpack.c.l.b16 %v4164
      %v4197 = vunpack.c.l.b16 %v4165
      %v4198 = vunpack.c.l.b16 %v4166
      %v4199 = vunpack.c.l.b16 %v4167
      %v4200 = vunpack.c.l.b16 %v4168
      %v4201 = vunpack.c.l.b16 %v4169
      %v4202 = vunpack.c.l.b16 %v4170
      %v4203 = vunpack.c.l.b16 %v4171
      %v4204 = vunpack.c.l.b16 %v4172
      %v4205 = vpack.c.b16 %v4190, %v4189
      %v4206 = vpack.c.b16 %v4192, %v4191
      %v4207 = vpack.c.b16 %v4194, %v4193
      %v4208 = vpack.c.b16 %v4196, %v4195
      %v4209 = vpack.c.b16 %v4198, %v4197
      %v4210 = vpack.c.b16 %v4200, %v4199
      %v4211 = vpack.c.b16 %v4202, %v4201
      %v4212 = vpack.c.b16 %v4204, %v4203
      %4221 = vmatprep.subr.bf16.mxu0 0
      %4222 = vmatpush1.bf16.msra.mxu0 %v4205
      %4223 = vmatprep.subr.bf16.mxu0 0
      %4224 = vmatpush1.bf16.msra.mxu0 %v4206
      %4225 = vmatprep.subr.bf16.mxu0 0
      %4226 = vmatpush1.bf16.msra.mxu0 %v4207
      %4227 = vmatprep.subr.bf16.mxu0 0
      %4228 = vmatpush1.bf16.msra.mxu0 %v4208
      %4229 = vmatprep.subr.bf16.mxu0 0
      %4230 = vmatpush1.bf16.msra.mxu0 %v4209
      %4231 = vmatprep.subr.bf16.mxu0 0
      %4232 = vmatpush1.bf16.msra.mxu0 %v4210
      %4233 = vmatprep.subr.bf16.mxu0 0
      %4234 = vmatpush1.bf16.msra.mxu0 %v4211
      %4235 = vmatprep.subr.bf16.mxu0 0
      %4236 = vmatpush1.bf16.msra.mxu0 %v4212
      %4237 = vmatprep.subr.bf16.mxu0 0
      %4238 = vmatpush1.bf16.msra.mxu0 0
      %4239 = vmatprep.subr.bf16.mxu0 0
      %4240 = vmatpush1.bf16.msra.mxu0 0
      %4241 = vmatprep.subr.bf16.mxu0 0
      %4242 = vmatpush1.bf16.msra.mxu0 0
      %4243 = vmatprep.subr.bf16.mxu0 0
      %4244 = vmatpush1.bf16.msra.mxu0 0
      %4245 = vmatprep.subr.bf16.mxu0 0
      %4246 = vmatpush1.bf16.msra.mxu0 0
      %4247 = vmatprep.subr.bf16.mxu0 0
      %4248 = vmatpush1.bf16.msra.mxu0 0
      %4249 = vmatprep.subr.bf16.mxu0 0
      %4250 = vmatpush1.bf16.msra.mxu0 0
      %4251 = vmatprep.subr.bf16.mxu0 0
      %4252 = vmatpush1.bf16.msra.mxu0 0
      %4253 = vmatprep.mubr.bf16.mxu0 0
      %4254 = vmatmul.mubr.bf16.gmra.mrb[0].mxu0 %v3403
      %v4255 = vpop.f32.mrb[0].mxu0
      %v4256 = vadd.f32 0.0, %v4255
      %v4257 = vpop.f32.mrb[0].mxu0
      %v4258 = vpop.f32.mrb[0].mxu0
      %v4259 = vadd.f32 0.0, %v4258
      %v4260 = vpop.f32.mrb[0].mxu0
      %4261 = vmatprep.mubr.bf16.mxu0 0
      %4262 = vmatmul.mubr.bf16.gmra.mrb[0].mxu0 %v3404
      %v4263 = vpop.f32.mrb[0].mxu0
      %v4264 = vadd.f32 0.0, %v4263
      %v4265 = vpop.f32.mrb[0].mxu0
      %v4266 = vpop.f32.mrb[0].mxu0
      %v4267 = vadd.f32 0.0, %v4266
      %v4268 = vpop.f32.mrb[0].mxu0
      %4269 = vmatprep.mubr.bf16.mxu0 0
      %4270 = vmatmul.mubr.bf16.gmra.mrb[0].mxu0 %v3405
      %v4271 = vpop.f32.mrb[0].mxu0
      %v4272 = vadd.f32 0.0, %v4271
      %v4273 = vpop.f32.mrb[0].mxu0
      %v4274 = vpop.f32.mrb[0].mxu0
      %v4275 = vadd.f32 0.0, %v4274
      %v4276 = vpop.f32.mrb[0].mxu0
      %4277 = vmatprep.mubr.bf16.mxu0 0
      %4278 = vmatmul.mubr.bf16.gmra.mrb[0].mxu0 %v3406
      %v4279 = vpop.f32.mrb[0].mxu0
      %v4280 = vadd.f32 0.0, %v4279
      %v4281 = vpop.f32.mrb[0].mxu0
      %v4282 = vpop.f32.mrb[0].mxu0
      %v4283 = vadd.f32 0.0, %v4282
      %v4284 = vpop.f32.mrb[0].mxu0
      %4285 = vdwg.mxu0
      %v4286 = vadd.f32 %v4148, %v4256
      %v4287 = vadd.f32 %v4149, %v4259
      %v4288 = vadd.f32 %v4150, %v4264
      %v4289 = vadd.f32 %v4151, %v4267
      %v4290 = vadd.f32 %v4152, %v4272
      %v4291 = vadd.f32 %v4153, %v4275
      %v4292 = vadd.f32 %v4154, %v4280
      %v4293 = vadd.f32 %v4155, %v4283
      %s4294 = scalar_lea.vmem %s4, 384
      %v4295 = vld [vmem:[%s4294] sm:$0xf]
      %v4296 = vld [vmem:[%s4294 + $0x4] sm:$0xf]
      %v4297 = vld [vmem:[%s4294 + $0x8] sm:$0xf]
      %v4298 = vld [vmem:[%s4294 + $0xc] sm:$0xf]
      %v4299 = vld [vmem:[%s4294 + $0x10] sm:$0xf]
      %v4300 = vld [vmem:[%s4294 + $0x14] sm:$0xf]
      %v4301 = vld [vmem:[%s4294 + $0x18] sm:$0xf]
      %v4302 = vld [vmem:[%s4294 + $0x1c] sm:$0xf]
      %v4303 = vld [vmem:[%s4294 + $0x20] sm:$0xf]
      %v4304 = vld [vmem:[%s4294 + $0x24] sm:$0xf]
      %v4305 = vld [vmem:[%s4294 + $0x28] sm:$0xf]
      %v4306 = vld [vmem:[%s4294 + $0x2c] sm:$0xf]
      %v4307 = vld [vmem:[%s4294 + $0x30] sm:$0xf]
      %v4308 = vld [vmem:[%s4294 + $0x34] sm:$0xf]
      %v4309 = vld [vmem:[%s4294 + $0x38] sm:$0xf]
      %v4310 = vld [vmem:[%s4294 + $0x3c] sm:$0xf]
      %v4327 = vunpack.c.l.b16 %v4295
      %v4328 = vunpack.c.l.b16 %v4296
      %v4329 = vunpack.c.l.b16 %v4297
      %v4330 = vunpack.c.l.b16 %v4298
      %v4331 = vunpack.c.l.b16 %v4299
      %v4332 = vunpack.c.l.b16 %v4300
      %v4333 = vunpack.c.l.b16 %v4301
      %v4334 = vunpack.c.l.b16 %v4302
      %v4335 = vunpack.c.l.b16 %v4303
      %v4336 = vunpack.c.l.b16 %v4304
      %v4337 = vunpack.c.l.b16 %v4305
      %v4338 = vunpack.c.l.b16 %v4306
      %v4339 = vunpack.c.l.b16 %v4307
      %v4340 = vunpack.c.l.b16 %v4308
      %v4341 = vunpack.c.l.b16 %v4309
      %v4342 = vunpack.c.l.b16 %v4310
      %v4343 = vpack.c.b16 %v4328, %v4327
      %v4344 = vpack.c.b16 %v4330, %v4329
      %v4345 = vpack.c.b16 %v4332, %v4331
      %v4346 = vpack.c.b16 %v4334, %v4333
      %v4347 = vpack.c.b16 %v4336, %v4335
      %v4348 = vpack.c.b16 %v4338, %v4337
      %v4349 = vpack.c.b16 %v4340, %v4339
      %v4350 = vpack.c.b16 %v4342, %v4341
      %4359 = vmatprep.subr.bf16.mxu0 0
      %4360 = vmatpush1.bf16.msra.mxu0 %v4343
      %4361 = vmatprep.subr.bf16.mxu0 0
      %4362 = vmatpush1.bf16.msra.mxu0 %v4344
      %4363 = vmatprep.subr.bf16.mxu0 0
      %4364 = vmatpush1.bf16.msra.mxu0 %v4345
      %4365 = vmatprep.subr.bf16.mxu0 0
      %4366 = vmatpush1.bf16.msra.mxu0 %v4346
      %4367 = vmatprep.subr.bf16.mxu0 0
      %4368 = vmatpush1.bf16.msra.mxu0 %v4347
      %4369 = vmatprep.subr.bf16.mxu0 0
      %4370 = vmatpush1.bf16.msra.mxu0 %v4348
      %4371 = vmatprep.subr.bf16.mxu0 0
      %4372 = vmatpush1.bf16.msra.mxu0 %v4349
      %4373 = vmatprep.subr.bf16.mxu0 0
      %4374 = vmatpush1.bf16.msra.mxu0 %v4350
      %4375 = vmatprep.subr.bf16.mxu0 0
      %4376 = vmatpush1.bf16.msra.mxu0 0
      %4377 = vmatprep.subr.bf16.mxu0 0
      %4378 = vmatpush1.bf16.msra.mxu0 0
      %4379 = vmatprep.subr.bf16.mxu0 0
      %4380 = vmatpush1.bf16.msra.mxu0 0
      %4381 = vmatprep.subr.bf16.mxu0 0
      %4382 = vmatpush1.bf16.msra.mxu0 0
      %4383 = vmatprep.subr.bf16.mxu0 0
      %4384 = vmatpush1.bf16.msra.mxu0 0
      %4385 = vmatprep.subr.bf16.mxu0 0
      %4386 = vmatpush1.bf16.msra.mxu0 0
      %4387 = vmatprep.subr.bf16.mxu0 0
      %4388 = vmatpush1.bf16.msra.mxu0 0
      %4389 = vmatprep.subr.bf16.mxu0 0
      %4390 = vmatpush1.bf16.msra.mxu0 0
      %4391 = vmatprep.mubr.bf16.mxu0 0
      %4392 = vmatmul.mubr.bf16.gmra.mrb[0].mxu0 %v3407
      %v4393 = vpop.f32.mrb[0].mxu0
      %v4394 = vadd.f32 0.0, %v4393
      %v4395 = vpop.f32.mrb[0].mxu0
      %v4396 = vpop.f32.mrb[0].mxu0
      %v4397 = vadd.f32 0.0, %v4396
      %v4398 = vpop.f32.mrb[0].mxu0
      %4399 = vmatprep.mubr.bf16.mxu0 0
      %4400 = vmatmul.mubr.bf16.gmra.mrb[0].mxu0 %v3408
      %v4401 = vpop.f32.mrb[0].mxu0
      %v4402 = vadd.f32 0.0, %v4401
      %v4403 = vpop.f32.mrb[0].mxu0
      %v4404 = vpop.f32.mrb[0].mxu0
      %v4405 = vadd.f32 0.0, %v4404
      %v4406 = vpop.f32.mrb[0].mxu0
      %4407 = vmatprep.mubr.bf16.mxu0 0
      %4408 = vmatmul.mubr.bf16.gmra.mrb[0].mxu0 %v3409
      %v4409 = vpop.f32.mrb[0].mxu0
      %v4410 = vadd.f32 0.0, %v4409
      %v4411 = vpop.f32.mrb[0].mxu0
      %v4412 = vpop.f32.mrb[0].mxu0
      %v4413 = vadd.f32 0.0, %v4412
      %v4414 = vpop.f32.mrb[0].mxu0
      %4415 = vmatprep.mubr.bf16.mxu0 0
      %4416 = vmatmul.mubr.bf16.gmra.mrb[0].mxu0 %v3410
      %v4417 = vpop.f32.mrb[0].mxu0
      %v4418 = vadd.f32 0.0, %v4417
      %v4419 = vpop.f32.mrb[0].mxu0
      %v4420 = vpop.f32.mrb[0].mxu0
      %v4421 = vadd.f32 0.0, %v4420
      %v4422 = vpop.f32.mrb[0].mxu0
      %4423 = vdwg.mxu0
      %v4424 = vadd.f32 %v4286, %v4394
      %v4425 = vadd.f32 %v4287, %v4397
      %v4426 = vadd.f32 %v4288, %v4402
      %v4427 = vadd.f32 %v4289, %v4405
      %v4428 = vadd.f32 %v4290, %v4410
      %v4429 = vadd.f32 %v4291, %v4413
      %v4430 = vadd.f32 %v4292, %v4418
      %v4431 = vadd.f32 %v4293, %v4421
      %s4432 = scalar_lea.vmem %s4, 448
      %v4433 = vld [vmem:[%s4432] sm:$0xf]
      %v4434 = vld [vmem:[%s4432 + $0x4] sm:$0xf]
      %v4435 = vld [vmem:[%s4432 + $0x8] sm:$0xf]
      %v4436 = vld [vmem:[%s4432 + $0xc] sm:$0xf]
      %v4437 = vld [vmem:[%s4432 + $0x10] sm:$0xf]
      %v4438 = vld [vmem:[%s4432 + $0x14] sm:$0xf]
      %v4439 = vld [vmem:[%s4432 + $0x18] sm:$0xf]
      %v4440 = vld [vmem:[%s4432 + $0x1c] sm:$0xf]
      %v4441 = vld [vmem:[%s4432 + $0x20] sm:$0xf]
      %v4442 = vld [vmem:[%s4432 + $0x24] sm:$0xf]
      %v4443 = vld [vmem:[%s4432 + $0x28] sm:$0xf]
      %v4444 = vld [vmem:[%s4432 + $0x2c] sm:$0xf]
      %v4445 = vld [vmem:[%s4432 + $0x30] sm:$0xf]
      %v4446 = vld [vmem:[%s4432 + $0x34] sm:$0xf]
      %v4447 = vld [vmem:[%s4432 + $0x38] sm:$0xf]
      %v4448 = vld [vmem:[%s4432 + $0x3c] sm:$0xf]
      %v4465 = vunpack.c.l.b16 %v4433
      %v4466 = vunpack.c.l.b16 %v4434
      %v4467 = vunpack.c.l.b16 %v4435
      %v4468 = vunpack.c.l.b16 %v4436
      %v4469 = vunpack.c.l.b16 %v4437
      %v4470 = vunpack.c.l.b16 %v4438
      %v4471 = vunpack.c.l.b16 %v4439
      %v4472 = vunpack.c.l.b16 %v4440
      %v4473 = vunpack.c.l.b16 %v4441
      %v4474 = vunpack.c.l.b16 %v4442
      %v4475 = vunpack.c.l.b16 %v4443
      %v4476 = vunpack.c.l.b16 %v4444
      %v4477 = vunpack.c.l.b16 %v4445
      %v4478 = vunpack.c.l.b16 %v4446
      %v4479 = vunpack.c.l.b16 %v4447
      %v4480 = vunpack.c.l.b16 %v4448
      %v4481 = vpack.c.b16 %v4466, %v4465
      %v4482 = vpack.c.b16 %v4468, %v4467
      %v4483 = vpack.c.b16 %v4470, %v4469
      %v4484 = vpack.c.b16 %v4472, %v4471
      %v4485 = vpack.c.b16 %v4474, %v4473
      %v4486 = vpack.c.b16 %v4476, %v4475
      %v4487 = vpack.c.b16 %v4478, %v4477
      %v4488 = vpack.c.b16 %v4480, %v4479
      %4497 = vmatprep.subr.bf16.mxu0 0
      %4498 = vmatpush1.bf16.msra.mxu0 %v4481
      %4499 = vmatprep.subr.bf16.mxu0 0
      %4500 = vmatpush1.bf16.msra.mxu0 %v4482
      %4501 = vmatprep.subr.bf16.mxu0 0
      %4502 = vmatpush1.bf16.msra.mxu0 %v4483
      %4503 = vmatprep.subr.bf16.mxu0 0
      %4504 = vmatpush1.bf16.msra.mxu0 %v4484
      %4505 = vmatprep.subr.bf16.mxu0 0
      %4506 = vmatpush1.bf16.msra.mxu0 %v4485
      %4507 = vmatprep.subr.bf16.mxu0 0
      %4508 = vmatpush1.bf16.msra.mxu0 %v4486
      %4509 = vmatprep.subr.bf16.mxu0 0
      %4510 = vmatpush1.bf16.msra.mxu0 %v4487
      %4511 = vmatprep.subr.bf16.mxu0 0
      %4512 = vmatpush1.bf16.msra.mxu0 %v4488
      %4513 = vmatprep.subr.bf16.mxu0 0
      %4514 = vmatpush1.bf16.msra.mxu0 0
      %4515 = vmatprep.subr.bf16.mxu0 0
      %4516 = vmatpush1.bf16.msra.mxu0 0
      %4517 = vmatprep.subr.bf16.mxu0 0
      %4518 = vmatpush1.bf16.msra.mxu0 0
      %4519 = vmatprep.subr.bf16.mxu0 0
      %4520 = vmatpush1.bf16.msra.mxu0 0
      %4521 = vmatprep.subr.bf16.mxu0 0
      %4522 = vmatpush1.bf16.msra.mxu0 0
      %4523 = vmatprep.subr.bf16.mxu0 0
      %4524 = vmatpush1.bf16.msra.mxu0 0
      %4525 = vmatprep.subr.bf16.mxu0 0
      %4526 = vmatpush1.bf16.msra.mxu0 0
      %4527 = vmatprep.subr.bf16.mxu0 0
      %4528 = vmatpush1.bf16.msra.mxu0 0
      %4529 = vmatprep.mubr.bf16.mxu0 0
      %4530 = vmatmul.mubr.bf16.gmra.mrb[0].mxu0 %v3411
      %v4531 = vpop.f32.mrb[0].mxu0
      %v4532 = vadd.f32 0.0, %v4531
      %v4533 = vpop.f32.mrb[0].mxu0
      %v4534 = vpop.f32.mrb[0].mxu0
      %v4535 = vadd.f32 0.0, %v4534
      %v4536 = vpop.f32.mrb[0].mxu0
      %4537 = vmatprep.mubr.bf16.mxu0 0
      %4538 = vmatmul.mubr.bf16.gmra.mrb[0].mxu0 %v3412
      %v4539 = vpop.f32.mrb[0].mxu0
      %v4540 = vadd.f32 0.0, %v4539
      %v4541 = vpop.f32.mrb[0].mxu0
      %v4542 = vpop.f32.mrb[0].mxu0
      %v4543 = vadd.f32 0.0, %v4542
      %v4544 = vpop.f32.mrb[0].mxu0
      %4545 = vmatprep.mubr.bf16.mxu0 0
      %4546 = vmatmul.mubr.bf16.gmra.mrb[0].mxu0 %v3413
      %v4547 = vpop.f32.mrb[0].mxu0
      %v4548 = vadd.f32 0.0, %v4547
      %v4549 = vpop.f32.mrb[0].mxu0
      %v4550 = vpop.f32.mrb[0].mxu0
      %v4551 = vadd.f32 0.0, %v4550
      %v4552 = vpop.f32.mrb[0].mxu0
      %4553 = vmatprep.mubr.bf16.mxu0 0
      %4554 = vmatmul.mubr.bf16.gmra.mrb[0].mxu0 %v3414
      %v4555 = vpop.f32.mrb[0].mxu0
      %v4556 = vadd.f32 0.0, %v4555
      %v4557 = vpop.f32.mrb[0].mxu0
      %v4558 = vpop.f32.mrb[0].mxu0
      %v4559 = vadd.f32 0.0, %v4558
      %v4560 = vpop.f32.mrb[0].mxu0
      %4561 = vdwg.mxu0
      %v4562 = vadd.f32 %v4424, %v4532
      %v4563 = vadd.f32 %v4425, %v4535
      %v4564 = vadd.f32 %v4426, %v4540
      %v4565 = vadd.f32 %v4427, %v4543
      %v4566 = vadd.f32 %v4428, %v4548
      %v4567 = vadd.f32 %v4429, %v4551
      %v4568 = vadd.f32 %v4430, %v4556
      %v4569 = vadd.f32 %v4431, %v4559
      %s4570 = scalar_lea.vmem %s4, 512
      %v4571 = vld [vmem:[%s4570] sm:$0xf]
      %v4572 = vld [vmem:[%s4570 + $0x4] sm:$0xf]
      %v4573 = vld [vmem:[%s4570 + $0x8] sm:$0xf]
      %v4574 = vld [vmem:[%s4570 + $0xc] sm:$0xf]
      %v4575 = vld [vmem:[%s4570 + $0x10] sm:$0xf]
      %v4576 = vld [vmem:[%s4570 + $0x14] sm:$0xf]
      %v4577 = vld [vmem:[%s4570 + $0x18] sm:$0xf]
      %v4578 = vld [vmem:[%s4570 + $0x1c] sm:$0xf]
      %v4579 = vld [vmem:[%s4570 + $0x20] sm:$0xf]
      %v4580 = vld [vmem:[%s4570 + $0x24] sm:$0xf]
      %v4581 = vld [vmem:[%s4570 + $0x28] sm:$0xf]
      %v4582 = vld [vmem:[%s4570 + $0x2c] sm:$0xf]
      %v4583 = vld [vmem:[%s4570 + $0x30] sm:$0xf]
      %v4584 = vld [vmem:[%s4570 + $0x34] sm:$0xf]
      %v4585 = vld [vmem:[%s4570 + $0x38] sm:$0xf]
      %v4586 = vld [vmem:[%s4570 + $0x3c] sm:$0xf]
      %v4603 = vunpack.c.l.b16 %v4571
      %v4604 = vunpack.c.l.b16 %v4572
      %v4605 = vunpack.c.l.b16 %v4573
      %v4606 = vunpack.c.l.b16 %v4574
      %v4607 = vunpack.c.l.b16 %v4575
      %v4608 = vunpack.c.l.b16 %v4576
      %v4609 = vunpack.c.l.b16 %v4577
      %v4610 = vunpack.c.l.b16 %v4578
      %v4611 = vunpack.c.l.b16 %v4579
      %v4612 = vunpack.c.l.b16 %v4580
      %v4613 = vunpack.c.l.b16 %v4581
      %v4614 = vunpack.c.l.b16 %v4582
      %v4615 = vunpack.c.l.b16 %v4583
      %v4616 = vunpack.c.l.b16 %v4584
      %v4617 = vunpack.c.l.b16 %v4585
      %v4618 = vunpack.c.l.b16 %v4586
      %v4619 = vpack.c.b16 %v4604, %v4603
      %v4620 = vpack.c.b16 %v4606, %v4605
      %v4621 = vpack.c.b16 %v4608, %v4607
      %v4622 = vpack.c.b16 %v4610, %v4609
      %v4623 = vpack.c.b16 %v4612, %v4611
      %v4624 = vpack.c.b16 %v4614, %v4613
      %v4625 = vpack.c.b16 %v4616, %v4615
      %v4626 = vpack.c.b16 %v4618, %v4617
      %4635 = vmatprep.subr.bf16.mxu0 0
      %4636 = vmatpush1.bf16.msra.mxu0 %v4619
      %4637 = vmatprep.subr.bf16.mxu0 0
      %4638 = vmatpush1.bf16.msra.mxu0 %v4620
      %4639 = vmatprep.subr.bf16.mxu0 0
      %4640 = vmatpush1.bf16.msra.mxu0 %v4621
      %4641 = vmatprep.subr.bf16.mxu0 0
      %4642 = vmatpush1.bf16.msra.mxu0 %v4622
      %4643 = vmatprep.subr.bf16.mxu0 0
      %4644 = vmatpush1.bf16.msra.mxu0 %v4623
      %4645 = vmatprep.subr.bf16.mxu0 0
      %4646 = vmatpush1.bf16.msra.mxu0 %v4624
      %4647 = vmatprep.subr.bf16.mxu0 0
      %4648 = vmatpush1.bf16.msra.mxu0 %v4625
      %4649 = vmatprep.subr.bf16.mxu0 0
      %4650 = vmatpush1.bf16.msra.mxu0 %v4626
      %4651 = vmatprep.subr.bf16.mxu0 0
      %4652 = vmatpush1.bf16.msra.mxu0 0
      %4653 = vmatprep.subr.bf16.mxu0 0
      %4654 = vmatpush1.bf16.msra.mxu0 0
      %4655 = vmatprep.subr.bf16.mxu0 0
      %4656 = vmatpush1.bf16.msra.mxu0 0
      %4657 = vmatprep.subr.bf16.mxu0 0
      %4658 = vmatpush1.bf16.msra.mxu0 0
      %4659 = vmatprep.subr.bf16.mxu0 0
      %4660 = vmatpush1.bf16.msra.mxu0 0
      %4661 = vmatprep.subr.bf16.mxu0 0
      %4662 = vmatpush1.bf16.msra.mxu0 0
      %4663 = vmatprep.subr.bf16.mxu0 0
      %4664 = vmatpush1.bf16.msra.mxu0 0
      %4665 = vmatprep.subr.bf16.mxu0 0
      %4666 = vmatpush1.bf16.msra.mxu0 0
      %4667 = vmatprep.mubr.bf16.mxu0 0
      %4668 = vmatmul.mubr.bf16.gmra.mrb[0].mxu0 %v3415
      %v4669 = vpop.f32.mrb[0].mxu0
      %v4670 = vadd.f32 0.0, %v4669
      %v4671 = vpop.f32.mrb[0].mxu0
      %v4672 = vpop.f32.mrb[0].mxu0
      %v4673 = vadd.f32 0.0, %v4672
      %v4674 = vpop.f32.mrb[0].mxu0
      %4675 = vmatprep.mubr.bf16.mxu0 0
      %4676 = vmatmul.mubr.bf16.gmra.mrb[0].mxu0 %v3416
      %v4677 = vpop.f32.mrb[0].mxu0
      %v4678 = vadd.f32 0.0, %v4677
      %v4679 = vpop.f32.mrb[0].mxu0
      %v4680 = vpop.f32.mrb[0].mxu0
      %v4681 = vadd.f32 0.0, %v4680
      %v4682 = vpop.f32.mrb[0].mxu0
      %4683 = vmatprep.mubr.bf16.mxu0 0
      %4684 = vmatmul.mubr.bf16.gmra.mrb[0].mxu0 %v3417
      %v4685 = vpop.f32.mrb[0].mxu0
      %v4686 = vadd.f32 0.0, %v4685
      %v4687 = vpop.f32.mrb[0].mxu0
      %v4688 = vpop.f32.mrb[0].mxu0
      %v4689 = vadd.f32 0.0, %v4688
      %v4690 = vpop.f32.mrb[0].mxu0
      %4691 = vmatprep.mubr.bf16.mxu0 0
      %4692 = vmatmul.mubr.bf16.gmra.mrb[0].mxu0 %v3418
      %v4693 = vpop.f32.mrb[0].mxu0
      %v4694 = vadd.f32 0.0, %v4693
      %v4695 = vpop.f32.mrb[0].mxu0
      %v4696 = vpop.f32.mrb[0].mxu0
      %v4697 = vadd.f32 0.0, %v4696
      %v4698 = vpop.f32.mrb[0].mxu0
      %4699 = vdwg.mxu0
      %v4700 = vadd.f32 %v4562, %v4670
      %v4701 = vadd.f32 %v4563, %v4673
      %v4702 = vadd.f32 %v4564, %v4678
      %v4703 = vadd.f32 %v4565, %v4681
      %v4704 = vadd.f32 %v4566, %v4686
      %v4705 = vadd.f32 %v4567, %v4689
      %v4706 = vadd.f32 %v4568, %v4694
      %v4707 = vadd.f32 %v4569, %v4697
      %s4708 = scalar_lea.vmem %s4, 576
      %v4709 = vld [vmem:[%s4708] sm:$0xf]
      %v4710 = vld [vmem:[%s4708 + $0x4] sm:$0xf]
      %v4711 = vld [vmem:[%s4708 + $0x8] sm:$0xf]
      %v4712 = vld [vmem:[%s4708 + $0xc] sm:$0xf]
      %v4713 = vld [vmem:[%s4708 + $0x10] sm:$0xf]
      %v4714 = vld [vmem:[%s4708 + $0x14] sm:$0xf]
      %v4715 = vld [vmem:[%s4708 + $0x18] sm:$0xf]
      %v4716 = vld [vmem:[%s4708 + $0x1c] sm:$0xf]
      %v4717 = vld [vmem:[%s4708 + $0x20] sm:$0xf]
      %v4718 = vld [vmem:[%s4708 + $0x24] sm:$0xf]
      %v4719 = vld [vmem:[%s4708 + $0x28] sm:$0xf]
      %v4720 = vld [vmem:[%s4708 + $0x2c] sm:$0xf]
      %v4721 = vld [vmem:[%s4708 + $0x30] sm:$0xf]
      %v4722 = vld [vmem:[%s4708 + $0x34] sm:$0xf]
      %v4723 = vld [vmem:[%s4708 + $0x38] sm:$0xf]
      %v4724 = vld [vmem:[%s4708 + $0x3c] sm:$0xf]
      %v4741 = vunpack.c.l.b16 %v4709
      %v4742 = vunpack.c.l.b16 %v4710
      %v4743 = vunpack.c.l.b16 %v4711
      %v4744 = vunpack.c.l.b16 %v4712
      %v4745 = vunpack.c.l.b16 %v4713
      %v4746 = vunpack.c.l.b16 %v4714
      %v4747 = vunpack.c.l.b16 %v4715
      %v4748 = vunpack.c.l.b16 %v4716
      %v4749 = vunpack.c.l.b16 %v4717
      %v4750 = vunpack.c.l.b16 %v4718
      %v4751 = vunpack.c.l.b16 %v4719
      %v4752 = vunpack.c.l.b16 %v4720
      %v4753 = vunpack.c.l.b16 %v4721
      %v4754 = vunpack.c.l.b16 %v4722
      %v4755 = vunpack.c.l.b16 %v4723
      %v4756 = vunpack.c.l.b16 %v4724
      %v4757 = vpack.c.b16 %v4742, %v4741
      %v4758 = vpack.c.b16 %v4744, %v4743
      %v4759 = vpack.c.b16 %v4746, %v4745
      %v4760 = vpack.c.b16 %v4748, %v4747
      %v4761 = vpack.c.b16 %v4750, %v4749
      %v4762 = vpack.c.b16 %v4752, %v4751
      %v4763 = vpack.c.b16 %v4754, %v4753
      %v4764 = vpack.c.b16 %v4756, %v4755
      %4773 = vmatprep.subr.bf16.mxu0 0
      %4774 = vmatpush1.bf16.msra.mxu0 %v4757
      %4775 = vmatprep.subr.bf16.mxu0 0
      %4776 = vmatpush1.bf16.msra.mxu0 %v4758
      %4777 = vmatprep.subr.bf16.mxu0 0
      %4778 = vmatpush1.bf16.msra.mxu0 %v4759
      %4779 = vmatprep.subr.bf16.mxu0 0
      %4780 = vmatpush1.bf16.msra.mxu0 %v4760
      %4781 = vmatprep.subr.bf16.mxu0 0
      %4782 = vmatpush1.bf16.msra.mxu0 %v4761
      %4783 = vmatprep.subr.bf16.mxu0 0
      %4784 = vmatpush1.bf16.msra.mxu0 %v4762
      %4785 = vmatprep.subr.bf16.mxu0 0
      %4786 = vmatpush1.bf16.msra.mxu0 %v4763
      %4787 = vmatprep.subr.bf16.mxu0 0
      %4788 = vmatpush1.bf16.msra.mxu0 %v4764
      %4789 = vmatprep.subr.bf16.mxu0 0
      %4790 = vmatpush1.bf16.msra.mxu0 0
      %4791 = vmatprep.subr.bf16.mxu0 0
      %4792 = vmatpush1.bf16.msra.mxu0 0
      %4793 = vmatprep.subr.bf16.mxu0 0
      %4794 = vmatpush1.bf16.msra.mxu0 0
      %4795 = vmatprep.subr.bf16.mxu0 0
      %4796 = vmatpush1.bf16.msra.mxu0 0
      %4797 = vmatprep.subr.bf16.mxu0 0
      %4798 = vmatpush1.bf16.msra.mxu0 0
      %4799 = vmatprep.subr.bf16.mxu0 0
      %4800 = vmatpush1.bf16.msra.mxu0 0
      %4801 = vmatprep.subr.bf16.mxu0 0
      %4802 = vmatpush1.bf16.msra.mxu0 0
      %4803 = vmatprep.subr.bf16.mxu0 0
      %4804 = vmatpush1.bf16.msra.mxu0 0
      %4805 = vmatprep.mubr.bf16.mxu0 0
      %4806 = vmatmul.mubr.bf16.gmra.mrb[0].mxu0 %v3419
      %v4807 = vpop.f32.mrb[0].mxu0
      %v4808 = vadd.f32 0.0, %v4807
      %v4809 = vpop.f32.mrb[0].mxu0
      %v4810 = vpop.f32.mrb[0].mxu0
      %v4811 = vadd.f32 0.0, %v4810
      %v4812 = vpop.f32.mrb[0].mxu0
      %4813 = vmatprep.mubr.bf16.mxu0 0
      %4814 = vmatmul.mubr.bf16.gmra.mrb[0].mxu0 %v3420
      %v4815 = vpop.f32.mrb[0].mxu0
      %v4816 = vadd.f32 0.0, %v4815
      %v4817 = vpop.f32.mrb[0].mxu0
      %v4818 = vpop.f32.mrb[0].mxu0
      %v4819 = vadd.f32 0.0, %v4818
      %v4820 = vpop.f32.mrb[0].mxu0
      %4821 = vmatprep.mubr.bf16.mxu0 0
      %4822 = vmatmul.mubr.bf16.gmra.mrb[0].mxu0 %v3421
      %v4823 = vpop.f32.mrb[0].mxu0
      %v4824 = vadd.f32 0.0, %v4823
      %v4825 = vpop.f32.mrb[0].mxu0
      %v4826 = vpop.f32.mrb[0].mxu0
      %v4827 = vadd.f32 0.0, %v4826
      %v4828 = vpop.f32.mrb[0].mxu0
      %4829 = vmatprep.mubr.bf16.mxu0 0
      %4830 = vmatmul.mubr.bf16.gmra.mrb[0].mxu0 %v3422
      %v4831 = vpop.f32.mrb[0].mxu0
      %v4832 = vadd.f32 0.0, %v4831
      %v4833 = vpop.f32.mrb[0].mxu0
      %v4834 = vpop.f32.mrb[0].mxu0
      %v4835 = vadd.f32 0.0, %v4834
      %v4836 = vpop.f32.mrb[0].mxu0
      %4837 = vdwg.mxu0
      %v4838 = vadd.f32 %v4700, %v4808
      %v4839 = vadd.f32 %v4701, %v4811
      %v4840 = vadd.f32 %v4702, %v4816
      %v4841 = vadd.f32 %v4703, %v4819
      %v4842 = vadd.f32 %v4704, %v4824
      %v4843 = vadd.f32 %v4705, %v4827
      %v4844 = vadd.f32 %v4706, %v4832
      %v4845 = vadd.f32 %v4707, %v4835
      %s4846 = scalar_lea.vmem %s4, 640
      %v4847 = vld [vmem:[%s4846] sm:$0xf]
      %v4848 = vld [vmem:[%s4846 + $0x4] sm:$0xf]
      %v4849 = vld [vmem:[%s4846 + $0x8] sm:$0xf]
      %v4850 = vld [vmem:[%s4846 + $0xc] sm:$0xf]
      %v4851 = vld [vmem:[%s4846 + $0x10] sm:$0xf]
      %v4852 = vld [vmem:[%s4846 + $0x14] sm:$0xf]
      %v4853 = vld [vmem:[%s4846 + $0x18] sm:$0xf]
      %v4854 = vld [vmem:[%s4846 + $0x1c] sm:$0xf]
      %v4855 = vld [vmem:[%s4846 + $0x20] sm:$0xf]
      %v4856 = vld [vmem:[%s4846 + $0x24] sm:$0xf]
      %v4857 = vld [vmem:[%s4846 + $0x28] sm:$0xf]
      %v4858 = vld [vmem:[%s4846 + $0x2c] sm:$0xf]
      %v4859 = vld [vmem:[%s4846 + $0x30] sm:$0xf]
      %v4860 = vld [vmem:[%s4846 + $0x34] sm:$0xf]
      %v4861 = vld [vmem:[%s4846 + $0x38] sm:$0xf]
      %v4862 = vld [vmem:[%s4846 + $0x3c] sm:$0xf]
      %v4879 = vunpack.c.l.b16 %v4847
      %v4880 = vunpack.c.l.b16 %v4848
      %v4881 = vunpack.c.l.b16 %v4849
      %v4882 = vunpack.c.l.b16 %v4850
      %v4883 = vunpack.c.l.b16 %v4851
      %v4884 = vunpack.c.l.b16 %v4852
      %v4885 = vunpack.c.l.b16 %v4853
      %v4886 = vunpack.c.l.b16 %v4854
      %v4887 = vunpack.c.l.b16 %v4855
      %v4888 = vunpack.c.l.b16 %v4856
      %v4889 = vunpack.c.l.b16 %v4857
      %v4890 = vunpack.c.l.b16 %v4858
      %v4891 = vunpack.c.l.b16 %v4859
      %v4892 = vunpack.c.l.b16 %v4860
      %v4893 = vunpack.c.l.b16 %v4861
      %v4894 = vunpack.c.l.b16 %v4862
      %v4895 = vpack.c.b16 %v4880, %v4879
      %v4896 = vpack.c.b16 %v4882, %v4881
      %v4897 = vpack.c.b16 %v4884, %v4883
      %v4898 = vpack.c.b16 %v4886, %v4885
      %v4899 = vpack.c.b16 %v4888, %v4887
      %v4900 = vpack.c.b16 %v4890, %v4889
      %v4901 = vpack.c.b16 %v4892, %v4891
      %v4902 = vpack.c.b16 %v4894, %v4893
      %4911 = vmatprep.subr.bf16.mxu0 0
      %4912 = vmatpush1.bf16.msra.mxu0 %v4895
      %4913 = vmatprep.subr.bf16.mxu0 0
      %4914 = vmatpush1.bf16.msra.mxu0 %v4896
      %4915 = vmatprep.subr.bf16.mxu0 0
      %4916 = vmatpush1.bf16.msra.mxu0 %v4897
      %4917 = vmatprep.subr.bf16.mxu0 0
      %4918 = vmatpush1.bf16.msra.mxu0 %v4898
      %4919 = vmatprep.subr.bf16.mxu0 0
      %4920 = vmatpush1.bf16.msra.mxu0 %v4899
      %4921 = vmatprep.subr.bf16.mxu0 0
      %4922 = vmatpush1.bf16.msra.mxu0 %v4900
      %4923 = vmatprep.subr.bf16.mxu0 0
      %4924 = vmatpush1.bf16.msra.mxu0 %v4901
      %4925 = vmatprep.subr.bf16.mxu0 0
      %4926 = vmatpush1.bf16.msra.mxu0 %v4902
      %4927 = vmatprep.subr.bf16.mxu0 0
      %4928 = vmatpush1.bf16.msra.mxu0 0
      %4929 = vmatprep.subr.bf16.mxu0 0
      %4930 = vmatpush1.bf16.msra.mxu0 0
      %4931 = vmatprep.subr.bf16.mxu0 0
      %4932 = vmatpush1.bf16.msra.mxu0 0
      %4933 = vmatprep.subr.bf16.mxu0 0
      %4934 = vmatpush1.bf16.msra.mxu0 0
      %4935 = vmatprep.subr.bf16.mxu0 0
      %4936 = vmatpush1.bf16.msra.mxu0 0
      %4937 = vmatprep.subr.bf16.mxu0 0
      %4938 = vmatpush1.bf16.msra.mxu0 0
      %4939 = vmatprep.subr.bf16.mxu0 0
      %4940 = vmatpush1.bf16.msra.mxu0 0
      %4941 = vmatprep.subr.bf16.mxu0 0
      %4942 = vmatpush1.bf16.msra.mxu0 0
      %4943 = vmatprep.mubr.bf16.mxu0 0
      %4944 = vmatmul.mubr.bf16.gmra.mrb[0].mxu0 %v3423
      %v4945 = vpop.f32.mrb[0].mxu0
      %v4946 = vadd.f32 0.0, %v4945
      %v4947 = vpop.f32.mrb[0].mxu0
      %v4948 = vpop.f32.mrb[0].mxu0
      %v4949 = vadd.f32 0.0, %v4948
      %v4950 = vpop.f32.mrb[0].mxu0
      %4951 = vmatprep.mubr.bf16.mxu0 0
      %4952 = vmatmul.mubr.bf16.gmra.mrb[0].mxu0 %v3424
      %v4953 = vpop.f32.mrb[0].mxu0
      %v4954 = vadd.f32 0.0, %v4953
      %v4955 = vpop.f32.mrb[0].mxu0
      %v4956 = vpop.f32.mrb[0].mxu0
      %v4957 = vadd.f32 0.0, %v4956
      %v4958 = vpop.f32.mrb[0].mxu0
      %4959 = vmatprep.mubr.bf16.mxu0 0
      %4960 = vmatmul.mubr.bf16.gmra.mrb[0].mxu0 %v3425
      %v4961 = vpop.f32.mrb[0].mxu0
      %v4962 = vadd.f32 0.0, %v4961
      %v4963 = vpop.f32.mrb[0].mxu0
      %v4964 = vpop.f32.mrb[0].mxu0
      %v4965 = vadd.f32 0.0, %v4964
      %v4966 = vpop.f32.mrb[0].mxu0
      %4967 = vmatprep.mubr.bf16.mxu0 0
      %4968 = vmatmul.mubr.bf16.gmra.mrb[0].mxu0 %v3426
      %v4969 = vpop.f32.mrb[0].mxu0
      %v4970 = vadd.f32 0.0, %v4969
      %v4971 = vpop.f32.mrb[0].mxu0
      %v4972 = vpop.f32.mrb[0].mxu0
      %v4973 = vadd.f32 0.0, %v4972
      %v4974 = vpop.f32.mrb[0].mxu0
      %4975 = vdwg.mxu0
      %v4976 = vadd.f32 %v4838, %v4946
      %v4977 = vadd.f32 %v4839, %v4949
      %v4978 = vadd.f32 %v4840, %v4954
      %v4979 = vadd.f32 %v4841, %v4957
      %v4980 = vadd.f32 %v4842, %v4962
      %v4981 = vadd.f32 %v4843, %v4965
      %v4982 = vadd.f32 %v4844, %v4970
      %v4983 = vadd.f32 %v4845, %v4973
      %s4984 = scalar_lea.vmem %s4, 704
      %v4985 = vld [vmem:[%s4984] sm:$0xf]
      %v4986 = vld [vmem:[%s4984 + $0x4] sm:$0xf]
      %v4987 = vld [vmem:[%s4984 + $0x8] sm:$0xf]
      %v4988 = vld [vmem:[%s4984 + $0xc] sm:$0xf]
      %v4989 = vld [vmem:[%s4984 + $0x10] sm:$0xf]
      %v4990 = vld [vmem:[%s4984 + $0x14] sm:$0xf]
      %v4991 = vld [vmem:[%s4984 + $0x18] sm:$0xf]
      %v4992 = vld [vmem:[%s4984 + $0x1c] sm:$0xf]
      %v4993 = vld [vmem:[%s4984 + $0x20] sm:$0xf]
      %v4994 = vld [vmem:[%s4984 + $0x24] sm:$0xf]
      %v4995 = vld [vmem:[%s4984 + $0x28] sm:$0xf]
      %v4996 = vld [vmem:[%s4984 + $0x2c] sm:$0xf]
      %v4997 = vld [vmem:[%s4984 + $0x30] sm:$0xf]
      %v4998 = vld [vmem:[%s4984 + $0x34] sm:$0xf]
      %v4999 = vld [vmem:[%s4984 + $0x38] sm:$0xf]
      %v5000 = vld [vmem:[%s4984 + $0x3c] sm:$0xf]
      %v5017 = vunpack.c.l.b16 %v4985
      %v5018 = vunpack.c.l.b16 %v4986
      %v5019 = vunpack.c.l.b16 %v4987
      %v5020 = vunpack.c.l.b16 %v4988
      %v5021 = vunpack.c.l.b16 %v4989
      %v5022 = vunpack.c.l.b16 %v4990
      %v5023 = vunpack.c.l.b16 %v4991
      %v5024 = vunpack.c.l.b16 %v4992
      %v5025 = vunpack.c.l.b16 %v4993
      %v5026 = vunpack.c.l.b16 %v4994
      %v5027 = vunpack.c.l.b16 %v4995
      %v5028 = vunpack.c.l.b16 %v4996
      %v5029 = vunpack.c.l.b16 %v4997
      %v5030 = vunpack.c.l.b16 %v4998
      %v5031 = vunpack.c.l.b16 %v4999
      %v5032 = vunpack.c.l.b16 %v5000
      %v5033 = vpack.c.b16 %v5018, %v5017
      %v5034 = vpack.c.b16 %v5020, %v5019
      %v5035 = vpack.c.b16 %v5022, %v5021
      %v5036 = vpack.c.b16 %v5024, %v5023
      %v5037 = vpack.c.b16 %v5026, %v5025
      %v5038 = vpack.c.b16 %v5028, %v5027
      %v5039 = vpack.c.b16 %v5030, %v5029
      %v5040 = vpack.c.b16 %v5032, %v5031
      %5049 = vmatprep.subr.bf16.mxu0 0
      %5050 = vmatpush1.bf16.msra.mxu0 %v5033
      %5051 = vmatprep.subr.bf16.mxu0 0
      %5052 = vmatpush1.bf16.msra.mxu0 %v5034
      %5053 = vmatprep.subr.bf16.mxu0 0
      %5054 = vmatpush1.bf16.msra.mxu0 %v5035
      %5055 = vmatprep.subr.bf16.mxu0 0
      %5056 = vmatpush1.bf16.msra.mxu0 %v5036
      %5057 = vmatprep.subr.bf16.mxu0 0
      %5058 = vmatpush1.bf16.msra.mxu0 %v5037
      %5059 = vmatprep.subr.bf16.mxu0 0
      %5060 = vmatpush1.bf16.msra.mxu0 %v5038
      %5061 = vmatprep.subr.bf16.mxu0 0
      %5062 = vmatpush1.bf16.msra.mxu0 %v5039
      %5063 = vmatprep.subr.bf16.mxu0 0
      %5064 = vmatpush1.bf16.msra.mxu0 %v5040
      %5065 = vmatprep.subr.bf16.mxu0 0
      %5066 = vmatpush1.bf16.msra.mxu0 0
      %5067 = vmatprep.subr.bf16.mxu0 0
      %5068 = vmatpush1.bf16.msra.mxu0 0
      %5069 = vmatprep.subr.bf16.mxu0 0
      %5070 = vmatpush1.bf16.msra.mxu0 0
      %5071 = vmatprep.subr.bf16.mxu0 0
      %5072 = vmatpush1.bf16.msra.mxu0 0
      %5073 = vmatprep.subr.bf16.mxu0 0
      %5074 = vmatpush1.bf16.msra.mxu0 0
      %5075 = vmatprep.subr.bf16.mxu0 0
      %5076 = vmatpush1.bf16.msra.mxu0 0
      %5077 = vmatprep.subr.bf16.mxu0 0
      %5078 = vmatpush1.bf16.msra.mxu0 0
      %5079 = vmatprep.subr.bf16.mxu0 0
      %5080 = vmatpush1.bf16.msra.mxu0 0
      %5081 = vmatprep.mubr.bf16.mxu0 0
      %5082 = vmatmul.mubr.bf16.gmra.mrb[0].mxu0 %v3427
      %v5083 = vpop.f32.mrb[0].mxu0
      %v5084 = vadd.f32 0.0, %v5083
      %v5085 = vpop.f32.mrb[0].mxu0
      %v5086 = vpop.f32.mrb[0].mxu0
      %v5087 = vadd.f32 0.0, %v5086
      %v5088 = vpop.f32.mrb[0].mxu0
      %5089 = vmatprep.mubr.bf16.mxu0 0
      %5090 = vmatmul.mubr.bf16.gmra.mrb[0].mxu0 %v3428
      %v5091 = vpop.f32.mrb[0].mxu0
      %v5092 = vadd.f32 0.0, %v5091
      %v5093 = vpop.f32.mrb[0].mxu0
      %v5094 = vpop.f32.mrb[0].mxu0
      %v5095 = vadd.f32 0.0, %v5094
      %v5096 = vpop.f32.mrb[0].mxu0
      %5097 = vmatprep.mubr.bf16.mxu0 0
      %5098 = vmatmul.mubr.bf16.gmra.mrb[0].mxu0 %v3429
      %v5099 = vpop.f32.mrb[0].mxu0
      %v5100 = vadd.f32 0.0, %v5099
      %v5101 = vpop.f32.mrb[0].mxu0
      %v5102 = vpop.f32.mrb[0].mxu0
      %v5103 = vadd.f32 0.0, %v5102
      %v5104 = vpop.f32.mrb[0].mxu0
      %5105 = vmatprep.mubr.bf16.mxu0 0
      %5106 = vmatmul.mubr.bf16.gmra.mrb[0].mxu0 %v3430
      %v5107 = vpop.f32.mrb[0].mxu0
      %v5108 = vadd.f32 0.0, %v5107
      %v5109 = vpop.f32.mrb[0].mxu0
      %v5110 = vpop.f32.mrb[0].mxu0
      %v5111 = vadd.f32 0.0, %v5110
      %v5112 = vpop.f32.mrb[0].mxu0
      %5113 = vdwg.mxu0
      %v5114 = vadd.f32 %v4976, %v5084
      %v5115 = vadd.f32 %v4977, %v5087
      %v5116 = vadd.f32 %v4978, %v5092
      %v5117 = vadd.f32 %v4979, %v5095
      %v5118 = vadd.f32 %v4980, %v5100
      %v5119 = vadd.f32 %v4981, %v5103
      %v5120 = vadd.f32 %v4982, %v5108
      %v5121 = vadd.f32 %v4983, %v5111
      %s5122 = scalar_lea.vmem %s4, 768
      %v5123 = vld [vmem:[%s5122] sm:$0xf]
      %v5124 = vld [vmem:[%s5122 + $0x4] sm:$0xf]
      %v5125 = vld [vmem:[%s5122 + $0x8] sm:$0xf]
      %v5126 = vld [vmem:[%s5122 + $0xc] sm:$0xf]
      %v5127 = vld [vmem:[%s5122 + $0x10] sm:$0xf]
      %v5128 = vld [vmem:[%s5122 + $0x14] sm:$0xf]
      %v5129 = vld [vmem:[%s5122 + $0x18] sm:$0xf]
      %v5130 = vld [vmem:[%s5122 + $0x1c] sm:$0xf]
      %v5131 = vld [vmem:[%s5122 + $0x20] sm:$0xf]
      %v5132 = vld [vmem:[%s5122 + $0x24] sm:$0xf]
      %v5133 = vld [vmem:[%s5122 + $0x28] sm:$0xf]
      %v5134 = vld [vmem:[%s5122 + $0x2c] sm:$0xf]
      %v5135 = vld [vmem:[%s5122 + $0x30] sm:$0xf]
      %v5136 = vld [vmem:[%s5122 + $0x34] sm:$0xf]
      %v5137 = vld [vmem:[%s5122 + $0x38] sm:$0xf]
      %v5138 = vld [vmem:[%s5122 + $0x3c] sm:$0xf]
      %v5155 = vunpack.c.l.b16 %v5123
      %v5156 = vunpack.c.l.b16 %v5124
      %v5157 = vunpack.c.l.b16 %v5125
      %v5158 = vunpack.c.l.b16 %v5126
      %v5159 = vunpack.c.l.b16 %v5127
      %v5160 = vunpack.c.l.b16 %v5128
      %v5161 = vunpack.c.l.b16 %v5129
      %v5162 = vunpack.c.l.b16 %v5130
      %v5163 = vunpack.c.l.b16 %v5131
      %v5164 = vunpack.c.l.b16 %v5132
      %v5165 = vunpack.c.l.b16 %v5133
      %v5166 = vunpack.c.l.b16 %v5134
      %v5167 = vunpack.c.l.b16 %v5135
      %v5168 = vunpack.c.l.b16 %v5136
      %v5169 = vunpack.c.l.b16 %v5137
      %v5170 = vunpack.c.l.b16 %v5138
      %v5171 = vpack.c.b16 %v5156, %v5155
      %v5172 = vpack.c.b16 %v5158, %v5157
      %v5173 = vpack.c.b16 %v5160, %v5159
      %v5174 = vpack.c.b16 %v5162, %v5161
      %v5175 = vpack.c.b16 %v5164, %v5163
      %v5176 = vpack.c.b16 %v5166, %v5165
      %v5177 = vpack.c.b16 %v5168, %v5167
      %v5178 = vpack.c.b16 %v5170, %v5169
      %5187 = vmatprep.subr.bf16.mxu0 0
      %5188 = vmatpush1.bf16.msra.mxu0 %v5171
      %5189 = vmatprep.subr.bf16.mxu0 0
      %5190 = vmatpush1.bf16.msra.mxu0 %v5172
      %5191 = vmatprep.subr.bf16.mxu0 0
      %5192 = vmatpush1.bf16.msra.mxu0 %v5173
      %5193 = vmatprep.subr.bf16.mxu0 0
      %5194 = vmatpush1.bf16.msra.mxu0 %v5174
      %5195 = vmatprep.subr.bf16.mxu0 0
      %5196 = vmatpush1.bf16.msra.mxu0 %v5175
      %5197 = vmatprep.subr.bf16.mxu0 0
      %5198 = vmatpush1.bf16.msra.mxu0 %v5176
      %5199 = vmatprep.subr.bf16.mxu0 0
      %5200 = vmatpush1.bf16.msra.mxu0 %v5177
      %5201 = vmatprep.subr.bf16.mxu0 0
      %5202 = vmatpush1.bf16.msra.mxu0 %v5178
      %5203 = vmatprep.subr.bf16.mxu0 0
      %5204 = vmatpush1.bf16.msra.mxu0 0
      %5205 = vmatprep.subr.bf16.mxu0 0
      %5206 = vmatpush1.bf16.msra.mxu0 0
      %5207 = vmatprep.subr.bf16.mxu0 0
      %5208 = vmatpush1.bf16.msra.mxu0 0
      %5209 = vmatprep.subr.bf16.mxu0 0
      %5210 = vmatpush1.bf16.msra.mxu0 0
      %5211 = vmatprep.subr.bf16.mxu0 0
      %5212 = vmatpush1.bf16.msra.mxu0 0
      %5213 = vmatprep.subr.bf16.mxu0 0
      %5214 = vmatpush1.bf16.msra.mxu0 0
      %5215 = vmatprep.subr.bf16.mxu0 0
      %5216 = vmatpush1.bf16.msra.mxu0 0
      %5217 = vmatprep.subr.bf16.mxu0 0
      %5218 = vmatpush1.bf16.msra.mxu0 0
      %5219 = vmatprep.mubr.bf16.mxu0 0
      %5220 = vmatmul.mubr.bf16.gmra.mrb[0].mxu0 %v3431
      %v5221 = vpop.f32.mrb[0].mxu0
      %v5222 = vadd.f32 0.0, %v5221
      %v5223 = vpop.f32.mrb[0].mxu0
      %v5224 = vpop.f32.mrb[0].mxu0
      %v5225 = vadd.f32 0.0, %v5224
      %v5226 = vpop.f32.mrb[0].mxu0
      %5227 = vmatprep.mubr.bf16.mxu0 0
      %5228 = vmatmul.mubr.bf16.gmra.mrb[0].mxu0 %v3432
      %v5229 = vpop.f32.mrb[0].mxu0
      %v5230 = vadd.f32 0.0, %v5229
      %v5231 = vpop.f32.mrb[0].mxu0
      %v5232 = vpop.f32.mrb[0].mxu0
      %v5233 = vadd.f32 0.0, %v5232
      %v5234 = vpop.f32.mrb[0].mxu0
      %5235 = vmatprep.mubr.bf16.mxu0 0
      %5236 = vmatmul.mubr.bf16.gmra.mrb[0].mxu0 %v3433
      %v5237 = vpop.f32.mrb[0].mxu0
      %v5238 = vadd.f32 0.0, %v5237
      %v5239 = vpop.f32.mrb[0].mxu0
      %v5240 = vpop.f32.mrb[0].mxu0
      %v5241 = vadd.f32 0.0, %v5240
      %v5242 = vpop.f32.mrb[0].mxu0
      %5243 = vmatprep.mubr.bf16.mxu0 0
      %5244 = vmatmul.mubr.bf16.gmra.mrb[0].mxu0 %v3434
      %v5245 = vpop.f32.mrb[0].mxu0
      %v5246 = vadd.f32 0.0, %v5245
      %v5247 = vpop.f32.mrb[0].mxu0
      %v5248 = vpop.f32.mrb[0].mxu0
      %v5249 = vadd.f32 0.0, %v5248
      %v5250 = vpop.f32.mrb[0].mxu0
      %5251 = vdwg.mxu0
      %v5252 = vadd.f32 %v5114, %v5222
      %v5253 = vadd.f32 %v5115, %v5225
      %v5254 = vadd.f32 %v5116, %v5230
      %v5255 = vadd.f32 %v5117, %v5233
      %v5256 = vadd.f32 %v5118, %v5238
      %v5257 = vadd.f32 %v5119, %v5241
      %v5258 = vadd.f32 %v5120, %v5246
      %v5259 = vadd.f32 %v5121, %v5249
      %s5260 = scalar_lea.vmem %s4, 832
      %v5261 = vld [vmem:[%s5260] sm:$0xf]
      %v5262 = vld [vmem:[%s5260 + $0x4] sm:$0xf]
      %v5263 = vld [vmem:[%s5260 + $0x8] sm:$0xf]
      %v5264 = vld [vmem:[%s5260 + $0xc] sm:$0xf]
      %v5265 = vld [vmem:[%s5260 + $0x10] sm:$0xf]
      %v5266 = vld [vmem:[%s5260 + $0x14] sm:$0xf]
      %v5267 = vld [vmem:[%s5260 + $0x18] sm:$0xf]
      %v5268 = vld [vmem:[%s5260 + $0x1c] sm:$0xf]
      %v5269 = vld [vmem:[%s5260 + $0x20] sm:$0xf]
      %v5270 = vld [vmem:[%s5260 + $0x24] sm:$0xf]
      %v5271 = vld [vmem:[%s5260 + $0x28] sm:$0xf]
      %v5272 = vld [vmem:[%s5260 + $0x2c] sm:$0xf]
      %v5273 = vld [vmem:[%s5260 + $0x30] sm:$0xf]
      %v5274 = vld [vmem:[%s5260 + $0x34] sm:$0xf]
      %v5275 = vld [vmem:[%s5260 + $0x38] sm:$0xf]
      %v5276 = vld [vmem:[%s5260 + $0x3c] sm:$0xf]
      %v5293 = vunpack.c.l.b16 %v5261
      %v5294 = vunpack.c.l.b16 %v5262
      %v5295 = vunpack.c.l.b16 %v5263
      %v5296 = vunpack.c.l.b16 %v5264
      %v5297 = vunpack.c.l.b16 %v5265
      %v5298 = vunpack.c.l.b16 %v5266
      %v5299 = vunpack.c.l.b16 %v5267
      %v5300 = vunpack.c.l.b16 %v5268
      %v5301 = vunpack.c.l.b16 %v5269
      %v5302 = vunpack.c.l.b16 %v5270
      %v5303 = vunpack.c.l.b16 %v5271
      %v5304 = vunpack.c.l.b16 %v5272
      %v5305 = vunpack.c.l.b16 %v5273
      %v5306 = vunpack.c.l.b16 %v5274
      %v5307 = vunpack.c.l.b16 %v5275
      %v5308 = vunpack.c.l.b16 %v5276
      %v5309 = vpack.c.b16 %v5294, %v5293
      %v5310 = vpack.c.b16 %v5296, %v5295
      %v5311 = vpack.c.b16 %v5298, %v5297
      %v5312 = vpack.c.b16 %v5300, %v5299
      %v5313 = vpack.c.b16 %v5302, %v5301
      %v5314 = vpack.c.b16 %v5304, %v5303
      %v5315 = vpack.c.b16 %v5306, %v5305
      %v5316 = vpack.c.b16 %v5308, %v5307
      %5325 = vmatprep.subr.bf16.mxu0 0
      %5326 = vmatpush1.bf16.msra.mxu0 %v5309
      %5327 = vmatprep.subr.bf16.mxu0 0
      %5328 = vmatpush1.bf16.msra.mxu0 %v5310
      %5329 = vmatprep.subr.bf16.mxu0 0
      %5330 = vmatpush1.bf16.msra.mxu0 %v5311
      %5331 = vmatprep.subr.bf16.mxu0 0
      %5332 = vmatpush1.bf16.msra.mxu0 %v5312
      %5333 = vmatprep.subr.bf16.mxu0 0
      %5334 = vmatpush1.bf16.msra.mxu0 %v5313
      %5335 = vmatprep.subr.bf16.mxu0 0
      %5336 = vmatpush1.bf16.msra.mxu0 %v5314
      %5337 = vmatprep.subr.bf16.mxu0 0
      %5338 = vmatpush1.bf16.msra.mxu0 %v5315
      %5339 = vmatprep.subr.bf16.mxu0 0
      %5340 = vmatpush1.bf16.msra.mxu0 %v5316
      %5341 = vmatprep.subr.bf16.mxu0 0
      %5342 = vmatpush1.bf16.msra.mxu0 0
      %5343 = vmatprep.subr.bf16.mxu0 0
      %5344 = vmatpush1.bf16.msra.mxu0 0
      %5345 = vmatprep.subr.bf16.mxu0 0
      %5346 = vmatpush1.bf16.msra.mxu0 0
      %5347 = vmatprep.subr.bf16.mxu0 0
      %5348 = vmatpush1.bf16.msra.mxu0 0
      %5349 = vmatprep.subr.bf16.mxu0 0
      %5350 = vmatpush1.bf16.msra.mxu0 0
      %5351 = vmatprep.subr.bf16.mxu0 0
      %5352 = vmatpush1.bf16.msra.mxu0 0
      %5353 = vmatprep.subr.bf16.mxu0 0
      %5354 = vmatpush1.bf16.msra.mxu0 0
      %5355 = vmatprep.subr.bf16.mxu0 0
      %5356 = vmatpush1.bf16.msra.mxu0 0
      %5357 = vmatprep.mubr.bf16.mxu0 0
      %5358 = vmatmul.mubr.bf16.gmra.mrb[0].mxu0 %v3435
      %v5359 = vpop.f32.mrb[0].mxu0
      %v5360 = vadd.f32 0.0, %v5359
      %v5361 = vpop.f32.mrb[0].mxu0
      %v5362 = vpop.f32.mrb[0].mxu0
      %v5363 = vadd.f32 0.0, %v5362
      %v5364 = vpop.f32.mrb[0].mxu0
      %5365 = vmatprep.mubr.bf16.mxu0 0
      %5366 = vmatmul.mubr.bf16.gmra.mrb[0].mxu0 %v3436
      %v5367 = vpop.f32.mrb[0].mxu0
      %v5368 = vadd.f32 0.0, %v5367
      %v5369 = vpop.f32.mrb[0].mxu0
      %v5370 = vpop.f32.mrb[0].mxu0
      %v5371 = vadd.f32 0.0, %v5370
      %v5372 = vpop.f32.mrb[0].mxu0
      %5373 = vmatprep.mubr.bf16.mxu0 0
      %5374 = vmatmul.mubr.bf16.gmra.mrb[0].mxu0 %v3437
      %v5375 = vpop.f32.mrb[0].mxu0
      %v5376 = vadd.f32 0.0, %v5375
      %v5377 = vpop.f32.mrb[0].mxu0
      %v5378 = vpop.f32.mrb[0].mxu0
      %v5379 = vadd.f32 0.0, %v5378
      %v5380 = vpop.f32.mrb[0].mxu0
      %5381 = vmatprep.mubr.bf16.mxu0 0
      %5382 = vmatmul.mubr.bf16.gmra.mrb[0].mxu0 %v3438
      %v5383 = vpop.f32.mrb[0].mxu0
      %v5384 = vadd.f32 0.0, %v5383
      %v5385 = vpop.f32.mrb[0].mxu0
      %v5386 = vpop.f32.mrb[0].mxu0
      %v5387 = vadd.f32 0.0, %v5386
      %v5388 = vpop.f32.mrb[0].mxu0
      %5389 = vdwg.mxu0
      %v5390 = vadd.f32 %v5252, %v5360
      %v5391 = vadd.f32 %v5253, %v5363
      %v5392 = vadd.f32 %v5254, %v5368
      %v5393 = vadd.f32 %v5255, %v5371
      %v5394 = vadd.f32 %v5256, %v5376
      %v5395 = vadd.f32 %v5257, %v5379
      %v5396 = vadd.f32 %v5258, %v5384
      %v5397 = vadd.f32 %v5259, %v5387
      %s5398 = scalar_lea.vmem %s4, 896
      %v5399 = vld [vmem:[%s5398] sm:$0xf]
      %v5400 = vld [vmem:[%s5398 + $0x4] sm:$0xf]
      %v5401 = vld [vmem:[%s5398 + $0x8] sm:$0xf]
      %v5402 = vld [vmem:[%s5398 + $0xc] sm:$0xf]
      %v5403 = vld [vmem:[%s5398 + $0x10] sm:$0xf]
      %v5404 = vld [vmem:[%s5398 + $0x14] sm:$0xf]
      %v5405 = vld [vmem:[%s5398 + $0x18] sm:$0xf]
      %v5406 = vld [vmem:[%s5398 + $0x1c] sm:$0xf]
      %v5407 = vld [vmem:[%s5398 + $0x20] sm:$0xf]
      %v5408 = vld [vmem:[%s5398 + $0x24] sm:$0xf]
      %v5409 = vld [vmem:[%s5398 + $0x28] sm:$0xf]
      %v5410 = vld [vmem:[%s5398 + $0x2c] sm:$0xf]
      %v5411 = vld [vmem:[%s5398 + $0x30] sm:$0xf]
      %v5412 = vld [vmem:[%s5398 + $0x34] sm:$0xf]
      %v5413 = vld [vmem:[%s5398 + $0x38] sm:$0xf]
      %v5414 = vld [vmem:[%s5398 + $0x3c] sm:$0xf]
      %v5431 = vunpack.c.l.b16 %v5399
      %v5432 = vunpack.c.l.b16 %v5400
      %v5433 = vunpack.c.l.b16 %v5401
      %v5434 = vunpack.c.l.b16 %v5402
      %v5435 = vunpack.c.l.b16 %v5403
      %v5436 = vunpack.c.l.b16 %v5404
      %v5437 = vunpack.c.l.b16 %v5405
      %v5438 = vunpack.c.l.b16 %v5406
      %v5439 = vunpack.c.l.b16 %v5407
      %v5440 = vunpack.c.l.b16 %v5408
      %v5441 = vunpack.c.l.b16 %v5409
      %v5442 = vunpack.c.l.b16 %v5410
      %v5443 = vunpack.c.l.b16 %v5411
      %v5444 = vunpack.c.l.b16 %v5412
      %v5445 = vunpack.c.l.b16 %v5413
      %v5446 = vunpack.c.l.b16 %v5414
      %v5447 = vpack.c.b16 %v5432, %v5431
      %v5448 = vpack.c.b16 %v5434, %v5433
      %v5449 = vpack.c.b16 %v5436, %v5435
      %v5450 = vpack.c.b16 %v5438, %v5437
      %v5451 = vpack.c.b16 %v5440, %v5439
      %v5452 = vpack.c.b16 %v5442, %v5441
      %v5453 = vpack.c.b16 %v5444, %v5443
      %v5454 = vpack.c.b16 %v5446, %v5445
      %5463 = vmatprep.subr.bf16.mxu0 0
      %5464 = vmatpush1.bf16.msra.mxu0 %v5447
      %5465 = vmatprep.subr.bf16.mxu0 0
      %5466 = vmatpush1.bf16.msra.mxu0 %v5448
      %5467 = vmatprep.subr.bf16.mxu0 0
      %5468 = vmatpush1.bf16.msra.mxu0 %v5449
      %5469 = vmatprep.subr.bf16.mxu0 0
      %5470 = vmatpush1.bf16.msra.mxu0 %v5450
      %5471 = vmatprep.subr.bf16.mxu0 0
      %5472 = vmatpush1.bf16.msra.mxu0 %v5451
      %5473 = vmatprep.subr.bf16.mxu0 0
      %5474 = vmatpush1.bf16.msra.mxu0 %v5452
      %5475 = vmatprep.subr.bf16.mxu0 0
      %5476 = vmatpush1.bf16.msra.mxu0 %v5453
      %5477 = vmatprep.subr.bf16.mxu0 0
      %5478 = vmatpush1.bf16.msra.mxu0 %v5454
      %5479 = vmatprep.subr.bf16.mxu0 0
      %5480 = vmatpush1.bf16.msra.mxu0 0
      %5481 = vmatprep.subr.bf16.mxu0 0
      %5482 = vmatpush1.bf16.msra.mxu0 0
      %5483 = vmatprep.subr.bf16.mxu0 0
      %5484 = vmatpush1.bf16.msra.mxu0 0
      %5485 = vmatprep.subr.bf16.mxu0 0
      %5486 = vmatpush1.bf16.msra.mxu0 0
      %5487 = vmatprep.subr.bf16.mxu0 0
      %5488 = vmatpush1.bf16.msra.mxu0 0
      %5489 = vmatprep.subr.bf16.mxu0 0
      %5490 = vmatpush1.bf16.msra.mxu0 0
      %5491 = vmatprep.subr.bf16.mxu0 0
      %5492 = vmatpush1.bf16.msra.mxu0 0
      %5493 = vmatprep.subr.bf16.mxu0 0
      %5494 = vmatpush1.bf16.msra.mxu0 0
      %5495 = vmatprep.mubr.bf16.mxu0 0
      %5496 = vmatmul.mubr.bf16.gmra.mrb[0].mxu0 %v3439
      %v5497 = vpop.f32.mrb[0].mxu0
      %v5498 = vadd.f32 0.0, %v5497
      %v5499 = vpop.f32.mrb[0].mxu0
      %v5500 = vpop.f32.mrb[0].mxu0
      %v5501 = vadd.f32 0.0, %v5500
      %v5502 = vpop.f32.mrb[0].mxu0
      %5503 = vmatprep.mubr.bf16.mxu0 0
      %5504 = vmatmul.mubr.bf16.gmra.mrb[0].mxu0 %v3440
      %v5505 = vpop.f32.mrb[0].mxu0
      %v5506 = vadd.f32 0.0, %v5505
      %v5507 = vpop.f32.mrb[0].mxu0
      %v5508 = vpop.f32.mrb[0].mxu0
      %v5509 = vadd.f32 0.0, %v5508
      %v5510 = vpop.f32.mrb[0].mxu0
      %5511 = vmatprep.mubr.bf16.mxu0 0
      %5512 = vmatmul.mubr.bf16.gmra.mrb[0].mxu0 %v3441
      %v5513 = vpop.f32.mrb[0].mxu0
      %v5514 = vadd.f32 0.0, %v5513
      %v5515 = vpop.f32.mrb[0].mxu0
      %v5516 = vpop.f32.mrb[0].mxu0
      %v5517 = vadd.f32 0.0, %v5516
      %v5518 = vpop.f32.mrb[0].mxu0
      %5519 = vmatprep.mubr.bf16.mxu0 0
      %5520 = vmatmul.mubr.bf16.gmra.mrb[0].mxu0 %v3442
      %v5521 = vpop.f32.mrb[0].mxu0
      %v5522 = vadd.f32 0.0, %v5521
      %v5523 = vpop.f32.mrb[0].mxu0
      %v5524 = vpop.f32.mrb[0].mxu0
      %v5525 = vadd.f32 0.0, %v5524
      %v5526 = vpop.f32.mrb[0].mxu0
      %5527 = vdwg.mxu0
      %v5528 = vadd.f32 %v5390, %v5498
      %v5529 = vadd.f32 %v5391, %v5501
      %v5530 = vadd.f32 %v5392, %v5506
      %v5531 = vadd.f32 %v5393, %v5509
      %v5532 = vadd.f32 %v5394, %v5514
      %v5533 = vadd.f32 %v5395, %v5517
      %v5534 = vadd.f32 %v5396, %v5522
      %v5535 = vadd.f32 %v5397, %v5525
      %s5536 = scalar_lea.vmem %s4, 960
      %v5537 = vld [vmem:[%s5536] sm:$0xf]
      %v5538 = vld [vmem:[%s5536 + $0x4] sm:$0xf]
      %v5539 = vld [vmem:[%s5536 + $0x8] sm:$0xf]
      %v5540 = vld [vmem:[%s5536 + $0xc] sm:$0xf]
      %v5541 = vld [vmem:[%s5536 + $0x10] sm:$0xf]
      %v5542 = vld [vmem:[%s5536 + $0x14] sm:$0xf]
      %v5543 = vld [vmem:[%s5536 + $0x18] sm:$0xf]
      %v5544 = vld [vmem:[%s5536 + $0x1c] sm:$0xf]
      %v5545 = vld [vmem:[%s5536 + $0x20] sm:$0xf]
      %v5546 = vld [vmem:[%s5536 + $0x24] sm:$0xf]
      %v5547 = vld [vmem:[%s5536 + $0x28] sm:$0xf]
      %v5548 = vld [vmem:[%s5536 + $0x2c] sm:$0xf]
      %v5549 = vld [vmem:[%s5536 + $0x30] sm:$0xf]
      %v5550 = vld [vmem:[%s5536 + $0x34] sm:$0xf]
      %v5551 = vld [vmem:[%s5536 + $0x38] sm:$0xf]
      %v5552 = vld [vmem:[%s5536 + $0x3c] sm:$0xf]
      %v5569 = vunpack.c.l.b16 %v5537
      %v5570 = vunpack.c.l.b16 %v5538
      %v5571 = vunpack.c.l.b16 %v5539
      %v5572 = vunpack.c.l.b16 %v5540
      %v5573 = vunpack.c.l.b16 %v5541
      %v5574 = vunpack.c.l.b16 %v5542
      %v5575 = vunpack.c.l.b16 %v5543
      %v5576 = vunpack.c.l.b16 %v5544
      %v5577 = vunpack.c.l.b16 %v5545
      %v5578 = vunpack.c.l.b16 %v5546
      %v5579 = vunpack.c.l.b16 %v5547
      %v5580 = vunpack.c.l.b16 %v5548
      %v5581 = vunpack.c.l.b16 %v5549
      %v5582 = vunpack.c.l.b16 %v5550
      %v5583 = vunpack.c.l.b16 %v5551
      %v5584 = vunpack.c.l.b16 %v5552
      %v5585 = vpack.c.b16 %v5570, %v5569
      %v5586 = vpack.c.b16 %v5572, %v5571
      %v5587 = vpack.c.b16 %v5574, %v5573
      %v5588 = vpack.c.b16 %v5576, %v5575
      %v5589 = vpack.c.b16 %v5578, %v5577
      %v5590 = vpack.c.b16 %v5580, %v5579
      %v5591 = vpack.c.b16 %v5582, %v5581
      %v5592 = vpack.c.b16 %v5584, %v5583
      %5601 = vmatprep.subr.bf16.mxu0 0
      %5602 = vmatpush1.bf16.msra.mxu0 %v5585
      %5603 = vmatprep.subr.bf16.mxu0 0
      %5604 = vmatpush1.bf16.msra.mxu0 %v5586
      %5605 = vmatprep.subr.bf16.mxu0 0
      %5606 = vmatpush1.bf16.msra.mxu0 %v5587
      %5607 = vmatprep.subr.bf16.mxu0 0
      %5608 = vmatpush1.bf16.msra.mxu0 %v5588
      %5609 = vmatprep.subr.bf16.mxu0 0
      %5610 = vmatpush1.bf16.msra.mxu0 %v5589
      %5611 = vmatprep.subr.bf16.mxu0 0
      %5612 = vmatpush1.bf16.msra.mxu0 %v5590
      %5613 = vmatprep.subr.bf16.mxu0 0
      %5614 = vmatpush1.bf16.msra.mxu0 %v5591
      %5615 = vmatprep.subr.bf16.mxu0 0
      %5616 = vmatpush1.bf16.msra.mxu0 %v5592
      %5617 = vmatprep.subr.bf16.mxu0 0
      %5618 = vmatpush1.bf16.msra.mxu0 0
      %5619 = vmatprep.subr.bf16.mxu0 0
      %5620 = vmatpush1.bf16.msra.mxu0 0
      %5621 = vmatprep.subr.bf16.mxu0 0
      %5622 = vmatpush1.bf16.msra.mxu0 0
      %5623 = vmatprep.subr.bf16.mxu0 0
      %5624 = vmatpush1.bf16.msra.mxu0 0
      %5625 = vmatprep.subr.bf16.mxu0 0
      %5626 = vmatpush1.bf16.msra.mxu0 0
      %5627 = vmatprep.subr.bf16.mxu0 0
      %5628 = vmatpush1.bf16.msra.mxu0 0
      %5629 = vmatprep.subr.bf16.mxu0 0
      %5630 = vmatpush1.bf16.msra.mxu0 0
      %5631 = vmatprep.subr.bf16.mxu0 0
      %5632 = vmatpush1.bf16.msra.mxu0 0
      %5633 = vmatprep.mubr.bf16.mxu0 0
      %5634 = vmatmul.mubr.bf16.gmra.mrb[0].mxu0 %v3443
      %v5635 = vpop.f32.mrb[0].mxu0
      %v5636 = vadd.f32 0.0, %v5635
      %v5637 = vpop.f32.mrb[0].mxu0
      %v5638 = vpop.f32.mrb[0].mxu0
      %v5639 = vadd.f32 0.0, %v5638
      %v5640 = vpop.f32.mrb[0].mxu0
      %5641 = vmatprep.mubr.bf16.mxu0 0
      %5642 = vmatmul.mubr.bf16.gmra.mrb[0].mxu0 %v3444
      %v5643 = vpop.f32.mrb[0].mxu0
      %v5644 = vadd.f32 0.0, %v5643
      %v5645 = vpop.f32.mrb[0].mxu0
      %v5646 = vpop.f32.mrb[0].mxu0
      %v5647 = vadd.f32 0.0, %v5646
      %v5648 = vpop.f32.mrb[0].mxu0
      %5649 = vmatprep.mubr.bf16.mxu0 0
      %5650 = vmatmul.mubr.bf16.gmra.mrb[0].mxu0 %v3445
      %v5651 = vpop.f32.mrb[0].mxu0
      %v5652 = vadd.f32 0.0, %v5651
      %v5653 = vpop.f32.mrb[0].mxu0
      %v5654 = vpop.f32.mrb[0].mxu0
      %v5655 = vadd.f32 0.0, %v5654
      %v5656 = vpop.f32.mrb[0].mxu0
      %5657 = vmatprep.mubr.bf16.mxu0 0
      %5658 = vmatmul.mubr.bf16.gmra.mrb[0].mxu0 %v3446
      %v5659 = vpop.f32.mrb[0].mxu0
      %v5660 = vadd.f32 0.0, %v5659
      %v5661 = vpop.f32.mrb[0].mxu0
      %v5662 = vpop.f32.mrb[0].mxu0
      %v5663 = vadd.f32 0.0, %v5662
      %v5664 = vpop.f32.mrb[0].mxu0
      %5665 = vdwg.mxu0
      %v5666 = vadd.f32 %v5528, %v5636
      %v5667 = vadd.f32 %v5529, %v5639
      %v5668 = vadd.f32 %v5530, %v5644
      %v5669 = vadd.f32 %v5531, %v5647
      %v5670 = vadd.f32 %v5532, %v5652
      %v5671 = vadd.f32 %v5533, %v5655
      %v5672 = vadd.f32 %v5534, %v5660
      %v5673 = vadd.f32 %v5535, %v5663
      %s5674 = scalar_lea.vmem %s4, 1024
      %v5675 = vld [vmem:[%s5674] sm:$0xf]
      %v5676 = vld [vmem:[%s5674 + $0x4] sm:$0xf]
      %v5677 = vld [vmem:[%s5674 + $0x8] sm:$0xf]
      %v5678 = vld [vmem:[%s5674 + $0xc] sm:$0xf]
      %v5679 = vld [vmem:[%s5674 + $0x10] sm:$0xf]
      %v5680 = vld [vmem:[%s5674 + $0x14] sm:$0xf]
      %v5681 = vld [vmem:[%s5674 + $0x18] sm:$0xf]
      %v5682 = vld [vmem:[%s5674 + $0x1c] sm:$0xf]
      %v5683 = vld [vmem:[%s5674 + $0x20] sm:$0xf]
      %v5684 = vld [vmem:[%s5674 + $0x24] sm:$0xf]
      %v5685 = vld [vmem:[%s5674 + $0x28] sm:$0xf]
      %v5686 = vld [vmem:[%s5674 + $0x2c] sm:$0xf]
      %v5687 = vld [vmem:[%s5674 + $0x30] sm:$0xf]
      %v5688 = vld [vmem:[%s5674 + $0x34] sm:$0xf]
      %v5689 = vld [vmem:[%s5674 + $0x38] sm:$0xf]
      %v5690 = vld [vmem:[%s5674 + $0x3c] sm:$0xf]
      %v5707 = vunpack.c.l.b16 %v5675
      %v5708 = vunpack.c.l.b16 %v5676
      %v5709 = vunpack.c.l.b16 %v5677
      %v5710 = vunpack.c.l.b16 %v5678
      %v5711 = vunpack.c.l.b16 %v5679
      %v5712 = vunpack.c.l.b16 %v5680
      %v5713 = vunpack.c.l.b16 %v5681
      %v5714 = vunpack.c.l.b16 %v5682
      %v5715 = vunpack.c.l.b16 %v5683
      %v5716 = vunpack.c.l.b16 %v5684
      %v5717 = vunpack.c.l.b16 %v5685
      %v5718 = vunpack.c.l.b16 %v5686
      %v5719 = vunpack.c.l.b16 %v5687
      %v5720 = vunpack.c.l.b16 %v5688
      %v5721 = vunpack.c.l.b16 %v5689
      %v5722 = vunpack.c.l.b16 %v5690
      %v5723 = vpack.c.b16 %v5708, %v5707
      %v5724 = vpack.c.b16 %v5710, %v5709
      %v5725 = vpack.c.b16 %v5712, %v5711
      %v5726 = vpack.c.b16 %v5714, %v5713
      %v5727 = vpack.c.b16 %v5716, %v5715
      %v5728 = vpack.c.b16 %v5718, %v5717
      %v5729 = vpack.c.b16 %v5720, %v5719
      %v5730 = vpack.c.b16 %v5722, %v5721
      %5739 = vmatprep.subr.bf16.mxu0 0
      %5740 = vmatpush1.bf16.msra.mxu0 %v5723
      %5741 = vmatprep.subr.bf16.mxu0 0
      %5742 = vmatpush1.bf16.msra.mxu0 %v5724
      %5743 = vmatprep.subr.bf16.mxu0 0
      %5744 = vmatpush1.bf16.msra.mxu0 %v5725
      %5745 = vmatprep.subr.bf16.mxu0 0
      %5746 = vmatpush1.bf16.msra.mxu0 %v5726
      %5747 = vmatprep.subr.bf16.mxu0 0
      %5748 = vmatpush1.bf16.msra.mxu0 %v5727
      %5749 = vmatprep.subr.bf16.mxu0 0
      %5750 = vmatpush1.bf16.msra.mxu0 %v5728
      %5751 = vmatprep.subr.bf16.mxu0 0
      %5752 = vmatpush1.bf16.msra.mxu0 %v5729
      %5753 = vmatprep.subr.bf16.mxu0 0
      %5754 = vmatpush1.bf16.msra.mxu0 %v5730
      %5755 = vmatprep.subr.bf16.mxu0 0
      %5756 = vmatpush1.bf16.msra.mxu0 0
      %5757 = vmatprep.subr.bf16.mxu0 0
      %5758 = vmatpush1.bf16.msra.mxu0 0
      %5759 = vmatprep.subr.bf16.mxu0 0
      %5760 = vmatpush1.bf16.msra.mxu0 0
      %5761 = vmatprep.subr.bf16.mxu0 0
      %5762 = vmatpush1.bf16.msra.mxu0 0
      %5763 = vmatprep.subr.bf16.mxu0 0
      %5764 = vmatpush1.bf16.msra.mxu0 0
      %5765 = vmatprep.subr.bf16.mxu0 0
      %5766 = vmatpush1.bf16.msra.mxu0 0
      %5767 = vmatprep.subr.bf16.mxu0 0
      %5768 = vmatpush1.bf16.msra.mxu0 0
      %5769 = vmatprep.subr.bf16.mxu0 0
      %5770 = vmatpush1.bf16.msra.mxu0 0
      %5771 = vmatprep.mubr.bf16.mxu0 0
      %5772 = vmatmul.mubr.bf16.gmra.mrb[0].mxu0 %v3447
      %v5773 = vpop.f32.mrb[0].mxu0
      %v5774 = vadd.f32 0.0, %v5773
      %v5775 = vpop.f32.mrb[0].mxu0
      %v5776 = vpop.f32.mrb[0].mxu0
      %v5777 = vadd.f32 0.0, %v5776
      %v5778 = vpop.f32.mrb[0].mxu0
      %5779 = vmatprep.mubr.bf16.mxu0 0
      %5780 = vmatmul.mubr.bf16.gmra.mrb[0].mxu0 %v3448
      %v5781 = vpop.f32.mrb[0].mxu0
      %v5782 = vadd.f32 0.0, %v5781
      %v5783 = vpop.f32.mrb[0].mxu0
      %v5784 = vpop.f32.mrb[0].mxu0
      %v5785 = vadd.f32 0.0, %v5784
      %v5786 = vpop.f32.mrb[0].mxu0
      %5787 = vmatprep.mubr.bf16.mxu0 0
      %5788 = vmatmul.mubr.bf16.gmra.mrb[0].mxu0 %v3449
      %v5789 = vpop.f32.mrb[0].mxu0
      %v5790 = vadd.f32 0.0, %v5789
      %v5791 = vpop.f32.mrb[0].mxu0
      %v5792 = vpop.f32.mrb[0].mxu0
      %v5793 = vadd.f32 0.0, %v5792
      %v5794 = vpop.f32.mrb[0].mxu0
      %5795 = vmatprep.mubr.bf16.mxu0 0
      %5796 = vmatmul.mubr.bf16.gmra.mrb[0].mxu0 %v3450
      %v5797 = vpop.f32.mrb[0].mxu0
      %v5798 = vadd.f32 0.0, %v5797
      %v5799 = vpop.f32.mrb[0].mxu0
      %v5800 = vpop.f32.mrb[0].mxu0
      %v5801 = vadd.f32 0.0, %v5800
      %v5802 = vpop.f32.mrb[0].mxu0
      %5803 = vdwg.mxu0
      %v5804 = vadd.f32 %v5666, %v5774
      %v5805 = vadd.f32 %v5667, %v5777
      %v5806 = vadd.f32 %v5668, %v5782
      %v5807 = vadd.f32 %v5669, %v5785
      %v5808 = vadd.f32 %v5670, %v5790
      %v5809 = vadd.f32 %v5671, %v5793
      %v5810 = vadd.f32 %v5672, %v5798
      %v5811 = vadd.f32 %v5673, %v5801
      %s5812 = scalar_lea.vmem %s4, 1088
      %v5813 = vld [vmem:[%s5812] sm:$0xf]
      %v5814 = vld [vmem:[%s5812 + $0x4] sm:$0xf]
      %v5815 = vld [vmem:[%s5812 + $0x8] sm:$0xf]
      %v5816 = vld [vmem:[%s5812 + $0xc] sm:$0xf]
      %v5817 = vld [vmem:[%s5812 + $0x10] sm:$0xf]
      %v5818 = vld [vmem:[%s5812 + $0x14] sm:$0xf]
      %v5819 = vld [vmem:[%s5812 + $0x18] sm:$0xf]
      %v5820 = vld [vmem:[%s5812 + $0x1c] sm:$0xf]
      %v5821 = vld [vmem:[%s5812 + $0x20] sm:$0xf]
      %v5822 = vld [vmem:[%s5812 + $0x24] sm:$0xf]
      %v5823 = vld [vmem:[%s5812 + $0x28] sm:$0xf]
      %v5824 = vld [vmem:[%s5812 + $0x2c] sm:$0xf]
      %v5825 = vld [vmem:[%s5812 + $0x30] sm:$0xf]
      %v5826 = vld [vmem:[%s5812 + $0x34] sm:$0xf]
      %v5827 = vld [vmem:[%s5812 + $0x38] sm:$0xf]
      %v5828 = vld [vmem:[%s5812 + $0x3c] sm:$0xf]
      %v5845 = vunpack.c.l.b16 %v5813
      %v5846 = vunpack.c.l.b16 %v5814
      %v5847 = vunpack.c.l.b16 %v5815
      %v5848 = vunpack.c.l.b16 %v5816
      %v5849 = vunpack.c.l.b16 %v5817
      %v5850 = vunpack.c.l.b16 %v5818
      %v5851 = vunpack.c.l.b16 %v5819
      %v5852 = vunpack.c.l.b16 %v5820
      %v5853 = vunpack.c.l.b16 %v5821
      %v5854 = vunpack.c.l.b16 %v5822
      %v5855 = vunpack.c.l.b16 %v5823
      %v5856 = vunpack.c.l.b16 %v5824
      %v5857 = vunpack.c.l.b16 %v5825
      %v5858 = vunpack.c.l.b16 %v5826
      %v5859 = vunpack.c.l.b16 %v5827
      %v5860 = vunpack.c.l.b16 %v5828
      %v5861 = vpack.c.b16 %v5846, %v5845
      %v5862 = vpack.c.b16 %v5848, %v5847
      %v5863 = vpack.c.b16 %v5850, %v5849
      %v5864 = vpack.c.b16 %v5852, %v5851
      %v5865 = vpack.c.b16 %v5854, %v5853
      %v5866 = vpack.c.b16 %v5856, %v5855
      %v5867 = vpack.c.b16 %v5858, %v5857
      %v5868 = vpack.c.b16 %v5860, %v5859
      %5877 = vmatprep.subr.bf16.mxu0 0
      %5878 = vmatpush1.bf16.msra.mxu0 %v5861
      %5879 = vmatprep.subr.bf16.mxu0 0
      %5880 = vmatpush1.bf16.msra.mxu0 %v5862
      %5881 = vmatprep.subr.bf16.mxu0 0
      %5882 = vmatpush1.bf16.msra.mxu0 %v5863
      %5883 = vmatprep.subr.bf16.mxu0 0
      %5884 = vmatpush1.bf16.msra.mxu0 %v5864
      %5885 = vmatprep.subr.bf16.mxu0 0
      %5886 = vmatpush1.bf16.msra.mxu0 %v5865
      %5887 = vmatprep.subr.bf16.mxu0 0
      %5888 = vmatpush1.bf16.msra.mxu0 %v5866
      %5889 = vmatprep.subr.bf16.mxu0 0
      %5890 = vmatpush1.bf16.msra.mxu0 %v5867
      %5891 = vmatprep.subr.bf16.mxu0 0
      %5892 = vmatpush1.bf16.msra.mxu0 %v5868
      %5893 = vmatprep.subr.bf16.mxu0 0
      %5894 = vmatpush1.bf16.msra.mxu0 0
      %5895 = vmatprep.subr.bf16.mxu0 0
      %5896 = vmatpush1.bf16.msra.mxu0 0
      %5897 = vmatprep.subr.bf16.mxu0 0
      %5898 = vmatpush1.bf16.msra.mxu0 0
      %5899 = vmatprep.subr.bf16.mxu0 0
      %5900 = vmatpush1.bf16.msra.mxu0 0
      %5901 = vmatprep.subr.bf16.mxu0 0
      %5902 = vmatpush1.bf16.msra.mxu0 0
      %5903 = vmatprep.subr.bf16.mxu0 0
      %5904 = vmatpush1.bf16.msra.mxu0 0
      %5905 = vmatprep.subr.bf16.mxu0 0
      %5906 = vmatpush1.bf16.msra.mxu0 0
      %5907 = vmatprep.subr.bf16.mxu0 0
      %5908 = vmatpush1.bf16.msra.mxu0 0
      %5909 = vmatprep.mubr.bf16.mxu0 0
      %5910 = vmatmul.mubr.bf16.gmra.mrb[0].mxu0 %v3451
      %v5911 = vpop.f32.mrb[0].mxu0
      %v5912 = vadd.f32 0.0, %v5911
      %v5913 = vpop.f32.mrb[0].mxu0
      %v5914 = vpop.f32.mrb[0].mxu0
      %v5915 = vadd.f32 0.0, %v5914
      %v5916 = vpop.f32.mrb[0].mxu0
      %5917 = vmatprep.mubr.bf16.mxu0 0
      %5918 = vmatmul.mubr.bf16.gmra.mrb[0].mxu0 %v3452
      %v5919 = vpop.f32.mrb[0].mxu0
      %v5920 = vadd.f32 0.0, %v5919
      %v5921 = vpop.f32.mrb[0].mxu0
      %v5922 = vpop.f32.mrb[0].mxu0
      %v5923 = vadd.f32 0.0, %v5922
      %v5924 = vpop.f32.mrb[0].mxu0
      %5925 = vmatprep.mubr.bf16.mxu0 0
      %5926 = vmatmul.mubr.bf16.gmra.mrb[0].mxu0 %v3453
      %v5927 = vpop.f32.mrb[0].mxu0
      %v5928 = vadd.f32 0.0, %v5927
      %v5929 = vpop.f32.mrb[0].mxu0
      %v5930 = vpop.f32.mrb[0].mxu0
      %v5931 = vadd.f32 0.0, %v5930
      %v5932 = vpop.f32.mrb[0].mxu0
      %5933 = vmatprep.mubr.bf16.mxu0 0
      %5934 = vmatmul.mubr.bf16.gmra.mrb[0].mxu0 %v3454
      %v5935 = vpop.f32.mrb[0].mxu0
      %v5936 = vadd.f32 0.0, %v5935
      %v5937 = vpop.f32.mrb[0].mxu0
      %v5938 = vpop.f32.mrb[0].mxu0
      %v5939 = vadd.f32 0.0, %v5938
      %v5940 = vpop.f32.mrb[0].mxu0
      %5941 = vdwg.mxu0
      %v5942 = vadd.f32 %v5804, %v5912
      %v5943 = vadd.f32 %v5805, %v5915
      %v5944 = vadd.f32 %v5806, %v5920
      %v5945 = vadd.f32 %v5807, %v5923
      %v5946 = vadd.f32 %v5808, %v5928
      %v5947 = vadd.f32 %v5809, %v5931
      %v5948 = vadd.f32 %v5810, %v5936
      %v5949 = vadd.f32 %v5811, %v5939
      %s5950 = scalar_lea.vmem %s4, 1152
      %v5951 = vld [vmem:[%s5950] sm:$0xf]
      %v5952 = vld [vmem:[%s5950 + $0x4] sm:$0xf]
      %v5953 = vld [vmem:[%s5950 + $0x8] sm:$0xf]
      %v5954 = vld [vmem:[%s5950 + $0xc] sm:$0xf]
      %v5955 = vld [vmem:[%s5950 + $0x10] sm:$0xf]
      %v5956 = vld [vmem:[%s5950 + $0x14] sm:$0xf]
      %v5957 = vld [vmem:[%s5950 + $0x18] sm:$0xf]
      %v5958 = vld [vmem:[%s5950 + $0x1c] sm:$0xf]
      %v5959 = vld [vmem:[%s5950 + $0x20] sm:$0xf]
      %v5960 = vld [vmem:[%s5950 + $0x24] sm:$0xf]
      %v5961 = vld [vmem:[%s5950 + $0x28] sm:$0xf]
      %v5962 = vld [vmem:[%s5950 + $0x2c] sm:$0xf]
      %v5963 = vld [vmem:[%s5950 + $0x30] sm:$0xf]
      %v5964 = vld [vmem:[%s5950 + $0x34] sm:$0xf]
      %v5965 = vld [vmem:[%s5950 + $0x38] sm:$0xf]
      %v5966 = vld [vmem:[%s5950 + $0x3c] sm:$0xf]
      %v5983 = vunpack.c.l.b16 %v5951
      %v5984 = vunpack.c.l.b16 %v5952
      %v5985 = vunpack.c.l.b16 %v5953
      %v5986 = vunpack.c.l.b16 %v5954
      %v5987 = vunpack.c.l.b16 %v5955
      %v5988 = vunpack.c.l.b16 %v5956
      %v5989 = vunpack.c.l.b16 %v5957
      %v5990 = vunpack.c.l.b16 %v5958
      %v5991 = vunpack.c.l.b16 %v5959
      %v5992 = vunpack.c.l.b16 %v5960
      %v5993 = vunpack.c.l.b16 %v5961
      %v5994 = vunpack.c.l.b16 %v5962
      %v5995 = vunpack.c.l.b16 %v5963
      %v5996 = vunpack.c.l.b16 %v5964
      %v5997 = vunpack.c.l.b16 %v5965
      %v5998 = vunpack.c.l.b16 %v5966
      %v5999 = vpack.c.b16 %v5984, %v5983
      %v6000 = vpack.c.b16 %v5986, %v5985
      %v6001 = vpack.c.b16 %v5988, %v5987
      %v6002 = vpack.c.b16 %v5990, %v5989
      %v6003 = vpack.c.b16 %v5992, %v5991
      %v6004 = vpack.c.b16 %v5994, %v5993
      %v6005 = vpack.c.b16 %v5996, %v5995
      %v6006 = vpack.c.b16 %v5998, %v5997
      %6015 = vmatprep.subr.bf16.mxu0 0
      %6016 = vmatpush1.bf16.msra.mxu0 %v5999
      %6017 = vmatprep.subr.bf16.mxu0 0
      %6018 = vmatpush1.bf16.msra.mxu0 %v6000
      %6019 = vmatprep.subr.bf16.mxu0 0
      %6020 = vmatpush1.bf16.msra.mxu0 %v6001
      %6021 = vmatprep.subr.bf16.mxu0 0
      %6022 = vmatpush1.bf16.msra.mxu0 %v6002
      %6023 = vmatprep.subr.bf16.mxu0 0
      %6024 = vmatpush1.bf16.msra.mxu0 %v6003
      %6025 = vmatprep.subr.bf16.mxu0 0
      %6026 = vmatpush1.bf16.msra.mxu0 %v6004
      %6027 = vmatprep.subr.bf16.mxu0 0
      %6028 = vmatpush1.bf16.msra.mxu0 %v6005
      %6029 = vmatprep.subr.bf16.mxu0 0
      %6030 = vmatpush1.bf16.msra.mxu0 %v6006
      %6031 = vmatprep.subr.bf16.mxu0 0
      %6032 = vmatpush1.bf16.msra.mxu0 0
      %6033 = vmatprep.subr.bf16.mxu0 0
      %6034 = vmatpush1.bf16.msra.mxu0 0
      %6035 = vmatprep.subr.bf16.mxu0 0
      %6036 = vmatpush1.bf16.msra.mxu0 0
      %6037 = vmatprep.subr.bf16.mxu0 0
      %6038 = vmatpush1.bf16.msra.mxu0 0
      %6039 = vmatprep.subr.bf16.mxu0 0
      %6040 = vmatpush1.bf16.msra.mxu0 0
      %6041 = vmatprep.subr.bf16.mxu0 0
      %6042 = vmatpush1.bf16.msra.mxu0 0
      %6043 = vmatprep.subr.bf16.mxu0 0
      %6044 = vmatpush1.bf16.msra.mxu0 0
      %6045 = vmatprep.subr.bf16.mxu0 0
      %6046 = vmatpush1.bf16.msra.mxu0 0
      %6047 = vmatprep.mubr.bf16.mxu0 0
      %6048 = vmatmul.mubr.bf16.gmra.mrb[0].mxu0 %v3455
      %v6049 = vpop.f32.mrb[0].mxu0
      %v6050 = vadd.f32 0.0, %v6049
      %v6051 = vpop.f32.mrb[0].mxu0
      %v6052 = vpop.f32.mrb[0].mxu0
      %v6053 = vadd.f32 0.0, %v6052
      %v6054 = vpop.f32.mrb[0].mxu0
      %6055 = vmatprep.mubr.bf16.mxu0 0
      %6056 = vmatmul.mubr.bf16.gmra.mrb[0].mxu0 %v3456
      %v6057 = vpop.f32.mrb[0].mxu0
      %v6058 = vadd.f32 0.0, %v6057
      %v6059 = vpop.f32.mrb[0].mxu0
      %v6060 = vpop.f32.mrb[0].mxu0
      %v6061 = vadd.f32 0.0, %v6060
      %v6062 = vpop.f32.mrb[0].mxu0
      %6063 = vmatprep.mubr.bf16.mxu0 0
      %6064 = vmatmul.mubr.bf16.gmra.mrb[0].mxu0 %v3457
      %v6065 = vpop.f32.mrb[0].mxu0
      %v6066 = vadd.f32 0.0, %v6065
      %v6067 = vpop.f32.mrb[0].mxu0
      %v6068 = vpop.f32.mrb[0].mxu0
      %v6069 = vadd.f32 0.0, %v6068
      %v6070 = vpop.f32.mrb[0].mxu0
      %6071 = vmatprep.mubr.bf16.mxu0 0
      %6072 = vmatmul.mubr.bf16.gmra.mrb[0].mxu0 %v3458
      %v6073 = vpop.f32.mrb[0].mxu0
      %v6074 = vadd.f32 0.0, %v6073
      %v6075 = vpop.f32.mrb[0].mxu0
      %v6076 = vpop.f32.mrb[0].mxu0
      %v6077 = vadd.f32 0.0, %v6076
      %v6078 = vpop.f32.mrb[0].mxu0
      %6079 = vdwg.mxu0
      %v6080 = vadd.f32 %v5942, %v6050
      %v6081 = vadd.f32 %v5943, %v6053
      %v6082 = vadd.f32 %v5944, %v6058
      %v6083 = vadd.f32 %v5945, %v6061
      %v6084 = vadd.f32 %v5946, %v6066
      %v6085 = vadd.f32 %v5947, %v6069
      %v6086 = vadd.f32 %v5948, %v6074
      %v6087 = vadd.f32 %v5949, %v6077
      %s6088 = scalar_lea.vmem %s4, 1216
      %v6089 = vld [vmem:[%s6088] sm:$0xf]
      %v6090 = vld [vmem:[%s6088 + $0x4] sm:$0xf]
      %v6091 = vld [vmem:[%s6088 + $0x8] sm:$0xf]
      %v6092 = vld [vmem:[%s6088 + $0xc] sm:$0xf]
      %v6093 = vld [vmem:[%s6088 + $0x10] sm:$0xf]
      %v6094 = vld [vmem:[%s6088 + $0x14] sm:$0xf]
      %v6095 = vld [vmem:[%s6088 + $0x18] sm:$0xf]
      %v6096 = vld [vmem:[%s6088 + $0x1c] sm:$0xf]
      %v6097 = vld [vmem:[%s6088 + $0x20] sm:$0xf]
      %v6098 = vld [vmem:[%s6088 + $0x24] sm:$0xf]
      %v6099 = vld [vmem:[%s6088 + $0x28] sm:$0xf]
      %v6100 = vld [vmem:[%s6088 + $0x2c] sm:$0xf]
      %v6101 = vld [vmem:[%s6088 + $0x30] sm:$0xf]
      %v6102 = vld [vmem:[%s6088 + $0x34] sm:$0xf]
      %v6103 = vld [vmem:[%s6088 + $0x38] sm:$0xf]
      %v6104 = vld [vmem:[%s6088 + $0x3c] sm:$0xf]
      %v6121 = vunpack.c.l.b16 %v6089
      %v6122 = vunpack.c.l.b16 %v6090
      %v6123 = vunpack.c.l.b16 %v6091
      %v6124 = vunpack.c.l.b16 %v6092
      %v6125 = vunpack.c.l.b16 %v6093
      %v6126 = vunpack.c.l.b16 %v6094
      %v6127 = vunpack.c.l.b16 %v6095
      %v6128 = vunpack.c.l.b16 %v6096
      %v6129 = vunpack.c.l.b16 %v6097
      %v6130 = vunpack.c.l.b16 %v6098
      %v6131 = vunpack.c.l.b16 %v6099
      %v6132 = vunpack.c.l.b16 %v6100
      %v6133 = vunpack.c.l.b16 %v6101
      %v6134 = vunpack.c.l.b16 %v6102
      %v6135 = vunpack.c.l.b16 %v6103
      %v6136 = vunpack.c.l.b16 %v6104
      %v6137 = vpack.c.b16 %v6122, %v6121
      %v6138 = vpack.c.b16 %v6124, %v6123
      %v6139 = vpack.c.b16 %v6126, %v6125
      %v6140 = vpack.c.b16 %v6128, %v6127
      %v6141 = vpack.c.b16 %v6130, %v6129
      %v6142 = vpack.c.b16 %v6132, %v6131
      %v6143 = vpack.c.b16 %v6134, %v6133
      %v6144 = vpack.c.b16 %v6136, %v6135
      %6153 = vmatprep.subr.bf16.mxu0 0
      %6154 = vmatpush1.bf16.msra.mxu0 %v6137
      %6155 = vmatprep.subr.bf16.mxu0 0
      %6156 = vmatpush1.bf16.msra.mxu0 %v6138
      %6157 = vmatprep.subr.bf16.mxu0 0
      %6158 = vmatpush1.bf16.msra.mxu0 %v6139
      %6159 = vmatprep.subr.bf16.mxu0 0
      %6160 = vmatpush1.bf16.msra.mxu0 %v6140
      %6161 = vmatprep.subr.bf16.mxu0 0
      %6162 = vmatpush1.bf16.msra.mxu0 %v6141
      %6163 = vmatprep.subr.bf16.mxu0 0
      %6164 = vmatpush1.bf16.msra.mxu0 %v6142
      %6165 = vmatprep.subr.bf16.mxu0 0
      %6166 = vmatpush1.bf16.msra.mxu0 %v6143
      %6167 = vmatprep.subr.bf16.mxu0 0
      %6168 = vmatpush1.bf16.msra.mxu0 %v6144
      %6169 = vmatprep.subr.bf16.mxu0 0
      %6170 = vmatpush1.bf16.msra.mxu0 0
      %6171 = vmatprep.subr.bf16.mxu0 0
      %6172 = vmatpush1.bf16.msra.mxu0 0
      %6173 = vmatprep.subr.bf16.mxu0 0
      %6174 = vmatpush1.bf16.msra.mxu0 0
      %6175 = vmatprep.subr.bf16.mxu0 0
      %6176 = vmatpush1.bf16.msra.mxu0 0
      %6177 = vmatprep.subr.bf16.mxu0 0
      %6178 = vmatpush1.bf16.msra.mxu0 0
      %6179 = vmatprep.subr.bf16.mxu0 0
      %6180 = vmatpush1.bf16.msra.mxu0 0
      %6181 = vmatprep.subr.bf16.mxu0 0
      %6182 = vmatpush1.bf16.msra.mxu0 0
      %6183 = vmatprep.subr.bf16.mxu0 0
      %6184 = vmatpush1.bf16.msra.mxu0 0
      %6185 = vmatprep.mubr.bf16.mxu0 0
      %6186 = vmatmul.mubr.bf16.gmra.mrb[0].mxu0 %v3459
      %v6187 = vpop.f32.mrb[0].mxu0
      %v6188 = vadd.f32 0.0, %v6187
      %v6189 = vpop.f32.mrb[0].mxu0
      %v6190 = vpop.f32.mrb[0].mxu0
      %v6191 = vadd.f32 0.0, %v6190
      %v6192 = vpop.f32.mrb[0].mxu0
      %6193 = vmatprep.mubr.bf16.mxu0 0
      %6194 = vmatmul.mubr.bf16.gmra.mrb[0].mxu0 %v3460
      %v6195 = vpop.f32.mrb[0].mxu0
      %v6196 = vadd.f32 0.0, %v6195
      %v6197 = vpop.f32.mrb[0].mxu0
      %v6198 = vpop.f32.mrb[0].mxu0
      %v6199 = vadd.f32 0.0, %v6198
      %v6200 = vpop.f32.mrb[0].mxu0
      %6201 = vmatprep.mubr.bf16.mxu0 0
      %6202 = vmatmul.mubr.bf16.gmra.mrb[0].mxu0 %v3461
      %v6203 = vpop.f32.mrb[0].mxu0
      %v6204 = vadd.f32 0.0, %v6203
      %v6205 = vpop.f32.mrb[0].mxu0
      %v6206 = vpop.f32.mrb[0].mxu0
      %v6207 = vadd.f32 0.0, %v6206
      %v6208 = vpop.f32.mrb[0].mxu0
      %6209 = vmatprep.mubr.bf16.mxu0 0
      %6210 = vmatmul.mubr.bf16.gmra.mrb[0].mxu0 %v3462
      %v6211 = vpop.f32.mrb[0].mxu0
      %v6212 = vadd.f32 0.0, %v6211
      %v6213 = vpop.f32.mrb[0].mxu0
      %v6214 = vpop.f32.mrb[0].mxu0
      %v6215 = vadd.f32 0.0, %v6214
      %v6216 = vpop.f32.mrb[0].mxu0
      %6217 = vdwg.mxu0
      %v6218 = vadd.f32 %v6080, %v6188
      %v6219 = vadd.f32 %v6081, %v6191
      %v6220 = vadd.f32 %v6082, %v6196
      %v6221 = vadd.f32 %v6083, %v6199
      %v6222 = vadd.f32 %v6084, %v6204
      %v6223 = vadd.f32 %v6085, %v6207
      %v6224 = vadd.f32 %v6086, %v6212
      %v6225 = vadd.f32 %v6087, %v6215
      %s6226 = scalar_lea.vmem %s4, 1280
      %v6227 = vld [vmem:[%s6226] sm:$0xf]
      %v6228 = vld [vmem:[%s6226 + $0x4] sm:$0xf]
      %v6229 = vld [vmem:[%s6226 + $0x8] sm:$0xf]
      %v6230 = vld [vmem:[%s6226 + $0xc] sm:$0xf]
      %v6231 = vld [vmem:[%s6226 + $0x10] sm:$0xf]
      %v6232 = vld [vmem:[%s6226 + $0x14] sm:$0xf]
      %v6233 = vld [vmem:[%s6226 + $0x18] sm:$0xf]
      %v6234 = vld [vmem:[%s6226 + $0x1c] sm:$0xf]
      %v6235 = vld [vmem:[%s6226 + $0x20] sm:$0xf]
      %v6236 = vld [vmem:[%s6226 + $0x24] sm:$0xf]
      %v6237 = vld [vmem:[%s6226 + $0x28] sm:$0xf]
      %v6238 = vld [vmem:[%s6226 + $0x2c] sm:$0xf]
      %v6239 = vld [vmem:[%s6226 + $0x30] sm:$0xf]
      %v6240 = vld [vmem:[%s6226 + $0x34] sm:$0xf]
      %v6241 = vld [vmem:[%s6226 + $0x38] sm:$0xf]
      %v6242 = vld [vmem:[%s6226 + $0x3c] sm:$0xf]
      %v6259 = vunpack.c.l.b16 %v6227
      %v6260 = vunpack.c.l.b16 %v6228
      %v6261 = vunpack.c.l.b16 %v6229
      %v6262 = vunpack.c.l.b16 %v6230
      %v6263 = vunpack.c.l.b16 %v6231
      %v6264 = vunpack.c.l.b16 %v6232
      %v6265 = vunpack.c.l.b16 %v6233
      %v6266 = vunpack.c.l.b16 %v6234
      %v6267 = vunpack.c.l.b16 %v6235
      %v6268 = vunpack.c.l.b16 %v6236
      %v6269 = vunpack.c.l.b16 %v6237
      %v6270 = vunpack.c.l.b16 %v6238
      %v6271 = vunpack.c.l.b16 %v6239
      %v6272 = vunpack.c.l.b16 %v6240
      %v6273 = vunpack.c.l.b16 %v6241
      %v6274 = vunpack.c.l.b16 %v6242
      %v6275 = vpack.c.b16 %v6260, %v6259
      %v6276 = vpack.c.b16 %v6262, %v6261
      %v6277 = vpack.c.b16 %v6264, %v6263
      %v6278 = vpack.c.b16 %v6266, %v6265
      %v6279 = vpack.c.b16 %v6268, %v6267
      %v6280 = vpack.c.b16 %v6270, %v6269
      %v6281 = vpack.c.b16 %v6272, %v6271
      %v6282 = vpack.c.b16 %v6274, %v6273
      %6291 = vmatprep.subr.bf16.mxu0 0
      %6292 = vmatpush1.bf16.msra.mxu0 %v6275
      %6293 = vmatprep.subr.bf16.mxu0 0
      %6294 = vmatpush1.bf16.msra.mxu0 %v6276
      %6295 = vmatprep.subr.bf16.mxu0 0
      %6296 = vmatpush1.bf16.msra.mxu0 %v6277
      %6297 = vmatprep.subr.bf16.mxu0 0
      %6298 = vmatpush1.bf16.msra.mxu0 %v6278
      %6299 = vmatprep.subr.bf16.mxu0 0
      %6300 = vmatpush1.bf16.msra.mxu0 %v6279
      %6301 = vmatprep.subr.bf16.mxu0 0
      %6302 = vmatpush1.bf16.msra.mxu0 %v6280
      %6303 = vmatprep.subr.bf16.mxu0 0
      %6304 = vmatpush1.bf16.msra.mxu0 %v6281
      %6305 = vmatprep.subr.bf16.mxu0 0
      %6306 = vmatpush1.bf16.msra.mxu0 %v6282
      %6307 = vmatprep.subr.bf16.mxu0 0
      %6308 = vmatpush1.bf16.msra.mxu0 0
      %6309 = vmatprep.subr.bf16.mxu0 0
      %6310 = vmatpush1.bf16.msra.mxu0 0
      %6311 = vmatprep.subr.bf16.mxu0 0
      %6312 = vmatpush1.bf16.msra.mxu0 0
      %6313 = vmatprep.subr.bf16.mxu0 0
      %6314 = vmatpush1.bf16.msra.mxu0 0
      %6315 = vmatprep.subr.bf16.mxu0 0
      %6316 = vmatpush1.bf16.msra.mxu0 0
      %6317 = vmatprep.subr.bf16.mxu0 0
      %6318 = vmatpush1.bf16.msra.mxu0 0
      %6319 = vmatprep.subr.bf16.mxu0 0
      %6320 = vmatpush1.bf16.msra.mxu0 0
      %6321 = vmatprep.subr.bf16.mxu0 0
      %6322 = vmatpush1.bf16.msra.mxu0 0
      %6323 = vmatprep.mubr.bf16.mxu0 0
      %6324 = vmatmul.mubr.bf16.gmra.mrb[0].mxu0 %v3463
      %v6325 = vpop.f32.mrb[0].mxu0
      %v6326 = vadd.f32 0.0, %v6325
      %v6327 = vpop.f32.mrb[0].mxu0
      %v6328 = vpop.f32.mrb[0].mxu0
      %v6329 = vadd.f32 0.0, %v6328
      %v6330 = vpop.f32.mrb[0].mxu0
      %6331 = vmatprep.mubr.bf16.mxu0 0
      %6332 = vmatmul.mubr.bf16.gmra.mrb[0].mxu0 %v3464
      %v6333 = vpop.f32.mrb[0].mxu0
      %v6334 = vadd.f32 0.0, %v6333
      %v6335 = vpop.f32.mrb[0].mxu0
      %v6336 = vpop.f32.mrb[0].mxu0
      %v6337 = vadd.f32 0.0, %v6336
      %v6338 = vpop.f32.mrb[0].mxu0
      %6339 = vmatprep.mubr.bf16.mxu0 0
      %6340 = vmatmul.mubr.bf16.gmra.mrb[0].mxu0 %v3465
      %v6341 = vpop.f32.mrb[0].mxu0
      %v6342 = vadd.f32 0.0, %v6341
      %v6343 = vpop.f32.mrb[0].mxu0
      %v6344 = vpop.f32.mrb[0].mxu0
      %v6345 = vadd.f32 0.0, %v6344
      %v6346 = vpop.f32.mrb[0].mxu0
      %6347 = vmatprep.mubr.bf16.mxu0 0
      %6348 = vmatmul.mubr.bf16.gmra.mrb[0].mxu0 %v3466
      %v6349 = vpop.f32.mrb[0].mxu0
      %v6350 = vadd.f32 0.0, %v6349
      %v6351 = vpop.f32.mrb[0].mxu0
      %v6352 = vpop.f32.mrb[0].mxu0
      %v6353 = vadd.f32 0.0, %v6352
      %v6354 = vpop.f32.mrb[0].mxu0
      %6355 = vdwg.mxu0
      %v6356 = vadd.f32 %v6218, %v6326
      %v6357 = vadd.f32 %v6219, %v6329
      %v6358 = vadd.f32 %v6220, %v6334
      %v6359 = vadd.f32 %v6221, %v6337
      %v6360 = vadd.f32 %v6222, %v6342
      %v6361 = vadd.f32 %v6223, %v6345
      %v6362 = vadd.f32 %v6224, %v6350
      %v6363 = vadd.f32 %v6225, %v6353
      %s6364 = scalar_lea.vmem %s4, 1344
      %v6365 = vld [vmem:[%s6364] sm:$0xf]
      %v6366 = vld [vmem:[%s6364 + $0x4] sm:$0xf]
      %v6367 = vld [vmem:[%s6364 + $0x8] sm:$0xf]
      %v6368 = vld [vmem:[%s6364 + $0xc] sm:$0xf]
      %v6369 = vld [vmem:[%s6364 + $0x10] sm:$0xf]
      %v6370 = vld [vmem:[%s6364 + $0x14] sm:$0xf]
      %v6371 = vld [vmem:[%s6364 + $0x18] sm:$0xf]
      %v6372 = vld [vmem:[%s6364 + $0x1c] sm:$0xf]
      %v6373 = vld [vmem:[%s6364 + $0x20] sm:$0xf]
      %v6374 = vld [vmem:[%s6364 + $0x24] sm:$0xf]
      %v6375 = vld [vmem:[%s6364 + $0x28] sm:$0xf]
      %v6376 = vld [vmem:[%s6364 + $0x2c] sm:$0xf]
      %v6377 = vld [vmem:[%s6364 + $0x30] sm:$0xf]
      %v6378 = vld [vmem:[%s6364 + $0x34] sm:$0xf]
      %v6379 = vld [vmem:[%s6364 + $0x38] sm:$0xf]
      %v6380 = vld [vmem:[%s6364 + $0x3c] sm:$0xf]
      %v6397 = vunpack.c.l.b16 %v6365
      %v6398 = vunpack.c.l.b16 %v6366
      %v6399 = vunpack.c.l.b16 %v6367
      %v6400 = vunpack.c.l.b16 %v6368
      %v6401 = vunpack.c.l.b16 %v6369
      %v6402 = vunpack.c.l.b16 %v6370
      %v6403 = vunpack.c.l.b16 %v6371
      %v6404 = vunpack.c.l.b16 %v6372
      %v6405 = vunpack.c.l.b16 %v6373
      %v6406 = vunpack.c.l.b16 %v6374
      %v6407 = vunpack.c.l.b16 %v6375
      %v6408 = vunpack.c.l.b16 %v6376
      %v6409 = vunpack.c.l.b16 %v6377
      %v6410 = vunpack.c.l.b16 %v6378
      %v6411 = vunpack.c.l.b16 %v6379
      %v6412 = vunpack.c.l.b16 %v6380
      %v6413 = vpack.c.b16 %v6398, %v6397
      %v6414 = vpack.c.b16 %v6400, %v6399
      %v6415 = vpack.c.b16 %v6402, %v6401
      %v6416 = vpack.c.b16 %v6404, %v6403
      %v6417 = vpack.c.b16 %v6406, %v6405
      %v6418 = vpack.c.b16 %v6408, %v6407
      %v6419 = vpack.c.b16 %v6410, %v6409
      %v6420 = vpack.c.b16 %v6412, %v6411
      %6429 = vmatprep.subr.bf16.mxu0 0
      %6430 = vmatpush1.bf16.msra.mxu0 %v6413
      %6431 = vmatprep.subr.bf16.mxu0 0
      %6432 = vmatpush1.bf16.msra.mxu0 %v6414
      %6433 = vmatprep.subr.bf16.mxu0 0
      %6434 = vmatpush1.bf16.msra.mxu0 %v6415
      %6435 = vmatprep.subr.bf16.mxu0 0
      %6436 = vmatpush1.bf16.msra.mxu0 %v6416
      %6437 = vmatprep.subr.bf16.mxu0 0
      %6438 = vmatpush1.bf16.msra.mxu0 %v6417
      %6439 = vmatprep.subr.bf16.mxu0 0
      %6440 = vmatpush1.bf16.msra.mxu0 %v6418
      %6441 = vmatprep.subr.bf16.mxu0 0
      %6442 = vmatpush1.bf16.msra.mxu0 %v6419
      %6443 = vmatprep.subr.bf16.mxu0 0
      %6444 = vmatpush1.bf16.msra.mxu0 %v6420
      %6445 = vmatprep.subr.bf16.mxu0 0
      %6446 = vmatpush1.bf16.msra.mxu0 0
      %6447 = vmatprep.subr.bf16.mxu0 0
      %6448 = vmatpush1.bf16.msra.mxu0 0
      %6449 = vmatprep.subr.bf16.mxu0 0
      %6450 = vmatpush1.bf16.msra.mxu0 0
      %6451 = vmatprep.subr.bf16.mxu0 0
      %6452 = vmatpush1.bf16.msra.mxu0 0
      %6453 = vmatprep.subr.bf16.mxu0 0
      %6454 = vmatpush1.bf16.msra.mxu0 0
      %6455 = vmatprep.subr.bf16.mxu0 0
      %6456 = vmatpush1.bf16.msra.mxu0 0
      %6457 = vmatprep.subr.bf16.mxu0 0
      %6458 = vmatpush1.bf16.msra.mxu0 0
      %6459 = vmatprep.subr.bf16.mxu0 0
      %6460 = vmatpush1.bf16.msra.mxu0 0
      %6461 = vmatprep.mubr.bf16.mxu0 0
      %6462 = vmatmul.mubr.bf16.gmra.mrb[0].mxu0 %v3467
      %v6463 = vpop.f32.mrb[0].mxu0
      %v6464 = vadd.f32 0.0, %v6463
      %v6465 = vpop.f32.mrb[0].mxu0
      %v6466 = vpop.f32.mrb[0].mxu0
      %v6467 = vadd.f32 0.0, %v6466
      %v6468 = vpop.f32.mrb[0].mxu0
      %6469 = vmatprep.mubr.bf16.mxu0 0
      %6470 = vmatmul.mubr.bf16.gmra.mrb[0].mxu0 %v3468
      %v6471 = vpop.f32.mrb[0].mxu0
      %v6472 = vadd.f32 0.0, %v6471
      %v6473 = vpop.f32.mrb[0].mxu0
      %v6474 = vpop.f32.mrb[0].mxu0
      %v6475 = vadd.f32 0.0, %v6474
      %v6476 = vpop.f32.mrb[0].mxu0
      %6477 = vmatprep.mubr.bf16.mxu0 0
      %6478 = vmatmul.mubr.bf16.gmra.mrb[0].mxu0 %v3469
      %v6479 = vpop.f32.mrb[0].mxu0
      %v6480 = vadd.f32 0.0, %v6479
      %v6481 = vpop.f32.mrb[0].mxu0
      %v6482 = vpop.f32.mrb[0].mxu0
      %v6483 = vadd.f32 0.0, %v6482
      %v6484 = vpop.f32.mrb[0].mxu0
      %6485 = vmatprep.mubr.bf16.mxu0 0
      %6486 = vmatmul.mubr.bf16.gmra.mrb[0].mxu0 %v3470
      %v6487 = vpop.f32.mrb[0].mxu0
      %v6488 = vadd.f32 0.0, %v6487
      %v6489 = vpop.f32.mrb[0].mxu0
      %v6490 = vpop.f32.mrb[0].mxu0
      %v6491 = vadd.f32 0.0, %v6490
      %v6492 = vpop.f32.mrb[0].mxu0
      %6493 = vdwg.mxu0
      %v6494 = vadd.f32 %v6356, %v6464
      %v6495 = vadd.f32 %v6357, %v6467
      %v6496 = vadd.f32 %v6358, %v6472
      %v6497 = vadd.f32 %v6359, %v6475
      %v6498 = vadd.f32 %v6360, %v6480
      %v6499 = vadd.f32 %v6361, %v6483
      %v6500 = vadd.f32 %v6362, %v6488
      %v6501 = vadd.f32 %v6363, %v6491
      %s6502 = scalar_lea.vmem %s4, 1408
      %v6503 = vld [vmem:[%s6502] sm:$0xf]
      %v6504 = vld [vmem:[%s6502 + $0x4] sm:$0xf]
      %v6505 = vld [vmem:[%s6502 + $0x8] sm:$0xf]
      %v6506 = vld [vmem:[%s6502 + $0xc] sm:$0xf]
      %v6507 = vld [vmem:[%s6502 + $0x10] sm:$0xf]
      %v6508 = vld [vmem:[%s6502 + $0x14] sm:$0xf]
      %v6509 = vld [vmem:[%s6502 + $0x18] sm:$0xf]
      %v6510 = vld [vmem:[%s6502 + $0x1c] sm:$0xf]
      %v6511 = vld [vmem:[%s6502 + $0x20] sm:$0xf]
      %v6512 = vld [vmem:[%s6502 + $0x24] sm:$0xf]
      %v6513 = vld [vmem:[%s6502 + $0x28] sm:$0xf]
      %v6514 = vld [vmem:[%s6502 + $0x2c] sm:$0xf]
      %v6515 = vld [vmem:[%s6502 + $0x30] sm:$0xf]
      %v6516 = vld [vmem:[%s6502 + $0x34] sm:$0xf]
      %v6517 = vld [vmem:[%s6502 + $0x38] sm:$0xf]
      %v6518 = vld [vmem:[%s6502 + $0x3c] sm:$0xf]
      %v6535 = vunpack.c.l.b16 %v6503
      %v6536 = vunpack.c.l.b16 %v6504
      %v6537 = vunpack.c.l.b16 %v6505
      %v6538 = vunpack.c.l.b16 %v6506
      %v6539 = vunpack.c.l.b16 %v6507
      %v6540 = vunpack.c.l.b16 %v6508
      %v6541 = vunpack.c.l.b16 %v6509
      %v6542 = vunpack.c.l.b16 %v6510
      %v6543 = vunpack.c.l.b16 %v6511
      %v6544 = vunpack.c.l.b16 %v6512
      %v6545 = vunpack.c.l.b16 %v6513
      %v6546 = vunpack.c.l.b16 %v6514
      %v6547 = vunpack.c.l.b16 %v6515
      %v6548 = vunpack.c.l.b16 %v6516
      %v6549 = vunpack.c.l.b16 %v6517
      %v6550 = vunpack.c.l.b16 %v6518
      %v6551 = vpack.c.b16 %v6536, %v6535
      %v6552 = vpack.c.b16 %v6538, %v6537
      %v6553 = vpack.c.b16 %v6540, %v6539
      %v6554 = vpack.c.b16 %v6542, %v6541
      %v6555 = vpack.c.b16 %v6544, %v6543
      %v6556 = vpack.c.b16 %v6546, %v6545
      %v6557 = vpack.c.b16 %v6548, %v6547
      %v6558 = vpack.c.b16 %v6550, %v6549
      %6567 = vmatprep.subr.bf16.mxu0 0
      %6568 = vmatpush1.bf16.msra.mxu0 %v6551
      %6569 = vmatprep.subr.bf16.mxu0 0
      %6570 = vmatpush1.bf16.msra.mxu0 %v6552
      %6571 = vmatprep.subr.bf16.mxu0 0
      %6572 = vmatpush1.bf16.msra.mxu0 %v6553
      %6573 = vmatprep.subr.bf16.mxu0 0
      %6574 = vmatpush1.bf16.msra.mxu0 %v6554
      %6575 = vmatprep.subr.bf16.mxu0 0
      %6576 = vmatpush1.bf16.msra.mxu0 %v6555
      %6577 = vmatprep.subr.bf16.mxu0 0
      %6578 = vmatpush1.bf16.msra.mxu0 %v6556
      %6579 = vmatprep.subr.bf16.mxu0 0
      %6580 = vmatpush1.bf16.msra.mxu0 %v6557
      %6581 = vmatprep.subr.bf16.mxu0 0
      %6582 = vmatpush1.bf16.msra.mxu0 %v6558
      %6583 = vmatprep.subr.bf16.mxu0 0
      %6584 = vmatpush1.bf16.msra.mxu0 0
      %6585 = vmatprep.subr.bf16.mxu0 0
      %6586 = vmatpush1.bf16.msra.mxu0 0
      %6587 = vmatprep.subr.bf16.mxu0 0
      %6588 = vmatpush1.bf16.msra.mxu0 0
      %6589 = vmatprep.subr.bf16.mxu0 0
      %6590 = vmatpush1.bf16.msra.mxu0 0
      %6591 = vmatprep.subr.bf16.mxu0 0
      %6592 = vmatpush1.bf16.msra.mxu0 0
      %6593 = vmatprep.subr.bf16.mxu0 0
      %6594 = vmatpush1.bf16.msra.mxu0 0
      %6595 = vmatprep.subr.bf16.mxu0 0
      %6596 = vmatpush1.bf16.msra.mxu0 0
      %6597 = vmatprep.subr.bf16.mxu0 0
      %6598 = vmatpush1.bf16.msra.mxu0 0
      %6599 = vmatprep.mubr.bf16.mxu0 0
      %6600 = vmatmul.mubr.bf16.gmra.mrb[0].mxu0 %v3471
      %v6601 = vpop.f32.mrb[0].mxu0
      %v6602 = vadd.f32 0.0, %v6601
      %v6603 = vpop.f32.mrb[0].mxu0
      %v6604 = vpop.f32.mrb[0].mxu0
      %v6605 = vadd.f32 0.0, %v6604
      %v6606 = vpop.f32.mrb[0].mxu0
      %6607 = vmatprep.mubr.bf16.mxu0 0
      %6608 = vmatmul.mubr.bf16.gmra.mrb[0].mxu0 %v3472
      %v6609 = vpop.f32.mrb[0].mxu0
      %v6610 = vadd.f32 0.0, %v6609
      %v6611 = vpop.f32.mrb[0].mxu0
      %v6612 = vpop.f32.mrb[0].mxu0
      %v6613 = vadd.f32 0.0, %v6612
      %v6614 = vpop.f32.mrb[0].mxu0
      %6615 = vmatprep.mubr.bf16.mxu0 0
      %6616 = vmatmul.mubr.bf16.gmra.mrb[0].mxu0 %v3473
      %v6617 = vpop.f32.mrb[0].mxu0
      %v6618 = vadd.f32 0.0, %v6617
      %v6619 = vpop.f32.mrb[0].mxu0
      %v6620 = vpop.f32.mrb[0].mxu0
      %v6621 = vadd.f32 0.0, %v6620
      %v6622 = vpop.f32.mrb[0].mxu0
      %6623 = vmatprep.mubr.bf16.mxu0 0
      %6624 = vmatmul.mubr.bf16.gmra.mrb[0].mxu0 %v3474
      %v6625 = vpop.f32.mrb[0].mxu0
      %v6626 = vadd.f32 0.0, %v6625
      %v6627 = vpop.f32.mrb[0].mxu0
      %v6628 = vpop.f32.mrb[0].mxu0
      %v6629 = vadd.f32 0.0, %v6628
      %v6630 = vpop.f32.mrb[0].mxu0
      %6631 = vdwg.mxu0
      %v6632 = vadd.f32 %v6494, %v6602
      %v6633 = vadd.f32 %v6495, %v6605
      %v6634 = vadd.f32 %v6496, %v6610
      %v6635 = vadd.f32 %v6497, %v6613
      %v6636 = vadd.f32 %v6498, %v6618
      %v6637 = vadd.f32 %v6499, %v6621
      %v6638 = vadd.f32 %v6500, %v6626
      %v6639 = vadd.f32 %v6501, %v6629
      %s6640 = scalar_lea.vmem %s4, 1472
      %v6641 = vld [vmem:[%s6640] sm:$0xf]
      %v6642 = vld [vmem:[%s6640 + $0x4] sm:$0xf]
      %v6643 = vld [vmem:[%s6640 + $0x8] sm:$0xf]
      %v6644 = vld [vmem:[%s6640 + $0xc] sm:$0xf]
      %v6645 = vld [vmem:[%s6640 + $0x10] sm:$0xf]
      %v6646 = vld [vmem:[%s6640 + $0x14] sm:$0xf]
      %v6647 = vld [vmem:[%s6640 + $0x18] sm:$0xf]
      %v6648 = vld [vmem:[%s6640 + $0x1c] sm:$0xf]
      %v6649 = vld [vmem:[%s6640 + $0x20] sm:$0xf]
      %v6650 = vld [vmem:[%s6640 + $0x24] sm:$0xf]
      %v6651 = vld [vmem:[%s6640 + $0x28] sm:$0xf]
      %v6652 = vld [vmem:[%s6640 + $0x2c] sm:$0xf]
      %v6653 = vld [vmem:[%s6640 + $0x30] sm:$0xf]
      %v6654 = vld [vmem:[%s6640 + $0x34] sm:$0xf]
      %v6655 = vld [vmem:[%s6640 + $0x38] sm:$0xf]
      %v6656 = vld [vmem:[%s6640 + $0x3c] sm:$0xf]
      %v6673 = vunpack.c.l.b16 %v6641
      %v6674 = vunpack.c.l.b16 %v6642
      %v6675 = vunpack.c.l.b16 %v6643
      %v6676 = vunpack.c.l.b16 %v6644
      %v6677 = vunpack.c.l.b16 %v6645
      %v6678 = vunpack.c.l.b16 %v6646
      %v6679 = vunpack.c.l.b16 %v6647
      %v6680 = vunpack.c.l.b16 %v6648
      %v6681 = vunpack.c.l.b16 %v6649
      %v6682 = vunpack.c.l.b16 %v6650
      %v6683 = vunpack.c.l.b16 %v6651
      %v6684 = vunpack.c.l.b16 %v6652
      %v6685 = vunpack.c.l.b16 %v6653
      %v6686 = vunpack.c.l.b16 %v6654
      %v6687 = vunpack.c.l.b16 %v6655
      %v6688 = vunpack.c.l.b16 %v6656
      %v6689 = vpack.c.b16 %v6674, %v6673
      %v6690 = vpack.c.b16 %v6676, %v6675
      %v6691 = vpack.c.b16 %v6678, %v6677
      %v6692 = vpack.c.b16 %v6680, %v6679
      %v6693 = vpack.c.b16 %v6682, %v6681
      %v6694 = vpack.c.b16 %v6684, %v6683
      %v6695 = vpack.c.b16 %v6686, %v6685
      %v6696 = vpack.c.b16 %v6688, %v6687
      %6705 = vmatprep.subr.bf16.mxu0 0
      %6706 = vmatpush1.bf16.msra.mxu0 %v6689
      %6707 = vmatprep.subr.bf16.mxu0 0
      %6708 = vmatpush1.bf16.msra.mxu0 %v6690
      %6709 = vmatprep.subr.bf16.mxu0 0
      %6710 = vmatpush1.bf16.msra.mxu0 %v6691
      %6711 = vmatprep.subr.bf16.mxu0 0
      %6712 = vmatpush1.bf16.msra.mxu0 %v6692
      %6713 = vmatprep.subr.bf16.mxu0 0
      %6714 = vmatpush1.bf16.msra.mxu0 %v6693
      %6715 = vmatprep.subr.bf16.mxu0 0
      %6716 = vmatpush1.bf16.msra.mxu0 %v6694
      %6717 = vmatprep.subr.bf16.mxu0 0
      %6718 = vmatpush1.bf16.msra.mxu0 %v6695
      %6719 = vmatprep.subr.bf16.mxu0 0
      %6720 = vmatpush1.bf16.msra.mxu0 %v6696
      %6721 = vmatprep.subr.bf16.mxu0 0
      %6722 = vmatpush1.bf16.msra.mxu0 0
      %6723 = vmatprep.subr.bf16.mxu0 0
      %6724 = vmatpush1.bf16.msra.mxu0 0
      %6725 = vmatprep.subr.bf16.mxu0 0
      %6726 = vmatpush1.bf16.msra.mxu0 0
      %6727 = vmatprep.subr.bf16.mxu0 0
      %6728 = vmatpush1.bf16.msra.mxu0 0
      %6729 = vmatprep.subr.bf16.mxu0 0
      %6730 = vmatpush1.bf16.msra.mxu0 0
      %6731 = vmatprep.subr.bf16.mxu0 0
      %6732 = vmatpush1.bf16.msra.mxu0 0
      %6733 = vmatprep.subr.bf16.mxu0 0
      %6734 = vmatpush1.bf16.msra.mxu0 0
      %6735 = vmatprep.subr.bf16.mxu0 0
      %6736 = vmatpush1.bf16.msra.mxu0 0
      %6737 = vmatprep.mubr.bf16.mxu0 0
      %6738 = vmatmul.mubr.bf16.gmra.mrb[0].mxu0 %v3475
      %v6739 = vpop.f32.mrb[0].mxu0
      %v6740 = vadd.f32 0.0, %v6739
      %v6741 = vpop.f32.mrb[0].mxu0
      %v6742 = vpop.f32.mrb[0].mxu0
      %v6743 = vadd.f32 0.0, %v6742
      %v6744 = vpop.f32.mrb[0].mxu0
      %6745 = vmatprep.mubr.bf16.mxu0 0
      %6746 = vmatmul.mubr.bf16.gmra.mrb[0].mxu0 %v3476
      %v6747 = vpop.f32.mrb[0].mxu0
      %v6748 = vadd.f32 0.0, %v6747
      %v6749 = vpop.f32.mrb[0].mxu0
      %v6750 = vpop.f32.mrb[0].mxu0
      %v6751 = vadd.f32 0.0, %v6750
      %v6752 = vpop.f32.mrb[0].mxu0
      %6753 = vmatprep.mubr.bf16.mxu0 0
      %6754 = vmatmul.mubr.bf16.gmra.mrb[0].mxu0 %v3477
      %v6755 = vpop.f32.mrb[0].mxu0
      %v6756 = vadd.f32 0.0, %v6755
      %v6757 = vpop.f32.mrb[0].mxu0
      %v6758 = vpop.f32.mrb[0].mxu0
      %v6759 = vadd.f32 0.0, %v6758
      %v6760 = vpop.f32.mrb[0].mxu0
      %6761 = vmatprep.mubr.bf16.mxu0 0
      %6762 = vmatmul.mubr.bf16.gmra.mrb[0].mxu0 %v3478
      %v6763 = vpop.f32.mrb[0].mxu0
      %v6764 = vadd.f32 0.0, %v6763
      %v6765 = vpop.f32.mrb[0].mxu0
      %v6766 = vpop.f32.mrb[0].mxu0
      %v6767 = vadd.f32 0.0, %v6766
      %v6768 = vpop.f32.mrb[0].mxu0
      %6769 = vdwg.mxu0
      %v6770 = vadd.f32 %v6632, %v6740
      %v6771 = vadd.f32 %v6633, %v6743
      %v6772 = vadd.f32 %v6634, %v6748
      %v6773 = vadd.f32 %v6635, %v6751
      %v6774 = vadd.f32 %v6636, %v6756
      %v6775 = vadd.f32 %v6637, %v6759
      %v6776 = vadd.f32 %v6638, %v6764
      %v6777 = vadd.f32 %v6639, %v6767
      %s6778 = scalar_lea.vmem %s4, 1536
      %v6779 = vld [vmem:[%s6778] sm:$0xf]
      %v6780 = vld [vmem:[%s6778 + $0x4] sm:$0xf]
      %v6781 = vld [vmem:[%s6778 + $0x8] sm:$0xf]
      %v6782 = vld [vmem:[%s6778 + $0xc] sm:$0xf]
      %v6783 = vld [vmem:[%s6778 + $0x10] sm:$0xf]
      %v6784 = vld [vmem:[%s6778 + $0x14] sm:$0xf]
      %v6785 = vld [vmem:[%s6778 + $0x18] sm:$0xf]
      %v6786 = vld [vmem:[%s6778 + $0x1c] sm:$0xf]
      %v6787 = vld [vmem:[%s6778 + $0x20] sm:$0xf]
      %v6788 = vld [vmem:[%s6778 + $0x24] sm:$0xf]
      %v6789 = vld [vmem:[%s6778 + $0x28] sm:$0xf]
      %v6790 = vld [vmem:[%s6778 + $0x2c] sm:$0xf]
      %v6791 = vld [vmem:[%s6778 + $0x30] sm:$0xf]
      %v6792 = vld [vmem:[%s6778 + $0x34] sm:$0xf]
      %v6793 = vld [vmem:[%s6778 + $0x38] sm:$0xf]
      %v6794 = vld [vmem:[%s6778 + $0x3c] sm:$0xf]
      %v6811 = vunpack.c.l.b16 %v6779
      %v6812 = vunpack.c.l.b16 %v6780
      %v6813 = vunpack.c.l.b16 %v6781
      %v6814 = vunpack.c.l.b16 %v6782
      %v6815 = vunpack.c.l.b16 %v6783
      %v6816 = vunpack.c.l.b16 %v6784
      %v6817 = vunpack.c.l.b16 %v6785
      %v6818 = vunpack.c.l.b16 %v6786
      %v6819 = vunpack.c.l.b16 %v6787
      %v6820 = vunpack.c.l.b16 %v6788
      %v6821 = vunpack.c.l.b16 %v6789
      %v6822 = vunpack.c.l.b16 %v6790
      %v6823 = vunpack.c.l.b16 %v6791
      %v6824 = vunpack.c.l.b16 %v6792
      %v6825 = vunpack.c.l.b16 %v6793
      %v6826 = vunpack.c.l.b16 %v6794
      %v6827 = vpack.c.b16 %v6812, %v6811
      %v6828 = vpack.c.b16 %v6814, %v6813
      %v6829 = vpack.c.b16 %v6816, %v6815
      %v6830 = vpack.c.b16 %v6818, %v6817
      %v6831 = vpack.c.b16 %v6820, %v6819
      %v6832 = vpack.c.b16 %v6822, %v6821
      %v6833 = vpack.c.b16 %v6824, %v6823
      %v6834 = vpack.c.b16 %v6826, %v6825
      %6843 = vmatprep.subr.bf16.mxu0 0
      %6844 = vmatpush1.bf16.msra.mxu0 %v6827
      %6845 = vmatprep.subr.bf16.mxu0 0
      %6846 = vmatpush1.bf16.msra.mxu0 %v6828
      %6847 = vmatprep.subr.bf16.mxu0 0
      %6848 = vmatpush1.bf16.msra.mxu0 %v6829
      %6849 = vmatprep.subr.bf16.mxu0 0
      %6850 = vmatpush1.bf16.msra.mxu0 %v6830
      %6851 = vmatprep.subr.bf16.mxu0 0
      %6852 = vmatpush1.bf16.msra.mxu0 %v6831
      %6853 = vmatprep.subr.bf16.mxu0 0
      %6854 = vmatpush1.bf16.msra.mxu0 %v6832
      %6855 = vmatprep.subr.bf16.mxu0 0
      %6856 = vmatpush1.bf16.msra.mxu0 %v6833
      %6857 = vmatprep.subr.bf16.mxu0 0
      %6858 = vmatpush1.bf16.msra.mxu0 %v6834
      %6859 = vmatprep.subr.bf16.mxu0 0
      %6860 = vmatpush1.bf16.msra.mxu0 0
      %6861 = vmatprep.subr.bf16.mxu0 0
      %6862 = vmatpush1.bf16.msra.mxu0 0
      %6863 = vmatprep.subr.bf16.mxu0 0
      %6864 = vmatpush1.bf16.msra.mxu0 0
      %6865 = vmatprep.subr.bf16.mxu0 0
      %6866 = vmatpush1.bf16.msra.mxu0 0
      %6867 = vmatprep.subr.bf16.mxu0 0
      %6868 = vmatpush1.bf16.msra.mxu0 0
      %6869 = vmatprep.subr.bf16.mxu0 0
      %6870 = vmatpush1.bf16.msra.mxu0 0
      %6871 = vmatprep.subr.bf16.mxu0 0
      %6872 = vmatpush1.bf16.msra.mxu0 0
      %6873 = vmatprep.subr.bf16.mxu0 0
      %6874 = vmatpush1.bf16.msra.mxu0 0
      %6875 = vmatprep.mubr.bf16.mxu0 0
      %6876 = vmatmul.mubr.bf16.gmra.mrb[0].mxu0 %v3479
      %v6877 = vpop.f32.mrb[0].mxu0
      %v6878 = vadd.f32 0.0, %v6877
      %v6879 = vpop.f32.mrb[0].mxu0
      %v6880 = vpop.f32.mrb[0].mxu0
      %v6881 = vadd.f32 0.0, %v6880
      %v6882 = vpop.f32.mrb[0].mxu0
      %6883 = vmatprep.mubr.bf16.mxu0 0
      %6884 = vmatmul.mubr.bf16.gmra.mrb[0].mxu0 %v3480
      %v6885 = vpop.f32.mrb[0].mxu0
      %v6886 = vadd.f32 0.0, %v6885
      %v6887 = vpop.f32.mrb[0].mxu0
      %v6888 = vpop.f32.mrb[0].mxu0
      %v6889 = vadd.f32 0.0, %v6888
      %v6890 = vpop.f32.mrb[0].mxu0
      %6891 = vmatprep.mubr.bf16.mxu0 0
      %6892 = vmatmul.mubr.bf16.gmra.mrb[0].mxu0 %v3481
      %v6893 = vpop.f32.mrb[0].mxu0
      %v6894 = vadd.f32 0.0, %v6893
      %v6895 = vpop.f32.mrb[0].mxu0
      %v6896 = vpop.f32.mrb[0].mxu0
      %v6897 = vadd.f32 0.0, %v6896
      %v6898 = vpop.f32.mrb[0].mxu0
      %6899 = vmatprep.mubr.bf16.mxu0 0
      %6900 = vmatmul.mubr.bf16.gmra.mrb[0].mxu0 %v3482
      %v6901 = vpop.f32.mrb[0].mxu0
      %v6902 = vadd.f32 0.0, %v6901
      %v6903 = vpop.f32.mrb[0].mxu0
      %v6904 = vpop.f32.mrb[0].mxu0
      %v6905 = vadd.f32 0.0, %v6904
      %v6906 = vpop.f32.mrb[0].mxu0
      %6907 = vdwg.mxu0
      %v6908 = vadd.f32 %v6770, %v6878
      %v6909 = vadd.f32 %v6771, %v6881
      %v6910 = vadd.f32 %v6772, %v6886
      %v6911 = vadd.f32 %v6773, %v6889
      %v6912 = vadd.f32 %v6774, %v6894
      %v6913 = vadd.f32 %v6775, %v6897
      %v6914 = vadd.f32 %v6776, %v6902
      %v6915 = vadd.f32 %v6777, %v6905
      %v6916 = vld [vmem:[%s5] sm:$0x1]
      %v6918 = vlaneseq
      %v6919 = vshrl.u32 %v6918, 7
      %v6920 = vsub.s32 0, %v6919
      %v6921 = vrot.slane %v6916, %v6920
      %v6923 = vadd.f32 %v6908, %v6921
      %v6924 = vadd.f32 %v6909, %v6921
      %v6925 = vadd.f32 %v6910, %v6921
      %v6926 = vadd.f32 %v6911, %v6921
      %v6927 = vadd.f32 %v6912, %v6921
      %v6928 = vadd.f32 %v6913, %v6921
      %v6929 = vadd.f32 %v6914, %v6921
      %v6930 = vadd.f32 %v6915, %v6921
      %v6931 = vmax.f32 %v6923, %v6925
      %v6932 = vmax.f32 %v6924, %v6926
      %v6933 = vmax.f32 %v6927, %v6929
      %v6934 = vmax.f32 %v6928, %v6930
      %v6935 = vmax.f32 %v6931, %v6933
      %v6936 = vmax.f32 %v6932, %v6934
      %v6937 = vmax.f32 %v6935, 0.0
      %v6938 = vmax.f32 %v6936, 0.0
      %v6939 = vpack.c.bf16 %v6938, %v6937
      %v6940 = vld [vmem:[%s6] sm:$0xf]
      %v6941 = vld [vmem:[%s6 + $0x4] sm:$0xf]
      %v6942 = vld [vmem:[%s6 + $0x8] sm:$0xf]
      %v6943 = vld [vmem:[%s6 + $0xc] sm:$0xf]
      %v6944 = vld [vmem:[%s6 + $0x10] sm:$0xf]
      %v6945 = vld [vmem:[%s6 + $0x14] sm:$0xf]
      %v6946 = vld [vmem:[%s6 + $0x18] sm:$0xf]
      %v6947 = vld [vmem:[%s6 + $0x1c] sm:$0xf]
      %v6948 = vld [vmem:[%s6 + $0x20] sm:$0xf]
      %v6949 = vld [vmem:[%s6 + $0x24] sm:$0xf]
      %v6950 = vld [vmem:[%s6 + $0x28] sm:$0xf]
      %v6951 = vld [vmem:[%s6 + $0x2c] sm:$0xf]
      %v6952 = vld [vmem:[%s6 + $0x30] sm:$0xf]
      %v6953 = vld [vmem:[%s6 + $0x34] sm:$0xf]
      %v6954 = vld [vmem:[%s6 + $0x38] sm:$0xf]
      %v6955 = vld [vmem:[%s6 + $0x3c] sm:$0xf]
      %s6956 = scalar_lea.vmem %s6, 64
      %v6957 = vld [vmem:[%s6956] sm:$0xf]
      %v6958 = vld [vmem:[%s6956 + $0x4] sm:$0xf]
      %v6959 = vld [vmem:[%s6956 + $0x8] sm:$0xf]
      %v6960 = vld [vmem:[%s6956 + $0xc] sm:$0xf]
      %v6961 = vld [vmem:[%s6956 + $0x10] sm:$0xf]
      %v6962 = vld [vmem:[%s6956 + $0x14] sm:$0xf]
      %v6963 = vld [vmem:[%s6956 + $0x18] sm:$0xf]
      %v6964 = vld [vmem:[%s6956 + $0x1c] sm:$0xf]
      %v6965 = vld [vmem:[%s6956 + $0x20] sm:$0xf]
      %v6966 = vld [vmem:[%s6956 + $0x24] sm:$0xf]
      %v6967 = vld [vmem:[%s6956 + $0x28] sm:$0xf]
      %v6968 = vld [vmem:[%s6956 + $0x2c] sm:$0xf]
      %v6969 = vld [vmem:[%s6956 + $0x30] sm:$0xf]
      %v6970 = vld [vmem:[%s6956 + $0x34] sm:$0xf]
      %v6971 = vld [vmem:[%s6956 + $0x38] sm:$0xf]
      %v6972 = vld [vmem:[%s6956 + $0x3c] sm:$0xf]
      %v6974 = vshrl.u32 %v6939, 16
      %v6993 = vunpack.c.l.b16 %v6957
      %v6994 = vunpack.c.l.b16 %v6958
      %v6995 = vunpack.c.l.b16 %v6959
      %v6996 = vunpack.c.l.b16 %v6960
      %v6997 = vunpack.c.l.b16 %v6961
      %v6998 = vunpack.c.l.b16 %v6962
      %v6999 = vunpack.c.l.b16 %v6963
      %v7000 = vunpack.c.l.b16 %v6964
      %v7001 = vunpack.c.l.b16 %v6965
      %v7002 = vunpack.c.l.b16 %v6966
      %v7003 = vunpack.c.l.b16 %v6967
      %v7004 = vunpack.c.l.b16 %v6968
      %v7005 = vunpack.c.l.b16 %v6969
      %v7006 = vunpack.c.l.b16 %v6970
      %v7007 = vunpack.c.l.b16 %v6971
      %v7008 = vunpack.c.l.b16 %v6972
      %v7009 = vpack.c.b16 %v6994, %v6993
      %v7010 = vpack.c.b16 %v6996, %v6995
      %v7011 = vpack.c.b16 %v6998, %v6997
      %v7012 = vpack.c.b16 %v7000, %v6999
      %v7013 = vpack.c.b16 %v7002, %v7001
      %v7014 = vpack.c.b16 %v7004, %v7003
      %v7015 = vpack.c.b16 %v7006, %v7005
      %v7016 = vpack.c.b16 %v7008, %v7007
      %7025 = vmatprep.subr.bf16.mxu0 0
      %7026 = vmatpush1.bf16.msra.mxu0 %v7009
      %7027 = vmatprep.subr.bf16.mxu0 0
      %7028 = vmatpush1.bf16.msra.mxu0 %v7010
      %7029 = vmatprep.subr.bf16.mxu0 0
      %7030 = vmatpush1.bf16.msra.mxu0 %v7011
      %7031 = vmatprep.subr.bf16.mxu0 0
      %7032 = vmatpush1.bf16.msra.mxu0 %v7012
      %7033 = vmatprep.subr.bf16.mxu0 0
      %7034 = vmatpush1.bf16.msra.mxu0 %v7013
      %7035 = vmatprep.subr.bf16.mxu0 0
      %7036 = vmatpush1.bf16.msra.mxu0 %v7014
      %7037 = vmatprep.subr.bf16.mxu0 0
      %7038 = vmatpush1.bf16.msra.mxu0 %v7015
      %7039 = vmatprep.subr.bf16.mxu0 0
      %7040 = vmatpush1.bf16.msra.mxu0 %v7016
      %7041 = vmatprep.subr.bf16.mxu0 0
      %7042 = vmatpush1.bf16.msra.mxu0 0
      %7043 = vmatprep.subr.bf16.mxu0 0
      %7044 = vmatpush1.bf16.msra.mxu0 0
      %7045 = vmatprep.subr.bf16.mxu0 0
      %7046 = vmatpush1.bf16.msra.mxu0 0
      %7047 = vmatprep.subr.bf16.mxu0 0
      %7048 = vmatpush1.bf16.msra.mxu0 0
      %7049 = vmatprep.subr.bf16.mxu0 0
      %7050 = vmatpush1.bf16.msra.mxu0 0
      %7051 = vmatprep.subr.bf16.mxu0 0
      %7052 = vmatpush1.bf16.msra.mxu0 0
      %7053 = vmatprep.subr.bf16.mxu0 0
      %7054 = vmatpush1.bf16.msra.mxu0 0
      %7055 = vmatprep.subr.bf16.mxu0 0
      %7056 = vmatpush1.bf16.msra.mxu0 0
      %7057 = vmatprep.mubr.bf16.mxu0 0
      %7058 = vmatmul.mubr.bf16.gmra.mrb[0].mxu0 %v6974
      %v7059 = vpop.f32.mrb[0].mxu0
      %v7060 = vadd.f32 0.0, %v7059
      %v7061 = vpop.f32.mrb[0].mxu0
      %v7062 = vpop.f32.mrb[0].mxu0
      %v7063 = vpop.f32.mrb[0].mxu0
      %7064 = vdwg.mxu0
      %v7081 = vunpack.c.l.b16 %v6940
      %v7082 = vunpack.c.l.b16 %v6941
      %v7083 = vunpack.c.l.b16 %v6942
      %v7084 = vunpack.c.l.b16 %v6943
      %v7085 = vunpack.c.l.b16 %v6944
      %v7086 = vunpack.c.l.b16 %v6945
      %v7087 = vunpack.c.l.b16 %v6946
      %v7088 = vunpack.c.l.b16 %v6947
      %v7089 = vunpack.c.l.b16 %v6948
      %v7090 = vunpack.c.l.b16 %v6949
      %v7091 = vunpack.c.l.b16 %v6950
      %v7092 = vunpack.c.l.b16 %v6951
      %v7093 = vunpack.c.l.b16 %v6952
      %v7094 = vunpack.c.l.b16 %v6953
      %v7095 = vunpack.c.l.b16 %v6954
      %v7096 = vunpack.c.l.b16 %v6955
      %v7097 = vpack.c.b16 %v7082, %v7081
      %v7098 = vpack.c.b16 %v7084, %v7083
      %v7099 = vpack.c.b16 %v7086, %v7085
      %v7100 = vpack.c.b16 %v7088, %v7087
      %v7101 = vpack.c.b16 %v7090, %v7089
      %v7102 = vpack.c.b16 %v7092, %v7091
      %v7103 = vpack.c.b16 %v7094, %v7093
      %v7104 = vpack.c.b16 %v7096, %v7095
      %7113 = vmatprep.subr.bf16.mxu0 0
      %7114 = vmatpush1.bf16.msra.mxu0 %v7097
      %7115 = vmatprep.subr.bf16.mxu0 0
      %7116 = vmatpush1.bf16.msra.mxu0 %v7098
      %7117 = vmatprep.subr.bf16.mxu0 0
      %7118 = vmatpush1.bf16.msra.mxu0 %v7099
      %7119 = vmatprep.subr.bf16.mxu0 0
      %7120 = vmatpush1.bf16.msra.mxu0 %v7100
      %7121 = vmatprep.subr.bf16.mxu0 0
      %7122 = vmatpush1.bf16.msra.mxu0 %v7101
      %7123 = vmatprep.subr.bf16.mxu0 0
      %7124 = vmatpush1.bf16.msra.mxu0 %v7102
      %7125 = vmatprep.subr.bf16.mxu0 0
      %7126 = vmatpush1.bf16.msra.mxu0 %v7103
      %7127 = vmatprep.subr.bf16.mxu0 0
      %7128 = vmatpush1.bf16.msra.mxu0 %v7104
      %7129 = vmatprep.subr.bf16.mxu0 0
      %7130 = vmatpush1.bf16.msra.mxu0 0
      %7131 = vmatprep.subr.bf16.mxu0 0
      %7132 = vmatpush1.bf16.msra.mxu0 0
      %7133 = vmatprep.subr.bf16.mxu0 0
      %7134 = vmatpush1.bf16.msra.mxu0 0
      %7135 = vmatprep.subr.bf16.mxu0 0
      %7136 = vmatpush1.bf16.msra.mxu0 0
      %7137 = vmatprep.subr.bf16.mxu0 0
      %7138 = vmatpush1.bf16.msra.mxu0 0
      %7139 = vmatprep.subr.bf16.mxu0 0
      %7140 = vmatpush1.bf16.msra.mxu0 0
      %7141 = vmatprep.subr.bf16.mxu0 0
      %7142 = vmatpush1.bf16.msra.mxu0 0
      %7143 = vmatprep.subr.bf16.mxu0 0
      %7144 = vmatpush1.bf16.msra.mxu0 0
      %7145 = vmatprep.mubr.bf16.mxu0 0
      %7146 = vmatmul.mubr.bf16.gmra.mrb[0].mxu0 %v6939
      %v7147 = vpop.f32.mrb[0].mxu0
      %v7148 = vadd.f32 %v7060, %v7147
      %v7149 = vpop.f32.mrb[0].mxu0
      %v7150 = vpop.f32.mrb[0].mxu0
      %v7151 = vpop.f32.mrb[0].mxu0
      %7152 = vdwg.mxu0
      %s7153 = scalar_lea.vmem %s6, 128
      %v7154 = vld [vmem:[%s7153] sm:$0xf]
      %v7155 = vld [vmem:[%s7153 + $0x4] sm:$0xf]
      %v7156 = vld [vmem:[%s7153 + $0x8] sm:$0xf]
      %v7157 = vld [vmem:[%s7153 + $0xc] sm:$0xf]
      %v7158 = vld [vmem:[%s7153 + $0x10] sm:$0xf]
      %v7159 = vld [vmem:[%s7153 + $0x14] sm:$0xf]
      %v7160 = vld [vmem:[%s7153 + $0x18] sm:$0xf]
      %v7161 = vld [vmem:[%s7153 + $0x1c] sm:$0xf]
      %v7162 = vld [vmem:[%s7153 + $0x20] sm:$0xf]
      %v7163 = vld [vmem:[%s7153 + $0x24] sm:$0xf]
      %v7164 = vld [vmem:[%s7153 + $0x28] sm:$0xf]
      %v7165 = vld [vmem:[%s7153 + $0x2c] sm:$0xf]
      %v7166 = vld [vmem:[%s7153 + $0x30] sm:$0xf]
      %v7167 = vld [vmem:[%s7153 + $0x34] sm:$0xf]
      %v7168 = vld [vmem:[%s7153 + $0x38] sm:$0xf]
      %v7169 = vld [vmem:[%s7153 + $0x3c] sm:$0xf]
      %v7171 = vrot.slane %v6939, 1
      %v7189 = vunpack.c.l.b16 %v7154
      %v7190 = vunpack.c.l.b16 %v7155
      %v7191 = vunpack.c.l.b16 %v7156
      %v7192 = vunpack.c.l.b16 %v7157
      %v7193 = vunpack.c.l.b16 %v7158
      %v7194 = vunpack.c.l.b16 %v7159
      %v7195 = vunpack.c.l.b16 %v7160
      %v7196 = vunpack.c.l.b16 %v7161
      %v7197 = vunpack.c.l.b16 %v7162
      %v7198 = vunpack.c.l.b16 %v7163
      %v7199 = vunpack.c.l.b16 %v7164
      %v7200 = vunpack.c.l.b16 %v7165
      %v7201 = vunpack.c.l.b16 %v7166
      %v7202 = vunpack.c.l.b16 %v7167
      %v7203 = vunpack.c.l.b16 %v7168
      %v7204 = vunpack.c.l.b16 %v7169
      %v7205 = vpack.c.b16 %v7190, %v7189
      %v7206 = vpack.c.b16 %v7192, %v7191
      %v7207 = vpack.c.b16 %v7194, %v7193
      %v7208 = vpack.c.b16 %v7196, %v7195
      %v7209 = vpack.c.b16 %v7198, %v7197
      %v7210 = vpack.c.b16 %v7200, %v7199
      %v7211 = vpack.c.b16 %v7202, %v7201
      %v7212 = vpack.c.b16 %v7204, %v7203
      %7221 = vmatprep.subr.bf16.mxu0 0
      %7222 = vmatpush1.bf16.msra.mxu0 %v7205
      %7223 = vmatprep.subr.bf16.mxu0 0
      %7224 = vmatpush1.bf16.msra.mxu0 %v7206
      %7225 = vmatprep.subr.bf16.mxu0 0
      %7226 = vmatpush1.bf16.msra.mxu0 %v7207
      %7227 = vmatprep.subr.bf16.mxu0 0
      %7228 = vmatpush1.bf16.msra.mxu0 %v7208
      %7229 = vmatprep.subr.bf16.mxu0 0
      %7230 = vmatpush1.bf16.msra.mxu0 %v7209
      %7231 = vmatprep.subr.bf16.mxu0 0
      %7232 = vmatpush1.bf16.msra.mxu0 %v7210
      %7233 = vmatprep.subr.bf16.mxu0 0
      %7234 = vmatpush1.bf16.msra.mxu0 %v7211
      %7235 = vmatprep.subr.bf16.mxu0 0
      %7236 = vmatpush1.bf16.msra.mxu0 %v7212
      %7237 = vmatprep.subr.bf16.mxu0 0
      %7238 = vmatpush1.bf16.msra.mxu0 0
      %7239 = vmatprep.subr.bf16.mxu0 0
      %7240 = vmatpush1.bf16.msra.mxu0 0
      %7241 = vmatprep.subr.bf16.mxu0 0
      %7242 = vmatpush1.bf16.msra.mxu0 0
      %7243 = vmatprep.subr.bf16.mxu0 0
      %7244 = vmatpush1.bf16.msra.mxu0 0
      %7245 = vmatprep.subr.bf16.mxu0 0
      %7246 = vmatpush1.bf16.msra.mxu0 0
      %7247 = vmatprep.subr.bf16.mxu0 0
      %7248 = vmatpush1.bf16.msra.mxu0 0
      %7249 = vmatprep.subr.bf16.mxu0 0
      %7250 = vmatpush1.bf16.msra.mxu0 0
      %7251 = vmatprep.subr.bf16.mxu0 0
      %7252 = vmatpush1.bf16.msra.mxu0 0
      %7253 = vmatprep.mubr.bf16.mxu0 0
      %7254 = vmatmul.mubr.bf16.gmra.mrb[0].mxu0 %v7171
      %v7255 = vpop.f32.mrb[0].mxu0
      %v7256 = vadd.f32 0.0, %v7255
      %v7257 = vpop.f32.mrb[0].mxu0
      %v7258 = vpop.f32.mrb[0].mxu0
      %v7259 = vpop.f32.mrb[0].mxu0
      %7260 = vdwg.mxu0
      %v7261 = vadd.f32 %v7148, %v7256
      %s7262 = scalar_lea.vmem %s6, 192
      %v7263 = vld [vmem:[%s7262] sm:$0xf]
      %v7264 = vld [vmem:[%s7262 + $0x4] sm:$0xf]
      %v7265 = vld [vmem:[%s7262 + $0x8] sm:$0xf]
      %v7266 = vld [vmem:[%s7262 + $0xc] sm:$0xf]
      %v7267 = vld [vmem:[%s7262 + $0x10] sm:$0xf]
      %v7268 = vld [vmem:[%s7262 + $0x14] sm:$0xf]
      %v7269 = vld [vmem:[%s7262 + $0x18] sm:$0xf]
      %v7270 = vld [vmem:[%s7262 + $0x1c] sm:$0xf]
      %v7271 = vld [vmem:[%s7262 + $0x20] sm:$0xf]
      %v7272 = vld [vmem:[%s7262 + $0x24] sm:$0xf]
      %v7273 = vld [vmem:[%s7262 + $0x28] sm:$0xf]
      %v7274 = vld [vmem:[%s7262 + $0x2c] sm:$0xf]
      %v7275 = vld [vmem:[%s7262 + $0x30] sm:$0xf]
      %v7276 = vld [vmem:[%s7262 + $0x34] sm:$0xf]
      %v7277 = vld [vmem:[%s7262 + $0x38] sm:$0xf]
      %v7278 = vld [vmem:[%s7262 + $0x3c] sm:$0xf]
      %v7279 = vrot.slane %v6974, 1
      %v7297 = vunpack.c.l.b16 %v7263
      %v7298 = vunpack.c.l.b16 %v7264
      %v7299 = vunpack.c.l.b16 %v7265
      %v7300 = vunpack.c.l.b16 %v7266
      %v7301 = vunpack.c.l.b16 %v7267
      %v7302 = vunpack.c.l.b16 %v7268
      %v7303 = vunpack.c.l.b16 %v7269
      %v7304 = vunpack.c.l.b16 %v7270
      %v7305 = vunpack.c.l.b16 %v7271
      %v7306 = vunpack.c.l.b16 %v7272
      %v7307 = vunpack.c.l.b16 %v7273
      %v7308 = vunpack.c.l.b16 %v7274
      %v7309 = vunpack.c.l.b16 %v7275
      %v7310 = vunpack.c.l.b16 %v7276
      %v7311 = vunpack.c.l.b16 %v7277
      %v7312 = vunpack.c.l.b16 %v7278
      %v7313 = vpack.c.b16 %v7298, %v7297
      %v7314 = vpack.c.b16 %v7300, %v7299
      %v7315 = vpack.c.b16 %v7302, %v7301
      %v7316 = vpack.c.b16 %v7304, %v7303
      %v7317 = vpack.c.b16 %v7306, %v7305
      %v7318 = vpack.c.b16 %v7308, %v7307
      %v7319 = vpack.c.b16 %v7310, %v7309
      %v7320 = vpack.c.b16 %v7312, %v7311
      %7329 = vmatprep.subr.bf16.mxu0 0
      %7330 = vmatpush1.bf16.msra.mxu0 %v7313
      %7331 = vmatprep.subr.bf16.mxu0 0
      %7332 = vmatpush1.bf16.msra.mxu0 %v7314
      %7333 = vmatprep.subr.bf16.mxu0 0
      %7334 = vmatpush1.bf16.msra.mxu0 %v7315
      %7335 = vmatprep.subr.bf16.mxu0 0
      %7336 = vmatpush1.bf16.msra.mxu0 %v7316
      %7337 = vmatprep.subr.bf16.mxu0 0
      %7338 = vmatpush1.bf16.msra.mxu0 %v7317
      %7339 = vmatprep.subr.bf16.mxu0 0
      %7340 = vmatpush1.bf16.msra.mxu0 %v7318
      %7341 = vmatprep.subr.bf16.mxu0 0
      %7342 = vmatpush1.bf16.msra.mxu0 %v7319
      %7343 = vmatprep.subr.bf16.mxu0 0
      %7344 = vmatpush1.bf16.msra.mxu0 %v7320
      %7345 = vmatprep.subr.bf16.mxu0 0
      %7346 = vmatpush1.bf16.msra.mxu0 0
      %7347 = vmatprep.subr.bf16.mxu0 0
      %7348 = vmatpush1.bf16.msra.mxu0 0
      %7349 = vmatprep.subr.bf16.mxu0 0
      %7350 = vmatpush1.bf16.msra.mxu0 0
      %7351 = vmatprep.subr.bf16.mxu0 0
      %7352 = vmatpush1.bf16.msra.mxu0 0
      %7353 = vmatprep.subr.bf16.mxu0 0
      %7354 = vmatpush1.bf16.msra.mxu0 0
      %7355 = vmatprep.subr.bf16.mxu0 0
      %7356 = vmatpush1.bf16.msra.mxu0 0
      %7357 = vmatprep.subr.bf16.mxu0 0
      %7358 = vmatpush1.bf16.msra.mxu0 0
      %7359 = vmatprep.subr.bf16.mxu0 0
      %7360 = vmatpush1.bf16.msra.mxu0 0
      %7361 = vmatprep.mubr.bf16.mxu0 0
      %7362 = vmatmul.mubr.bf16.gmra.mrb[0].mxu0 %v7279
      %v7363 = vpop.f32.mrb[0].mxu0
      %v7364 = vadd.f32 0.0, %v7363
      %v7365 = vpop.f32.mrb[0].mxu0
      %v7366 = vpop.f32.mrb[0].mxu0
      %v7367 = vpop.f32.mrb[0].mxu0
      %7368 = vdwg.mxu0
      %v7369 = vadd.f32 %v7261, %v7364
      %s7370 = scalar_lea.vmem %s6, 256
      %v7371 = vld [vmem:[%s7370] sm:$0xf]
      %v7372 = vld [vmem:[%s7370 + $0x4] sm:$0xf]
      %v7373 = vld [vmem:[%s7370 + $0x8] sm:$0xf]
      %v7374 = vld [vmem:[%s7370 + $0xc] sm:$0xf]
      %v7375 = vld [vmem:[%s7370 + $0x10] sm:$0xf]
      %v7376 = vld [vmem:[%s7370 + $0x14] sm:$0xf]
      %v7377 = vld [vmem:[%s7370 + $0x18] sm:$0xf]
      %v7378 = vld [vmem:[%s7370 + $0x1c] sm:$0xf]
      %v7379 = vld [vmem:[%s7370 + $0x20] sm:$0xf]
      %v7380 = vld [vmem:[%s7370 + $0x24] sm:$0xf]
      %v7381 = vld [vmem:[%s7370 + $0x28] sm:$0xf]
      %v7382 = vld [vmem:[%s7370 + $0x2c] sm:$0xf]
      %v7383 = vld [vmem:[%s7370 + $0x30] sm:$0xf]
      %v7384 = vld [vmem:[%s7370 + $0x34] sm:$0xf]
      %v7385 = vld [vmem:[%s7370 + $0x38] sm:$0xf]
      %v7386 = vld [vmem:[%s7370 + $0x3c] sm:$0xf]
      %v7387 = vrot.slane %v6939, 2
      %v7405 = vunpack.c.l.b16 %v7371
      %v7406 = vunpack.c.l.b16 %v7372
      %v7407 = vunpack.c.l.b16 %v7373
      %v7408 = vunpack.c.l.b16 %v7374
      %v7409 = vunpack.c.l.b16 %v7375
      %v7410 = vunpack.c.l.b16 %v7376
      %v7411 = vunpack.c.l.b16 %v7377
      %v7412 = vunpack.c.l.b16 %v7378
      %v7413 = vunpack.c.l.b16 %v7379
      %v7414 = vunpack.c.l.b16 %v7380
      %v7415 = vunpack.c.l.b16 %v7381
      %v7416 = vunpack.c.l.b16 %v7382
      %v7417 = vunpack.c.l.b16 %v7383
      %v7418 = vunpack.c.l.b16 %v7384
      %v7419 = vunpack.c.l.b16 %v7385
      %v7420 = vunpack.c.l.b16 %v7386
      %v7421 = vpack.c.b16 %v7406, %v7405
      %v7422 = vpack.c.b16 %v7408, %v7407
      %v7423 = vpack.c.b16 %v7410, %v7409
      %v7424 = vpack.c.b16 %v7412, %v7411
      %v7425 = vpack.c.b16 %v7414, %v7413
      %v7426 = vpack.c.b16 %v7416, %v7415
      %v7427 = vpack.c.b16 %v7418, %v7417
      %v7428 = vpack.c.b16 %v7420, %v7419
      %7437 = vmatprep.subr.bf16.mxu0 0
      %7438 = vmatpush1.bf16.msra.mxu0 %v7421
      %7439 = vmatprep.subr.bf16.mxu0 0
      %7440 = vmatpush1.bf16.msra.mxu0 %v7422
      %7441 = vmatprep.subr.bf16.mxu0 0
      %7442 = vmatpush1.bf16.msra.mxu0 %v7423
      %7443 = vmatprep.subr.bf16.mxu0 0
      %7444 = vmatpush1.bf16.msra.mxu0 %v7424
      %7445 = vmatprep.subr.bf16.mxu0 0
      %7446 = vmatpush1.bf16.msra.mxu0 %v7425
      %7447 = vmatprep.subr.bf16.mxu0 0
      %7448 = vmatpush1.bf16.msra.mxu0 %v7426
      %7449 = vmatprep.subr.bf16.mxu0 0
      %7450 = vmatpush1.bf16.msra.mxu0 %v7427
      %7451 = vmatprep.subr.bf16.mxu0 0
      %7452 = vmatpush1.bf16.msra.mxu0 %v7428
      %7453 = vmatprep.subr.bf16.mxu0 0
      %7454 = vmatpush1.bf16.msra.mxu0 0
      %7455 = vmatprep.subr.bf16.mxu0 0
      %7456 = vmatpush1.bf16.msra.mxu0 0
      %7457 = vmatprep.subr.bf16.mxu0 0
      %7458 = vmatpush1.bf16.msra.mxu0 0
      %7459 = vmatprep.subr.bf16.mxu0 0
      %7460 = vmatpush1.bf16.msra.mxu0 0
      %7461 = vmatprep.subr.bf16.mxu0 0
      %7462 = vmatpush1.bf16.msra.mxu0 0
      %7463 = vmatprep.subr.bf16.mxu0 0
      %7464 = vmatpush1.bf16.msra.mxu0 0
      %7465 = vmatprep.subr.bf16.mxu0 0
      %7466 = vmatpush1.bf16.msra.mxu0 0
      %7467 = vmatprep.subr.bf16.mxu0 0
      %7468 = vmatpush1.bf16.msra.mxu0 0
      %7469 = vmatprep.mubr.bf16.mxu0 0
      %7470 = vmatmul.mubr.bf16.gmra.mrb[0].mxu0 %v7387
      %v7471 = vpop.f32.mrb[0].mxu0
      %v7472 = vadd.f32 0.0, %v7471
      %v7473 = vpop.f32.mrb[0].mxu0
      %v7474 = vpop.f32.mrb[0].mxu0
      %v7475 = vpop.f32.mrb[0].mxu0
      %7476 = vdwg.mxu0
      %v7477 = vadd.f32 %v7369, %v7472
      %s7478 = scalar_lea.vmem %s6, 320
      %v7479 = vld [vmem:[%s7478] sm:$0xf]
      %v7480 = vld [vmem:[%s7478 + $0x4] sm:$0xf]
      %v7481 = vld [vmem:[%s7478 + $0x8] sm:$0xf]
      %v7482 = vld [vmem:[%s7478 + $0xc] sm:$0xf]
      %v7483 = vld [vmem:[%s7478 + $0x10] sm:$0xf]
      %v7484 = vld [vmem:[%s7478 + $0x14] sm:$0xf]
      %v7485 = vld [vmem:[%s7478 + $0x18] sm:$0xf]
      %v7486 = vld [vmem:[%s7478 + $0x1c] sm:$0xf]
      %v7487 = vld [vmem:[%s7478 + $0x20] sm:$0xf]
      %v7488 = vld [vmem:[%s7478 + $0x24] sm:$0xf]
      %v7489 = vld [vmem:[%s7478 + $0x28] sm:$0xf]
      %v7490 = vld [vmem:[%s7478 + $0x2c] sm:$0xf]
      %v7491 = vld [vmem:[%s7478 + $0x30] sm:$0xf]
      %v7492 = vld [vmem:[%s7478 + $0x34] sm:$0xf]
      %v7493 = vld [vmem:[%s7478 + $0x38] sm:$0xf]
      %v7494 = vld [vmem:[%s7478 + $0x3c] sm:$0xf]
      %v7495 = vrot.slane %v6974, 2
      %v7513 = vunpack.c.l.b16 %v7479
      %v7514 = vunpack.c.l.b16 %v7480
      %v7515 = vunpack.c.l.b16 %v7481
      %v7516 = vunpack.c.l.b16 %v7482
      %v7517 = vunpack.c.l.b16 %v7483
      %v7518 = vunpack.c.l.b16 %v7484
      %v7519 = vunpack.c.l.b16 %v7485
      %v7520 = vunpack.c.l.b16 %v7486
      %v7521 = vunpack.c.l.b16 %v7487
      %v7522 = vunpack.c.l.b16 %v7488
      %v7523 = vunpack.c.l.b16 %v7489
      %v7524 = vunpack.c.l.b16 %v7490
      %v7525 = vunpack.c.l.b16 %v7491
      %v7526 = vunpack.c.l.b16 %v7492
      %v7527 = vunpack.c.l.b16 %v7493
      %v7528 = vunpack.c.l.b16 %v7494
      %v7529 = vpack.c.b16 %v7514, %v7513
      %v7530 = vpack.c.b16 %v7516, %v7515
      %v7531 = vpack.c.b16 %v7518, %v7517
      %v7532 = vpack.c.b16 %v7520, %v7519
      %v7533 = vpack.c.b16 %v7522, %v7521
      %v7534 = vpack.c.b16 %v7524, %v7523
      %v7535 = vpack.c.b16 %v7526, %v7525
      %v7536 = vpack.c.b16 %v7528, %v7527
      %7545 = vmatprep.subr.bf16.mxu0 0
      %7546 = vmatpush1.bf16.msra.mxu0 %v7529
      %7547 = vmatprep.subr.bf16.mxu0 0
      %7548 = vmatpush1.bf16.msra.mxu0 %v7530
      %7549 = vmatprep.subr.bf16.mxu0 0
      %7550 = vmatpush1.bf16.msra.mxu0 %v7531
      %7551 = vmatprep.subr.bf16.mxu0 0
      %7552 = vmatpush1.bf16.msra.mxu0 %v7532
      %7553 = vmatprep.subr.bf16.mxu0 0
      %7554 = vmatpush1.bf16.msra.mxu0 %v7533
      %7555 = vmatprep.subr.bf16.mxu0 0
      %7556 = vmatpush1.bf16.msra.mxu0 %v7534
      %7557 = vmatprep.subr.bf16.mxu0 0
      %7558 = vmatpush1.bf16.msra.mxu0 %v7535
      %7559 = vmatprep.subr.bf16.mxu0 0
      %7560 = vmatpush1.bf16.msra.mxu0 %v7536
      %7561 = vmatprep.subr.bf16.mxu0 0
      %7562 = vmatpush1.bf16.msra.mxu0 0
      %7563 = vmatprep.subr.bf16.mxu0 0
      %7564 = vmatpush1.bf16.msra.mxu0 0
      %7565 = vmatprep.subr.bf16.mxu0 0
      %7566 = vmatpush1.bf16.msra.mxu0 0
      %7567 = vmatprep.subr.bf16.mxu0 0
      %7568 = vmatpush1.bf16.msra.mxu0 0
      %7569 = vmatprep.subr.bf16.mxu0 0
      %7570 = vmatpush1.bf16.msra.mxu0 0
      %7571 = vmatprep.subr.bf16.mxu0 0
      %7572 = vmatpush1.bf16.msra.mxu0 0
      %7573 = vmatprep.subr.bf16.mxu0 0
      %7574 = vmatpush1.bf16.msra.mxu0 0
      %7575 = vmatprep.subr.bf16.mxu0 0
      %7576 = vmatpush1.bf16.msra.mxu0 0
      %7577 = vmatprep.mubr.bf16.mxu0 0
      %7578 = vmatmul.mubr.bf16.gmra.mrb[0].mxu0 %v7495
      %v7579 = vpop.f32.mrb[0].mxu0
      %v7580 = vadd.f32 0.0, %v7579
      %v7581 = vpop.f32.mrb[0].mxu0
      %v7582 = vpop.f32.mrb[0].mxu0
      %v7583 = vpop.f32.mrb[0].mxu0
      %7584 = vdwg.mxu0
      %v7585 = vadd.f32 %v7477, %v7580
      %s7586 = scalar_lea.vmem %s6, 384
      %v7587 = vld [vmem:[%s7586] sm:$0xf]
      %v7588 = vld [vmem:[%s7586 + $0x4] sm:$0xf]
      %v7589 = vld [vmem:[%s7586 + $0x8] sm:$0xf]
      %v7590 = vld [vmem:[%s7586 + $0xc] sm:$0xf]
      %v7591 = vld [vmem:[%s7586 + $0x10] sm:$0xf]
      %v7592 = vld [vmem:[%s7586 + $0x14] sm:$0xf]
      %v7593 = vld [vmem:[%s7586 + $0x18] sm:$0xf]
      %v7594 = vld [vmem:[%s7586 + $0x1c] sm:$0xf]
      %v7595 = vld [vmem:[%s7586 + $0x20] sm:$0xf]
      %v7596 = vld [vmem:[%s7586 + $0x24] sm:$0xf]
      %v7597 = vld [vmem:[%s7586 + $0x28] sm:$0xf]
      %v7598 = vld [vmem:[%s7586 + $0x2c] sm:$0xf]
      %v7599 = vld [vmem:[%s7586 + $0x30] sm:$0xf]
      %v7600 = vld [vmem:[%s7586 + $0x34] sm:$0xf]
      %v7601 = vld [vmem:[%s7586 + $0x38] sm:$0xf]
      %v7602 = vld [vmem:[%s7586 + $0x3c] sm:$0xf]
      %v7603 = vrot.slane %v6939, 3
      %v7621 = vunpack.c.l.b16 %v7587
      %v7622 = vunpack.c.l.b16 %v7588
      %v7623 = vunpack.c.l.b16 %v7589
      %v7624 = vunpack.c.l.b16 %v7590
      %v7625 = vunpack.c.l.b16 %v7591
      %v7626 = vunpack.c.l.b16 %v7592
      %v7627 = vunpack.c.l.b16 %v7593
      %v7628 = vunpack.c.l.b16 %v7594
      %v7629 = vunpack.c.l.b16 %v7595
      %v7630 = vunpack.c.l.b16 %v7596
      %v7631 = vunpack.c.l.b16 %v7597
      %v7632 = vunpack.c.l.b16 %v7598
      %v7633 = vunpack.c.l.b16 %v7599
      %v7634 = vunpack.c.l.b16 %v7600
      %v7635 = vunpack.c.l.b16 %v7601
      %v7636 = vunpack.c.l.b16 %v7602
      %v7637 = vpack.c.b16 %v7622, %v7621
      %v7638 = vpack.c.b16 %v7624, %v7623
      %v7639 = vpack.c.b16 %v7626, %v7625
      %v7640 = vpack.c.b16 %v7628, %v7627
      %v7641 = vpack.c.b16 %v7630, %v7629
      %v7642 = vpack.c.b16 %v7632, %v7631
      %v7643 = vpack.c.b16 %v7634, %v7633
      %v7644 = vpack.c.b16 %v7636, %v7635
      %7653 = vmatprep.subr.bf16.mxu0 0
      %7654 = vmatpush1.bf16.msra.mxu0 %v7637
      %7655 = vmatprep.subr.bf16.mxu0 0
      %7656 = vmatpush1.bf16.msra.mxu0 %v7638
      %7657 = vmatprep.subr.bf16.mxu0 0
      %7658 = vmatpush1.bf16.msra.mxu0 %v7639
      %7659 = vmatprep.subr.bf16.mxu0 0
      %7660 = vmatpush1.bf16.msra.mxu0 %v7640
      %7661 = vmatprep.subr.bf16.mxu0 0
      %7662 = vmatpush1.bf16.msra.mxu0 %v7641
      %7663 = vmatprep.subr.bf16.mxu0 0
      %7664 = vmatpush1.bf16.msra.mxu0 %v7642
      %7665 = vmatprep.subr.bf16.mxu0 0
      %7666 = vmatpush1.bf16.msra.mxu0 %v7643
      %7667 = vmatprep.subr.bf16.mxu0 0
      %7668 = vmatpush1.bf16.msra.mxu0 %v7644
      %7669 = vmatprep.subr.bf16.mxu0 0
      %7670 = vmatpush1.bf16.msra.mxu0 0
      %7671 = vmatprep.subr.bf16.mxu0 0
      %7672 = vmatpush1.bf16.msra.mxu0 0
      %7673 = vmatprep.subr.bf16.mxu0 0
      %7674 = vmatpush1.bf16.msra.mxu0 0
      %7675 = vmatprep.subr.bf16.mxu0 0
      %7676 = vmatpush1.bf16.msra.mxu0 0
      %7677 = vmatprep.subr.bf16.mxu0 0
      %7678 = vmatpush1.bf16.msra.mxu0 0
      %7679 = vmatprep.subr.bf16.mxu0 0
      %7680 = vmatpush1.bf16.msra.mxu0 0
      %7681 = vmatprep.subr.bf16.mxu0 0
      %7682 = vmatpush1.bf16.msra.mxu0 0
      %7683 = vmatprep.subr.bf16.mxu0 0
      %7684 = vmatpush1.bf16.msra.mxu0 0
      %7685 = vmatprep.mubr.bf16.mxu0 0
      %7686 = vmatmul.mubr.bf16.gmra.mrb[0].mxu0 %v7603
      %v7687 = vpop.f32.mrb[0].mxu0
      %v7688 = vadd.f32 0.0, %v7687
      %v7689 = vpop.f32.mrb[0].mxu0
      %v7690 = vpop.f32.mrb[0].mxu0
      %v7691 = vpop.f32.mrb[0].mxu0
      %7692 = vdwg.mxu0
      %v7693 = vadd.f32 %v7585, %v7688
      %s7694 = scalar_lea.vmem %s6, 448
      %v7695 = vld [vmem:[%s7694] sm:$0xf]
      %v7696 = vld [vmem:[%s7694 + $0x4] sm:$0xf]
      %v7697 = vld [vmem:[%s7694 + $0x8] sm:$0xf]
      %v7698 = vld [vmem:[%s7694 + $0xc] sm:$0xf]
      %v7699 = vld [vmem:[%s7694 + $0x10] sm:$0xf]
      %v7700 = vld [vmem:[%s7694 + $0x14] sm:$0xf]
      %v7701 = vld [vmem:[%s7694 + $0x18] sm:$0xf]
      %v7702 = vld [vmem:[%s7694 + $0x1c] sm:$0xf]
      %v7703 = vld [vmem:[%s7694 + $0x20] sm:$0xf]
      %v7704 = vld [vmem:[%s7694 + $0x24] sm:$0xf]
      %v7705 = vld [vmem:[%s7694 + $0x28] sm:$0xf]
      %v7706 = vld [vmem:[%s7694 + $0x2c] sm:$0xf]
      %v7707 = vld [vmem:[%s7694 + $0x30] sm:$0xf]
      %v7708 = vld [vmem:[%s7694 + $0x34] sm:$0xf]
      %v7709 = vld [vmem:[%s7694 + $0x38] sm:$0xf]
      %v7710 = vld [vmem:[%s7694 + $0x3c] sm:$0xf]
      %v7711 = vrot.slane %v6974, 3
      %v7729 = vunpack.c.l.b16 %v7695
      %v7730 = vunpack.c.l.b16 %v7696
      %v7731 = vunpack.c.l.b16 %v7697
      %v7732 = vunpack.c.l.b16 %v7698
      %v7733 = vunpack.c.l.b16 %v7699
      %v7734 = vunpack.c.l.b16 %v7700
      %v7735 = vunpack.c.l.b16 %v7701
      %v7736 = vunpack.c.l.b16 %v7702
      %v7737 = vunpack.c.l.b16 %v7703
      %v7738 = vunpack.c.l.b16 %v7704
      %v7739 = vunpack.c.l.b16 %v7705
      %v7740 = vunpack.c.l.b16 %v7706
      %v7741 = vunpack.c.l.b16 %v7707
      %v7742 = vunpack.c.l.b16 %v7708
      %v7743 = vunpack.c.l.b16 %v7709
      %v7744 = vunpack.c.l.b16 %v7710
      %v7745 = vpack.c.b16 %v7730, %v7729
      %v7746 = vpack.c.b16 %v7732, %v7731
      %v7747 = vpack.c.b16 %v7734, %v7733
      %v7748 = vpack.c.b16 %v7736, %v7735
      %v7749 = vpack.c.b16 %v7738, %v7737
      %v7750 = vpack.c.b16 %v7740, %v7739
      %v7751 = vpack.c.b16 %v7742, %v7741
      %v7752 = vpack.c.b16 %v7744, %v7743
      %7761 = vmatprep.subr.bf16.mxu0 0
      %7762 = vmatpush1.bf16.msra.mxu0 %v7745
      %7763 = vmatprep.subr.bf16.mxu0 0
      %7764 = vmatpush1.bf16.msra.mxu0 %v7746
      %7765 = vmatprep.subr.bf16.mxu0 0
      %7766 = vmatpush1.bf16.msra.mxu0 %v7747
      %7767 = vmatprep.subr.bf16.mxu0 0
      %7768 = vmatpush1.bf16.msra.mxu0 %v7748
      %7769 = vmatprep.subr.bf16.mxu0 0
      %7770 = vmatpush1.bf16.msra.mxu0 %v7749
      %7771 = vmatprep.subr.bf16.mxu0 0
      %7772 = vmatpush1.bf16.msra.mxu0 %v7750
      %7773 = vmatprep.subr.bf16.mxu0 0
      %7774 = vmatpush1.bf16.msra.mxu0 %v7751
      %7775 = vmatprep.subr.bf16.mxu0 0
      %7776 = vmatpush1.bf16.msra.mxu0 %v7752
      %7777 = vmatprep.subr.bf16.mxu0 0
      %7778 = vmatpush1.bf16.msra.mxu0 0
      %7779 = vmatprep.subr.bf16.mxu0 0
      %7780 = vmatpush1.bf16.msra.mxu0 0
      %7781 = vmatprep.subr.bf16.mxu0 0
      %7782 = vmatpush1.bf16.msra.mxu0 0
      %7783 = vmatprep.subr.bf16.mxu0 0
      %7784 = vmatpush1.bf16.msra.mxu0 0
      %7785 = vmatprep.subr.bf16.mxu0 0
      %7786 = vmatpush1.bf16.msra.mxu0 0
      %7787 = vmatprep.subr.bf16.mxu0 0
      %7788 = vmatpush1.bf16.msra.mxu0 0
      %7789 = vmatprep.subr.bf16.mxu0 0
      %7790 = vmatpush1.bf16.msra.mxu0 0
      %7791 = vmatprep.subr.bf16.mxu0 0
      %7792 = vmatpush1.bf16.msra.mxu0 0
      %7793 = vmatprep.mubr.bf16.mxu0 0
      %7794 = vmatmul.mubr.bf16.gmra.mrb[0].mxu0 %v7711
      %v7795 = vpop.f32.mrb[0].mxu0
      %v7796 = vadd.f32 0.0, %v7795
      %v7797 = vpop.f32.mrb[0].mxu0
      %v7798 = vpop.f32.mrb[0].mxu0
      %v7799 = vpop.f32.mrb[0].mxu0
      %7800 = vdwg.mxu0
      %v7801 = vadd.f32 %v7693, %v7796
      %s7802 = scalar_lea.vmem %s6, 512
      %v7803 = vld [vmem:[%s7802] sm:$0xf]
      %v7804 = vld [vmem:[%s7802 + $0x4] sm:$0xf]
      %v7805 = vld [vmem:[%s7802 + $0x8] sm:$0xf]
      %v7806 = vld [vmem:[%s7802 + $0xc] sm:$0xf]
      %v7807 = vld [vmem:[%s7802 + $0x10] sm:$0xf]
      %v7808 = vld [vmem:[%s7802 + $0x14] sm:$0xf]
      %v7809 = vld [vmem:[%s7802 + $0x18] sm:$0xf]
      %v7810 = vld [vmem:[%s7802 + $0x1c] sm:$0xf]
      %v7811 = vld [vmem:[%s7802 + $0x20] sm:$0xf]
      %v7812 = vld [vmem:[%s7802 + $0x24] sm:$0xf]
      %v7813 = vld [vmem:[%s7802 + $0x28] sm:$0xf]
      %v7814 = vld [vmem:[%s7802 + $0x2c] sm:$0xf]
      %v7815 = vld [vmem:[%s7802 + $0x30] sm:$0xf]
      %v7816 = vld [vmem:[%s7802 + $0x34] sm:$0xf]
      %v7817 = vld [vmem:[%s7802 + $0x38] sm:$0xf]
      %v7818 = vld [vmem:[%s7802 + $0x3c] sm:$0xf]
      %v7819 = vrot.slane %v6939, 4
      %v7837 = vunpack.c.l.b16 %v7803
      %v7838 = vunpack.c.l.b16 %v7804
      %v7839 = vunpack.c.l.b16 %v7805
      %v7840 = vunpack.c.l.b16 %v7806
      %v7841 = vunpack.c.l.b16 %v7807
      %v7842 = vunpack.c.l.b16 %v7808
      %v7843 = vunpack.c.l.b16 %v7809
      %v7844 = vunpack.c.l.b16 %v7810
      %v7845 = vunpack.c.l.b16 %v7811
      %v7846 = vunpack.c.l.b16 %v7812
      %v7847 = vunpack.c.l.b16 %v7813
      %v7848 = vunpack.c.l.b16 %v7814
      %v7849 = vunpack.c.l.b16 %v7815
      %v7850 = vunpack.c.l.b16 %v7816
      %v7851 = vunpack.c.l.b16 %v7817
      %v7852 = vunpack.c.l.b16 %v7818
      %v7853 = vpack.c.b16 %v7838, %v7837
      %v7854 = vpack.c.b16 %v7840, %v7839
      %v7855 = vpack.c.b16 %v7842, %v7841
      %v7856 = vpack.c.b16 %v7844, %v7843
      %v7857 = vpack.c.b16 %v7846, %v7845
      %v7858 = vpack.c.b16 %v7848, %v7847
      %v7859 = vpack.c.b16 %v7850, %v7849
      %v7860 = vpack.c.b16 %v7852, %v7851
      %7869 = vmatprep.subr.bf16.mxu0 0
      %7870 = vmatpush1.bf16.msra.mxu0 %v7853
      %7871 = vmatprep.subr.bf16.mxu0 0
      %7872 = vmatpush1.bf16.msra.mxu0 %v7854
      %7873 = vmatprep.subr.bf16.mxu0 0
      %7874 = vmatpush1.bf16.msra.mxu0 %v7855
      %7875 = vmatprep.subr.bf16.mxu0 0
      %7876 = vmatpush1.bf16.msra.mxu0 %v7856
      %7877 = vmatprep.subr.bf16.mxu0 0
      %7878 = vmatpush1.bf16.msra.mxu0 %v7857
      %7879 = vmatprep.subr.bf16.mxu0 0
      %7880 = vmatpush1.bf16.msra.mxu0 %v7858
      %7881 = vmatprep.subr.bf16.mxu0 0
      %7882 = vmatpush1.bf16.msra.mxu0 %v7859
      %7883 = vmatprep.subr.bf16.mxu0 0
      %7884 = vmatpush1.bf16.msra.mxu0 %v7860
      %7885 = vmatprep.subr.bf16.mxu0 0
      %7886 = vmatpush1.bf16.msra.mxu0 0
      %7887 = vmatprep.subr.bf16.mxu0 0
      %7888 = vmatpush1.bf16.msra.mxu0 0
      %7889 = vmatprep.subr.bf16.mxu0 0
      %7890 = vmatpush1.bf16.msra.mxu0 0
      %7891 = vmatprep.subr.bf16.mxu0 0
      %7892 = vmatpush1.bf16.msra.mxu0 0
      %7893 = vmatprep.subr.bf16.mxu0 0
      %7894 = vmatpush1.bf16.msra.mxu0 0
      %7895 = vmatprep.subr.bf16.mxu0 0
      %7896 = vmatpush1.bf16.msra.mxu0 0
      %7897 = vmatprep.subr.bf16.mxu0 0
      %7898 = vmatpush1.bf16.msra.mxu0 0
      %7899 = vmatprep.subr.bf16.mxu0 0
      %7900 = vmatpush1.bf16.msra.mxu0 0
      %7901 = vmatprep.mubr.bf16.mxu0 0
      %7902 = vmatmul.mubr.bf16.gmra.mrb[0].mxu0 %v7819
      %v7903 = vpop.f32.mrb[0].mxu0
      %v7904 = vadd.f32 0.0, %v7903
      %v7905 = vpop.f32.mrb[0].mxu0
      %v7906 = vpop.f32.mrb[0].mxu0
      %v7907 = vpop.f32.mrb[0].mxu0
      %7908 = vdwg.mxu0
      %v7909 = vadd.f32 %v7801, %v7904
      %s7910 = scalar_lea.vmem %s6, 576
      %v7911 = vld [vmem:[%s7910] sm:$0xf]
      %v7912 = vld [vmem:[%s7910 + $0x4] sm:$0xf]
      %v7913 = vld [vmem:[%s7910 + $0x8] sm:$0xf]
      %v7914 = vld [vmem:[%s7910 + $0xc] sm:$0xf]
      %v7915 = vld [vmem:[%s7910 + $0x10] sm:$0xf]
      %v7916 = vld [vmem:[%s7910 + $0x14] sm:$0xf]
      %v7917 = vld [vmem:[%s7910 + $0x18] sm:$0xf]
      %v7918 = vld [vmem:[%s7910 + $0x1c] sm:$0xf]
      %v7919 = vld [vmem:[%s7910 + $0x20] sm:$0xf]
      %v7920 = vld [vmem:[%s7910 + $0x24] sm:$0xf]
      %v7921 = vld [vmem:[%s7910 + $0x28] sm:$0xf]
      %v7922 = vld [vmem:[%s7910 + $0x2c] sm:$0xf]
      %v7923 = vld [vmem:[%s7910 + $0x30] sm:$0xf]
      %v7924 = vld [vmem:[%s7910 + $0x34] sm:$0xf]
      %v7925 = vld [vmem:[%s7910 + $0x38] sm:$0xf]
      %v7926 = vld [vmem:[%s7910 + $0x3c] sm:$0xf]
      %v7927 = vrot.slane %v6974, 4
      %v7945 = vunpack.c.l.b16 %v7911
      %v7946 = vunpack.c.l.b16 %v7912
      %v7947 = vunpack.c.l.b16 %v7913
      %v7948 = vunpack.c.l.b16 %v7914
      %v7949 = vunpack.c.l.b16 %v7915
      %v7950 = vunpack.c.l.b16 %v7916
      %v7951 = vunpack.c.l.b16 %v7917
      %v7952 = vunpack.c.l.b16 %v7918
      %v7953 = vunpack.c.l.b16 %v7919
      %v7954 = vunpack.c.l.b16 %v7920
      %v7955 = vunpack.c.l.b16 %v7921
      %v7956 = vunpack.c.l.b16 %v7922
      %v7957 = vunpack.c.l.b16 %v7923
      %v7958 = vunpack.c.l.b16 %v7924
      %v7959 = vunpack.c.l.b16 %v7925
      %v7960 = vunpack.c.l.b16 %v7926
      %v7961 = vpack.c.b16 %v7946, %v7945
      %v7962 = vpack.c.b16 %v7948, %v7947
      %v7963 = vpack.c.b16 %v7950, %v7949
      %v7964 = vpack.c.b16 %v7952, %v7951
      %v7965 = vpack.c.b16 %v7954, %v7953
      %v7966 = vpack.c.b16 %v7956, %v7955
      %v7967 = vpack.c.b16 %v7958, %v7957
      %v7968 = vpack.c.b16 %v7960, %v7959
      %7977 = vmatprep.subr.bf16.mxu0 0
      %7978 = vmatpush1.bf16.msra.mxu0 %v7961
      %7979 = vmatprep.subr.bf16.mxu0 0
      %7980 = vmatpush1.bf16.msra.mxu0 %v7962
      %7981 = vmatprep.subr.bf16.mxu0 0
      %7982 = vmatpush1.bf16.msra.mxu0 %v7963
      %7983 = vmatprep.subr.bf16.mxu0 0
      %7984 = vmatpush1.bf16.msra.mxu0 %v7964
      %7985 = vmatprep.subr.bf16.mxu0 0
      %7986 = vmatpush1.bf16.msra.mxu0 %v7965
      %7987 = vmatprep.subr.bf16.mxu0 0
      %7988 = vmatpush1.bf16.msra.mxu0 %v7966
      %7989 = vmatprep.subr.bf16.mxu0 0
      %7990 = vmatpush1.bf16.msra.mxu0 %v7967
      %7991 = vmatprep.subr.bf16.mxu0 0
      %7992 = vmatpush1.bf16.msra.mxu0 %v7968
      %7993 = vmatprep.subr.bf16.mxu0 0
      %7994 = vmatpush1.bf16.msra.mxu0 0
      %7995 = vmatprep.subr.bf16.mxu0 0
      %7996 = vmatpush1.bf16.msra.mxu0 0
      %7997 = vmatprep.subr.bf16.mxu0 0
      %7998 = vmatpush1.bf16.msra.mxu0 0
      %7999 = vmatprep.subr.bf16.mxu0 0
      %8000 = vmatpush1.bf16.msra.mxu0 0
      %8001 = vmatprep.subr.bf16.mxu0 0
      %8002 = vmatpush1.bf16.msra.mxu0 0
      %8003 = vmatprep.subr.bf16.mxu0 0
      %8004 = vmatpush1.bf16.msra.mxu0 0
      %8005 = vmatprep.subr.bf16.mxu0 0
      %8006 = vmatpush1.bf16.msra.mxu0 0
      %8007 = vmatprep.subr.bf16.mxu0 0
      %8008 = vmatpush1.bf16.msra.mxu0 0
      %8009 = vmatprep.mubr.bf16.mxu0 0
      %8010 = vmatmul.mubr.bf16.gmra.mrb[0].mxu0 %v7927
      %v8011 = vpop.f32.mrb[0].mxu0
      %v8012 = vadd.f32 0.0, %v8011
      %v8013 = vpop.f32.mrb[0].mxu0
      %v8014 = vpop.f32.mrb[0].mxu0
      %v8015 = vpop.f32.mrb[0].mxu0
      %8016 = vdwg.mxu0
      %v8017 = vadd.f32 %v7909, %v8012
      %s8018 = scalar_lea.vmem %s6, 640
      %v8019 = vld [vmem:[%s8018] sm:$0xf]
      %v8020 = vld [vmem:[%s8018 + $0x4] sm:$0xf]
      %v8021 = vld [vmem:[%s8018 + $0x8] sm:$0xf]
      %v8022 = vld [vmem:[%s8018 + $0xc] sm:$0xf]
      %v8023 = vld [vmem:[%s8018 + $0x10] sm:$0xf]
      %v8024 = vld [vmem:[%s8018 + $0x14] sm:$0xf]
      %v8025 = vld [vmem:[%s8018 + $0x18] sm:$0xf]
      %v8026 = vld [vmem:[%s8018 + $0x1c] sm:$0xf]
      %v8027 = vld [vmem:[%s8018 + $0x20] sm:$0xf]
      %v8028 = vld [vmem:[%s8018 + $0x24] sm:$0xf]
      %v8029 = vld [vmem:[%s8018 + $0x28] sm:$0xf]
      %v8030 = vld [vmem:[%s8018 + $0x2c] sm:$0xf]
      %v8031 = vld [vmem:[%s8018 + $0x30] sm:$0xf]
      %v8032 = vld [vmem:[%s8018 + $0x34] sm:$0xf]
      %v8033 = vld [vmem:[%s8018 + $0x38] sm:$0xf]
      %v8034 = vld [vmem:[%s8018 + $0x3c] sm:$0xf]
      %v8035 = vrot.slane %v6939, 5
      %v8053 = vunpack.c.l.b16 %v8019
      %v8054 = vunpack.c.l.b16 %v8020
      %v8055 = vunpack.c.l.b16 %v8021
      %v8056 = vunpack.c.l.b16 %v8022
      %v8057 = vunpack.c.l.b16 %v8023
      %v8058 = vunpack.c.l.b16 %v8024
      %v8059 = vunpack.c.l.b16 %v8025
      %v8060 = vunpack.c.l.b16 %v8026
      %v8061 = vunpack.c.l.b16 %v8027
      %v8062 = vunpack.c.l.b16 %v8028
      %v8063 = vunpack.c.l.b16 %v8029
      %v8064 = vunpack.c.l.b16 %v8030
      %v8065 = vunpack.c.l.b16 %v8031
      %v8066 = vunpack.c.l.b16 %v8032
      %v8067 = vunpack.c.l.b16 %v8033
      %v8068 = vunpack.c.l.b16 %v8034
      %v8069 = vpack.c.b16 %v8054, %v8053
      %v8070 = vpack.c.b16 %v8056, %v8055
      %v8071 = vpack.c.b16 %v8058, %v8057
      %v8072 = vpack.c.b16 %v8060, %v8059
      %v8073 = vpack.c.b16 %v8062, %v8061
      %v8074 = vpack.c.b16 %v8064, %v8063
      %v8075 = vpack.c.b16 %v8066, %v8065
      %v8076 = vpack.c.b16 %v8068, %v8067
      %8085 = vmatprep.subr.bf16.mxu0 0
      %8086 = vmatpush1.bf16.msra.mxu0 %v8069
      %8087 = vmatprep.subr.bf16.mxu0 0
      %8088 = vmatpush1.bf16.msra.mxu0 %v8070
      %8089 = vmatprep.subr.bf16.mxu0 0
      %8090 = vmatpush1.bf16.msra.mxu0 %v8071
      %8091 = vmatprep.subr.bf16.mxu0 0
      %8092 = vmatpush1.bf16.msra.mxu0 %v8072
      %8093 = vmatprep.subr.bf16.mxu0 0
      %8094 = vmatpush1.bf16.msra.mxu0 %v8073
      %8095 = vmatprep.subr.bf16.mxu0 0
      %8096 = vmatpush1.bf16.msra.mxu0 %v8074
      %8097 = vmatprep.subr.bf16.mxu0 0
      %8098 = vmatpush1.bf16.msra.mxu0 %v8075
      %8099 = vmatprep.subr.bf16.mxu0 0
      %8100 = vmatpush1.bf16.msra.mxu0 %v8076
      %8101 = vmatprep.subr.bf16.mxu0 0
      %8102 = vmatpush1.bf16.msra.mxu0 0
      %8103 = vmatprep.subr.bf16.mxu0 0
      %8104 = vmatpush1.bf16.msra.mxu0 0
      %8105 = vmatprep.subr.bf16.mxu0 0
      %8106 = vmatpush1.bf16.msra.mxu0 0
      %8107 = vmatprep.subr.bf16.mxu0 0
      %8108 = vmatpush1.bf16.msra.mxu0 0
      %8109 = vmatprep.subr.bf16.mxu0 0
      %8110 = vmatpush1.bf16.msra.mxu0 0
      %8111 = vmatprep.subr.bf16.mxu0 0
      %8112 = vmatpush1.bf16.msra.mxu0 0
      %8113 = vmatprep.subr.bf16.mxu0 0
      %8114 = vmatpush1.bf16.msra.mxu0 0
      %8115 = vmatprep.subr.bf16.mxu0 0
      %8116 = vmatpush1.bf16.msra.mxu0 0
      %8117 = vmatprep.mubr.bf16.mxu0 0
      %8118 = vmatmul.mubr.bf16.gmra.mrb[0].mxu0 %v8035
      %v8119 = vpop.f32.mrb[0].mxu0
      %v8120 = vadd.f32 0.0, %v8119
      %v8121 = vpop.f32.mrb[0].mxu0
      %v8122 = vpop.f32.mrb[0].mxu0
      %v8123 = vpop.f32.mrb[0].mxu0
      %8124 = vdwg.mxu0
      %v8125 = vadd.f32 %v8017, %v8120
      %s8126 = scalar_lea.vmem %s6, 704
      %v8127 = vld [vmem:[%s8126] sm:$0xf]
      %v8128 = vld [vmem:[%s8126 + $0x4] sm:$0xf]
      %v8129 = vld [vmem:[%s8126 + $0x8] sm:$0xf]
      %v8130 = vld [vmem:[%s8126 + $0xc] sm:$0xf]
      %v8131 = vld [vmem:[%s8126 + $0x10] sm:$0xf]
      %v8132 = vld [vmem:[%s8126 + $0x14] sm:$0xf]
      %v8133 = vld [vmem:[%s8126 + $0x18] sm:$0xf]
      %v8134 = vld [vmem:[%s8126 + $0x1c] sm:$0xf]
      %v8135 = vld [vmem:[%s8126 + $0x20] sm:$0xf]
      %v8136 = vld [vmem:[%s8126 + $0x24] sm:$0xf]
      %v8137 = vld [vmem:[%s8126 + $0x28] sm:$0xf]
      %v8138 = vld [vmem:[%s8126 + $0x2c] sm:$0xf]
      %v8139 = vld [vmem:[%s8126 + $0x30] sm:$0xf]
      %v8140 = vld [vmem:[%s8126 + $0x34] sm:$0xf]
      %v8141 = vld [vmem:[%s8126 + $0x38] sm:$0xf]
      %v8142 = vld [vmem:[%s8126 + $0x3c] sm:$0xf]
      %v8143 = vrot.slane %v6974, 5
      %v8161 = vunpack.c.l.b16 %v8127
      %v8162 = vunpack.c.l.b16 %v8128
      %v8163 = vunpack.c.l.b16 %v8129
      %v8164 = vunpack.c.l.b16 %v8130
      %v8165 = vunpack.c.l.b16 %v8131
      %v8166 = vunpack.c.l.b16 %v8132
      %v8167 = vunpack.c.l.b16 %v8133
      %v8168 = vunpack.c.l.b16 %v8134
      %v8169 = vunpack.c.l.b16 %v8135
      %v8170 = vunpack.c.l.b16 %v8136
      %v8171 = vunpack.c.l.b16 %v8137
      %v8172 = vunpack.c.l.b16 %v8138
      %v8173 = vunpack.c.l.b16 %v8139
      %v8174 = vunpack.c.l.b16 %v8140
      %v8175 = vunpack.c.l.b16 %v8141
      %v8176 = vunpack.c.l.b16 %v8142
      %v8177 = vpack.c.b16 %v8162, %v8161
      %v8178 = vpack.c.b16 %v8164, %v8163
      %v8179 = vpack.c.b16 %v8166, %v8165
      %v8180 = vpack.c.b16 %v8168, %v8167
      %v8181 = vpack.c.b16 %v8170, %v8169
      %v8182 = vpack.c.b16 %v8172, %v8171
      %v8183 = vpack.c.b16 %v8174, %v8173
      %v8184 = vpack.c.b16 %v8176, %v8175
      %8193 = vmatprep.subr.bf16.mxu0 0
      %8194 = vmatpush1.bf16.msra.mxu0 %v8177
      %8195 = vmatprep.subr.bf16.mxu0 0
      %8196 = vmatpush1.bf16.msra.mxu0 %v8178
      %8197 = vmatprep.subr.bf16.mxu0 0
      %8198 = vmatpush1.bf16.msra.mxu0 %v8179
      %8199 = vmatprep.subr.bf16.mxu0 0
      %8200 = vmatpush1.bf16.msra.mxu0 %v8180
      %8201 = vmatprep.subr.bf16.mxu0 0
      %8202 = vmatpush1.bf16.msra.mxu0 %v8181
      %8203 = vmatprep.subr.bf16.mxu0 0
      %8204 = vmatpush1.bf16.msra.mxu0 %v8182
      %8205 = vmatprep.subr.bf16.mxu0 0
      %8206 = vmatpush1.bf16.msra.mxu0 %v8183
      %8207 = vmatprep.subr.bf16.mxu0 0
      %8208 = vmatpush1.bf16.msra.mxu0 %v8184
      %8209 = vmatprep.subr.bf16.mxu0 0
      %8210 = vmatpush1.bf16.msra.mxu0 0
      %8211 = vmatprep.subr.bf16.mxu0 0
      %8212 = vmatpush1.bf16.msra.mxu0 0
      %8213 = vmatprep.subr.bf16.mxu0 0
      %8214 = vmatpush1.bf16.msra.mxu0 0
      %8215 = vmatprep.subr.bf16.mxu0 0
      %8216 = vmatpush1.bf16.msra.mxu0 0
      %8217 = vmatprep.subr.bf16.mxu0 0
      %8218 = vmatpush1.bf16.msra.mxu0 0
      %8219 = vmatprep.subr.bf16.mxu0 0
      %8220 = vmatpush1.bf16.msra.mxu0 0
      %8221 = vmatprep.subr.bf16.mxu0 0
      %8222 = vmatpush1.bf16.msra.mxu0 0
      %8223 = vmatprep.subr.bf16.mxu0 0
      %8224 = vmatpush1.bf16.msra.mxu0 0
      %8225 = vmatprep.mubr.bf16.mxu0 0
      %8226 = vmatmul.mubr.bf16.gmra.mrb[0].mxu0 %v8143
      %v8227 = vpop.f32.mrb[0].mxu0
      %v8228 = vadd.f32 0.0, %v8227
      %v8229 = vpop.f32.mrb[0].mxu0
      %v8230 = vpop.f32.mrb[0].mxu0
      %v8231 = vpop.f32.mrb[0].mxu0
      %8232 = vdwg.mxu0
      %v8233 = vadd.f32 %v8125, %v8228
      %s8234 = scalar_lea.vmem %s6, 768
      %v8235 = vld [vmem:[%s8234] sm:$0xf]
      %v8236 = vld [vmem:[%s8234 + $0x4] sm:$0xf]
      %v8237 = vld [vmem:[%s8234 + $0x8] sm:$0xf]
      %v8238 = vld [vmem:[%s8234 + $0xc] sm:$0xf]
      %v8239 = vld [vmem:[%s8234 + $0x10] sm:$0xf]
      %v8240 = vld [vmem:[%s8234 + $0x14] sm:$0xf]
      %v8241 = vld [vmem:[%s8234 + $0x18] sm:$0xf]
      %v8242 = vld [vmem:[%s8234 + $0x1c] sm:$0xf]
      %v8243 = vld [vmem:[%s8234 + $0x20] sm:$0xf]
      %v8244 = vld [vmem:[%s8234 + $0x24] sm:$0xf]
      %v8245 = vld [vmem:[%s8234 + $0x28] sm:$0xf]
      %v8246 = vld [vmem:[%s8234 + $0x2c] sm:$0xf]
      %v8247 = vld [vmem:[%s8234 + $0x30] sm:$0xf]
      %v8248 = vld [vmem:[%s8234 + $0x34] sm:$0xf]
      %v8249 = vld [vmem:[%s8234 + $0x38] sm:$0xf]
      %v8250 = vld [vmem:[%s8234 + $0x3c] sm:$0xf]
      %v8251 = vrot.slane %v6939, 6
      %v8269 = vunpack.c.l.b16 %v8235
      %v8270 = vunpack.c.l.b16 %v8236
      %v8271 = vunpack.c.l.b16 %v8237
      %v8272 = vunpack.c.l.b16 %v8238
      %v8273 = vunpack.c.l.b16 %v8239
      %v8274 = vunpack.c.l.b16 %v8240
      %v8275 = vunpack.c.l.b16 %v8241
      %v8276 = vunpack.c.l.b16 %v8242
      %v8277 = vunpack.c.l.b16 %v8243
      %v8278 = vunpack.c.l.b16 %v8244
      %v8279 = vunpack.c.l.b16 %v8245
      %v8280 = vunpack.c.l.b16 %v8246
      %v8281 = vunpack.c.l.b16 %v8247
      %v8282 = vunpack.c.l.b16 %v8248
      %v8283 = vunpack.c.l.b16 %v8249
      %v8284 = vunpack.c.l.b16 %v8250
      %v8285 = vpack.c.b16 %v8270, %v8269
      %v8286 = vpack.c.b16 %v8272, %v8271
      %v8287 = vpack.c.b16 %v8274, %v8273
      %v8288 = vpack.c.b16 %v8276, %v8275
      %v8289 = vpack.c.b16 %v8278, %v8277
      %v8290 = vpack.c.b16 %v8280, %v8279
      %v8291 = vpack.c.b16 %v8282, %v8281
      %v8292 = vpack.c.b16 %v8284, %v8283
      %8301 = vmatprep.subr.bf16.mxu0 0
      %8302 = vmatpush1.bf16.msra.mxu0 %v8285
      %8303 = vmatprep.subr.bf16.mxu0 0
      %8304 = vmatpush1.bf16.msra.mxu0 %v8286
      %8305 = vmatprep.subr.bf16.mxu0 0
      %8306 = vmatpush1.bf16.msra.mxu0 %v8287
      %8307 = vmatprep.subr.bf16.mxu0 0
      %8308 = vmatpush1.bf16.msra.mxu0 %v8288
      %8309 = vmatprep.subr.bf16.mxu0 0
      %8310 = vmatpush1.bf16.msra.mxu0 %v8289
      %8311 = vmatprep.subr.bf16.mxu0 0
      %8312 = vmatpush1.bf16.msra.mxu0 %v8290
      %8313 = vmatprep.subr.bf16.mxu0 0
      %8314 = vmatpush1.bf16.msra.mxu0 %v8291
      %8315 = vmatprep.subr.bf16.mxu0 0
      %8316 = vmatpush1.bf16.msra.mxu0 %v8292
      %8317 = vmatprep.subr.bf16.mxu0 0
      %8318 = vmatpush1.bf16.msra.mxu0 0
      %8319 = vmatprep.subr.bf16.mxu0 0
      %8320 = vmatpush1.bf16.msra.mxu0 0
      %8321 = vmatprep.subr.bf16.mxu0 0
      %8322 = vmatpush1.bf16.msra.mxu0 0
      %8323 = vmatprep.subr.bf16.mxu0 0
      %8324 = vmatpush1.bf16.msra.mxu0 0
      %8325 = vmatprep.subr.bf16.mxu0 0
      %8326 = vmatpush1.bf16.msra.mxu0 0
      %8327 = vmatprep.subr.bf16.mxu0 0
      %8328 = vmatpush1.bf16.msra.mxu0 0
      %8329 = vmatprep.subr.bf16.mxu0 0
      %8330 = vmatpush1.bf16.msra.mxu0 0
      %8331 = vmatprep.subr.bf16.mxu0 0
      %8332 = vmatpush1.bf16.msra.mxu0 0
      %8333 = vmatprep.mubr.bf16.mxu0 0
      %8334 = vmatmul.mubr.bf16.gmra.mrb[0].mxu0 %v8251
      %v8335 = vpop.f32.mrb[0].mxu0
      %v8336 = vadd.f32 0.0, %v8335
      %v8337 = vpop.f32.mrb[0].mxu0
      %v8338 = vpop.f32.mrb[0].mxu0
      %v8339 = vpop.f32.mrb[0].mxu0
      %8340 = vdwg.mxu0
      %v8341 = vadd.f32 %v8233, %v8336
      %s8342 = scalar_lea.vmem %s6, 832
      %v8343 = vld [vmem:[%s8342] sm:$0xf]
      %v8344 = vld [vmem:[%s8342 + $0x4] sm:$0xf]
      %v8345 = vld [vmem:[%s8342 + $0x8] sm:$0xf]
      %v8346 = vld [vmem:[%s8342 + $0xc] sm:$0xf]
      %v8347 = vld [vmem:[%s8342 + $0x10] sm:$0xf]
      %v8348 = vld [vmem:[%s8342 + $0x14] sm:$0xf]
      %v8349 = vld [vmem:[%s8342 + $0x18] sm:$0xf]
      %v8350 = vld [vmem:[%s8342 + $0x1c] sm:$0xf]
      %v8351 = vld [vmem:[%s8342 + $0x20] sm:$0xf]
      %v8352 = vld [vmem:[%s8342 + $0x24] sm:$0xf]
      %v8353 = vld [vmem:[%s8342 + $0x28] sm:$0xf]
      %v8354 = vld [vmem:[%s8342 + $0x2c] sm:$0xf]
      %v8355 = vld [vmem:[%s8342 + $0x30] sm:$0xf]
      %v8356 = vld [vmem:[%s8342 + $0x34] sm:$0xf]
      %v8357 = vld [vmem:[%s8342 + $0x38] sm:$0xf]
      %v8358 = vld [vmem:[%s8342 + $0x3c] sm:$0xf]
      %v8359 = vrot.slane %v6974, 6
      %v8377 = vunpack.c.l.b16 %v8343
      %v8378 = vunpack.c.l.b16 %v8344
      %v8379 = vunpack.c.l.b16 %v8345
      %v8380 = vunpack.c.l.b16 %v8346
      %v8381 = vunpack.c.l.b16 %v8347
      %v8382 = vunpack.c.l.b16 %v8348
      %v8383 = vunpack.c.l.b16 %v8349
      %v8384 = vunpack.c.l.b16 %v8350
      %v8385 = vunpack.c.l.b16 %v8351
      %v8386 = vunpack.c.l.b16 %v8352
      %v8387 = vunpack.c.l.b16 %v8353
      %v8388 = vunpack.c.l.b16 %v8354
      %v8389 = vunpack.c.l.b16 %v8355
      %v8390 = vunpack.c.l.b16 %v8356
      %v8391 = vunpack.c.l.b16 %v8357
      %v8392 = vunpack.c.l.b16 %v8358
      %v8393 = vpack.c.b16 %v8378, %v8377
      %v8394 = vpack.c.b16 %v8380, %v8379
      %v8395 = vpack.c.b16 %v8382, %v8381
      %v8396 = vpack.c.b16 %v8384, %v8383
      %v8397 = vpack.c.b16 %v8386, %v8385
      %v8398 = vpack.c.b16 %v8388, %v8387
      %v8399 = vpack.c.b16 %v8390, %v8389
      %v8400 = vpack.c.b16 %v8392, %v8391
      %8409 = vmatprep.subr.bf16.mxu0 0
      %8410 = vmatpush1.bf16.msra.mxu0 %v8393
      %8411 = vmatprep.subr.bf16.mxu0 0
      %8412 = vmatpush1.bf16.msra.mxu0 %v8394
      %8413 = vmatprep.subr.bf16.mxu0 0
      %8414 = vmatpush1.bf16.msra.mxu0 %v8395
      %8415 = vmatprep.subr.bf16.mxu0 0
      %8416 = vmatpush1.bf16.msra.mxu0 %v8396
      %8417 = vmatprep.subr.bf16.mxu0 0
      %8418 = vmatpush1.bf16.msra.mxu0 %v8397
      %8419 = vmatprep.subr.bf16.mxu0 0
      %8420 = vmatpush1.bf16.msra.mxu0 %v8398
      %8421 = vmatprep.subr.bf16.mxu0 0
      %8422 = vmatpush1.bf16.msra.mxu0 %v8399
      %8423 = vmatprep.subr.bf16.mxu0 0
      %8424 = vmatpush1.bf16.msra.mxu0 %v8400
      %8425 = vmatprep.subr.bf16.mxu0 0
      %8426 = vmatpush1.bf16.msra.mxu0 0
      %8427 = vmatprep.subr.bf16.mxu0 0
      %8428 = vmatpush1.bf16.msra.mxu0 0
      %8429 = vmatprep.subr.bf16.mxu0 0
      %8430 = vmatpush1.bf16.msra.mxu0 0
      %8431 = vmatprep.subr.bf16.mxu0 0
      %8432 = vmatpush1.bf16.msra.mxu0 0
      %8433 = vmatprep.subr.bf16.mxu0 0
      %8434 = vmatpush1.bf16.msra.mxu0 0
      %8435 = vmatprep.subr.bf16.mxu0 0
      %8436 = vmatpush1.bf16.msra.mxu0 0
      %8437 = vmatprep.subr.bf16.mxu0 0
      %8438 = vmatpush1.bf16.msra.mxu0 0
      %8439 = vmatprep.subr.bf16.mxu0 0
      %8440 = vmatpush1.bf16.msra.mxu0 0
      %8441 = vmatprep.mubr.bf16.mxu0 0
      %8442 = vmatmul.mubr.bf16.gmra.mrb[0].mxu0 %v8359
      %v8443 = vpop.f32.mrb[0].mxu0
      %v8444 = vadd.f32 0.0, %v8443
      %v8445 = vpop.f32.mrb[0].mxu0
      %v8446 = vpop.f32.mrb[0].mxu0
      %v8447 = vpop.f32.mrb[0].mxu0
      %8448 = vdwg.mxu0
      %v8449 = vadd.f32 %v8341, %v8444
      %s8450 = scalar_lea.vmem %s6, 896
      %v8451 = vld [vmem:[%s8450] sm:$0xf]
      %v8452 = vld [vmem:[%s8450 + $0x4] sm:$0xf]
      %v8453 = vld [vmem:[%s8450 + $0x8] sm:$0xf]
      %v8454 = vld [vmem:[%s8450 + $0xc] sm:$0xf]
      %v8455 = vld [vmem:[%s8450 + $0x10] sm:$0xf]
      %v8456 = vld [vmem:[%s8450 + $0x14] sm:$0xf]
      %v8457 = vld [vmem:[%s8450 + $0x18] sm:$0xf]
      %v8458 = vld [vmem:[%s8450 + $0x1c] sm:$0xf]
      %v8459 = vld [vmem:[%s8450 + $0x20] sm:$0xf]
      %v8460 = vld [vmem:[%s8450 + $0x24] sm:$0xf]
      %v8461 = vld [vmem:[%s8450 + $0x28] sm:$0xf]
      %v8462 = vld [vmem:[%s8450 + $0x2c] sm:$0xf]
      %v8463 = vld [vmem:[%s8450 + $0x30] sm:$0xf]
      %v8464 = vld [vmem:[%s8450 + $0x34] sm:$0xf]
      %v8465 = vld [vmem:[%s8450 + $0x38] sm:$0xf]
      %v8466 = vld [vmem:[%s8450 + $0x3c] sm:$0xf]
      %v8467 = vrot.slane %v6939, 7
      %v8485 = vunpack.c.l.b16 %v8451
      %v8486 = vunpack.c.l.b16 %v8452
      %v8487 = vunpack.c.l.b16 %v8453
      %v8488 = vunpack.c.l.b16 %v8454
      %v8489 = vunpack.c.l.b16 %v8455
      %v8490 = vunpack.c.l.b16 %v8456
      %v8491 = vunpack.c.l.b16 %v8457
      %v8492 = vunpack.c.l.b16 %v8458
      %v8493 = vunpack.c.l.b16 %v8459
      %v8494 = vunpack.c.l.b16 %v8460
      %v8495 = vunpack.c.l.b16 %v8461
      %v8496 = vunpack.c.l.b16 %v8462
      %v8497 = vunpack.c.l.b16 %v8463
      %v8498 = vunpack.c.l.b16 %v8464
      %v8499 = vunpack.c.l.b16 %v8465
      %v8500 = vunpack.c.l.b16 %v8466
      %v8501 = vpack.c.b16 %v8486, %v8485
      %v8502 = vpack.c.b16 %v8488, %v8487
      %v8503 = vpack.c.b16 %v8490, %v8489
      %v8504 = vpack.c.b16 %v8492, %v8491
      %v8505 = vpack.c.b16 %v8494, %v8493
      %v8506 = vpack.c.b16 %v8496, %v8495
      %v8507 = vpack.c.b16 %v8498, %v8497
      %v8508 = vpack.c.b16 %v8500, %v8499
      %8517 = vmatprep.subr.bf16.mxu0 0
      %8518 = vmatpush1.bf16.msra.mxu0 %v8501
      %8519 = vmatprep.subr.bf16.mxu0 0
      %8520 = vmatpush1.bf16.msra.mxu0 %v8502
      %8521 = vmatprep.subr.bf16.mxu0 0
      %8522 = vmatpush1.bf16.msra.mxu0 %v8503
      %8523 = vmatprep.subr.bf16.mxu0 0
      %8524 = vmatpush1.bf16.msra.mxu0 %v8504
      %8525 = vmatprep.subr.bf16.mxu0 0
      %8526 = vmatpush1.bf16.msra.mxu0 %v8505
      %8527 = vmatprep.subr.bf16.mxu0 0
      %8528 = vmatpush1.bf16.msra.mxu0 %v8506
      %8529 = vmatprep.subr.bf16.mxu0 0
      %8530 = vmatpush1.bf16.msra.mxu0 %v8507
      %8531 = vmatprep.subr.bf16.mxu0 0
      %8532 = vmatpush1.bf16.msra.mxu0 %v8508
      %8533 = vmatprep.subr.bf16.mxu0 0
      %8534 = vmatpush1.bf16.msra.mxu0 0
      %8535 = vmatprep.subr.bf16.mxu0 0
      %8536 = vmatpush1.bf16.msra.mxu0 0
      %8537 = vmatprep.subr.bf16.mxu0 0
      %8538 = vmatpush1.bf16.msra.mxu0 0
      %8539 = vmatprep.subr.bf16.mxu0 0
      %8540 = vmatpush1.bf16.msra.mxu0 0
      %8541 = vmatprep.subr.bf16.mxu0 0
      %8542 = vmatpush1.bf16.msra.mxu0 0
      %8543 = vmatprep.subr.bf16.mxu0 0
      %8544 = vmatpush1.bf16.msra.mxu0 0
      %8545 = vmatprep.subr.bf16.mxu0 0
      %8546 = vmatpush1.bf16.msra.mxu0 0
      %8547 = vmatprep.subr.bf16.mxu0 0
      %8548 = vmatpush1.bf16.msra.mxu0 0
      %8549 = vmatprep.mubr.bf16.mxu0 0
      %8550 = vmatmul.mubr.bf16.gmra.mrb[0].mxu0 %v8467
      %v8551 = vpop.f32.mrb[0].mxu0
      %v8552 = vadd.f32 0.0, %v8551
      %v8553 = vpop.f32.mrb[0].mxu0
      %v8554 = vpop.f32.mrb[0].mxu0
      %v8555 = vpop.f32.mrb[0].mxu0
      %8556 = vdwg.mxu0
      %v8557 = vadd.f32 %v8449, %v8552
      %s8558 = scalar_lea.vmem %s6, 960
      %v8559 = vld [vmem:[%s8558] sm:$0xf]
      %v8560 = vld [vmem:[%s8558 + $0x4] sm:$0xf]
      %v8561 = vld [vmem:[%s8558 + $0x8] sm:$0xf]
      %v8562 = vld [vmem:[%s8558 + $0xc] sm:$0xf]
      %v8563 = vld [vmem:[%s8558 + $0x10] sm:$0xf]
      %v8564 = vld [vmem:[%s8558 + $0x14] sm:$0xf]
      %v8565 = vld [vmem:[%s8558 + $0x18] sm:$0xf]
      %v8566 = vld [vmem:[%s8558 + $0x1c] sm:$0xf]
      %v8567 = vld [vmem:[%s8558 + $0x20] sm:$0xf]
      %v8568 = vld [vmem:[%s8558 + $0x24] sm:$0xf]
      %v8569 = vld [vmem:[%s8558 + $0x28] sm:$0xf]
      %v8570 = vld [vmem:[%s8558 + $0x2c] sm:$0xf]
      %v8571 = vld [vmem:[%s8558 + $0x30] sm:$0xf]
      %v8572 = vld [vmem:[%s8558 + $0x34] sm:$0xf]
      %v8573 = vld [vmem:[%s8558 + $0x38] sm:$0xf]
      %v8574 = vld [vmem:[%s8558 + $0x3c] sm:$0xf]
      %v8575 = vrot.slane %v6974, 7
      %v8593 = vunpack.c.l.b16 %v8559
      %v8594 = vunpack.c.l.b16 %v8560
      %v8595 = vunpack.c.l.b16 %v8561
      %v8596 = vunpack.c.l.b16 %v8562
      %v8597 = vunpack.c.l.b16 %v8563
      %v8598 = vunpack.c.l.b16 %v8564
      %v8599 = vunpack.c.l.b16 %v8565
      %v8600 = vunpack.c.l.b16 %v8566
      %v8601 = vunpack.c.l.b16 %v8567
      %v8602 = vunpack.c.l.b16 %v8568
      %v8603 = vunpack.c.l.b16 %v8569
      %v8604 = vunpack.c.l.b16 %v8570
      %v8605 = vunpack.c.l.b16 %v8571
      %v8606 = vunpack.c.l.b16 %v8572
      %v8607 = vunpack.c.l.b16 %v8573
      %v8608 = vunpack.c.l.b16 %v8574
      %v8609 = vpack.c.b16 %v8594, %v8593
      %v8610 = vpack.c.b16 %v8596, %v8595
      %v8611 = vpack.c.b16 %v8598, %v8597
      %v8612 = vpack.c.b16 %v8600, %v8599
      %v8613 = vpack.c.b16 %v8602, %v8601
      %v8614 = vpack.c.b16 %v8604, %v8603
      %v8615 = vpack.c.b16 %v8606, %v8605
      %v8616 = vpack.c.b16 %v8608, %v8607
      %8625 = vmatprep.subr.bf16.mxu0 0
      %8626 = vmatpush1.bf16.msra.mxu0 %v8609
      %8627 = vmatprep.subr.bf16.mxu0 0
      %8628 = vmatpush1.bf16.msra.mxu0 %v8610
      %8629 = vmatprep.subr.bf16.mxu0 0
      %8630 = vmatpush1.bf16.msra.mxu0 %v8611
      %8631 = vmatprep.subr.bf16.mxu0 0
      %8632 = vmatpush1.bf16.msra.mxu0 %v8612
      %8633 = vmatprep.subr.bf16.mxu0 0
      %8634 = vmatpush1.bf16.msra.mxu0 %v8613
      %8635 = vmatprep.subr.bf16.mxu0 0
      %8636 = vmatpush1.bf16.msra.mxu0 %v8614
      %8637 = vmatprep.subr.bf16.mxu0 0
      %8638 = vmatpush1.bf16.msra.mxu0 %v8615
      %8639 = vmatprep.subr.bf16.mxu0 0
      %8640 = vmatpush1.bf16.msra.mxu0 %v8616
      %8641 = vmatprep.subr.bf16.mxu0 0
      %8642 = vmatpush1.bf16.msra.mxu0 0
      %8643 = vmatprep.subr.bf16.mxu0 0
      %8644 = vmatpush1.bf16.msra.mxu0 0
      %8645 = vmatprep.subr.bf16.mxu0 0
      %8646 = vmatpush1.bf16.msra.mxu0 0
      %8647 = vmatprep.subr.bf16.mxu0 0
      %8648 = vmatpush1.bf16.msra.mxu0 0
      %8649 = vmatprep.subr.bf16.mxu0 0
      %8650 = vmatpush1.bf16.msra.mxu0 0
      %8651 = vmatprep.subr.bf16.mxu0 0
      %8652 = vmatpush1.bf16.msra.mxu0 0
      %8653 = vmatprep.subr.bf16.mxu0 0
      %8654 = vmatpush1.bf16.msra.mxu0 0
      %8655 = vmatprep.subr.bf16.mxu0 0
      %8656 = vmatpush1.bf16.msra.mxu0 0
      %8657 = vmatprep.mubr.bf16.mxu0 0
      %8658 = vmatmul.mubr.bf16.gmra.mrb[0].mxu0 %v8575
      %v8659 = vpop.f32.mrb[0].mxu0
      %v8660 = vadd.f32 0.0, %v8659
      %v8661 = vpop.f32.mrb[0].mxu0
      %v8662 = vpop.f32.mrb[0].mxu0
      %v8663 = vpop.f32.mrb[0].mxu0
      %8664 = vdwg.mxu0
      %v8665 = vadd.f32 %v8557, %v8660
      %v8666 = vld [vmem:[%s7] sm:$0x1]
      %v8667 = vadd.f32 %v8665, %v8666
      %v8668 = vmax.f32 %v8667, 0.0
      %v8669 = vpack.c.bf16 %v8668, %v8668
      %v8670 = vld [vmem:[%s8] sm:$0xf]
      %v8671 = vld [vmem:[%s8 + $0x4] sm:$0xf]
      %v8672 = vld [vmem:[%s8 + $0x8] sm:$0xf]
      %v8673 = vld [vmem:[%s8 + $0xc] sm:$0xf]
      %v8674 = vld [vmem:[%s8 + $0x10] sm:$0xf]
      %v8675 = vld [vmem:[%s8 + $0x14] sm:$0xf]
      %v8676 = vld [vmem:[%s8 + $0x18] sm:$0xf]
      %v8677 = vld [vmem:[%s8 + $0x1c] sm:$0xf]
      %v8678 = vld [vmem:[%s8 + $0x20] sm:$0xf]
      %v8679 = vld [vmem:[%s8 + $0x24] sm:$0xf]
      %v8680 = vld [vmem:[%s8 + $0x28] sm:$0xf]
      %v8681 = vld [vmem:[%s8 + $0x2c] sm:$0xf]
      %v8682 = vld [vmem:[%s8 + $0x30] sm:$0xf]
      %v8683 = vld [vmem:[%s8 + $0x34] sm:$0xf]
      %v8684 = vld [vmem:[%s8 + $0x38] sm:$0xf]
      %v8685 = vld [vmem:[%s8 + $0x3c] sm:$0xf]
      %v8686 = vld [vmem:[%s9] sm:$0x1]
      %v8703 = vunpack.c.l.b16 %v8670
      %v8704 = vunpack.c.l.b16 %v8671
      %v8705 = vunpack.c.l.b16 %v8672
      %v8706 = vunpack.c.l.b16 %v8673
      %v8707 = vunpack.c.l.b16 %v8674
      %v8708 = vunpack.c.l.b16 %v8675
      %v8709 = vunpack.c.l.b16 %v8676
      %v8710 = vunpack.c.l.b16 %v8677
      %v8711 = vunpack.c.l.b16 %v8678
      %v8712 = vunpack.c.l.b16 %v8679
      %v8713 = vunpack.c.l.b16 %v8680
      %v8714 = vunpack.c.l.b16 %v8681
      %v8715 = vunpack.c.l.b16 %v8682
      %v8716 = vunpack.c.l.b16 %v8683
      %v8717 = vunpack.c.l.b16 %v8684
      %v8718 = vunpack.c.l.b16 %v8685
      %v8719 = vpack.c.b16 %v8704, %v8703
      %v8720 = vpack.c.b16 %v8706, %v8705
      %v8721 = vpack.c.b16 %v8708, %v8707
      %v8722 = vpack.c.b16 %v8710, %v8709
      %v8723 = vpack.c.b16 %v8712, %v8711
      %v8724 = vpack.c.b16 %v8714, %v8713
      %v8725 = vpack.c.b16 %v8716, %v8715
      %v8726 = vpack.c.b16 %v8718, %v8717
      %8735 = vmatprep.subr.bf16.mxu0 0
      %8736 = vmatpush1.bf16.msra.mxu0 %v8719
      %8737 = vmatprep.subr.bf16.mxu0 0
      %8738 = vmatpush1.bf16.msra.mxu0 %v8720
      %8739 = vmatprep.subr.bf16.mxu0 0
      %8740 = vmatpush1.bf16.msra.mxu0 %v8721
      %8741 = vmatprep.subr.bf16.mxu0 0
      %8742 = vmatpush1.bf16.msra.mxu0 %v8722
      %8743 = vmatprep.subr.bf16.mxu0 0
      %8744 = vmatpush1.bf16.msra.mxu0 %v8723
      %8745 = vmatprep.subr.bf16.mxu0 0
      %8746 = vmatpush1.bf16.msra.mxu0 %v8724
      %8747 = vmatprep.subr.bf16.mxu0 0
      %8748 = vmatpush1.bf16.msra.mxu0 %v8725
      %8749 = vmatprep.subr.bf16.mxu0 0
      %8750 = vmatpush1.bf16.msra.mxu0 %v8726
      %8751 = vmatprep.subr.bf16.mxu0 0
      %8752 = vmatpush1.bf16.msra.mxu0 0
      %8753 = vmatprep.subr.bf16.mxu0 0
      %8754 = vmatpush1.bf16.msra.mxu0 0
      %8755 = vmatprep.subr.bf16.mxu0 0
      %8756 = vmatpush1.bf16.msra.mxu0 0
      %8757 = vmatprep.subr.bf16.mxu0 0
      %8758 = vmatpush1.bf16.msra.mxu0 0
      %8759 = vmatprep.subr.bf16.mxu0 0
      %8760 = vmatpush1.bf16.msra.mxu0 0
      %8761 = vmatprep.subr.bf16.mxu0 0
      %8762 = vmatpush1.bf16.msra.mxu0 0
      %8763 = vmatprep.subr.bf16.mxu0 0
      %8764 = vmatpush1.bf16.msra.mxu0 0
      %8765 = vmatprep.subr.bf16.mxu0 0
      %8766 = vmatpush1.bf16.msra.mxu0 0
      %8767 = vmatprep.mubr.bf16.mxu0 0
      %8768 = vmatmul.mubr.bf16.gmra.mrb[0].mxu0 %v8669
      %v8769 = vpop.f32.mrb[0].mxu0
      %v8770 = vadd.f32 %v8686, %v8769
      %v8771 = vpop.f32.mrb[0].mxu0
      %v8772 = vpop.f32.mrb[0].mxu0
      %v8773 = vpop.f32.mrb[0].mxu0
      %8774 = vdwg.mxu0
      %v8775 = vlaneseq
      %v8776 = vand.u32 %v8775, 127
      %vm8777 = vcmp.lt.s32.totalorder %v8776, 10
      %v8778 = vsel %vm8777, %v8770, -inf
      %vm8779 = vcmask 1040384
      %v8780 = vsel %vm8779, %v8778, -inf
      %8781 = vmax.xlane.f32.xlu0 %v8780
      %v8782 = vpop.xlane.xlu0 %8781
      %v8783 = vsub.f32 %v8770, %v8782
      %v8784 = vmul.f32 %v8783, 1.442695
      %v8785 = vpow.pop %v8784
      %v8786 = vsel %vm8777, %v8785, 0.0
      %v8787 = vsel %vm8779, %v8786, 0.0
      %8788 = vadd.xlane.f32.xlu0 %v8787
      %v8789 = vpop.xlane.xlu0 %8788
      %v8790 = vlog2.pop %v8789
      %v8791 = vmul.f32 %v8790, 0.6931472
      %v8792 = vsub.f32 %v8783, %v8791
      %v8793 = vsel %vm8777, %v8792, 0.0
      %8794 = vst [vmem:[%s355] sm:$0x1] %v8793
      %p8795 = scmp.lt.s32.totalorder %s21, 1
      %s8796 = scalar_select %p8795, %s21, 1
      %s8797 = scalar_lea.vmem %s10, %s8796
      // Predicated region
      $region61: #{net_forward.1} parent=59 // pred_check
        %p8798 = pneg %p254
      $region62: #{net_forward.1} parent=59 // pred_check_branch
        %8800 = sbr.rel (%p8798) target = $region64
      $region63: #{net_forward.1} parent=59 // pred_region
        _
      $region64: #{net_forward.1} parent=59 // pred_fallthru
        _
    $region60: #{net_forward.1} parent=5 // pred_fallthru
      _
    %p8801 = scmp.le.s32.totalorder 2, %s16
    // Predicated region
    $region65: #{net_forward.1} parent=5 // pred_check
      %p8802 = pneg %p8801
    $region66: #{net_forward.1} parent=5 // pred_check_branch
      %8804 = sbr.rel (%p8802) target = $region68
    $region67: #{net_forward.1} parent=5 // pred_region
      %s8805 = ssub.s32 %s16, 2
      // Predicated region
      $region69: #{net_forward.1} parent=67 // pred_check
        %p8806 = pneg %p260
      $region70: #{net_forward.1} parent=67 // pred_check_branch
        %8808 = sbr.rel (%p8806) target = $region72
      $region71: #{net_forward.1} parent=67 // pred_region
        %p8809 = scmp.lt.s32.totalorder %s22, 1
        %s8810 = scalar_select %p8809, %s22, 1
        %s8811 = scalar_lea.vmem %s10, %s8810
      $region72: #{net_forward.1} parent=67 // pred_fallthru
        _
    $region68: #{net_forward.1} parent=5 // pred_fallthru
      _
  $region6: #{net_forward.1} parent=0 // loop_footer
    %s20 = sadd.s32 1, %s16
  $region7: #{net_forward.1} parent=0 // loop_footer_branch
    %15 = sbr.rel target = $region3
  $region8: #{net_forward.1} parent=0 // loop_exit
    _

</llo_original>
